<compile_context>
chip_gen: v7x
topology: tpu7x:2x2x1
jax: 0.10.0
libtpu: 0.0.40
codegen_flags: <defaults>
</compile_context>

<pallas_src>
import jax
import jax.numpy as jnp
from jax.experimental import pallas as pl
from jax.experimental.pallas import tpu as pltpu


def _round_up(x, m):
    return ((x + m - 1) // m) * m


def _row_block(H, W, max_flat_rows=128):
    """Largest even divisor of H whose flat row count (rb*W) stays small."""
    rb = H
    for cand in range(2, H + 1, 2):
        if H % cand == 0 and cand * W <= max_flat_rows:
            rb = cand
    return rb


# ----------------------------------------------------------------------------
# Kernel 1: fused 3x3 conv (pad=1, stride=1, no bias) + BatchNorm (batch stats)
#           + ReLU + 2x2 MaxPool for one image, one Cout tile per grid step.
# ----------------------------------------------------------------------------
def conv_bn_relu_pool_kernel(x_ref, w_ref, gamma_ref, beta_ref, o_ref, conv_ref):
    # x_ref:     (H+2, W+2, Cin)   zero-padded input, HWC, bf16
    # w_ref:     (9, Cin, TC)      3x3 taps (ky*3+kx) for this Cout tile, bf16
    # gamma/beta:(1, TC)           f32
    # o_ref:     (H//2, W//2, TC)  bf16
    # conv_ref:  (H*W, TC)         f32 VMEM scratch holding the conv output
    Hp2, Wp2, Cin = x_ref.shape
    H, W = Hp2 - 2, Wp2 - 2
    TC = o_ref.shape[2]
    HW = H * W

    RB = _row_block(H, W)          # image rows per block (even, divides H)
    n_blocks = H // RB

    s1 = jnp.zeros((1, TC), jnp.float32)   # per-channel sum
    s2 = jnp.zeros((1, TC), jnp.float32)   # per-channel sum of squares

    # ---- Pass 1: conv in row blocks -> VMEM scratch, accumulate BN stats ----
    for rb in range(n_blocks):
        r0 = rb * RB
        acc = jnp.zeros((RB * W, TC), jnp.float32)
        for dx in range(3):
            # One dx-shifted slab, reused for all 3 dy taps (leading-dim slices).
            col = x_ref[r0:r0 + RB + 2, dx:dx + W, :].reshape((RB + 2) * W, Cin)
            for dy in range(3):
                acc = acc + jnp.dot(col[dy * W:dy * W + RB * W],
                                    w_ref[dy * 3 + dx],
                                    preferred_element_type=jnp.float32)
        conv_ref[r0 * W:(r0 + RB) * W, :] = acc
        s1 = s1 + jnp.sum(acc, axis=0, keepdims=True)
        s2 = s2 + jnp.sum(acc * acc, axis=0, keepdims=True)

    # BatchNorm2d (training mode, N=1): biased variance over H*W, f32 stats.
    mean = s1 / HW
    var = s2 / HW - mean * mean
    scale = gamma_ref[...] * jax.lax.rsqrt(var + 1e-5)
    shift = beta_ref[...] - mean * scale

    # ---- Pass 2: normalize + ReLU + 2x2 max-pool, row block at a time -------
    for rb in range(n_blocks):
        r0 = rb * RB
        y = conv_ref[r0 * W:(r0 + RB) * W, :] * scale + shift
        y = jnp.maximum(y, 0.0)
        y = y.reshape(RB, W, TC)
        y = jnp.max(y.reshape(RB, W // 2, 2, TC), axis=2)       # pool along W
        y = jnp.max(y.reshape(RB // 2, 2, W // 2, TC), axis=1)  # pool along H
        o_ref[r0 // 2:(r0 + RB) // 2, :, :] = y.astype(o_ref.dtype)


# ----------------------------------------------------------------------------
# Kernel 2: fc1 (F-tiled reduction) -> fc2 -> softmax, fused at the last step.
# ----------------------------------------------------------------------------
def mlp_softmax_kernel(x_ref, w1_ref, b1_ref, w2_ref, b2_ref, o_ref, h_ref):
    # x_ref: (1, TF) bf16; w1_ref: (TF, M_pad) bf16; b1_ref: (1, M_pad) f32
    # w2_ref: (M_pad, V) f32; b2_ref: (1, V) f32; o_ref: (1, V) f32
    # h_ref: (1, M_pad) f32 VMEM accumulator for the fc1 partial products.
    f = pl.program_id(0)

    @pl.when(f == 0)
    def _():
        h_ref[...] = jnp.zeros_like(h_ref)

    h_ref[...] += jnp.dot(x_ref[...], w1_ref[...],
                          preferred_element_type=jnp.float32)

    @pl.when(f == pl.num_programs(0) - 1)
    def _():
        h = h_ref[...] + b1_ref[...]
        logits = jnp.dot(h, w2_ref[...],
                         preferred_element_type=jnp.float32) + b2_ref[...]
        m = jnp.max(logits, axis=-1, keepdims=True)
        e = jnp.exp(logits - m)
        denom = jnp.sum(e, axis=-1, keepdims=True)
        o_ref[...] = e * pl.reciprocal(denom, approx=True)


# ----------------------------------------------------------------------------
# Wrappers
# ----------------------------------------------------------------------------
def conv_block(x_hwc, w9, gamma, beta):
    H, W, Cin = x_hwc.shape
    Cout = w9.shape[-1]
    tc = 128 if Cout % 128 == 0 else Cout           # Cout tile (lane-dense at real sizes)
    x_pad = jnp.pad(x_hwc, ((1, 1), (1, 1), (0, 0)))

    flops = 2 * H * W * 9 * Cin * Cout
    bytes_accessed = (x_pad.size * 2 + w9.size * 2 + (gamma.size + beta.size) * 4
                      + (H // 2) * (W // 2) * Cout * 2)

    return pl.pallas_call(
        conv_bn_relu_pool_kernel,
        out_shape=jax.ShapeDtypeStruct((H // 2, W // 2, Cout), jnp.bfloat16),
        grid_spec=pltpu.PrefetchScalarGridSpec(
            num_scalar_prefetch=0,
            grid=(Cout // tc,),
            in_specs=[
                pl.BlockSpec((H + 2, W + 2, Cin), lambda j: (0, 0, 0)),
                pl.BlockSpec((9, Cin, tc), lambda j: (0, 0, j)),
                pl.BlockSpec((1, tc), lambda j: (0, j)),
                pl.BlockSpec((1, tc), lambda j: (0, j)),
            ],
            out_specs=pl.BlockSpec((H // 2, W // 2, tc), lambda j: (0, 0, j)),
            scratch_shapes=[pltpu.VMEM((H * W, tc), jnp.float32)],
        ),
        compiler_params=pltpu.CompilerParams(
            dimension_semantics=("parallel",),
            vmem_limit_bytes=32 * 1024 * 1024),
        cost_estimate=pl.CostEstimate(flops=flops, transcendentals=0,
                                      bytes_accessed=bytes_accessed),
    )(x_pad, w9, gamma, beta)


def mlp_softmax(flat, fc1_w, fc1_b, fc2_w, fc2_b, f_tile):
    f_pad, m_pad = fc1_w.shape
    V = fc2_w.shape[-1]
    flops = 2 * f_pad * m_pad + 2 * m_pad * V
    bytes_accessed = (flat.size * 2 + fc1_w.size * 2
                      + (fc1_b.size + fc2_w.size + fc2_b.size + V) * 4)

    return pl.pallas_call(
        mlp_softmax_kernel,
        out_shape=jax.ShapeDtypeStruct((1, V), jnp.float32),
        grid_spec=pltpu.PrefetchScalarGridSpec(
            num_scalar_prefetch=0,
            grid=(f_pad // f_tile,),
            in_specs=[
                pl.BlockSpec((1, f_tile), lambda f: (0, f)),
                pl.BlockSpec((f_tile, m_pad), lambda f: (f, 0)),
                pl.BlockSpec((1, m_pad), lambda f: (0, 0)),
                pl.BlockSpec((m_pad, V), lambda f: (0, 0)),
                pl.BlockSpec((1, V), lambda f: (0, 0)),
            ],
            out_specs=pl.BlockSpec((1, V), lambda f: (0, 0)),
            scratch_shapes=[pltpu.VMEM((1, m_pad), jnp.float32)],
        ),
        compiler_params=pltpu.CompilerParams(
            dimension_semantics=("arbitrary",),
            vmem_limit_bytes=32 * 1024 * 1024),
        cost_estimate=pl.CostEstimate(flops=flops, transcendentals=2 * V,
                                      bytes_accessed=bytes_accessed),
    )(flat, fc1_w, fc1_b, fc2_w, fc2_b)


def netd_forward(x_nchw, params, f_tile):
    """x_nchw: (1, embedding_dim, max_size, max_size) -> (TGT_VOCAB_SIZE,)"""
    # NCHW -> HWC, bf16 for the MXU (x.view(-1) before fc1 implies N == 1).
    x = jnp.transpose(x_nchw[0], (1, 2, 0)).astype(jnp.bfloat16)
    x = conv_block(x, params["w1"], params["g1"], params["bt1"])   # (H/2, W/2, 2ed)
    x = conv_block(x, params["w2"], params["g2"], params["bt2"])   # (H/4, W/4, 3ed)
    # HWC flatten: fc1_w rows were permuted offline to HWC order, so this is
    # exactly torch's view(-1) on NCHW with no runtime transpose.
    flat = x.reshape(1, -1)
    f_pad = params["fc1_w"].shape[0]
    if f_pad != flat.shape[1]:
        flat = jnp.pad(flat, ((0, 0), (0, f_pad - flat.shape[1])))
    out = mlp_softmax(flat, params["fc1_w"], params["fc1_b"],
                      params["fc2_w"], params["fc2_b"], f_tile)
    return out[0]                                                  # 1-D, like torch


# ----------------------------------------------------------------------------
# Parameters (torch layouts -> kernel layouts) and a pure-JAX f32 reference.
# ----------------------------------------------------------------------------
def init_params(key, ed, max_size, vocab_size, f_tile):
    """Returns (kernel_params, torch_params).  Kernel layouts: conv taps
    (9, Cin, Cout) bf16; fc1 (F_pad, M_pad) bf16 with input rows permuted to
    HWC flatten order; fc2 (M_pad, V) f32."""
    ks = jax.random.split(key, 6)
    c1, c2, c3 = ed, 2 * ed, 3 * ed
    h2 = w2d = max_size // 4
    feat = c3 * h2 * w2d
    m_pad = _round_up(max_size, 128)
    f_pad = _round_up(feat, f_tile)

    wc1 = jax.random.normal(ks[0], (c2, c1, 3, 3), jnp.float32) * 0.05  # torch (Cout,Cin,kh,kw)
    wc2 = jax.random.normal(ks[1], (c3, c2, 3, 3), jnp.float32) * 0.05
    fc1_w = jax.random.normal(ks[2], (max_size, feat), jnp.float32) * 0.05  # torch (out, in=(c,h,w))
    fc1_b = jax.random.normal(ks[3], (max_size,), jnp.float32) * 0.05
    fc2_w = jax.random.normal(ks[4], (vocab_size, max_size), jnp.float32) * 0.05
    fc2_b = jax.random.normal(ks[5], (vocab_size,), jnp.float32) * 0.05

    def taps(w):  # (Cout, Cin, 3, 3) -> (9, Cin, Cout), tap index = ky*3 + kx
        return jnp.transpose(w, (2, 3, 1, 0)).reshape(
            9, w.shape[1], w.shape[0]).astype(jnp.bfloat16)

    # Permute fc1's input dim from torch (c,h,w) order to HWC (h,w,c) order,
    # transpose to (F, M), zero-pad to (F_pad, M_pad) (padding is a no-op).
    w1 = fc1_w.reshape(max_size, c3, h2, w2d)
    w1 = jnp.transpose(w1, (0, 2, 3, 1)).reshape(max_size, feat).T
    w1 = jnp.pad(w1, ((0, f_pad - feat), (0, m_pad - max_size))).astype(jnp.bfloat16)
    b1 = jnp.pad(fc1_b, (0, m_pad - max_size)).reshape(1, m_pad)
    w2f = jnp.pad(fc2_w.T, ((0, m_pad - max_size), (0, 0)))   # (M_pad, V) f32
    b2 = fc2_b.reshape(1, -1)

    kernel_params = dict(
        w1=taps(wc1), g1=jnp.ones((1, c2), jnp.float32), bt1=jnp.zeros((1, c2), jnp.float32),
        w2=taps(wc2), g2=jnp.ones((1, c3), jnp.float32), bt2=jnp.zeros((1, c3), jnp.float32),
        fc1_w=w1, fc1_b=b1, fc2_w=w2f, fc2_b=b2,
    )
    torch_params = dict(wc1=wc1, wc2=wc2, fc1_w=fc1_w, fc1_b=fc1_b,
                        fc2_w=fc2_w, fc2_b=fc2_b)
    return kernel_params, torch_params


def netd_reference(x_nchw, tp):
    """Pure-JAX f32 reference of the torch module (training-mode BN, N=1)."""
    def conv3x3(x, w):
        return jax.lax.conv_general_dilated(
            x, w, window_strides=(1, 1), padding=((1, 1), (1, 1)),
            dimension_numbers=("NCHW", "OIHW", "NCHW"))

    def bn(x):  # gamma=1, beta=0, biased batch variance, eps=1e-5
        mean = jnp.mean(x, axis=(0, 2, 3), keepdims=True)
        var = jnp.var(x, axis=(0, 2, 3), keepdims=True)
        return (x - mean) * jax.lax.rsqrt(var + 1e-5)

    def pool(x):  # MaxPool2d(2)
        n, c, h, w = x.shape
        return jnp.max(x.reshape(n, c, h // 2, 2, w // 2, 2), axis=(3, 5))

    h = pool(jnp.maximum(bn(conv3x3(x_nchw, tp["wc1"])), 0.0))
    h = pool(jnp.maximum(bn(conv3x3(h, tp["wc2"])), 0.0))
    flat = h.reshape(-1)                                    # NCHW .view(-1), N=1
    h1 = tp["fc1_w"] @ flat + tp["fc1_b"]
    logits = tp["fc2_w"] @ h1 + tp["fc2_b"]
    return jax.nn.softmax(logits)


if __name__ == "__main__":
    # Small, module-consistent shapes (embedding_dim=256 in the original;
    # scaled down so the demo runs fast). max_size must be divisible by 4.
    EMBEDDING_DIM = 8
    MAX_SIZE = 16
    TGT_VOCAB_SIZE = 16

    key = jax.random.PRNGKey(0)
    k_x, k_p = jax.random.split(key)
    x = jax.random.normal(k_x, (1, EMBEDDING_DIM, MAX_SIZE, MAX_SIZE), jnp.float32)

    feat = 3 * EMBEDDING_DIM * (MAX_SIZE // 4) ** 2
    f_tile = 512 if feat >= 2048 else 128          # fc1 reduction tile (lane-dense)
    params, torch_params = init_params(k_p, EMBEDDING_DIM, MAX_SIZE,
                                       TGT_VOCAB_SIZE, f_tile)

    fwd = jax.jit(lambda xx: netd_forward(xx, params, f_tile))
    out = jax.block_until_ready(fwd(x))

    ref = jax.block_until_ready(jax.jit(lambda xx: netd_reference(xx, torch_params))(x))

    assert out.shape == (TGT_VOCAB_SIZE,), out.shape
    assert jnp.isfinite(out).all()
    assert abs(float(jnp.sum(out)) - 1.0) < 5e-3            # softmax output
    max_err = float(jnp.max(jnp.abs(out - ref)))
    assert max_err < 2e-2, f"mismatch vs reference: {max_err}"
    print("KERNEL_OK")
</pallas_src>

<mosaic_0001>
module attributes {stable_mosaic.version = 11 : i64} {
  func.func @conv_bn_relu_pool_kernel(%arg0: i32, %arg1: memref<18x18x8xbf16, #tpu.memory_space<vmem>>, %arg2: memref<9x8x16xbf16, #tpu.memory_space<vmem>>, %arg3: memref<1x16xf32, #tpu.memory_space<vmem>>, %arg4: memref<1x16xf32, #tpu.memory_space<vmem>>, %arg5: memref<8x8x16xbf16, #tpu.memory_space<vmem>>, %arg6: memref<256x16xf32, #tpu.memory_space<vmem>>) attributes {dimension_semantics = [#tpu.dimension_semantics<parallel>], iteration_bounds = array<i64: 1>, scalar_prefetch = 0 : i64, scratch_operands = 1 : i64, tpu.core_type = #tpu.core_type<tc>, window_params = [{pipeline_mode = #tpu.pipeline_mode<synchronous>, transform_indices = @transform_0, window_bounds = array<i64: 18, 18, 8>}, {transform_indices = @transform_1, window_bounds = array<i64: 9, 8, 16>}, {transform_indices = @transform_2, window_bounds = array<i64: 1, 16>}, {transform_indices = @transform_3, window_bounds = array<i64: 1, 16>}, {transform_indices = @transform_4, window_bounds = array<i64: 8, 8, 16>}]} {
    %cst = arith.constant 0.000000e+00 : f32
    %0 = vector.broadcast %cst : f32 to vector<1x16xf32>
    %cst_0 = arith.constant 0.000000e+00 : f32
    %1 = vector.broadcast %cst_0 : f32 to vector<1x16xf32>
    %cst_1 = arith.constant 0.000000e+00 : f32
    %2 = vector.broadcast %cst_1 : f32 to vector<128x16xf32>
    %c0 = arith.constant 0 : index
    %c0_2 = arith.constant 0 : index
    %c0_3 = arith.constant 0 : index
    %3 = vector.load %arg1[%c0, %c0_2, %c0_3] : memref<18x18x8xbf16, #tpu.memory_space<vmem>>, vector<10x16x8xbf16>
    %4 = vector.shape_cast %3 : vector<10x16x8xbf16> to vector<160x8xbf16>
    %5 = vector.extract_strided_slice %4 {offsets = [0, 0], sizes = [128, 8], strides = [1, 1]} : vector<160x8xbf16> to vector<128x8xbf16>
    %c0_4 = arith.constant 0 : index
    %c0_5 = arith.constant 0 : index
    %c0_6 = arith.constant 0 : index
    %6 = vector.load %arg2[%c0_4, %c0_5, %c0_6] : memref<9x8x16xbf16, #tpu.memory_space<vmem>>, vector<1x8x16xbf16>
    %7 = vector.shape_cast %6 : vector<1x8x16xbf16> to vector<8x16xbf16>
    %cst_7 = arith.constant dense<0.000000e+00> : vector<128x16xf32>
    %8 = tpu.matmul %5, %7, %cst_7 {dimension_numbers = #tpu.dot_dimension_numbers<[1], [0], [0], [1], [0, 0, 1, 1], [], []>} : vector<128x8xbf16>, vector<8x16xbf16>, vector<128x16xf32> -> vector<128x16xf32>
    %9 = arith.addf %2, %8 : vector<128x16xf32>
    %10 = vector.extract_strided_slice %4 {offsets = [16, 0], sizes = [128, 8], strides = [1, 1]} : vector<160x8xbf16> to vector<128x8xbf16>
    %c3 = arith.constant 3 : index
    %c0_8 = arith.constant 0 : index
    %c0_9 = arith.constant 0 : index
    %11 = vector.load %arg2[%c3, %c0_8, %c0_9] : memref<9x8x16xbf16, #tpu.memory_space<vmem>>, vector<1x8x16xbf16>
    %12 = vector.shape_cast %11 : vector<1x8x16xbf16> to vector<8x16xbf16>
    %cst_10 = arith.constant dense<0.000000e+00> : vector<128x16xf32>
    %13 = tpu.matmul %10, %12, %cst_10 {dimension_numbers = #tpu.dot_dimension_numbers<[1], [0], [0], [1], [0, 0, 1, 1], [], []>} : vector<128x8xbf16>, vector<8x16xbf16>, vector<128x16xf32> -> vector<128x16xf32>
    %14 = arith.addf %9, %13 : vector<128x16xf32>
    %15 = vector.extract_strided_slice %4 {offsets = [32, 0], sizes = [128, 8], strides = [1, 1]} : vector<160x8xbf16> to vector<128x8xbf16>
    %c6 = arith.constant 6 : index
    %c0_11 = arith.constant 0 : index
    %c0_12 = arith.constant 0 : index
    %16 = vector.load %arg2[%c6, %c0_11, %c0_12] : memref<9x8x16xbf16, #tpu.memory_space<vmem>>, vector<1x8x16xbf16>
    %17 = vector.shape_cast %16 : vector<1x8x16xbf16> to vector<8x16xbf16>
    %cst_13 = arith.constant dense<0.000000e+00> : vector<128x16xf32>
    %18 = tpu.matmul %15, %17, %cst_13 {dimension_numbers = #tpu.dot_dimension_numbers<[1], [0], [0], [1], [0, 0, 1, 1], [], []>} : vector<128x8xbf16>, vector<8x16xbf16>, vector<128x16xf32> -> vector<128x16xf32>
    %19 = arith.addf %14, %18 : vector<128x16xf32>
    %c0_14 = arith.constant 0 : index
    %c1 = arith.constant 1 : index
    %c0_15 = arith.constant 0 : index
    %20 = vector.load %arg1[%c0_14, %c1, %c0_15] : memref<18x18x8xbf16, #tpu.memory_space<vmem>>, vector<10x16x8xbf16>
    %21 = vector.shape_cast %20 : vector<10x16x8xbf16> to vector<160x8xbf16>
    %22 = vector.extract_strided_slice %21 {offsets = [0, 0], sizes = [128, 8], strides = [1, 1]} : vector<160x8xbf16> to vector<128x8xbf16>
    %c1_16 = arith.constant 1 : index
    %c0_17 = arith.constant 0 : index
    %c0_18 = arith.constant 0 : index
    %23 = vector.load %arg2[%c1_16, %c0_17, %c0_18] : memref<9x8x16xbf16, #tpu.memory_space<vmem>>, vector<1x8x16xbf16>
    %24 = vector.shape_cast %23 : vector<1x8x16xbf16> to vector<8x16xbf16>
    %cst_19 = arith.constant dense<0.000000e+00> : vector<128x16xf32>
    %25 = tpu.matmul %22, %24, %cst_19 {dimension_numbers = #tpu.dot_dimension_numbers<[1], [0], [0], [1], [0, 0, 1, 1], [], []>} : vector<128x8xbf16>, vector<8x16xbf16>, vector<128x16xf32> -> vector<128x16xf32>
    %26 = arith.addf %19, %25 : vector<128x16xf32>
    %27 = vector.extract_strided_slice %21 {offsets = [16, 0], sizes = [128, 8], strides = [1, 1]} : vector<160x8xbf16> to vector<128x8xbf16>
    %c4 = arith.constant 4 : index
    %c0_20 = arith.constant 0 : index
    %c0_21 = arith.constant 0 : index
    %28 = vector.load %arg2[%c4, %c0_20, %c0_21] : memref<9x8x16xbf16, #tpu.memory_space<vmem>>, vector<1x8x16xbf16>
    %29 = vector.shape_cast %28 : vector<1x8x16xbf16> to vector<8x16xbf16>
    %cst_22 = arith.constant dense<0.000000e+00> : vector<128x16xf32>
    %30 = tpu.matmul %27, %29, %cst_22 {dimension_numbers = #tpu.dot_dimension_numbers<[1], [0], [0], [1], [0, 0, 1, 1], [], []>} : vector<128x8xbf16>, vector<8x16xbf16>, vector<128x16xf32> -> vector<128x16xf32>
    %31 = arith.addf %26, %30 : vector<128x16xf32>
    %32 = vector.extract_strided_slice %21 {offsets = [32, 0], sizes = [128, 8], strides = [1, 1]} : vector<160x8xbf16> to vector<128x8xbf16>
    %c7 = arith.constant 7 : index
    %c0_23 = arith.constant 0 : index
    %c0_24 = arith.constant 0 : index
    %33 = vector.load %arg2[%c7, %c0_23, %c0_24] : memref<9x8x16xbf16, #tpu.memory_space<vmem>>, vector<1x8x16xbf16>
    %34 = vector.shape_cast %33 : vector<1x8x16xbf16> to vector<8x16xbf16>
    %cst_25 = arith.constant dense<0.000000e+00> : vector<128x16xf32>
    %35 = tpu.matmul %32, %34, %cst_25 {dimension_numbers = #tpu.dot_dimension_numbers<[1], [0], [0], [1], [0, 0, 1, 1], [], []>} : vector<128x8xbf16>, vector<8x16xbf16>, vector<128x16xf32> -> vector<128x16xf32>
    %36 = arith.addf %31, %35 : vector<128x16xf32>
    %c0_26 = arith.constant 0 : index
    %c2 = arith.constant 2 : index
    %c0_27 = arith.constant 0 : index
    %37 = vector.load %arg1[%c0_26, %c2, %c0_27] : memref<18x18x8xbf16, #tpu.memory_space<vmem>>, vector<10x16x8xbf16>
    %38 = vector.shape_cast %37 : vector<10x16x8xbf16> to vector<160x8xbf16>
    %39 = vector.extract_strided_slice %38 {offsets = [0, 0], sizes = [128, 8], strides = [1, 1]} : vector<160x8xbf16> to vector<128x8xbf16>
    %c2_28 = arith.constant 2 : index
    %c0_29 = arith.constant 0 : index
    %c0_30 = arith.constant 0 : index
    %40 = vector.load %arg2[%c2_28, %c0_29, %c0_30] : memref<9x8x16xbf16, #tpu.memory_space<vmem>>, vector<1x8x16xbf16>
    %41 = vector.shape_cast %40 : vector<1x8x16xbf16> to vector<8x16xbf16>
    %cst_31 = arith.constant dense<0.000000e+00> : vector<128x16xf32>
    %42 = tpu.matmul %39, %41, %cst_31 {dimension_numbers = #tpu.dot_dimension_numbers<[1], [0], [0], [1], [0, 0, 1, 1], [], []>} : vector<128x8xbf16>, vector<8x16xbf16>, vector<128x16xf32> -> vector<128x16xf32>
    %43 = arith.addf %36, %42 : vector<128x16xf32>
    %44 = vector.extract_strided_slice %38 {offsets = [16, 0], sizes = [128, 8], strides = [1, 1]} : vector<160x8xbf16> to vector<128x8xbf16>
    %c5 = arith.constant 5 : index
    %c0_32 = arith.constant 0 : index
    %c0_33 = arith.constant 0 : index
    %45 = vector.load %arg2[%c5, %c0_32, %c0_33] : memref<9x8x16xbf16, #tpu.memory_space<vmem>>, vector<1x8x16xbf16>
    %46 = vector.shape_cast %45 : vector<1x8x16xbf16> to vector<8x16xbf16>
    %cst_34 = arith.constant dense<0.000000e+00> : vector<128x16xf32>
    %47 = tpu.matmul %44, %46, %cst_34 {dimension_numbers = #tpu.dot_dimension_numbers<[1], [0], [0], [1], [0, 0, 1, 1], [], []>} : vector<128x8xbf16>, vector<8x16xbf16>, vector<128x16xf32> -> vector<128x16xf32>
    %48 = arith.addf %43, %47 : vector<128x16xf32>
    %49 = vector.extract_strided_slice %38 {offsets = [32, 0], sizes = [128, 8], strides = [1, 1]} : vector<160x8xbf16> to vector<128x8xbf16>
    %c8 = arith.constant 8 : index
    %c0_35 = arith.constant 0 : index
    %c0_36 = arith.constant 0 : index
    %50 = vector.load %arg2[%c8, %c0_35, %c0_36] : memref<9x8x16xbf16, #tpu.memory_space<vmem>>, vector<1x8x16xbf16>
    %51 = vector.shape_cast %50 : vector<1x8x16xbf16> to vector<8x16xbf16>
    %cst_37 = arith.constant dense<0.000000e+00> : vector<128x16xf32>
    %52 = tpu.matmul %49, %51, %cst_37 {dimension_numbers = #tpu.dot_dimension_numbers<[1], [0], [0], [1], [0, 0, 1, 1], [], []>} : vector<128x8xbf16>, vector<8x16xbf16>, vector<128x16xf32> -> vector<128x16xf32>
    %53 = arith.addf %48, %52 : vector<128x16xf32>
    %c0_38 = arith.constant 0 : index
    %c0_39 = arith.constant 0 : index
    %54 = vector.load %arg6[%c0_38, %c0_39] : memref<256x16xf32, #tpu.memory_space<vmem>>, vector<128x16xf32>
    tpu.vector_store %arg6[%c0_38, %c0_39], %53 {strides = array<i32>} : memref<256x16xf32, #tpu.memory_space<vmem>>, vector<128x16xf32>,
    %cst_40 = arith.constant dense<0.000000e+00> : vector<16xf32>
    %55 = vector.multi_reduction <add>, %53, %cst_40 [0] : vector<128x16xf32> to vector<16xf32>
    %56 = vector.shape_cast %55 : vector<16xf32> to vector<1x16xf32>
    %57 = arith.addf %0, %56 : vector<1x16xf32>
    %58 = arith.mulf %53, %53 : vector<128x16xf32>
    %cst_41 = arith.constant dense<0.000000e+00> : vector<16xf32>
    %59 = vector.multi_reduction <add>, %58, %cst_41 [0] : vector<128x16xf32> to vector<16xf32>
    %60 = vector.shape_cast %59 : vector<16xf32> to vector<1x16xf32>
    %61 = arith.addf %1, %60 : vector<1x16xf32>
    %cst_42 = arith.constant 0.000000e+00 : f32
    %62 = vector.broadcast %cst_42 : f32 to vector<128x16xf32>
    %c8_43 = arith.constant 8 : index
    %c0_44 = arith.constant 0 : index
    %c0_45 = arith.constant 0 : index
    %63 = vector.load %arg1[%c8_43, %c0_44, %c0_45] : memref<18x18x8xbf16, #tpu.memory_space<vmem>>, vector<10x16x8xbf16>
    %64 = vector.shape_cast %63 : vector<10x16x8xbf16> to vector<160x8xbf16>
    %65 = vector.extract_strided_slice %64 {offsets = [0, 0], sizes = [128, 8], strides = [1, 1]} : vector<160x8xbf16> to vector<128x8xbf16>
    %c0_46 = arith.constant 0 : index
    %c0_47 = arith.constant 0 : index
    %c0_48 = arith.constant 0 : index
    %66 = vector.load %arg2[%c0_46, %c0_47, %c0_48] : memref<9x8x16xbf16, #tpu.memory_space<vmem>>, vector<1x8x16xbf16>
    %67 = vector.shape_cast %66 : vector<1x8x16xbf16> to vector<8x16xbf16>
    %cst_49 = arith.constant dense<0.000000e+00> : vector<128x16xf32>
    %68 = tpu.matmul %65, %67, %cst_49 {dimension_numbers = #tpu.dot_dimension_numbers<[1], [0], [0], [1], [0, 0, 1, 1], [], []>} : vector<128x8xbf16>, vector<8x16xbf16>, vector<128x16xf32> -> vector<128x16xf32>
    %69 = arith.addf %62, %68 : vector<128x16xf32>
    %70 = vector.extract_strided_slice %64 {offsets = [16, 0], sizes = [128, 8], strides = [1, 1]} : vector<160x8xbf16> to vector<128x8xbf16>
    %c3_50 = arith.constant 3 : index
    %c0_51 = arith.constant 0 : index
    %c0_52 = arith.constant 0 : index
    %71 = vector.load %arg2[%c3_50, %c0_51, %c0_52] : memref<9x8x16xbf16, #tpu.memory_space<vmem>>, vector<1x8x16xbf16>
    %72 = vector.shape_cast %71 : vector<1x8x16xbf16> to vector<8x16xbf16>
    %cst_53 = arith.constant dense<0.000000e+00> : vector<128x16xf32>
    %73 = tpu.matmul %70, %72, %cst_53 {dimension_numbers = #tpu.dot_dimension_numbers<[1], [0], [0], [1], [0, 0, 1, 1], [], []>} : vector<128x8xbf16>, vector<8x16xbf16>, vector<128x16xf32> -> vector<128x16xf32>
    %74 = arith.addf %69, %73 : vector<128x16xf32>
    %75 = vector.extract_strided_slice %64 {offsets = [32, 0], sizes = [128, 8], strides = [1, 1]} : vector<160x8xbf16> to vector<128x8xbf16>
    %c6_54 = arith.constant 6 : index
    %c0_55 = arith.constant 0 : index
    %c0_56 = arith.constant 0 : index
    %76 = vector.load %arg2[%c6_54, %c0_55, %c0_56] : memref<9x8x16xbf16, #tpu.memory_space<vmem>>, vector<1x8x16xbf16>
    %77 = vector.shape_cast %76 : vector<1x8x16xbf16> to vector<8x16xbf16>
    %cst_57 = arith.constant dense<0.000000e+00> : vector<128x16xf32>
    %78 = tpu.matmul %75, %77, %cst_57 {dimension_numbers = #tpu.dot_dimension_numbers<[1], [0], [0], [1], [0, 0, 1, 1], [], []>} : vector<128x8xbf16>, vector<8x16xbf16>, vector<128x16xf32> -> vector<128x16xf32>
    %79 = arith.addf %74, %78 : vector<128x16xf32>
    %c8_58 = arith.constant 8 : index
    %c1_59 = arith.constant 1 : index
    %c0_60 = arith.constant 0 : index
    %80 = vector.load %arg1[%c8_58, %c1_59, %c0_60] : memref<18x18x8xbf16, #tpu.memory_space<vmem>>, vector<10x16x8xbf16>
    %81 = vector.shape_cast %80 : vector<10x16x8xbf16> to vector<160x8xbf16>
    %82 = vector.extract_strided_slice %81 {offsets = [0, 0], sizes = [128, 8], strides = [1, 1]} : vector<160x8xbf16> to vector<128x8xbf16>
    %c1_61 = arith.constant 1 : index
    %c0_62 = arith.constant 0 : index
    %c0_63 = arith.constant 0 : index
    %83 = vector.load %arg2[%c1_61, %c0_62, %c0_63] : memref<9x8x16xbf16, #tpu.memory_space<vmem>>, vector<1x8x16xbf16>
    %84 = vector.shape_cast %83 : vector<1x8x16xbf16> to vector<8x16xbf16>
    %cst_64 = arith.constant dense<0.000000e+00> : vector<128x16xf32>
    %85 = tpu.matmul %82, %84, %cst_64 {dimension_numbers = #tpu.dot_dimension_numbers<[1], [0], [0], [1], [0, 0, 1, 1], [], []>} : vector<128x8xbf16>, vector<8x16xbf16>, vector<128x16xf32> -> vector<128x16xf32>
    %86 = arith.addf %79, %85 : vector<128x16xf32>
    %87 = vector.extract_strided_slice %81 {offsets = [16, 0], sizes = [128, 8], strides = [1, 1]} : vector<160x8xbf16> to vector<128x8xbf16>
    %c4_65 = arith.constant 4 : index
    %c0_66 = arith.constant 0 : index
    %c0_67 = arith.constant 0 : index
    %88 = vector.load %arg2[%c4_65, %c0_66, %c0_67] : memref<9x8x16xbf16, #tpu.memory_space<vmem>>, vector<1x8x16xbf16>
    %89 = vector.shape_cast %88 : vector<1x8x16xbf16> to vector<8x16xbf16>
    %cst_68 = arith.constant dense<0.000000e+00> : vector<128x16xf32>
    %90 = tpu.matmul %87, %89, %cst_68 {dimension_numbers = #tpu.dot_dimension_numbers<[1], [0], [0], [1], [0, 0, 1, 1], [], []>} : vector<128x8xbf16>, vector<8x16xbf16>, vector<128x16xf32> -> vector<128x16xf32>
    %91 = arith.addf %86, %90 : vector<128x16xf32>
    %92 = vector.extract_strided_slice %81 {offsets = [32, 0], sizes = [128, 8], strides = [1, 1]} : vector<160x8xbf16> to vector<128x8xbf16>
    %c7_69 = arith.constant 7 : index
    %c0_70 = arith.constant 0 : index
    %c0_71 = arith.constant 0 : index
    %93 = vector.load %arg2[%c7_69, %c0_70, %c0_71] : memref<9x8x16xbf16, #tpu.memory_space<vmem>>, vector<1x8x16xbf16>
    %94 = vector.shape_cast %93 : vector<1x8x16xbf16> to vector<8x16xbf16>
    %cst_72 = arith.constant dense<0.000000e+00> : vector<128x16xf32>
    %95 = tpu.matmul %92, %94, %cst_72 {dimension_numbers = #tpu.dot_dimension_numbers<[1], [0], [0], [1], [0, 0, 1, 1], [], []>} : vector<128x8xbf16>, vector<8x16xbf16>, vector<128x16xf32> -> vector<128x16xf32>
    %96 = arith.addf %91, %95 : vector<128x16xf32>
    %c8_73 = arith.constant 8 : index
    %c2_74 = arith.constant 2 : index
    %c0_75 = arith.constant 0 : index
    %97 = vector.load %arg1[%c8_73, %c2_74, %c0_75] : memref<18x18x8xbf16, #tpu.memory_space<vmem>>, vector<10x16x8xbf16>
    %98 = vector.shape_cast %97 : vector<10x16x8xbf16> to vector<160x8xbf16>
    %99 = vector.extract_strided_slice %98 {offsets = [0, 0], sizes = [128, 8], strides = [1, 1]} : vector<160x8xbf16> to vector<128x8xbf16>
    %c2_76 = arith.constant 2 : index
    %c0_77 = arith.constant 0 : index
    %c0_78 = arith.constant 0 : index
    %100 = vector.load %arg2[%c2_76, %c0_77, %c0_78] : memref<9x8x16xbf16, #tpu.memory_space<vmem>>, vector<1x8x16xbf16>
    %101 = vector.shape_cast %100 : vector<1x8x16xbf16> to vector<8x16xbf16>
    %cst_79 = arith.constant dense<0.000000e+00> : vector<128x16xf32>
    %102 = tpu.matmul %99, %101, %cst_79 {dimension_numbers = #tpu.dot_dimension_numbers<[1], [0], [0], [1], [0, 0, 1, 1], [], []>} : vector<128x8xbf16>, vector<8x16xbf16>, vector<128x16xf32> -> vector<128x16xf32>
    %103 = arith.addf %96, %102 : vector<128x16xf32>
    %104 = vector.extract_strided_slice %98 {offsets = [16, 0], sizes = [128, 8], strides = [1, 1]} : vector<160x8xbf16> to vector<128x8xbf16>
    %c5_80 = arith.constant 5 : index
    %c0_81 = arith.constant 0 : index
    %c0_82 = arith.constant 0 : index
    %105 = vector.load %arg2[%c5_80, %c0_81, %c0_82] : memref<9x8x16xbf16, #tpu.memory_space<vmem>>, vector<1x8x16xbf16>
    %106 = vector.shape_cast %105 : vector<1x8x16xbf16> to vector<8x16xbf16>
    %cst_83 = arith.constant dense<0.000000e+00> : vector<128x16xf32>
    %107 = tpu.matmul %104, %106, %cst_83 {dimension_numbers = #tpu.dot_dimension_numbers<[1], [0], [0], [1], [0, 0, 1, 1], [], []>} : vector<128x8xbf16>, vector<8x16xbf16>, vector<128x16xf32> -> vector<128x16xf32>
    %108 = arith.addf %103, %107 : vector<128x16xf32>
    %109 = vector.extract_strided_slice %98 {offsets = [32, 0], sizes = [128, 8], strides = [1, 1]} : vector<160x8xbf16> to vector<128x8xbf16>
    %c8_84 = arith.constant 8 : index
    %c0_85 = arith.constant 0 : index
    %c0_86 = arith.constant 0 : index
    %110 = vector.load %arg2[%c8_84, %c0_85, %c0_86] : memref<9x8x16xbf16, #tpu.memory_space<vmem>>, vector<1x8x16xbf16>
    %111 = vector.shape_cast %110 : vector<1x8x16xbf16> to vector<8x16xbf16>
    %cst_87 = arith.constant dense<0.000000e+00> : vector<128x16xf32>
    %112 = tpu.matmul %109, %111, %cst_87 {dimension_numbers = #tpu.dot_dimension_numbers<[1], [0], [0], [1], [0, 0, 1, 1], [], []>} : vector<128x8xbf16>, vector<8x16xbf16>, vector<128x16xf32> -> vector<128x16xf32>
    %113 = arith.addf %108, %112 : vector<128x16xf32>
    %c128 = arith.constant 128 : index
    %c0_88 = arith.constant 0 : index
    %114 = vector.load %arg6[%c128, %c0_88] : memref<256x16xf32, #tpu.memory_space<vmem>>, vector<128x16xf32>
    tpu.vector_store %arg6[%c128, %c0_88], %113 {strides = array<i32>} : memref<256x16xf32, #tpu.memory_space<vmem>>, vector<128x16xf32>,
    %cst_89 = arith.constant dense<0.000000e+00> : vector<16xf32>
    %115 = vector.multi_reduction <add>, %113, %cst_89 [0] : vector<128x16xf32> to vector<16xf32>
    %116 = vector.shape_cast %115 : vector<16xf32> to vector<1x16xf32>
    %117 = arith.addf %57, %116 : vector<1x16xf32>
    %118 = arith.mulf %113, %113 : vector<128x16xf32>
    %cst_90 = arith.constant dense<0.000000e+00> : vector<16xf32>
    %119 = vector.multi_reduction <add>, %118, %cst_90 [0] : vector<128x16xf32> to vector<16xf32>
    %120 = vector.shape_cast %119 : vector<16xf32> to vector<1x16xf32>
    %121 = arith.addf %61, %120 : vector<1x16xf32>
    %cst_91 = arith.constant 2.560000e+02 : f32
    %122 = vector.broadcast %cst_91 : f32 to vector<1x16xf32>
    %123 = arith.divf %117, %122 : vector<1x16xf32>
    %cst_92 = arith.constant 2.560000e+02 : f32
    %124 = vector.broadcast %cst_92 : f32 to vector<1x16xf32>
    %125 = arith.divf %121, %124 : vector<1x16xf32>
    %126 = arith.mulf %123, %123 : vector<1x16xf32>
    %127 = arith.subf %125, %126 : vector<1x16xf32>
    %c0_93 = arith.constant 0 : index
    %c0_94 = arith.constant 0 : index
    %128 = vector.load %arg3[%c0_93, %c0_94] : memref<1x16xf32, #tpu.memory_space<vmem>>, vector<1x16xf32>
    %cst_95 = arith.constant 9.99999974E-6 : f32
    %129 = vector.broadcast %cst_95 : f32 to vector<1x16xf32>
    %130 = arith.addf %127, %129 : vector<1x16xf32>
    %131 = math.rsqrt %130 : vector<1x16xf32>
    %132 = arith.mulf %128, %131 : vector<1x16xf32>
    %c0_96 = arith.constant 0 : index
    %c0_97 = arith.constant 0 : index
    %133 = vector.load %arg4[%c0_96, %c0_97] : memref<1x16xf32, #tpu.memory_space<vmem>>, vector<1x16xf32>
    %134 = arith.mulf %123, %132 : vector<1x16xf32>
    %135 = arith.subf %133, %134 : vector<1x16xf32>
    %c0_98 = arith.constant 0 : index
    %c0_99 = arith.constant 0 : index
    %136 = vector.load %arg6[%c0_98, %c0_99] : memref<256x16xf32, #tpu.memory_space<vmem>>, vector<128x16xf32>
    %137 = vector.broadcast %132 : vector<1x16xf32> to vector<128x16xf32>
    %138 = arith.mulf %136, %137 : vector<128x16xf32>
    %139 = vector.broadcast %135 : vector<1x16xf32> to vector<128x16xf32>
    %140 = arith.addf %138, %139 : vector<128x16xf32>
    %cst_100 = arith.constant 0.000000e+00 : f32
    %141 = vector.broadcast %cst_100 : f32 to vector<128x16xf32>
    %142 = arith.maximumf %140, %141 : vector<128x16xf32>
    %143 = vector.shape_cast %142 : vector<128x16xf32> to vector<8x16x16xf32>
    %144 = vector.shape_cast %143 : vector<8x16x16xf32> to vector<8x8x2x16xf32>
    %cst_101 = arith.constant dense<0xFF800000> : vector<8x8x16xf32>
    %145 = vector.multi_reduction <maximumf>, %144, %cst_101 [2] : vector<8x8x2x16xf32> to vector<8x8x16xf32>
    %146 = vector.shape_cast %145 : vector<8x8x16xf32> to vector<4x2x8x16xf32>
    %cst_102 = arith.constant dense<0xFF800000> : vector<4x8x16xf32>
    %147 = vector.multi_reduction <maximumf>, %146, %cst_102 [1] : vector<4x2x8x16xf32> to vector<4x8x16xf32>
    %148 = arith.truncf %147 : vector<4x8x16xf32> to vector<4x8x16xbf16>
    %c0_103 = arith.constant 0 : index
    %c0_104 = arith.constant 0 : index
    %c0_105 = arith.constant 0 : index
    %149 = vector.load %arg5[%c0_103, %c0_104, %c0_105] : memref<8x8x16xbf16, #tpu.memory_space<vmem>>, vector<4x8x16xbf16>
    tpu.vector_store %arg5[%c0_103, %c0_104, %c0_105], %148 {strides = array<i32>} : memref<8x8x16xbf16, #tpu.memory_space<vmem>>, vector<4x8x16xbf16>,
    %c128_106 = arith.constant 128 : index
    %c0_107 = arith.constant 0 : index
    %150 = vector.load %arg6[%c128_106, %c0_107] : memref<256x16xf32, #tpu.memory_space<vmem>>, vector<128x16xf32>
    %151 = vector.broadcast %132 : vector<1x16xf32> to vector<128x16xf32>
    %152 = arith.mulf %150, %151 : vector<128x16xf32>
    %153 = vector.broadcast %135 : vector<1x16xf32> to vector<128x16xf32>
    %154 = arith.addf %152, %153 : vector<128x16xf32>
    %cst_108 = arith.constant 0.000000e+00 : f32
    %155 = vector.broadcast %cst_108 : f32 to vector<128x16xf32>
    %156 = arith.maximumf %154, %155 : vector<128x16xf32>
    %157 = vector.shape_cast %156 : vector<128x16xf32> to vector<8x16x16xf32>
    %158 = vector.shape_cast %157 : vector<8x16x16xf32> to vector<8x8x2x16xf32>
    %cst_109 = arith.constant dense<0xFF800000> : vector<8x8x16xf32>
    %159 = vector.multi_reduction <maximumf>, %158, %cst_109 [2] : vector<8x8x2x16xf32> to vector<8x8x16xf32>
    %160 = vector.shape_cast %159 : vector<8x8x16xf32> to vector<4x2x8x16xf32>
    %cst_110 = arith.constant dense<0xFF800000> : vector<4x8x16xf32>
    %161 = vector.multi_reduction <maximumf>, %160, %cst_110 [1] : vector<4x2x8x16xf32> to vector<4x8x16xf32>
    %162 = arith.truncf %161 : vector<4x8x16xf32> to vector<4x8x16xbf16>
    %c4_111 = arith.constant 4 : index
    %c0_112 = arith.constant 0 : index
    %c0_113 = arith.constant 0 : index
    %163 = vector.load %arg5[%c4_111, %c0_112, %c0_113] : memref<8x8x16xbf16, #tpu.memory_space<vmem>>, vector<4x8x16xbf16>
    tpu.vector_store %arg5[%c4_111, %c0_112, %c0_113], %162 {strides = array<i32>} : memref<8x8x16xbf16, #tpu.memory_space<vmem>>, vector<4x8x16xbf16>,
    return
  }
  func.func @transform_0(%arg0: i32) -> (i32, i32, i32) {
    %c0_i32 = arith.constant 0 : i32
    %c0_i32_0 = arith.constant 0 : i32
    %c0_i32_1 = arith.constant 0 : i32
    %c0_i32_2 = arith.constant 0 : i32
    return %c0_i32, %c0_i32_0, %c0_i32_1 : i32, i32, i32
  }
  func.func @transform_1(%arg0: i32) -> (i32, i32, i32) {
    %c0_i32 = arith.constant 0 : i32
    %c0_i32_0 = arith.constant 0 : i32
    %c0_i32_1 = arith.constant 0 : i32
    return %c0_i32, %c0_i32_0, %arg0 : i32, i32, i32
  }
  func.func @transform_2(%arg0: i32) -> (i32, i32) {
    %c0_i32 = arith.constant 0 : i32
    %c0_i32_0 = arith.constant 0 : i32
    return %c0_i32, %arg0 : i32, i32
  }
  func.func @transform_3(%arg0: i32) -> (i32, i32) {
    %c0_i32 = arith.constant 0 : i32
    %c0_i32_0 = arith.constant 0 : i32
    return %c0_i32, %arg0 : i32, i32
  }
  func.func @transform_4(%arg0: i32) -> (i32, i32, i32) {
    %c0_i32 = arith.constant 0 : i32
    %c0_i32_0 = arith.constant 0 : i32
    %c0_i32_1 = arith.constant 0 : i32
    return %c0_i32, %c0_i32_0, %arg0 : i32, i32, i32
  }
}

module attributes {stable_mosaic.version = 11 : i64} {
  func.func @mlp_softmax_kernel(%arg0: i32, %arg1: memref<1x128xbf16, #tpu.memory_space<vmem>>, %arg2: memref<128x128xbf16, #tpu.memory_space<vmem>>, %arg3: memref<1x128xf32, #tpu.memory_space<vmem>>, %arg4: memref<128x16xf32, #tpu.memory_space<vmem>>, %arg5: memref<1x16xf32, #tpu.memory_space<vmem>>, %arg6: memref<1x16xf32, #tpu.memory_space<vmem>>, %arg7: memref<1x128xf32, #tpu.memory_space<vmem>>) attributes {dimension_semantics = [#tpu.dimension_semantics<arbitrary>], iteration_bounds = array<i64: 3>, scalar_prefetch = 0 : i64, scratch_operands = 1 : i64, tpu.core_type = #tpu.core_type<tc>, window_params = [{transform_indices = @transform_0, window_bounds = array<i64: 1, 128>}, {transform_indices = @transform_1, window_bounds = array<i64: 128, 128>}, {pipeline_mode = #tpu.pipeline_mode<synchronous>, transform_indices = @transform_2, window_bounds = array<i64: 1, 128>}, {pipeline_mode = #tpu.pipeline_mode<synchronous>, transform_indices = @transform_3, window_bounds = array<i64: 128, 16>}, {pipeline_mode = #tpu.pipeline_mode<synchronous>, transform_indices = @transform_4, window_bounds = array<i64: 1, 16>}, {pipeline_mode = #tpu.pipeline_mode<synchronous>, transform_indices = @transform_5, window_bounds = array<i64: 1, 16>}]} {
    %c0_i32 = arith.constant 0 : i32
    %0 = arith.cmpi eq, %arg0, %c0_i32 : i32
    %1 = arith.extui %0 : i1 to i32
    %c0_i32_0 = arith.constant 0 : i32
    %2 = arith.cmpi ne, %1, %c0_i32_0 : i32
    scf.if %2 {
      %cst_9 = arith.constant 0.000000e+00 : f32
      %12 = vector.broadcast %cst_9 : f32 to vector<1x128xf32>
      %c0_10 = arith.constant 0 : index
      %c0_11 = arith.constant 0 : index
      %13 = vector.load %arg7[%c0_10, %c0_11] : memref<1x128xf32, #tpu.memory_space<vmem>>, vector<1x128xf32>
      tpu.vector_store %arg7[%c0_10, %c0_11], %12 {strides = array<i32>} : memref<1x128xf32, #tpu.memory_space<vmem>>, vector<1x128xf32>,
    } else {
    }
    %c0 = arith.constant 0 : index
    %c0_1 = arith.constant 0 : index
    %3 = vector.load %arg7[%c0, %c0_1] : memref<1x128xf32, #tpu.memory_space<vmem>>, vector<1x128xf32>
    %c0_2 = arith.constant 0 : index
    %c0_3 = arith.constant 0 : index
    %4 = vector.load %arg1[%c0_2, %c0_3] : memref<1x128xbf16, #tpu.memory_space<vmem>>, vector<1x128xbf16>
    %c0_4 = arith.constant 0 : index
    %c0_5 = arith.constant 0 : index
    %5 = vector.load %arg2[%c0_4, %c0_5] : memref<128x128xbf16, #tpu.memory_space<vmem>>, vector<128x128xbf16>
    %cst = arith.constant dense<0.000000e+00> : vector<1x128xf32>
    %6 = tpu.matmul %4, %5, %cst {dimension_numbers = #tpu.dot_dimension_numbers<[1], [0], [0], [1], [0, 0, 1, 1], [], []>} : vector<1x128xbf16>, vector<128x128xbf16>, vector<1x128xf32> -> vector<1x128xf32>
    %7 = arith.addf %3, %6 : vector<1x128xf32>
    %c0_6 = arith.constant 0 : index
    %c0_7 = arith.constant 0 : index
    %8 = vector.load %arg7[%c0_6, %c0_7] : memref<1x128xf32, #tpu.memory_space<vmem>>, vector<1x128xf32>
    tpu.vector_store %arg7[%c0_6, %c0_7], %7 {strides = array<i32>} : memref<1x128xf32, #tpu.memory_space<vmem>>, vector<1x128xf32>,
    %c2_i32 = arith.constant 2 : i32
    %9 = arith.cmpi eq, %arg0, %c2_i32 : i32
    %10 = arith.extui %9 : i1 to i32
    %c0_i32_8 = arith.constant 0 : i32
    %11 = arith.cmpi ne, %10, %c0_i32_8 : i32
    scf.if %11 {
      %c0_9 = arith.constant 0 : index
      %c0_10 = arith.constant 0 : index
      %12 = vector.load %arg7[%c0_9, %c0_10] : memref<1x128xf32, #tpu.memory_space<vmem>>, vector<1x128xf32>
      %c0_11 = arith.constant 0 : index
      %c0_12 = arith.constant 0 : index
      %13 = vector.load %arg3[%c0_11, %c0_12] : memref<1x128xf32, #tpu.memory_space<vmem>>, vector<1x128xf32>
      %14 = arith.addf %12, %13 : vector<1x128xf32>
      %c0_13 = arith.constant 0 : index
      %c0_14 = arith.constant 0 : index
      %15 = vector.load %arg4[%c0_13, %c0_14] : memref<128x16xf32, #tpu.memory_space<vmem>>, vector<128x16xf32>
      %cst_15 = arith.constant dense<0.000000e+00> : vector<1x16xf32>
      %16 = tpu.matmul %14, %15, %cst_15 {dimension_numbers = #tpu.dot_dimension_numbers<[1], [0], [0], [1], [0, 0, 1, 1], [], []>} : vector<1x128xf32>, vector<128x16xf32>, vector<1x16xf32> -> vector<1x16xf32>
      %c0_16 = arith.constant 0 : index
      %c0_17 = arith.constant 0 : index
      %17 = vector.load %arg5[%c0_16, %c0_17] : memref<1x16xf32, #tpu.memory_space<vmem>>, vector<1x16xf32>
      %18 = arith.addf %16, %17 : vector<1x16xf32>
      %cst_18 = arith.constant dense<0xFF800000> : vector<1xf32>
      %19 = vector.multi_reduction <maximumf>, %18, %cst_18 [1] : vector<1x16xf32> to vector<1xf32>
      %20 = vector.shape_cast %19 : vector<1xf32> to vector<1x1xf32>
      %21 = vector.broadcast %20 : vector<1x1xf32> to vector<1x16xf32>
      %22 = arith.subf %18, %21 : vector<1x16xf32>
      %23 = math.exp %22 : vector<1x16xf32>
      %cst_19 = arith.constant dense<0.000000e+00> : vector<1xf32>
      %24 = vector.multi_reduction <add>, %23, %cst_19 [1] : vector<1x16xf32> to vector<1xf32>
      %25 = vector.shape_cast %24 : vector<1xf32> to vector<1x1xf32>
      %26 = tpu.reciprocal %25 {approx = true} : vector<1x1xf32> -> vector<1x1xf32>
      %27 = vector.broadcast %26 : vector<1x1xf32> to vector<1x16xf32>
      %28 = arith.mulf %23, %27 : vector<1x16xf32>
      %c0_20 = arith.constant 0 : index
      %c0_21 = arith.constant 0 : index
      %29 = vector.load %arg6[%c0_20, %c0_21] : memref<1x16xf32, #tpu.memory_space<vmem>>, vector<1x16xf32>
      tpu.vector_store %arg6[%c0_20, %c0_21], %28 {strides = array<i32>} : memref<1x16xf32, #tpu.memory_space<vmem>>, vector<1x16xf32>,
    } else {
    }
    return
  }
  func.func @transform_0(%arg0: i32) -> (i32, i32) {
    %c0_i32 = arith.constant 0 : i32
    %c0_i32_0 = arith.constant 0 : i32
    return %c0_i32, %arg0 : i32, i32
  }
  func.func @transform_1(%arg0: i32) -> (i32, i32) {
    %c0_i32 = arith.constant 0 : i32
    %c0_i32_0 = arith.constant 0 : i32
    return %arg0, %c0_i32 : i32, i32
  }
  func.func @transform_2(%arg0: i32) -> (i32, i32) {
    %c0_i32 = arith.constant 0 : i32
    %c0_i32_0 = arith.constant 0 : i32
    %c0_i32_1 = arith.constant 0 : i32
    return %c0_i32, %c0_i32_0 : i32, i32
  }
  func.func @transform_3(%arg0: i32) -> (i32, i32) {
    %c0_i32 = arith.constant 0 : i32
    %c0_i32_0 = arith.constant 0 : i32
    %c0_i32_1 = arith.constant 0 : i32
    return %c0_i32, %c0_i32_0 : i32, i32
  }
  func.func @transform_4(%arg0: i32) -> (i32, i32) {
    %c0_i32 = arith.constant 0 : i32
    %c0_i32_0 = arith.constant 0 : i32
    %c0_i32_1 = arith.constant 0 : i32
    return %c0_i32, %c0_i32_0 : i32, i32
  }
  func.func @transform_5(%arg0: i32) -> (i32, i32) {
    %c0_i32 = arith.constant 0 : i32
    %c0_i32_0 = arith.constant 0 : i32
    %c0_i32_1 = arith.constant 0 : i32
    return %c0_i32, %c0_i32_0 : i32, i32
  }
}

module attributes {stable_mosaic.version = 11 : i64} {
  func.func @conv_bn_relu_pool_kernel(%arg0: i32, %arg1: memref<10x10x16xbf16, #tpu.memory_space<vmem>>, %arg2: memref<9x16x24xbf16, #tpu.memory_space<vmem>>, %arg3: memref<1x24xf32, #tpu.memory_space<vmem>>, %arg4: memref<1x24xf32, #tpu.memory_space<vmem>>, %arg5: memref<4x4x24xbf16, #tpu.memory_space<vmem>>, %arg6: memref<64x24xf32, #tpu.memory_space<vmem>>) attributes {dimension_semantics = [#tpu.dimension_semantics<parallel>], iteration_bounds = array<i64: 1>, scalar_prefetch = 0 : i64, scratch_operands = 1 : i64, tpu.core_type = #tpu.core_type<tc>, window_params = [{pipeline_mode = #tpu.pipeline_mode<synchronous>, transform_indices = @transform_0, window_bounds = array<i64: 10, 10, 16>}, {transform_indices = @transform_1, window_bounds = array<i64: 9, 16, 24>}, {transform_indices = @transform_2, window_bounds = array<i64: 1, 24>}, {transform_indices = @transform_3, window_bounds = array<i64: 1, 24>}, {transform_indices = @transform_4, window_bounds = array<i64: 4, 4, 24>}]} {
    %cst = arith.constant 0.000000e+00 : f32
    %0 = vector.broadcast %cst : f32 to vector<1x24xf32>
    %cst_0 = arith.constant 0.000000e+00 : f32
    %1 = vector.broadcast %cst_0 : f32 to vector<1x24xf32>
    %cst_1 = arith.constant 0.000000e+00 : f32
    %2 = vector.broadcast %cst_1 : f32 to vector<64x24xf32>
    %c0 = arith.constant 0 : index
    %c0_2 = arith.constant 0 : index
    %c0_3 = arith.constant 0 : index
    %3 = vector.load %arg1[%c0, %c0_2, %c0_3] : memref<10x10x16xbf16, #tpu.memory_space<vmem>>, vector<10x8x16xbf16>
    %4 = vector.shape_cast %3 : vector<10x8x16xbf16> to vector<80x16xbf16>
    %5 = vector.extract_strided_slice %4 {offsets = [0, 0], sizes = [64, 16], strides = [1, 1]} : vector<80x16xbf16> to vector<64x16xbf16>
    %c0_4 = arith.constant 0 : index
    %c0_5 = arith.constant 0 : index
    %c0_6 = arith.constant 0 : index
    %6 = vector.load %arg2[%c0_4, %c0_5, %c0_6] : memref<9x16x24xbf16, #tpu.memory_space<vmem>>, vector<1x16x24xbf16>
    %7 = vector.shape_cast %6 : vector<1x16x24xbf16> to vector<16x24xbf16>
    %cst_7 = arith.constant dense<0.000000e+00> : vector<64x24xf32>
    %8 = tpu.matmul %5, %7, %cst_7 {dimension_numbers = #tpu.dot_dimension_numbers<[1], [0], [0], [1], [0, 0, 1, 1], [], []>} : vector<64x16xbf16>, vector<16x24xbf16>, vector<64x24xf32> -> vector<64x24xf32>
    %9 = arith.addf %2, %8 : vector<64x24xf32>
    %10 = vector.extract_strided_slice %4 {offsets = [8, 0], sizes = [64, 16], strides = [1, 1]} : vector<80x16xbf16> to vector<64x16xbf16>
    %c3 = arith.constant 3 : index
    %c0_8 = arith.constant 0 : index
    %c0_9 = arith.constant 0 : index
    %11 = vector.load %arg2[%c3, %c0_8, %c0_9] : memref<9x16x24xbf16, #tpu.memory_space<vmem>>, vector<1x16x24xbf16>
    %12 = vector.shape_cast %11 : vector<1x16x24xbf16> to vector<16x24xbf16>
    %cst_10 = arith.constant dense<0.000000e+00> : vector<64x24xf32>
    %13 = tpu.matmul %10, %12, %cst_10 {dimension_numbers = #tpu.dot_dimension_numbers<[1], [0], [0], [1], [0, 0, 1, 1], [], []>} : vector<64x16xbf16>, vector<16x24xbf16>, vector<64x24xf32> -> vector<64x24xf32>
    %14 = arith.addf %9, %13 : vector<64x24xf32>
    %15 = vector.extract_strided_slice %4 {offsets = [16, 0], sizes = [64, 16], strides = [1, 1]} : vector<80x16xbf16> to vector<64x16xbf16>
    %c6 = arith.constant 6 : index
    %c0_11 = arith.constant 0 : index
    %c0_12 = arith.constant 0 : index
    %16 = vector.load %arg2[%c6, %c0_11, %c0_12] : memref<9x16x24xbf16, #tpu.memory_space<vmem>>, vector<1x16x24xbf16>
    %17 = vector.shape_cast %16 : vector<1x16x24xbf16> to vector<16x24xbf16>
    %cst_13 = arith.constant dense<0.000000e+00> : vector<64x24xf32>
    %18 = tpu.matmul %15, %17, %cst_13 {dimension_numbers = #tpu.dot_dimension_numbers<[1], [0], [0], [1], [0, 0, 1, 1], [], []>} : vector<64x16xbf16>, vector<16x24xbf16>, vector<64x24xf32> -> vector<64x24xf32>
    %19 = arith.addf %14, %18 : vector<64x24xf32>
    %c0_14 = arith.constant 0 : index
    %c1 = arith.constant 1 : index
    %c0_15 = arith.constant 0 : index
    %20 = vector.load %arg1[%c0_14, %c1, %c0_15] : memref<10x10x16xbf16, #tpu.memory_space<vmem>>, vector<10x8x16xbf16>
    %21 = vector.shape_cast %20 : vector<10x8x16xbf16> to vector<80x16xbf16>
    %22 = vector.extract_strided_slice %21 {offsets = [0, 0], sizes = [64, 16], strides = [1, 1]} : vector<80x16xbf16> to vector<64x16xbf16>
    %c1_16 = arith.constant 1 : index
    %c0_17 = arith.constant 0 : index
    %c0_18 = arith.constant 0 : index
    %23 = vector.load %arg2[%c1_16, %c0_17, %c0_18] : memref<9x16x24xbf16, #tpu.memory_space<vmem>>, vector<1x16x24xbf16>
    %24 = vector.shape_cast %23 : vector<1x16x24xbf16> to vector<16x24xbf16>
    %cst_19 = arith.constant dense<0.000000e+00> : vector<64x24xf32>
    %25 = tpu.matmul %22, %24, %cst_19 {dimension_numbers = #tpu.dot_dimension_numbers<[1], [0], [0], [1], [0, 0, 1, 1], [], []>} : vector<64x16xbf16>, vector<16x24xbf16>, vector<64x24xf32> -> vector<64x24xf32>
    %26 = arith.addf %19, %25 : vector<64x24xf32>
    %27 = vector.extract_strided_slice %21 {offsets = [8, 0], sizes = [64, 16], strides = [1, 1]} : vector<80x16xbf16> to vector<64x16xbf16>
    %c4 = arith.constant 4 : index
    %c0_20 = arith.constant 0 : index
    %c0_21 = arith.constant 0 : index
    %28 = vector.load %arg2[%c4, %c0_20, %c0_21] : memref<9x16x24xbf16, #tpu.memory_space<vmem>>, vector<1x16x24xbf16>
    %29 = vector.shape_cast %28 : vector<1x16x24xbf16> to vector<16x24xbf16>
    %cst_22 = arith.constant dense<0.000000e+00> : vector<64x24xf32>
    %30 = tpu.matmul %27, %29, %cst_22 {dimension_numbers = #tpu.dot_dimension_numbers<[1], [0], [0], [1], [0, 0, 1, 1], [], []>} : vector<64x16xbf16>, vector<16x24xbf16>, vector<64x24xf32> -> vector<64x24xf32>
    %31 = arith.addf %26, %30 : vector<64x24xf32>
    %32 = vector.extract_strided_slice %21 {offsets = [16, 0], sizes = [64, 16], strides = [1, 1]} : vector<80x16xbf16> to vector<64x16xbf16>
    %c7 = arith.constant 7 : index
    %c0_23 = arith.constant 0 : index
    %c0_24 = arith.constant 0 : index
    %33 = vector.load %arg2[%c7, %c0_23, %c0_24] : memref<9x16x24xbf16, #tpu.memory_space<vmem>>, vector<1x16x24xbf16>
    %34 = vector.shape_cast %33 : vector<1x16x24xbf16> to vector<16x24xbf16>
    %cst_25 = arith.constant dense<0.000000e+00> : vector<64x24xf32>
    %35 = tpu.matmul %32, %34, %cst_25 {dimension_numbers = #tpu.dot_dimension_numbers<[1], [0], [0], [1], [0, 0, 1, 1], [], []>} : vector<64x16xbf16>, vector<16x24xbf16>, vector<64x24xf32> -> vector<64x24xf32>
    %36 = arith.addf %31, %35 : vector<64x24xf32>
    %c0_26 = arith.constant 0 : index
    %c2 = arith.constant 2 : index
    %c0_27 = arith.constant 0 : index
    %37 = vector.load %arg1[%c0_26, %c2, %c0_27] : memref<10x10x16xbf16, #tpu.memory_space<vmem>>, vector<10x8x16xbf16>
    %38 = vector.shape_cast %37 : vector<10x8x16xbf16> to vector<80x16xbf16>
    %39 = vector.extract_strided_slice %38 {offsets = [0, 0], sizes = [64, 16], strides = [1, 1]} : vector<80x16xbf16> to vector<64x16xbf16>
    %c2_28 = arith.constant 2 : index
    %c0_29 = arith.constant 0 : index
    %c0_30 = arith.constant 0 : index
    %40 = vector.load %arg2[%c2_28, %c0_29, %c0_30] : memref<9x16x24xbf16, #tpu.memory_space<vmem>>, vector<1x16x24xbf16>
    %41 = vector.shape_cast %40 : vector<1x16x24xbf16> to vector<16x24xbf16>
    %cst_31 = arith.constant dense<0.000000e+00> : vector<64x24xf32>
    %42 = tpu.matmul %39, %41, %cst_31 {dimension_numbers = #tpu.dot_dimension_numbers<[1], [0], [0], [1], [0, 0, 1, 1], [], []>} : vector<64x16xbf16>, vector<16x24xbf16>, vector<64x24xf32> -> vector<64x24xf32>
    %43 = arith.addf %36, %42 : vector<64x24xf32>
    %44 = vector.extract_strided_slice %38 {offsets = [8, 0], sizes = [64, 16], strides = [1, 1]} : vector<80x16xbf16> to vector<64x16xbf16>
    %c5 = arith.constant 5 : index
    %c0_32 = arith.constant 0 : index
    %c0_33 = arith.constant 0 : index
    %45 = vector.load %arg2[%c5, %c0_32, %c0_33] : memref<9x16x24xbf16, #tpu.memory_space<vmem>>, vector<1x16x24xbf16>
    %46 = vector.shape_cast %45 : vector<1x16x24xbf16> to vector<16x24xbf16>
    %cst_34 = arith.constant dense<0.000000e+00> : vector<64x24xf32>
    %47 = tpu.matmul %44, %46, %cst_34 {dimension_numbers = #tpu.dot_dimension_numbers<[1], [0], [0], [1], [0, 0, 1, 1], [], []>} : vector<64x16xbf16>, vector<16x24xbf16>, vector<64x24xf32> -> vector<64x24xf32>
    %48 = arith.addf %43, %47 : vector<64x24xf32>
    %49 = vector.extract_strided_slice %38 {offsets = [16, 0], sizes = [64, 16], strides = [1, 1]} : vector<80x16xbf16> to vector<64x16xbf16>
    %c8 = arith.constant 8 : index
    %c0_35 = arith.constant 0 : index
    %c0_36 = arith.constant 0 : index
    %50 = vector.load %arg2[%c8, %c0_35, %c0_36] : memref<9x16x24xbf16, #tpu.memory_space<vmem>>, vector<1x16x24xbf16>
    %51 = vector.shape_cast %50 : vector<1x16x24xbf16> to vector<16x24xbf16>
    %cst_37 = arith.constant dense<0.000000e+00> : vector<64x24xf32>
    %52 = tpu.matmul %49, %51, %cst_37 {dimension_numbers = #tpu.dot_dimension_numbers<[1], [0], [0], [1], [0, 0, 1, 1], [], []>} : vector<64x16xbf16>, vector<16x24xbf16>, vector<64x24xf32> -> vector<64x24xf32>
    %53 = arith.addf %48, %52 : vector<64x24xf32>
    %c0_38 = arith.constant 0 : index
    %c0_39 = arith.constant 0 : index
    %54 = vector.load %arg6[%c0_38, %c0_39] : memref<64x24xf32, #tpu.memory_space<vmem>>, vector<64x24xf32>
    tpu.vector_store %arg6[%c0_38, %c0_39], %53 {strides = array<i32>} : memref<64x24xf32, #tpu.memory_space<vmem>>, vector<64x24xf32>,
    %cst_40 = arith.constant dense<0.000000e+00> : vector<24xf32>
    %55 = vector.multi_reduction <add>, %53, %cst_40 [0] : vector<64x24xf32> to vector<24xf32>
    %56 = vector.shape_cast %55 : vector<24xf32> to vector<1x24xf32>
    %57 = arith.addf %0, %56 : vector<1x24xf32>
    %58 = arith.mulf %53, %53 : vector<64x24xf32>
    %cst_41 = arith.constant dense<0.000000e+00> : vector<24xf32>
    %59 = vector.multi_reduction <add>, %58, %cst_41 [0] : vector<64x24xf32> to vector<24xf32>
    %60 = vector.shape_cast %59 : vector<24xf32> to vector<1x24xf32>
    %61 = arith.addf %1, %60 : vector<1x24xf32>
    %cst_42 = arith.constant 6.400000e+01 : f32
    %62 = vector.broadcast %cst_42 : f32 to vector<1x24xf32>
    %63 = arith.divf %57, %62 : vector<1x24xf32>
    %cst_43 = arith.constant 6.400000e+01 : f32
    %64 = vector.broadcast %cst_43 : f32 to vector<1x24xf32>
    %65 = arith.divf %61, %64 : vector<1x24xf32>
    %66 = arith.mulf %63, %63 : vector<1x24xf32>
    %67 = arith.subf %65, %66 : vector<1x24xf32>
    %c0_44 = arith.constant 0 : index
    %c0_45 = arith.constant 0 : index
    %68 = vector.load %arg3[%c0_44, %c0_45] : memref<1x24xf32, #tpu.memory_space<vmem>>, vector<1x24xf32>
    %cst_46 = arith.constant 9.99999974E-6 : f32
    %69 = vector.broadcast %cst_46 : f32 to vector<1x24xf32>
    %70 = arith.addf %67, %69 : vector<1x24xf32>
    %71 = math.rsqrt %70 : vector<1x24xf32>
    %72 = arith.mulf %68, %71 : vector<1x24xf32>
    %c0_47 = arith.constant 0 : index
    %c0_48 = arith.constant 0 : index
    %73 = vector.load %arg4[%c0_47, %c0_48] : memref<1x24xf32, #tpu.memory_space<vmem>>, vector<1x24xf32>
    %74 = arith.mulf %63, %72 : vector<1x24xf32>
    %75 = arith.subf %73, %74 : vector<1x24xf32>
    %c0_49 = arith.constant 0 : index
    %c0_50 = arith.constant 0 : index
    %76 = vector.load %arg6[%c0_49, %c0_50] : memref<64x24xf32, #tpu.memory_space<vmem>>, vector<64x24xf32>
    %77 = vector.broadcast %72 : vector<1x24xf32> to vector<64x24xf32>
    %78 = arith.mulf %76, %77 : vector<64x24xf32>
    %79 = vector.broadcast %75 : vector<1x24xf32> to vector<64x24xf32>
    %80 = arith.addf %78, %79 : vector<64x24xf32>
    %cst_51 = arith.constant 0.000000e+00 : f32
    %81 = vector.broadcast %cst_51 : f32 to vector<64x24xf32>
    %82 = arith.maximumf %80, %81 : vector<64x24xf32>
    %83 = vector.shape_cast %82 : vector<64x24xf32> to vector<8x8x24xf32>
    %84 = vector.shape_cast %83 : vector<8x8x24xf32> to vector<8x4x2x24xf32>
    %cst_52 = arith.constant dense<0xFF800000> : vector<8x4x24xf32>
    %85 = vector.multi_reduction <maximumf>, %84, %cst_52 [2] : vector<8x4x2x24xf32> to vector<8x4x24xf32>
    %86 = vector.shape_cast %85 : vector<8x4x24xf32> to vector<4x2x4x24xf32>
    %cst_53 = arith.constant dense<0xFF800000> : vector<4x4x24xf32>
    %87 = vector.multi_reduction <maximumf>, %86, %cst_53 [1] : vector<4x2x4x24xf32> to vector<4x4x24xf32>
    %88 = arith.truncf %87 : vector<4x4x24xf32> to vector<4x4x24xbf16>
    %c0_54 = arith.constant 0 : index
    %c0_55 = arith.constant 0 : index
    %c0_56 = arith.constant 0 : index
    %89 = vector.load %arg5[%c0_54, %c0_55, %c0_56] : memref<4x4x24xbf16, #tpu.memory_space<vmem>>, vector<4x4x24xbf16>
    tpu.vector_store %arg5[%c0_54, %c0_55, %c0_56], %88 {strides = array<i32>} : memref<4x4x24xbf16, #tpu.memory_space<vmem>>, vector<4x4x24xbf16>,
    return
  }
  func.func @transform_0(%arg0: i32) -> (i32, i32, i32) {
    %c0_i32 = arith.constant 0 : i32
    %c0_i32_0 = arith.constant 0 : i32
    %c0_i32_1 = arith.constant 0 : i32
    %c0_i32_2 = arith.constant 0 : i32
    return %c0_i32, %c0_i32_0, %c0_i32_1 : i32, i32, i32
  }
  func.func @transform_1(%arg0: i32) -> (i32, i32, i32) {
    %c0_i32 = arith.constant 0 : i32
    %c0_i32_0 = arith.constant 0 : i32
    %c0_i32_1 = arith.constant 0 : i32
    return %c0_i32, %c0_i32_0, %arg0 : i32, i32, i32
  }
  func.func @transform_2(%arg0: i32) -> (i32, i32) {
    %c0_i32 = arith.constant 0 : i32
    %c0_i32_0 = arith.constant 0 : i32
    return %c0_i32, %arg0 : i32, i32
  }
  func.func @transform_3(%arg0: i32) -> (i32, i32) {
    %c0_i32 = arith.constant 0 : i32
    %c0_i32_0 = arith.constant 0 : i32
    return %c0_i32, %arg0 : i32, i32
  }
  func.func @transform_4(%arg0: i32) -> (i32, i32, i32) {
    %c0_i32 = arith.constant 0 : i32
    %c0_i32_0 = arith.constant 0 : i32
    %c0_i32_1 = arith.constant 0 : i32
    return %c0_i32, %c0_i32_0, %arg0 : i32, i32, i32
  }
}

</mosaic_0001>

<llo_original>
// kernel: _lambda_.5
$region0: #{_lambda_.5}
  #allocation0 [shape = 'u32[]', space=smem, size = 0x4, offset = 0x4, fixed_abs, tag = 'smem constant byte address 0x4 - core index']
  #allocation1 [shape = 'u32[144,128]{1,0:T(1,128)}', space=vmem, size = 0x12000, scoped, tag = 'internal scratch']
  #allocation2 [shape = 'f32[1,128]{1,0:T(1,128)}', space=vmem, size = 0x200, scoped, tag = 'scratch operand']
  %s0 = inlined_call_operand.vmem [shape: bf16[1,384], index: 0, kind: input, shape index: {}]
  %s1 = inlined_call_operand.vmem [shape: bf16[384,128], index: 1, kind: input, shape index: {}]
  %s2 = inlined_call_operand.vmem [shape: f32[1,128], index: 2, kind: input, shape index: {}]
  %s3 = inlined_call_operand.vmem [shape: f32[128,16], index: 3, kind: input, shape index: {}]
  %s4 = inlined_call_operand.vmem [shape: f32[1,16], index: 4, kind: input, shape index: {}]
  %s5 = inlined_call_operand.hbm [shape: f32[1,16], index: 5, kind: output, shape index: {}]
  %s6 = sld [smem:[#allocation0]]
  $region61: #{_lambda_.5} parent=0
    _
  %s8 = ssub.s32 1, %s6
  %s9 = scalar_select 0, %s8, %s6
  $region1: #{_lambda_.5} parent=0
    #allocation3 [shape = 'u8[512]{0}', space=vmem, size = 0x400, scoped, tag = 'output window, operand 0, single buffered']
    #allocation4 [shape = 's32[2]{0}', space=sflag, size = 0x8, scoped, tag = 'scoped memory for _lambda_.5']
    %10 = vsyncpa [#allocation4], 0
    loop: start=0, step=1, limit=5
    $region2: #{_lambda_.5} parent=1 // loop_pre_header
      _
    $region3: #{_lambda_.5} parent=1 // loop_header
      %s12 = sphi 0, %s16
      %p13 = scmp.ge.s32.totalorder %s12, 5
      %s22 = sphi 0, %s24
      %s25 = sphi 0, %s22
      %s26 = sphi 0, %s25
      %s42 = sphi 0, %s26
      %s48 = sphi 0, %s50
      %s51 = sphi 0, %s48
      %s52 = sphi 0, %s51
      %s68 = sphi 0, %s52
      %s72 = sphi 0, %s72
      %s74 = sphi 0, %s72
      %s75 = sphi 0, %s74
      %s89 = sphi 0, %s75
      %s93 = sphi 0, %s93
      %s95 = sphi 0, %s93
      %s96 = sphi 0, %s95
      %s110 = sphi 0, %s96
      %s114 = sphi 0, %s114
      %s116 = sphi 0, %s114
      %s117 = sphi 0, %s116
      %s131 = sphi 0, %s117
      %s135 = sphi 0, %s135
      %s137 = sphi 0, %s135
      %s138 = sphi 0, %s137
      %s152 = sphi 0, %s138
    $region4: #{_lambda_.5} parent=1 // loop_header_branch
      %15 = sbr.rel (%p13) target = $region8
    $region5: #{_lambda_.5} parent=1 // loop_body
      %s17 = ssub.s32 %s12, 1
      %s18 = ssub.s32 %s12, 2
      %s19 = sadd.s32 %s12, 1
      %s20 = ssub.s32 %s12, %s19
      %p21 = scmp.eq.s32.totalorder %s20, 0
      %s23 = sadd.s32 %s22, 1
      %s24 = scalar_select %p21, %s22, %s23
      %p27 = pneg %p21
      %p28 = scmp.eq.s32.totalorder %s12, 2
      %p29 = por %p27, %p28
      %p30 = scmp.ne.s32.totalorder %s22, %s25
      %p31 = scmp.eq.s32.totalorder %s12, 0
      %p32 = por %p30, %p31
      %p33 = scmp.ne.s32.totalorder %s22, %s25
      %p34 = scmp.eq.s32.totalorder %s17, 2
      %p35 = por %p33, %p34
      %p36 = scmp.ne.s32.totalorder %s25, %s26
      %p37 = scmp.eq.s32.totalorder %s17, 0
      %p38 = por %p36, %p37
      %p39 = scmp.ne.s32.totalorder %s25, %s26
      %p40 = scmp.eq.s32.totalorder %s18, 2
      %p41 = por %p39, %p40
      %p43 = scmp.ne.s32.totalorder %s26, %s42
      %p44 = scmp.eq.s32.totalorder %s18, 0
      %p45 = por %p43, %p44
      %s46 = ssub.s32 %s12, %s19
      %p47 = scmp.eq.s32.totalorder %s46, 0
      %s49 = sadd.s32 %s48, 1
      %s50 = scalar_select %p47, %s48, %s49
      %p53 = pneg %p47
      %p54 = scmp.eq.s32.totalorder %s12, 2
      %p55 = por %p53, %p54
      %p56 = scmp.ne.s32.totalorder %s48, %s51
      %p57 = scmp.eq.s32.totalorder %s12, 0
      %p58 = por %p56, %p57
      %p59 = scmp.ne.s32.totalorder %s48, %s51
      %p60 = scmp.eq.s32.totalorder %s17, 2
      %p61 = por %p59, %p60
      %p62 = scmp.ne.s32.totalorder %s51, %s52
      %p63 = scmp.eq.s32.totalorder %s17, 0
      %p64 = por %p62, %p63
      %p65 = scmp.ne.s32.totalorder %s51, %s52
      %p66 = scmp.eq.s32.totalorder %s18, 2
      %p67 = por %p65, %p66
      %p69 = scmp.ne.s32.totalorder %s52, %s68
      %p70 = scmp.eq.s32.totalorder %s18, 0
      %p71 = por %p69, %p70
      %s73 = sadd.s32 %s72, 1
      %p76 = scmp.eq.s32.totalorder %s12, 2
      %p77 = scmp.ne.s32.totalorder %s72, %s74
      %p78 = scmp.eq.s32.totalorder %s12, 0
      %p79 = por %p77, %p78
      %p80 = scmp.ne.s32.totalorder %s72, %s74
      %p81 = scmp.eq.s32.totalorder %s17, 2
      %p82 = por %p80, %p81
      %p83 = scmp.ne.s32.totalorder %s74, %s75
      %p84 = scmp.eq.s32.totalorder %s17, 0
      %p85 = por %p83, %p84
      %p86 = scmp.ne.s32.totalorder %s74, %s75
      %p87 = scmp.eq.s32.totalorder %s18, 2
      %p88 = por %p86, %p87
      %p90 = scmp.ne.s32.totalorder %s75, %s89
      %p91 = scmp.eq.s32.totalorder %s18, 0
      %p92 = por %p90, %p91
      %s94 = sadd.s32 %s93, 1
      %p97 = scmp.eq.s32.totalorder %s12, 2
      %p98 = scmp.ne.s32.totalorder %s93, %s95
      %p99 = scmp.eq.s32.totalorder %s12, 0
      %p100 = por %p98, %p99
      %p101 = scmp.ne.s32.totalorder %s93, %s95
      %p102 = scmp.eq.s32.totalorder %s17, 2
      %p103 = por %p101, %p102
      %p104 = scmp.ne.s32.totalorder %s95, %s96
      %p105 = scmp.eq.s32.totalorder %s17, 0
      %p106 = por %p104, %p105
      %p107 = scmp.ne.s32.totalorder %s95, %s96
      %p108 = scmp.eq.s32.totalorder %s18, 2
      %p109 = por %p107, %p108
      %p111 = scmp.ne.s32.totalorder %s96, %s110
      %p112 = scmp.eq.s32.totalorder %s18, 0
      %p113 = por %p111, %p112
      %s115 = sadd.s32 %s114, 1
      %p118 = scmp.eq.s32.totalorder %s12, 2
      %p119 = scmp.ne.s32.totalorder %s114, %s116
      %p120 = scmp.eq.s32.totalorder %s12, 0
      %p121 = por %p119, %p120
      %p122 = scmp.ne.s32.totalorder %s114, %s116
      %p123 = scmp.eq.s32.totalorder %s17, 2
      %p124 = por %p122, %p123
      %p125 = scmp.ne.s32.totalorder %s116, %s117
      %p126 = scmp.eq.s32.totalorder %s17, 0
      %p127 = por %p125, %p126
      %p128 = scmp.ne.s32.totalorder %s116, %s117
      %p129 = scmp.eq.s32.totalorder %s18, 2
      %p130 = por %p128, %p129
      %p132 = scmp.ne.s32.totalorder %s117, %s131
      %p133 = scmp.eq.s32.totalorder %s18, 0
      %p134 = por %p132, %p133
      %s136 = sadd.s32 %s135, 1
      %p139 = scmp.eq.s32.totalorder %s12, 2
      %p140 = scmp.ne.s32.totalorder %s135, %s137
      %p141 = scmp.eq.s32.totalorder %s12, 0
      %p142 = por %p140, %p141
      %p143 = scmp.ne.s32.totalorder %s135, %s137
      %p144 = scmp.eq.s32.totalorder %s17, 2
      %p145 = por %p143, %p144
      %p146 = scmp.ne.s32.totalorder %s137, %s138
      %p147 = scmp.eq.s32.totalorder %s17, 0
      %p148 = por %p146, %p147
      %p149 = scmp.ne.s32.totalorder %s137, %s138
      %p150 = scmp.eq.s32.totalorder %s18, 2
      %p151 = por %p149, %p150
      %p153 = scmp.ne.s32.totalorder %s138, %s152
      %p154 = scmp.eq.s32.totalorder %s18, 0
      %p155 = por %p153, %p154
      %p156 = scmp.le.s32.totalorder 1, %s12
      %p157 = scmp.lt.s32.totalorder %s12, 4
      %p158 = pnand %p156, %p157
      %p159 = pneg %p158
      // Predicated region
      $region9: #{_lambda_.5} parent=5 // pred_check
        _
      $region10: #{_lambda_.5} parent=5 // pred_check_branch
        %161 = sbr.rel (%p158) target = $region12
      $region11: #{_lambda_.5} parent=5 // pred_region
        %s162 = ssub.s32 %s12, 1
        // Predicated region
        $region13: #{_lambda_.5} parent=11 // pred_check
          %p163 = pneg %p85
        $region14: #{_lambda_.5} parent=11 // pred_check_branch
          %165 = sbr.rel (%p163) target = $region16
        $region15: #{_lambda_.5} parent=11 // pred_region
          _
        $region16: #{_lambda_.5} parent=11 // pred_fallthru
          _
        // Predicated region
        $region17: #{_lambda_.5} parent=11 // pred_check
          %p166 = pneg %p106
        $region18: #{_lambda_.5} parent=11 // pred_check_branch
          %168 = sbr.rel (%p166) target = $region20
        $region19: #{_lambda_.5} parent=11 // pred_region
          _
        $region20: #{_lambda_.5} parent=11 // pred_fallthru
          _
        // Predicated region
        $region21: #{_lambda_.5} parent=11 // pred_check
          %p169 = pneg %p127
        $region22: #{_lambda_.5} parent=11 // pred_check_branch
          %171 = sbr.rel (%p169) target = $region24
        $region23: #{_lambda_.5} parent=11 // pred_region
          _
        $region24: #{_lambda_.5} parent=11 // pred_fallthru
          _
      $region12: #{_lambda_.5} parent=5 // pred_fallthru
        _
      %p172 = scmp.lt.s32.totalorder %s12, 3
      // Predicated region
      $region25: #{_lambda_.5} parent=5 // pred_check
        %p173 = pneg %p172
      $region26: #{_lambda_.5} parent=5 // pred_check_branch
        %175 = sbr.rel (%p173) target = $region28
      $region27: #{_lambda_.5} parent=5 // pred_region
        // Predicated region
        $region29: #{_lambda_.5} parent=27 // pred_check
          %p176 = pneg %p32
        $region30: #{_lambda_.5} parent=27 // pred_check_branch
          %178 = sbr.rel (%p176) target = $region32
        $region31: #{_lambda_.5} parent=27 // pred_region
          %p179 = scmp.lt.s32.totalorder %s12, 2
          %s180 = scalar_select %p179, %s12, 2
          %s181 = scalar_lea.vmem %s0, %s180
        $region32: #{_lambda_.5} parent=27 // pred_fallthru
          _
        // Predicated region
        $region33: #{_lambda_.5} parent=27 // pred_check
          %p182 = pneg %p58
        $region34: #{_lambda_.5} parent=27 // pred_check_branch
          %184 = sbr.rel (%p182) target = $region36
        $region35: #{_lambda_.5} parent=27 // pred_region
          %s185 = smul.u32 16, %s12
          %p186 = scmp.lt.s32.totalorder %s185, 47
          %s187 = scalar_select %p186, %s185, 47
          %s188 = smul.addr %s187, 4
          %s189 = scalar_lea.vmem %s1, %s188
          %s190 = smul.u32 16, %s12
        $region36: #{_lambda_.5} parent=27 // pred_fallthru
          _
      $region28: #{_lambda_.5} parent=5 // pred_fallthru
        _
      %p191 = scmp.le.s32.totalorder 1, %s12
      %p192 = scmp.lt.s32.totalorder %s12, 4
      %p193 = pnand %p191, %p192
      %p194 = pneg %p193
      // Predicated region
      $region37: #{_lambda_.5} parent=5 // pred_check
        _
      $region38: #{_lambda_.5} parent=5 // pred_check_branch
        %196 = sbr.rel (%p193) target = $region40
      $region39: #{_lambda_.5} parent=5 // pred_region
        %s197 = ssub.s32 %s12, 1
        %p198 = scmp.lt.s32.totalorder %s17, 2
        %s199 = scalar_select %p198, %s17, 2
        %s200 = scalar_lea.vmem %s0, %s199
        %p201 = pneg %p38
        %p202 = pneg %p35
        %s203 = smul.u32 16, %s17
        %p204 = scmp.lt.s32.totalorder %s203, 47
        %s205 = scalar_select %p204, %s203, 47
        %s206 = smul.addr %s205, 4
        %s207 = scalar_lea.vmem %s1, %s206
        %p208 = pneg %p64
        %p209 = pneg %p61
        %p210 = pneg %p85
        %p211 = pneg %p82
        %p212 = pneg %p106
        %p213 = pneg %p103
        %p214 = pneg %p127
        %p215 = pneg %p124
        %p216 = pneg %p148
        %p217 = pneg %p145
        %p218 = scmp.lt.s32.totalorder %s17, 2
        %s219 = scalar_select %p218, %s17, 2
        %s220 = scalar_lea.vmem %s0, %s219
        %s221 = smul.u32 16, %s17
        %p222 = scmp.lt.s32.totalorder %s221, 47
        %s223 = scalar_select %p222, %s221, 47
        %s224 = smul.addr %s223, 4
        %s225 = scalar_lea.vmem %s1, %s224
        %s226 = smul.u32 16, %s17
        %p228 = scmp.eq.s32.totalorder %s17, 0
        // Predicated region
        $region41: #{_lambda_.5} parent=39 // pred_check
          %p229 = pneg %p228
        $region42: #{_lambda_.5} parent=39 // pred_check_branch
          %231 = sbr.rel (%p229) target = $region44
        $region43: #{_lambda_.5} parent=39 // pred_region
          %232 = vst [vmem:[#allocation2] sm:$0x1] 0.0
        $region44: #{_lambda_.5} parent=39 // pred_fallthru
          _
        %v233 = vld [vmem:[#allocation2] sm:$0x1]
        %v234 = vld [vmem:[%s220] sm:$0x1]
        %v235 = vld [vmem:[%s225] sm:$0xf]
        %v236 = vld [vmem:[%s225 + $0x4] sm:$0xf]
        %v237 = vld [vmem:[%s225 + $0x8] sm:$0xf]
        %v238 = vld [vmem:[%s225 + $0xc] sm:$0xf]
        %v239 = vld [vmem:[%s225 + $0x10] sm:$0xf]
        %v240 = vld [vmem:[%s225 + $0x14] sm:$0xf]
        %v241 = vld [vmem:[%s225 + $0x18] sm:$0xf]
        %v242 = vld [vmem:[%s225 + $0x1c] sm:$0xf]
        %v243 = vld [vmem:[%s225 + $0x20] sm:$0xf]
        %v244 = vld [vmem:[%s225 + $0x24] sm:$0xf]
        %v245 = vld [vmem:[%s225 + $0x28] sm:$0xf]
        %v246 = vld [vmem:[%s225 + $0x2c] sm:$0xf]
        %v247 = vld [vmem:[%s225 + $0x30] sm:$0xf]
        %v248 = vld [vmem:[%s225 + $0x34] sm:$0xf]
        %v249 = vld [vmem:[%s225 + $0x38] sm:$0xf]
        %v250 = vld [vmem:[%s225 + $0x3c] sm:$0xf]
        %v267 = vunpack.c.l.b16 %v235
        %v268 = vunpack.c.l.b16 %v236
        %v269 = vunpack.c.l.b16 %v237
        %v270 = vunpack.c.l.b16 %v238
        %v271 = vunpack.c.l.b16 %v239
        %v272 = vunpack.c.l.b16 %v240
        %v273 = vunpack.c.l.b16 %v241
        %v274 = vunpack.c.l.b16 %v242
        %v275 = vunpack.c.l.b16 %v243
        %v276 = vunpack.c.l.b16 %v244
        %v277 = vunpack.c.l.b16 %v245
        %v278 = vunpack.c.l.b16 %v246
        %v279 = vunpack.c.l.b16 %v247
        %v280 = vunpack.c.l.b16 %v248
        %v281 = vunpack.c.l.b16 %v249
        %v282 = vunpack.c.l.b16 %v250
        %v283 = vpack.c.b16 %v268, %v267
        %v284 = vpack.c.b16 %v270, %v269
        %v285 = vpack.c.b16 %v272, %v271
        %v286 = vpack.c.b16 %v274, %v273
        %v287 = vpack.c.b16 %v276, %v275
        %v288 = vpack.c.b16 %v278, %v277
        %v289 = vpack.c.b16 %v280, %v279
        %v290 = vpack.c.b16 %v282, %v281
        %299 = vmatprep.subr.bf16.mxu0 0
        %300 = vmatpush1.bf16.msra.mxu0 %v283
        %301 = vmatprep.subr.bf16.mxu0 0
        %302 = vmatpush1.bf16.msra.mxu0 %v284
        %303 = vmatprep.subr.bf16.mxu0 0
        %304 = vmatpush1.bf16.msra.mxu0 %v285
        %305 = vmatprep.subr.bf16.mxu0 0
        %306 = vmatpush1.bf16.msra.mxu0 %v286
        %307 = vmatprep.subr.bf16.mxu0 0
        %308 = vmatpush1.bf16.msra.mxu0 %v287
        %309 = vmatprep.subr.bf16.mxu0 0
        %310 = vmatpush1.bf16.msra.mxu0 %v288
        %311 = vmatprep.subr.bf16.mxu0 0
        %312 = vmatpush1.bf16.msra.mxu0 %v289
        %313 = vmatprep.subr.bf16.mxu0 0
        %314 = vmatpush1.bf16.msra.mxu0 %v290
        %315 = vmatprep.subr.bf16.mxu0 0
        %316 = vmatpush1.bf16.msra.mxu0 0
        %317 = vmatprep.subr.bf16.mxu0 0
        %318 = vmatpush1.bf16.msra.mxu0 0
        %319 = vmatprep.subr.bf16.mxu0 0
        %320 = vmatpush1.bf16.msra.mxu0 0
        %321 = vmatprep.subr.bf16.mxu0 0
        %322 = vmatpush1.bf16.msra.mxu0 0
        %323 = vmatprep.subr.bf16.mxu0 0
        %324 = vmatpush1.bf16.msra.mxu0 0
        %325 = vmatprep.subr.bf16.mxu0 0
        %326 = vmatpush1.bf16.msra.mxu0 0
        %327 = vmatprep.subr.bf16.mxu0 0
        %328 = vmatpush1.bf16.msra.mxu0 0
        %329 = vmatprep.subr.bf16.mxu0 0
        %330 = vmatpush1.bf16.msra.mxu0 0
        %331 = vmatprep.mubr.bf16.mxu0 0
        %332 = vmatmul.mubr.bf16.gmra.mrb[0].mxu0 %v234
        %v333 = vpop.f32.mrb[0].mxu0
        %v334 = vadd.f32 0.0, %v333
        %v335 = vpop.f32.mrb[0].mxu0
        %v336 = vpop.f32.mrb[0].mxu0
        %v337 = vpop.f32.mrb[0].mxu0
        %338 = vdwg.mxu0
        %v339 = vadd.f32 %v233, %v334
        %340 = vst [vmem:[#allocation2] sm:$0x1] %v339
        %p341 = scmp.eq.s32.totalorder %s17, 2
        // Predicated region
        $region45: #{_lambda_.5} parent=39 // pred_check
          %p342 = pneg %p341
        $region46: #{_lambda_.5} parent=39 // pred_check_branch
          %344 = sbr.rel (%p342) target = $region48
        $region47: #{_lambda_.5} parent=39 // pred_region
          %v345 = vld [vmem:[#allocation2] sm:$0x1]
          %v346 = vld [vmem:[%s2] sm:$0x1]
          %v347 = vadd.f32 %v345, %v346
          %v348 = vld [vmem:[%s3] sm:$0xff]
          %v349 = vld [vmem:[%s3 + $0x8] sm:$0xff]
          %v350 = vld [vmem:[%s3 + $0x10] sm:$0xff]
          %v351 = vld [vmem:[%s3 + $0x18] sm:$0xff]
          %v352 = vld [vmem:[%s3 + $0x20] sm:$0xff]
          %v353 = vld [vmem:[%s3 + $0x28] sm:$0xff]
          %v354 = vld [vmem:[%s3 + $0x30] sm:$0xff]
          %v355 = vld [vmem:[%s3 + $0x38] sm:$0xff]
          %v356 = vld [vmem:[%s3 + $0x40] sm:$0xff]
          %v357 = vld [vmem:[%s3 + $0x48] sm:$0xff]
          %v358 = vld [vmem:[%s3 + $0x50] sm:$0xff]
          %v359 = vld [vmem:[%s3 + $0x58] sm:$0xff]
          %v360 = vld [vmem:[%s3 + $0x60] sm:$0xff]
          %v361 = vld [vmem:[%s3 + $0x68] sm:$0xff]
          %v362 = vld [vmem:[%s3 + $0x70] sm:$0xff]
          %v363 = vld [vmem:[%s3 + $0x78] sm:$0xff]
          %v364 = vld [vmem:[%s4] sm:$0x1]
          %365 = vmatprep.subr.mxu0 0.0
          %366 = vmatpush1.msra.mxu0 %v348
          %367 = vmatprep.subr.mxu0 0.0
          %368 = vmatpush1.msra.mxu0 %v349
          %369 = vmatprep.subr.mxu0 0.0
          %370 = vmatpush1.msra.mxu0 %v350
          %371 = vmatprep.subr.mxu0 0.0
          %372 = vmatpush1.msra.mxu0 %v351
          %373 = vmatprep.subr.mxu0 0.0
          %374 = vmatpush1.msra.mxu0 %v352
          %375 = vmatprep.subr.mxu0 0.0
          %376 = vmatpush1.msra.mxu0 %v353
          %377 = vmatprep.subr.mxu0 0.0
          %378 = vmatpush1.msra.mxu0 %v354
          %379 = vmatprep.subr.mxu0 0.0
          %380 = vmatpush1.msra.mxu0 %v355
          %381 = vmatprep.subr.mxu0 0.0
          %382 = vmatpush1.msra.mxu0 %v356
          %383 = vmatprep.subr.mxu0 0.0
          %384 = vmatpush1.msra.mxu0 %v357
          %385 = vmatprep.subr.mxu0 0.0
          %386 = vmatpush1.msra.mxu0 %v358
          %387 = vmatprep.subr.mxu0 0.0
          %388 = vmatpush1.msra.mxu0 %v359
          %389 = vmatprep.subr.mxu0 0.0
          %390 = vmatpush1.msra.mxu0 %v360
          %391 = vmatprep.subr.mxu0 0.0
          %392 = vmatpush1.msra.mxu0 %v361
          %393 = vmatprep.subr.mxu0 0.0
          %394 = vmatpush1.msra.mxu0 %v362
          %395 = vmatprep.subr.mxu0 0.0
          %396 = vmatpush1.msra.mxu0 %v363
          %397 = vmatprep.subr.mxu0 0.0
          %398 = vmatpush1.msra.mxu0 0.0
          %399 = vmatprep.subr.mxu0 0.0
          %400 = vmatpush1.msra.mxu0 0.0
          %401 = vmatprep.subr.mxu0 0.0
          %402 = vmatpush1.msra.mxu0 0.0
          %403 = vmatprep.subr.mxu0 0.0
          %404 = vmatpush1.msra.mxu0 0.0
          %405 = vmatprep.subr.mxu0 0.0
          %406 = vmatpush1.msra.mxu0 0.0
          %407 = vmatprep.subr.mxu0 0.0
          %408 = vmatpush1.msra.mxu0 0.0
          %409 = vmatprep.subr.mxu0 0.0
          %410 = vmatpush1.msra.mxu0 0.0
          %411 = vmatprep.subr.mxu0 0.0
          %412 = vmatpush1.msra.mxu0 0.0
          %413 = vmatprep.subr.mxu0 0.0
          %414 = vmatpush1.msra.mxu0 0.0
          %415 = vmatprep.subr.mxu0 0.0
          %416 = vmatpush1.msra.mxu0 0.0
          %417 = vmatprep.subr.mxu0 0.0
          %418 = vmatpush1.msra.mxu0 0.0
          %419 = vmatprep.subr.mxu0 0.0
          %420 = vmatpush1.msra.mxu0 0.0
          %421 = vmatprep.subr.mxu0 0.0
          %422 = vmatpush1.msra.mxu0 0.0
          %423 = vmatprep.subr.mxu0 0.0
          %424 = vmatpush1.msra.mxu0 0.0
          %425 = vmatprep.subr.mxu0 0.0
          %426 = vmatpush1.msra.mxu0 0.0
          %427 = vmatprep.subr.mxu0 0.0
          %428 = vmatpush1.msra.mxu0 0.0
          %429 = vmatprep.mubr.f32.mxu0 0.0
          %430 = vmatmul.mubr.f32.gmra.mrb[0].mxu0 %v347
          %v431 = vpop.f32.mrb[0].mxu0
          %v432 = vadd.f32 %v364, %v431
          %v433 = vpop.f32.mrb[0].mxu0
          %434 = vdwg.mxu0
          %vm435 = vcmask 122880
          %v436 = vsel %vm435, %v432, -inf
          %437 = vmax.xlane.f32.xlu0 %v436
          %v438 = vpop.xlane.xlu0 %437
          %v439 = vsub.f32 %v432, %v438
          %v440 = vmul.f32 %v439, 1.442695
          %v441 = vpow.pop %v440
          %v442 = vsel %vm435, %v441, 0.0
          %443 = vadd.xlane.f32.xlu0 %v442
          %v444 = vpop.xlane.xlu0 %443
          %v445 = vrcp.pop %v444
          %v446 = vmul.f32 %v441, %v445
          %447 = vst.msk [vmem:[#allocation3] sm:$0x1] %vm435, %v446
        $region48: #{_lambda_.5} parent=39 // pred_fallthru
          _
        // Predicated region
        $region49: #{_lambda_.5} parent=39 // pred_check
          %p448 = pneg %p145
        $region50: #{_lambda_.5} parent=39 // pred_check_branch
          %450 = sbr.rel (%p448) target = $region52
        $region51: #{_lambda_.5} parent=39 // pred_region
          %s452 = ssub.s32 16, 16
          %453 = vsyncadd [#allocation4], %s452
          %s455 = sshll.u32 [#allocation3], 4
          %s456 = int_to_ptr.vmem [resolvable:$true] %s455
          %458 = dma.vmem_to_hbm [thread:$0]  %s456, 16, %s5, [#allocation4]
        $region52: #{_lambda_.5} parent=39 // pred_fallthru
          _
        // Predicated region
        $region53: #{_lambda_.5} parent=39 // pred_check
          %p459 = pneg %p145
        $region54: #{_lambda_.5} parent=39 // pred_check_branch
          %461 = sbr.rel (%p459) target = $region56
        $region55: #{_lambda_.5} parent=39 // pred_region
          %462 = dma.done [#allocation4], 16
        $region56: #{_lambda_.5} parent=39 // pred_fallthru
          _
      $region40: #{_lambda_.5} parent=5 // pred_fallthru
        _
      %p463 = scmp.le.s32.totalorder 2, %s12
      // Predicated region
      $region57: #{_lambda_.5} parent=5 // pred_check
        %p464 = pneg %p463
      $region58: #{_lambda_.5} parent=5 // pred_check_branch
        %466 = sbr.rel (%p464) target = $region60
      $region59: #{_lambda_.5} parent=5 // pred_region
        %s467 = ssub.s32 %s12, 2
      $region60: #{_lambda_.5} parent=5 // pred_fallthru
        _
    $region6: #{_lambda_.5} parent=1 // loop_footer
      %s16 = sadd.s32 1, %s12
    $region7: #{_lambda_.5} parent=1 // loop_footer_branch
      %11 = sbr.rel target = $region3
    $region8: #{_lambda_.5} parent=1 // loop_exit
      _
    %468 = vsyncpa [#allocation4], 1
    %s469 = scalar_lea.sflag [#allocation4], 1
    %470 = vsyncpa %s469, 1

// kernel: _lambda_.4
$region0: #{_lambda_.4}
  #allocation0 [shape = 'u32[]', space=smem, size = 0x4, offset = 0x4, fixed_abs, tag = 'smem constant byte address 0x4 - core index']
  #allocation1 [shape = 'u32[144,128]{1,0:T(1,128)}', space=vmem, size = 0x12000, scoped, tag = 'internal scratch']
  #allocation2 [shape = 'f32[64,24]{1,0:T(8,128)}', space=vmem, size = 0x8000, scoped, tag = 'scratch operand']
  %s0 = inlined_call_operand.vmem [shape: bf16[10,10,16], index: 0, kind: input, shape index: {}]
  %s1 = inlined_call_operand.vmem [shape: bf16[9,16,24], index: 1, kind: input, shape index: {}]
  %s2 = inlined_call_operand.vmem [shape: f32[1,24], index: 2, kind: input, shape index: {}]
  %s3 = inlined_call_operand.vmem [shape: f32[1,24], index: 3, kind: input, shape index: {}]
  %s4 = inlined_call_operand.vmem [shape: bf16[4,4,24], index: 4, kind: output, shape index: {}]
  %s5 = sld [smem:[#allocation0]]
  $region26: #{_lambda_.4} parent=0
    _
  %s7 = ssub.s32 1, %s5
  %s8 = scalar_select 0, %s7, %s5
  // Predicated region
  $region2: #{_lambda_.4} parent=0 // pred_check
    _
  $region3: #{_lambda_.4} parent=0 // pred_check_branch
    %10 = sbr.rel (0) target = $region5
  $region4: #{_lambda_.4} parent=0 // pred_region
    _
  $region5: #{_lambda_.4} parent=0 // pred_fallthru
    _
  // Predicated region
  $region6: #{_lambda_.4} parent=0 // pred_check
    _
  $region7: #{_lambda_.4} parent=0 // pred_check_branch
    %12 = sbr.rel (0) target = $region9
  $region8: #{_lambda_.4} parent=0 // pred_region
    _
  $region9: #{_lambda_.4} parent=0 // pred_fallthru
    _
  // Predicated region
  $region10: #{_lambda_.4} parent=0 // pred_check
    _
  $region11: #{_lambda_.4} parent=0 // pred_check_branch
    %14 = sbr.rel (0) target = $region13
  $region12: #{_lambda_.4} parent=0 // pred_region
    _
  $region13: #{_lambda_.4} parent=0 // pred_fallthru
    _
  // Predicated region
  $region14: #{_lambda_.4} parent=0 // pred_check
    _
  $region15: #{_lambda_.4} parent=0 // pred_check_branch
    %16 = sbr.rel (0) target = $region17
  $region16: #{_lambda_.4} parent=0 // pred_region
    _
  $region17: #{_lambda_.4} parent=0 // pred_fallthru
    _
  %v18 = vld [vmem:[%s0] sm:$0xf]
  %v19 = vld [vmem:[%s0 + $0x8] sm:$0xf]
  %v20 = vld [vmem:[%s0 + $0x10] sm:$0xf]
  %v21 = vld [vmem:[%s0 + $0x18] sm:$0xf]
  %v22 = vld [vmem:[%s0 + $0x20] sm:$0xf]
  %v23 = vld [vmem:[%s0 + $0x28] sm:$0xf]
  %v24 = vld [vmem:[%s0 + $0x30] sm:$0xf]
  %v25 = vld [vmem:[%s0 + $0x38] sm:$0xf]
  %v26 = vld [vmem:[%s0 + $0x40] sm:$0xf]
  %v27 = vld [vmem:[%s0 + $0x48] sm:$0xf]
  %v28 = vld [vmem:[%s1] sm:$0xf]
  %v29 = vld [vmem:[%s1 + $0x4] sm:$0xf]
  %s30 = scalar_lea.vmem %s1, 24
  %v31 = vld [vmem:[%s30] sm:$0xf]
  %v32 = vld [vmem:[%s30 + $0x4] sm:$0xf]
  %v41 = vunpack.c.l.b16 %v19
  %v42 = vunpack.c.l.b16 %v20
  %v43 = vunpack.c.l.b16 %v21
  %v44 = vunpack.c.l.b16 %v22
  %v45 = vunpack.c.l.b16 %v23
  %v46 = vunpack.c.l.b16 %v24
  %v47 = vunpack.c.l.b16 %v25
  %v48 = vunpack.c.l.b16 %v26
  %v49 = vpack.c.b16 %v42, %v41
  %v50 = vpack.c.b16 %v44, %v43
  %v51 = vpack.c.b16 %v46, %v45
  %v52 = vpack.c.b16 %v48, %v47
  %v55 = vunpack.c.l.b16 %v31
  %v56 = vunpack.c.l.b16 %v32
  %v57 = vpack.c.b16 %v56, %v55
  %vm59 = vcmask 130048
  %v61 = vsel %vm59, %v49, 0
  %v64 = vsel %vm59, %v50, 0
  %v67 = vsel %vm59, %v51, 0
  %v70 = vsel %vm59, %v52, 0
  %72 = vmatprep.subr.bf16.mxu0 0
  %73 = vmatpush1.bf16.msra.mxu0 %v57
  %74 = vmatprep.subr.bf16.mxu0 0
  %75 = vmatpush1.bf16.msra.mxu0 0
  %76 = vmatprep.subr.bf16.mxu0 0
  %77 = vmatpush1.bf16.msra.mxu0 0
  %78 = vmatprep.subr.bf16.mxu0 0
  %79 = vmatpush1.bf16.msra.mxu0 0
  %80 = vmatprep.subr.bf16.mxu0 0
  %81 = vmatpush1.bf16.msra.mxu0 0
  %82 = vmatprep.subr.bf16.mxu0 0
  %83 = vmatpush1.bf16.msra.mxu0 0
  %84 = vmatprep.subr.bf16.mxu0 0
  %85 = vmatpush1.bf16.msra.mxu0 0
  %86 = vmatprep.subr.bf16.mxu0 0
  %87 = vmatpush1.bf16.msra.mxu0 0
  %88 = vmatprep.subr.bf16.mxu0 0
  %89 = vmatpush1.bf16.msra.mxu0 0
  %90 = vmatprep.subr.bf16.mxu0 0
  %91 = vmatpush1.bf16.msra.mxu0 0
  %92 = vmatprep.subr.bf16.mxu0 0
  %93 = vmatpush1.bf16.msra.mxu0 0
  %94 = vmatprep.subr.bf16.mxu0 0
  %95 = vmatpush1.bf16.msra.mxu0 0
  %96 = vmatprep.subr.bf16.mxu0 0
  %97 = vmatpush1.bf16.msra.mxu0 0
  %98 = vmatprep.subr.bf16.mxu0 0
  %99 = vmatpush1.bf16.msra.mxu0 0
  %100 = vmatprep.subr.bf16.mxu0 0
  %101 = vmatpush1.bf16.msra.mxu0 0
  %102 = vmatprep.subr.bf16.mxu0 0
  %103 = vmatpush1.bf16.msra.mxu0 0
  %104 = vmatprep.mubr.bf16.mxu0 0
  %105 = vmatmul.mubr.bf16.gmra.mrb[0].mxu0 %v61
  %v106 = vpop.f32.mrb[0].mxu0
  %v107 = vadd.f32 0.0, %v106
  %v108 = vpop.f32.mrb[0].mxu0
  %v109 = vpop.f32.mrb[0].mxu0
  %v110 = vadd.f32 0.0, %v109
  %v111 = vpop.f32.mrb[0].mxu0
  %112 = vmatprep.mubr.bf16.mxu0 0
  %113 = vmatmul.mubr.bf16.gmra.mrb[0].mxu0 %v64
  %v114 = vpop.f32.mrb[0].mxu0
  %v115 = vadd.f32 0.0, %v114
  %v116 = vpop.f32.mrb[0].mxu0
  %v117 = vpop.f32.mrb[0].mxu0
  %v118 = vadd.f32 0.0, %v117
  %v119 = vpop.f32.mrb[0].mxu0
  %120 = vmatprep.mubr.bf16.mxu0 0
  %121 = vmatmul.mubr.bf16.gmra.mrb[0].mxu0 %v67
  %v122 = vpop.f32.mrb[0].mxu0
  %v123 = vadd.f32 0.0, %v122
  %v124 = vpop.f32.mrb[0].mxu0
  %v125 = vpop.f32.mrb[0].mxu0
  %v126 = vadd.f32 0.0, %v125
  %v127 = vpop.f32.mrb[0].mxu0
  %128 = vmatprep.mubr.bf16.mxu0 0
  %129 = vmatmul.mubr.bf16.gmra.mrb[0].mxu0 %v70
  %v130 = vpop.f32.mrb[0].mxu0
  %v131 = vadd.f32 0.0, %v130
  %v132 = vpop.f32.mrb[0].mxu0
  %v133 = vpop.f32.mrb[0].mxu0
  %v134 = vadd.f32 0.0, %v133
  %v135 = vpop.f32.mrb[0].mxu0
  %136 = vdwg.mxu0
  %v138 = vunpack.c.l.b16 %v18
  %v139 = vpack.c.b16 %v41, %v138
  %v140 = vpack.c.b16 %v43, %v42
  %v141 = vpack.c.b16 %v45, %v44
  %v142 = vpack.c.b16 %v47, %v46
  %v145 = vunpack.c.l.b16 %v28
  %v146 = vunpack.c.l.b16 %v29
  %v147 = vpack.c.b16 %v146, %v145
  %v150 = vsel %vm59, %v139, 0
  %v153 = vsel %vm59, %v140, 0
  %v156 = vsel %vm59, %v141, 0
  %v159 = vsel %vm59, %v142, 0
  %161 = vmatprep.subr.bf16.mxu0 0
  %162 = vmatpush1.bf16.msra.mxu0 %v147
  %163 = vmatprep.subr.bf16.mxu0 0
  %164 = vmatpush1.bf16.msra.mxu0 0
  %165 = vmatprep.subr.bf16.mxu0 0
  %166 = vmatpush1.bf16.msra.mxu0 0
  %167 = vmatprep.subr.bf16.mxu0 0
  %168 = vmatpush1.bf16.msra.mxu0 0
  %169 = vmatprep.subr.bf16.mxu0 0
  %170 = vmatpush1.bf16.msra.mxu0 0
  %171 = vmatprep.subr.bf16.mxu0 0
  %172 = vmatpush1.bf16.msra.mxu0 0
  %173 = vmatprep.subr.bf16.mxu0 0
  %174 = vmatpush1.bf16.msra.mxu0 0
  %175 = vmatprep.subr.bf16.mxu0 0
  %176 = vmatpush1.bf16.msra.mxu0 0
  %177 = vmatprep.subr.bf16.mxu0 0
  %178 = vmatpush1.bf16.msra.mxu0 0
  %179 = vmatprep.subr.bf16.mxu0 0
  %180 = vmatpush1.bf16.msra.mxu0 0
  %181 = vmatprep.subr.bf16.mxu0 0
  %182 = vmatpush1.bf16.msra.mxu0 0
  %183 = vmatprep.subr.bf16.mxu0 0
  %184 = vmatpush1.bf16.msra.mxu0 0
  %185 = vmatprep.subr.bf16.mxu0 0
  %186 = vmatpush1.bf16.msra.mxu0 0
  %187 = vmatprep.subr.bf16.mxu0 0
  %188 = vmatpush1.bf16.msra.mxu0 0
  %189 = vmatprep.subr.bf16.mxu0 0
  %190 = vmatpush1.bf16.msra.mxu0 0
  %191 = vmatprep.subr.bf16.mxu0 0
  %192 = vmatpush1.bf16.msra.mxu0 0
  %193 = vmatprep.mubr.bf16.mxu0 0
  %194 = vmatmul.mubr.bf16.gmra.mrb[0].mxu0 %v150
  %v195 = vpop.f32.mrb[0].mxu0
  %v196 = vadd.f32 %v107, %v195
  %v197 = vpop.f32.mrb[0].mxu0
  %v198 = vpop.f32.mrb[0].mxu0
  %v199 = vadd.f32 %v110, %v198
  %v200 = vpop.f32.mrb[0].mxu0
  %201 = vmatprep.mubr.bf16.mxu0 0
  %202 = vmatmul.mubr.bf16.gmra.mrb[0].mxu0 %v153
  %v203 = vpop.f32.mrb[0].mxu0
  %v204 = vadd.f32 %v115, %v203
  %v205 = vpop.f32.mrb[0].mxu0
  %v206 = vpop.f32.mrb[0].mxu0
  %v207 = vadd.f32 %v118, %v206
  %v208 = vpop.f32.mrb[0].mxu0
  %209 = vmatprep.mubr.bf16.mxu0 0
  %210 = vmatmul.mubr.bf16.gmra.mrb[0].mxu0 %v156
  %v211 = vpop.f32.mrb[0].mxu0
  %v212 = vadd.f32 %v123, %v211
  %v213 = vpop.f32.mrb[0].mxu0
  %v214 = vpop.f32.mrb[0].mxu0
  %v215 = vadd.f32 %v126, %v214
  %v216 = vpop.f32.mrb[0].mxu0
  %217 = vmatprep.mubr.bf16.mxu0 0
  %218 = vmatmul.mubr.bf16.gmra.mrb[0].mxu0 %v159
  %v219 = vpop.f32.mrb[0].mxu0
  %v220 = vadd.f32 %v131, %v219
  %v221 = vpop.f32.mrb[0].mxu0
  %v222 = vpop.f32.mrb[0].mxu0
  %v223 = vadd.f32 %v134, %v222
  %v224 = vpop.f32.mrb[0].mxu0
  %225 = vdwg.mxu0
  %s226 = scalar_lea.vmem %s1, 48
  %v227 = vld [vmem:[%s226] sm:$0xf]
  %v228 = vld [vmem:[%s226 + $0x4] sm:$0xf]
  %v230 = vunpack.c.l.b16 %v27
  %v231 = vpack.c.b16 %v230, %v48
  %v234 = vunpack.c.l.b16 %v227
  %v235 = vunpack.c.l.b16 %v228
  %v236 = vpack.c.b16 %v235, %v234
  %v239 = vsel %vm59, %v231, 0
  %241 = vmatprep.subr.bf16.mxu0 0
  %242 = vmatpush1.bf16.msra.mxu0 %v236
  %243 = vmatprep.subr.bf16.mxu0 0
  %244 = vmatpush1.bf16.msra.mxu0 0
  %245 = vmatprep.subr.bf16.mxu0 0
  %246 = vmatpush1.bf16.msra.mxu0 0
  %247 = vmatprep.subr.bf16.mxu0 0
  %248 = vmatpush1.bf16.msra.mxu0 0
  %249 = vmatprep.subr.bf16.mxu0 0
  %250 = vmatpush1.bf16.msra.mxu0 0
  %251 = vmatprep.subr.bf16.mxu0 0
  %252 = vmatpush1.bf16.msra.mxu0 0
  %253 = vmatprep.subr.bf16.mxu0 0
  %254 = vmatpush1.bf16.msra.mxu0 0
  %255 = vmatprep.subr.bf16.mxu0 0
  %256 = vmatpush1.bf16.msra.mxu0 0
  %257 = vmatprep.subr.bf16.mxu0 0
  %258 = vmatpush1.bf16.msra.mxu0 0
  %259 = vmatprep.subr.bf16.mxu0 0
  %260 = vmatpush1.bf16.msra.mxu0 0
  %261 = vmatprep.subr.bf16.mxu0 0
  %262 = vmatpush1.bf16.msra.mxu0 0
  %263 = vmatprep.subr.bf16.mxu0 0
  %264 = vmatpush1.bf16.msra.mxu0 0
  %265 = vmatprep.subr.bf16.mxu0 0
  %266 = vmatpush1.bf16.msra.mxu0 0
  %267 = vmatprep.subr.bf16.mxu0 0
  %268 = vmatpush1.bf16.msra.mxu0 0
  %269 = vmatprep.subr.bf16.mxu0 0
  %270 = vmatpush1.bf16.msra.mxu0 0
  %271 = vmatprep.subr.bf16.mxu0 0
  %272 = vmatpush1.bf16.msra.mxu0 0
  %273 = vmatprep.mubr.bf16.mxu0 0
  %274 = vmatmul.mubr.bf16.gmra.mrb[0].mxu0 %v153
  %v275 = vpop.f32.mrb[0].mxu0
  %v276 = vadd.f32 0.0, %v275
  %v277 = vpop.f32.mrb[0].mxu0
  %v278 = vpop.f32.mrb[0].mxu0
  %v279 = vadd.f32 0.0, %v278
  %v280 = vpop.f32.mrb[0].mxu0
  %281 = vmatprep.mubr.bf16.mxu0 0
  %282 = vmatmul.mubr.bf16.gmra.mrb[0].mxu0 %v156
  %v283 = vpop.f32.mrb[0].mxu0
  %v284 = vadd.f32 0.0, %v283
  %v285 = vpop.f32.mrb[0].mxu0
  %v286 = vpop.f32.mrb[0].mxu0
  %v287 = vadd.f32 0.0, %v286
  %v288 = vpop.f32.mrb[0].mxu0
  %289 = vmatprep.mubr.bf16.mxu0 0
  %290 = vmatmul.mubr.bf16.gmra.mrb[0].mxu0 %v159
  %v291 = vpop.f32.mrb[0].mxu0
  %v292 = vadd.f32 0.0, %v291
  %v293 = vpop.f32.mrb[0].mxu0
  %v294 = vpop.f32.mrb[0].mxu0
  %v295 = vadd.f32 0.0, %v294
  %v296 = vpop.f32.mrb[0].mxu0
  %297 = vmatprep.mubr.bf16.mxu0 0
  %298 = vmatmul.mubr.bf16.gmra.mrb[0].mxu0 %v239
  %v299 = vpop.f32.mrb[0].mxu0
  %v300 = vadd.f32 0.0, %v299
  %v301 = vpop.f32.mrb[0].mxu0
  %v302 = vpop.f32.mrb[0].mxu0
  %v303 = vadd.f32 0.0, %v302
  %v304 = vpop.f32.mrb[0].mxu0
  %305 = vdwg.mxu0
  %v306 = vadd.f32 %v196, %v276
  %v307 = vadd.f32 %v199, %v279
  %v308 = vadd.f32 %v204, %v284
  %v309 = vadd.f32 %v207, %v287
  %v310 = vadd.f32 %v212, %v292
  %v311 = vadd.f32 %v215, %v295
  %v312 = vadd.f32 %v220, %v300
  %v313 = vadd.f32 %v223, %v303
  %v314 = vld [vmem:[%s0] sm:$0xf]
  %v315 = vld [vmem:[%s0 + $0x4] sm:$0x1]
  %v316 = vld [vmem:[%s0 + $0x8] sm:$0xf]
  %v317 = vld [vmem:[%s0 + $0xc] sm:$0x1]
  %v318 = vld [vmem:[%s0 + $0x10] sm:$0xf]
  %v319 = vld [vmem:[%s0 + $0x14] sm:$0x1]
  %v320 = vld [vmem:[%s0 + $0x18] sm:$0xf]
  %v321 = vld [vmem:[%s0 + $0x1c] sm:$0x1]
  %v322 = vld [vmem:[%s0 + $0x20] sm:$0xf]
  %v323 = vld [vmem:[%s0 + $0x24] sm:$0x1]
  %v324 = vld [vmem:[%s0 + $0x28] sm:$0xf]
  %v325 = vld [vmem:[%s0 + $0x2c] sm:$0x1]
  %v326 = vld [vmem:[%s0 + $0x30] sm:$0xf]
  %v327 = vld [vmem:[%s0 + $0x34] sm:$0x1]
  %v328 = vld [vmem:[%s0 + $0x38] sm:$0xf]
  %v329 = vld [vmem:[%s0 + $0x3c] sm:$0x1]
  %v330 = vld [vmem:[%s0 + $0x40] sm:$0xf]
  %v331 = vld [vmem:[%s0 + $0x44] sm:$0x1]
  %v332 = vld [vmem:[%s0 + $0x48] sm:$0xf]
  %v333 = vld [vmem:[%s0 + $0x4c] sm:$0x1]
  %vm334 = vsmask.f32 3328
  %vm335 = vsmask.f32 7440
  %vm336 = vmor %vm334, %vm335
  %v338 = vshrl.u32 %v314, 16
  %v340 = vrot.slane %v338, 4
  %v341 = vshll.u32 %v314, 16
  %v343 = vrot.slane %v341, 5
  %v344 = vor.u32 %v340, %v343
  %v345 = vrot.slane %v344, 4
  %v347 = vshll.u32 %v315, 16
  %v349 = vrot.slane %v347, 5
  %v350 = vsel %vm336, %v345, %v349
  %v352 = vshrl.u32 %v316, 16
  %v354 = vrot.slane %v352, 4
  %v355 = vshll.u32 %v316, 16
  %v357 = vrot.slane %v355, 5
  %v358 = vor.u32 %v354, %v357
  %v359 = vrot.slane %v358, 4
  %v361 = vshll.u32 %v317, 16
  %v363 = vrot.slane %v361, 5
  %v364 = vsel %vm336, %v359, %v363
  %v366 = vshrl.u32 %v318, 16
  %v368 = vrot.slane %v366, 4
  %v369 = vshll.u32 %v318, 16
  %v371 = vrot.slane %v369, 5
  %v372 = vor.u32 %v368, %v371
  %v373 = vrot.slane %v372, 4
  %v375 = vshll.u32 %v319, 16
  %v377 = vrot.slane %v375, 5
  %v378 = vsel %vm336, %v373, %v377
  %v380 = vshrl.u32 %v320, 16
  %v382 = vrot.slane %v380, 4
  %v383 = vshll.u32 %v320, 16
  %v385 = vrot.slane %v383, 5
  %v386 = vor.u32 %v382, %v385
  %v387 = vrot.slane %v386, 4
  %v389 = vshll.u32 %v321, 16
  %v391 = vrot.slane %v389, 5
  %v392 = vsel %vm336, %v387, %v391
  %v394 = vshrl.u32 %v322, 16
  %v396 = vrot.slane %v394, 4
  %v397 = vshll.u32 %v322, 16
  %v399 = vrot.slane %v397, 5
  %v400 = vor.u32 %v396, %v399
  %v401 = vrot.slane %v400, 4
  %v403 = vshll.u32 %v323, 16
  %v405 = vrot.slane %v403, 5
  %v406 = vsel %vm336, %v401, %v405
  %v408 = vshrl.u32 %v324, 16
  %v410 = vrot.slane %v408, 4
  %v411 = vshll.u32 %v324, 16
  %v413 = vrot.slane %v411, 5
  %v414 = vor.u32 %v410, %v413
  %v415 = vrot.slane %v414, 4
  %v417 = vshll.u32 %v325, 16
  %v419 = vrot.slane %v417, 5
  %v420 = vsel %vm336, %v415, %v419
  %v422 = vshrl.u32 %v326, 16
  %v424 = vrot.slane %v422, 4
  %v425 = vshll.u32 %v326, 16
  %v427 = vrot.slane %v425, 5
  %v428 = vor.u32 %v424, %v427
  %v429 = vrot.slane %v428, 4
  %v431 = vshll.u32 %v327, 16
  %v433 = vrot.slane %v431, 5
  %v434 = vsel %vm336, %v429, %v433
  %v436 = vshrl.u32 %v328, 16
  %v438 = vrot.slane %v436, 4
  %v439 = vshll.u32 %v328, 16
  %v441 = vrot.slane %v439, 5
  %v442 = vor.u32 %v438, %v441
  %v443 = vrot.slane %v442, 4
  %v445 = vshll.u32 %v329, 16
  %v447 = vrot.slane %v445, 5
  %v448 = vsel %vm336, %v443, %v447
  %v450 = vshrl.u32 %v330, 16
  %v452 = vrot.slane %v450, 4
  %v453 = vshll.u32 %v330, 16
  %v455 = vrot.slane %v453, 5
  %v456 = vor.u32 %v452, %v455
  %v457 = vrot.slane %v456, 4
  %v459 = vshll.u32 %v331, 16
  %v461 = vrot.slane %v459, 5
  %v462 = vsel %vm336, %v457, %v461
  %v464 = vshrl.u32 %v332, 16
  %v466 = vrot.slane %v464, 4
  %v467 = vshll.u32 %v332, 16
  %v469 = vrot.slane %v467, 5
  %v470 = vor.u32 %v466, %v469
  %v471 = vrot.slane %v470, 4
  %v473 = vshll.u32 %v333, 16
  %v475 = vrot.slane %v473, 5
  %v476 = vsel %vm336, %v471, %v475
  %s477 = scalar_lea.vmem %s1, 8
  %v478 = vld [vmem:[%s477] sm:$0xf]
  %v479 = vld [vmem:[%s477 + $0x4] sm:$0xf]
  %v480 = vunpack.c.l.b16 %v350
  %v481 = vunpack.c.l.b16 %v364
  %v482 = vunpack.c.l.b16 %v378
  %v483 = vunpack.c.l.b16 %v392
  %v484 = vunpack.c.l.b16 %v406
  %v485 = vunpack.c.l.b16 %v420
  %v486 = vunpack.c.l.b16 %v434
  %v487 = vunpack.c.l.b16 %v448
  %v488 = vpack.c.b16 %v481, %v480
  %v489 = vpack.c.b16 %v483, %v482
  %v490 = vpack.c.b16 %v485, %v484
  %v491 = vpack.c.b16 %v487, %v486
  %v494 = vunpack.c.l.b16 %v478
  %v495 = vunpack.c.l.b16 %v479
  %v496 = vpack.c.b16 %v495, %v494
  %v499 = vsel %vm59, %v488, 0
  %v502 = vsel %vm59, %v489, 0
  %v505 = vsel %vm59, %v490, 0
  %v508 = vsel %vm59, %v491, 0
  %510 = vmatprep.subr.bf16.mxu0 0
  %511 = vmatpush1.bf16.msra.mxu0 %v496
  %512 = vmatprep.subr.bf16.mxu0 0
  %513 = vmatpush1.bf16.msra.mxu0 0
  %514 = vmatprep.subr.bf16.mxu0 0
  %515 = vmatpush1.bf16.msra.mxu0 0
  %516 = vmatprep.subr.bf16.mxu0 0
  %517 = vmatpush1.bf16.msra.mxu0 0
  %518 = vmatprep.subr.bf16.mxu0 0
  %519 = vmatpush1.bf16.msra.mxu0 0
  %520 = vmatprep.subr.bf16.mxu0 0
  %521 = vmatpush1.bf16.msra.mxu0 0
  %522 = vmatprep.subr.bf16.mxu0 0
  %523 = vmatpush1.bf16.msra.mxu0 0
  %524 = vmatprep.subr.bf16.mxu0 0
  %525 = vmatpush1.bf16.msra.mxu0 0
  %526 = vmatprep.subr.bf16.mxu0 0
  %527 = vmatpush1.bf16.msra.mxu0 0
  %528 = vmatprep.subr.bf16.mxu0 0
  %529 = vmatpush1.bf16.msra.mxu0 0
  %530 = vmatprep.subr.bf16.mxu0 0
  %531 = vmatpush1.bf16.msra.mxu0 0
  %532 = vmatprep.subr.bf16.mxu0 0
  %533 = vmatpush1.bf16.msra.mxu0 0
  %534 = vmatprep.subr.bf16.mxu0 0
  %535 = vmatpush1.bf16.msra.mxu0 0
  %536 = vmatprep.subr.bf16.mxu0 0
  %537 = vmatpush1.bf16.msra.mxu0 0
  %538 = vmatprep.subr.bf16.mxu0 0
  %539 = vmatpush1.bf16.msra.mxu0 0
  %540 = vmatprep.subr.bf16.mxu0 0
  %541 = vmatpush1.bf16.msra.mxu0 0
  %542 = vmatprep.mubr.bf16.mxu0 0
  %543 = vmatmul.mubr.bf16.gmra.mrb[0].mxu0 %v499
  %v544 = vpop.f32.mrb[0].mxu0
  %v545 = vadd.f32 0.0, %v544
  %v546 = vpop.f32.mrb[0].mxu0
  %v547 = vpop.f32.mrb[0].mxu0
  %v548 = vadd.f32 0.0, %v547
  %v549 = vpop.f32.mrb[0].mxu0
  %550 = vmatprep.mubr.bf16.mxu0 0
  %551 = vmatmul.mubr.bf16.gmra.mrb[0].mxu0 %v502
  %v552 = vpop.f32.mrb[0].mxu0
  %v553 = vadd.f32 0.0, %v552
  %v554 = vpop.f32.mrb[0].mxu0
  %v555 = vpop.f32.mrb[0].mxu0
  %v556 = vadd.f32 0.0, %v555
  %v557 = vpop.f32.mrb[0].mxu0
  %558 = vmatprep.mubr.bf16.mxu0 0
  %559 = vmatmul.mubr.bf16.gmra.mrb[0].mxu0 %v505
  %v560 = vpop.f32.mrb[0].mxu0
  %v561 = vadd.f32 0.0, %v560
  %v562 = vpop.f32.mrb[0].mxu0
  %v563 = vpop.f32.mrb[0].mxu0
  %v564 = vadd.f32 0.0, %v563
  %v565 = vpop.f32.mrb[0].mxu0
  %566 = vmatprep.mubr.bf16.mxu0 0
  %567 = vmatmul.mubr.bf16.gmra.mrb[0].mxu0 %v508
  %v568 = vpop.f32.mrb[0].mxu0
  %v569 = vadd.f32 0.0, %v568
  %v570 = vpop.f32.mrb[0].mxu0
  %v571 = vpop.f32.mrb[0].mxu0
  %v572 = vadd.f32 0.0, %v571
  %v573 = vpop.f32.mrb[0].mxu0
  %574 = vdwg.mxu0
  %v575 = vadd.f32 %v306, %v545
  %v576 = vadd.f32 %v307, %v548
  %v577 = vadd.f32 %v308, %v553
  %v578 = vadd.f32 %v309, %v556
  %v579 = vadd.f32 %v310, %v561
  %v580 = vadd.f32 %v311, %v564
  %v581 = vadd.f32 %v312, %v569
  %v582 = vadd.f32 %v313, %v572
  %s583 = scalar_lea.vmem %s1, 32
  %v584 = vld [vmem:[%s583] sm:$0xf]
  %v585 = vld [vmem:[%s583 + $0x4] sm:$0xf]
  %v586 = vunpack.c.l.b16 %v462
  %v587 = vpack.c.b16 %v482, %v481
  %v588 = vpack.c.b16 %v484, %v483
  %v589 = vpack.c.b16 %v486, %v485
  %v590 = vpack.c.b16 %v586, %v487
  %v593 = vunpack.c.l.b16 %v584
  %v594 = vunpack.c.l.b16 %v585
  %v595 = vpack.c.b16 %v594, %v593
  %v598 = vsel %vm59, %v587, 0
  %v601 = vsel %vm59, %v588, 0
  %v604 = vsel %vm59, %v589, 0
  %v607 = vsel %vm59, %v590, 0
  %609 = vmatprep.subr.bf16.mxu0 0
  %610 = vmatpush1.bf16.msra.mxu0 %v595
  %611 = vmatprep.subr.bf16.mxu0 0
  %612 = vmatpush1.bf16.msra.mxu0 0
  %613 = vmatprep.subr.bf16.mxu0 0
  %614 = vmatpush1.bf16.msra.mxu0 0
  %615 = vmatprep.subr.bf16.mxu0 0
  %616 = vmatpush1.bf16.msra.mxu0 0
  %617 = vmatprep.subr.bf16.mxu0 0
  %618 = vmatpush1.bf16.msra.mxu0 0
  %619 = vmatprep.subr.bf16.mxu0 0
  %620 = vmatpush1.bf16.msra.mxu0 0
  %621 = vmatprep.subr.bf16.mxu0 0
  %622 = vmatpush1.bf16.msra.mxu0 0
  %623 = vmatprep.subr.bf16.mxu0 0
  %624 = vmatpush1.bf16.msra.mxu0 0
  %625 = vmatprep.subr.bf16.mxu0 0
  %626 = vmatpush1.bf16.msra.mxu0 0
  %627 = vmatprep.subr.bf16.mxu0 0
  %628 = vmatpush1.bf16.msra.mxu0 0
  %629 = vmatprep.subr.bf16.mxu0 0
  %630 = vmatpush1.bf16.msra.mxu0 0
  %631 = vmatprep.subr.bf16.mxu0 0
  %632 = vmatpush1.bf16.msra.mxu0 0
  %633 = vmatprep.subr.bf16.mxu0 0
  %634 = vmatpush1.bf16.msra.mxu0 0
  %635 = vmatprep.subr.bf16.mxu0 0
  %636 = vmatpush1.bf16.msra.mxu0 0
  %637 = vmatprep.subr.bf16.mxu0 0
  %638 = vmatpush1.bf16.msra.mxu0 0
  %639 = vmatprep.subr.bf16.mxu0 0
  %640 = vmatpush1.bf16.msra.mxu0 0
  %641 = vmatprep.mubr.bf16.mxu0 0
  %642 = vmatmul.mubr.bf16.gmra.mrb[0].mxu0 %v598
  %v643 = vpop.f32.mrb[0].mxu0
  %v644 = vadd.f32 0.0, %v643
  %v645 = vpop.f32.mrb[0].mxu0
  %v646 = vpop.f32.mrb[0].mxu0
  %v647 = vadd.f32 0.0, %v646
  %v648 = vpop.f32.mrb[0].mxu0
  %649 = vmatprep.mubr.bf16.mxu0 0
  %650 = vmatmul.mubr.bf16.gmra.mrb[0].mxu0 %v601
  %v651 = vpop.f32.mrb[0].mxu0
  %v652 = vadd.f32 0.0, %v651
  %v653 = vpop.f32.mrb[0].mxu0
  %v654 = vpop.f32.mrb[0].mxu0
  %v655 = vadd.f32 0.0, %v654
  %v656 = vpop.f32.mrb[0].mxu0
  %657 = vmatprep.mubr.bf16.mxu0 0
  %658 = vmatmul.mubr.bf16.gmra.mrb[0].mxu0 %v604
  %v659 = vpop.f32.mrb[0].mxu0
  %v660 = vadd.f32 0.0, %v659
  %v661 = vpop.f32.mrb[0].mxu0
  %v662 = vpop.f32.mrb[0].mxu0
  %v663 = vadd.f32 0.0, %v662
  %v664 = vpop.f32.mrb[0].mxu0
  %665 = vmatprep.mubr.bf16.mxu0 0
  %666 = vmatmul.mubr.bf16.gmra.mrb[0].mxu0 %v607
  %v667 = vpop.f32.mrb[0].mxu0
  %v668 = vadd.f32 0.0, %v667
  %v669 = vpop.f32.mrb[0].mxu0
  %v670 = vpop.f32.mrb[0].mxu0
  %v671 = vadd.f32 0.0, %v670
  %v672 = vpop.f32.mrb[0].mxu0
  %673 = vdwg.mxu0
  %v674 = vadd.f32 %v575, %v644
  %v675 = vadd.f32 %v576, %v647
  %v676 = vadd.f32 %v577, %v652
  %v677 = vadd.f32 %v578, %v655
  %v678 = vadd.f32 %v579, %v660
  %v679 = vadd.f32 %v580, %v663
  %v680 = vadd.f32 %v581, %v668
  %v681 = vadd.f32 %v582, %v671
  %s682 = scalar_lea.vmem %s1, 56
  %v683 = vld [vmem:[%s682] sm:$0xf]
  %v684 = vld [vmem:[%s682 + $0x4] sm:$0xf]
  %v685 = vunpack.c.l.b16 %v476
  %v686 = vpack.c.b16 %v685, %v586
  %v689 = vunpack.c.l.b16 %v683
  %v690 = vunpack.c.l.b16 %v684
  %v691 = vpack.c.b16 %v690, %v689
  %v694 = vsel %vm59, %v686, 0
  %696 = vmatprep.subr.bf16.mxu0 0
  %697 = vmatpush1.bf16.msra.mxu0 %v691
  %698 = vmatprep.subr.bf16.mxu0 0
  %699 = vmatpush1.bf16.msra.mxu0 0
  %700 = vmatprep.subr.bf16.mxu0 0
  %701 = vmatpush1.bf16.msra.mxu0 0
  %702 = vmatprep.subr.bf16.mxu0 0
  %703 = vmatpush1.bf16.msra.mxu0 0
  %704 = vmatprep.subr.bf16.mxu0 0
  %705 = vmatpush1.bf16.msra.mxu0 0
  %706 = vmatprep.subr.bf16.mxu0 0
  %707 = vmatpush1.bf16.msra.mxu0 0
  %708 = vmatprep.subr.bf16.mxu0 0
  %709 = vmatpush1.bf16.msra.mxu0 0
  %710 = vmatprep.subr.bf16.mxu0 0
  %711 = vmatpush1.bf16.msra.mxu0 0
  %712 = vmatprep.subr.bf16.mxu0 0
  %713 = vmatpush1.bf16.msra.mxu0 0
  %714 = vmatprep.subr.bf16.mxu0 0
  %715 = vmatpush1.bf16.msra.mxu0 0
  %716 = vmatprep.subr.bf16.mxu0 0
  %717 = vmatpush1.bf16.msra.mxu0 0
  %718 = vmatprep.subr.bf16.mxu0 0
  %719 = vmatpush1.bf16.msra.mxu0 0
  %720 = vmatprep.subr.bf16.mxu0 0
  %721 = vmatpush1.bf16.msra.mxu0 0
  %722 = vmatprep.subr.bf16.mxu0 0
  %723 = vmatpush1.bf16.msra.mxu0 0
  %724 = vmatprep.subr.bf16.mxu0 0
  %725 = vmatpush1.bf16.msra.mxu0 0
  %726 = vmatprep.subr.bf16.mxu0 0
  %727 = vmatpush1.bf16.msra.mxu0 0
  %728 = vmatprep.mubr.bf16.mxu0 0
  %729 = vmatmul.mubr.bf16.gmra.mrb[0].mxu0 %v502
  %v730 = vpop.f32.mrb[0].mxu0
  %v731 = vadd.f32 0.0, %v730
  %v732 = vpop.f32.mrb[0].mxu0
  %v733 = vpop.f32.mrb[0].mxu0
  %v734 = vadd.f32 0.0, %v733
  %v735 = vpop.f32.mrb[0].mxu0
  %736 = vmatprep.mubr.bf16.mxu0 0
  %737 = vmatmul.mubr.bf16.gmra.mrb[0].mxu0 %v505
  %v738 = vpop.f32.mrb[0].mxu0
  %v739 = vadd.f32 0.0, %v738
  %v740 = vpop.f32.mrb[0].mxu0
  %v741 = vpop.f32.mrb[0].mxu0
  %v742 = vadd.f32 0.0, %v741
  %v743 = vpop.f32.mrb[0].mxu0
  %744 = vmatprep.mubr.bf16.mxu0 0
  %745 = vmatmul.mubr.bf16.gmra.mrb[0].mxu0 %v508
  %v746 = vpop.f32.mrb[0].mxu0
  %v747 = vadd.f32 0.0, %v746
  %v748 = vpop.f32.mrb[0].mxu0
  %v749 = vpop.f32.mrb[0].mxu0
  %v750 = vadd.f32 0.0, %v749
  %v751 = vpop.f32.mrb[0].mxu0
  %752 = vmatprep.mubr.bf16.mxu0 0
  %753 = vmatmul.mubr.bf16.gmra.mrb[0].mxu0 %v694
  %v754 = vpop.f32.mrb[0].mxu0
  %v755 = vadd.f32 0.0, %v754
  %v756 = vpop.f32.mrb[0].mxu0
  %v757 = vpop.f32.mrb[0].mxu0
  %v758 = vadd.f32 0.0, %v757
  %v759 = vpop.f32.mrb[0].mxu0
  %760 = vdwg.mxu0
  %v761 = vadd.f32 %v674, %v731
  %v762 = vadd.f32 %v675, %v734
  %v763 = vadd.f32 %v676, %v739
  %v764 = vadd.f32 %v677, %v742
  %v765 = vadd.f32 %v678, %v747
  %v766 = vadd.f32 %v679, %v750
  %v767 = vadd.f32 %v680, %v755
  %v768 = vadd.f32 %v681, %v758
  %v769 = vld [vmem:[%s0] sm:$0xe]
  %v770 = vld [vmem:[%s0 + $0x8] sm:$0xe]
  %v771 = vld [vmem:[%s0 + $0x10] sm:$0xe]
  %v772 = vld [vmem:[%s0 + $0x18] sm:$0xe]
  %v773 = vld [vmem:[%s0 + $0x20] sm:$0xe]
  %v774 = vld [vmem:[%s0 + $0x28] sm:$0xe]
  %v775 = vld [vmem:[%s0 + $0x30] sm:$0xe]
  %v776 = vld [vmem:[%s0 + $0x38] sm:$0xe]
  %v777 = vld [vmem:[%s0 + $0x40] sm:$0xe]
  %v778 = vld [vmem:[%s0 + $0x48] sm:$0xe]
  %vm799 = vcmask 1042432
  %vm800 = vcmask 1046532
  %vm801 = vmor %vm799, %vm800
  %v802 = vrot.slane %v769, 5
  %v803 = vrot.slane %v802, 4
  %v804 = vrot.slane %v315, 5
  %v805 = vsel %vm801, %v803, %v804
  %v806 = vrot.slane %v770, 5
  %v807 = vrot.slane %v806, 4
  %v808 = vrot.slane %v317, 5
  %v809 = vsel %vm801, %v807, %v808
  %v810 = vrot.slane %v771, 5
  %v811 = vrot.slane %v810, 4
  %v812 = vrot.slane %v319, 5
  %v813 = vsel %vm801, %v811, %v812
  %v814 = vrot.slane %v772, 5
  %v815 = vrot.slane %v814, 4
  %v816 = vrot.slane %v321, 5
  %v817 = vsel %vm801, %v815, %v816
  %v818 = vrot.slane %v773, 5
  %v819 = vrot.slane %v818, 4
  %v820 = vrot.slane %v323, 5
  %v821 = vsel %vm801, %v819, %v820
  %v822 = vrot.slane %v774, 5
  %v823 = vrot.slane %v822, 4
  %v824 = vrot.slane %v325, 5
  %v825 = vsel %vm801, %v823, %v824
  %v826 = vrot.slane %v775, 5
  %v827 = vrot.slane %v826, 4
  %v828 = vrot.slane %v327, 5
  %v829 = vsel %vm801, %v827, %v828
  %v830 = vrot.slane %v776, 5
  %v831 = vrot.slane %v830, 4
  %v832 = vrot.slane %v329, 5
  %v833 = vsel %vm801, %v831, %v832
  %v834 = vrot.slane %v777, 5
  %v835 = vrot.slane %v834, 4
  %v836 = vrot.slane %v331, 5
  %v837 = vsel %vm801, %v835, %v836
  %v838 = vrot.slane %v778, 5
  %v839 = vrot.slane %v838, 4
  %v840 = vrot.slane %v333, 5
  %v841 = vsel %vm801, %v839, %v840
  %s842 = scalar_lea.vmem %s1, 16
  %v843 = vld [vmem:[%s842] sm:$0xf]
  %v844 = vld [vmem:[%s842 + $0x4] sm:$0xf]
  %v845 = vunpack.c.l.b16 %v805
  %v846 = vunpack.c.l.b16 %v809
  %v847 = vunpack.c.l.b16 %v813
  %v848 = vunpack.c.l.b16 %v817
  %v849 = vunpack.c.l.b16 %v821
  %v850 = vunpack.c.l.b16 %v825
  %v851 = vunpack.c.l.b16 %v829
  %v852 = vunpack.c.l.b16 %v833
  %v853 = vpack.c.b16 %v846, %v845
  %v854 = vpack.c.b16 %v848, %v847
  %v855 = vpack.c.b16 %v850, %v849
  %v856 = vpack.c.b16 %v852, %v851
  %v859 = vunpack.c.l.b16 %v843
  %v860 = vunpack.c.l.b16 %v844
  %v861 = vpack.c.b16 %v860, %v859
  %v864 = vsel %vm59, %v853, 0
  %v867 = vsel %vm59, %v854, 0
  %v870 = vsel %vm59, %v855, 0
  %v873 = vsel %vm59, %v856, 0
  %875 = vmatprep.subr.bf16.mxu0 0
  %876 = vmatpush1.bf16.msra.mxu0 %v861
  %877 = vmatprep.subr.bf16.mxu0 0
  %878 = vmatpush1.bf16.msra.mxu0 0
  %879 = vmatprep.subr.bf16.mxu0 0
  %880 = vmatpush1.bf16.msra.mxu0 0
  %881 = vmatprep.subr.bf16.mxu0 0
  %882 = vmatpush1.bf16.msra.mxu0 0
  %883 = vmatprep.subr.bf16.mxu0 0
  %884 = vmatpush1.bf16.msra.mxu0 0
  %885 = vmatprep.subr.bf16.mxu0 0
  %886 = vmatpush1.bf16.msra.mxu0 0
  %887 = vmatprep.subr.bf16.mxu0 0
  %888 = vmatpush1.bf16.msra.mxu0 0
  %889 = vmatprep.subr.bf16.mxu0 0
  %890 = vmatpush1.bf16.msra.mxu0 0
  %891 = vmatprep.subr.bf16.mxu0 0
  %892 = vmatpush1.bf16.msra.mxu0 0
  %893 = vmatprep.subr.bf16.mxu0 0
  %894 = vmatpush1.bf16.msra.mxu0 0
  %895 = vmatprep.subr.bf16.mxu0 0
  %896 = vmatpush1.bf16.msra.mxu0 0
  %897 = vmatprep.subr.bf16.mxu0 0
  %898 = vmatpush1.bf16.msra.mxu0 0
  %899 = vmatprep.subr.bf16.mxu0 0
  %900 = vmatpush1.bf16.msra.mxu0 0
  %901 = vmatprep.subr.bf16.mxu0 0
  %902 = vmatpush1.bf16.msra.mxu0 0
  %903 = vmatprep.subr.bf16.mxu0 0
  %904 = vmatpush1.bf16.msra.mxu0 0
  %905 = vmatprep.subr.bf16.mxu0 0
  %906 = vmatpush1.bf16.msra.mxu0 0
  %907 = vmatprep.mubr.bf16.mxu0 0
  %908 = vmatmul.mubr.bf16.gmra.mrb[0].mxu0 %v864
  %v909 = vpop.f32.mrb[0].mxu0
  %v910 = vadd.f32 0.0, %v909
  %v911 = vpop.f32.mrb[0].mxu0
  %v912 = vpop.f32.mrb[0].mxu0
  %v913 = vadd.f32 0.0, %v912
  %v914 = vpop.f32.mrb[0].mxu0
  %915 = vmatprep.mubr.bf16.mxu0 0
  %916 = vmatmul.mubr.bf16.gmra.mrb[0].mxu0 %v867
  %v917 = vpop.f32.mrb[0].mxu0
  %v918 = vadd.f32 0.0, %v917
  %v919 = vpop.f32.mrb[0].mxu0
  %v920 = vpop.f32.mrb[0].mxu0
  %v921 = vadd.f32 0.0, %v920
  %v922 = vpop.f32.mrb[0].mxu0
  %923 = vmatprep.mubr.bf16.mxu0 0
  %924 = vmatmul.mubr.bf16.gmra.mrb[0].mxu0 %v870
  %v925 = vpop.f32.mrb[0].mxu0
  %v926 = vadd.f32 0.0, %v925
  %v927 = vpop.f32.mrb[0].mxu0
  %v928 = vpop.f32.mrb[0].mxu0
  %v929 = vadd.f32 0.0, %v928
  %v930 = vpop.f32.mrb[0].mxu0
  %931 = vmatprep.mubr.bf16.mxu0 0
  %932 = vmatmul.mubr.bf16.gmra.mrb[0].mxu0 %v873
  %v933 = vpop.f32.mrb[0].mxu0
  %v934 = vadd.f32 0.0, %v933
  %v935 = vpop.f32.mrb[0].mxu0
  %v936 = vpop.f32.mrb[0].mxu0
  %v937 = vadd.f32 0.0, %v936
  %v938 = vpop.f32.mrb[0].mxu0
  %939 = vdwg.mxu0
  %v940 = vadd.f32 %v761, %v910
  %v941 = vadd.f32 %v762, %v913
  %v942 = vadd.f32 %v763, %v918
  %v943 = vadd.f32 %v764, %v921
  %v944 = vadd.f32 %v765, %v926
  %v945 = vadd.f32 %v766, %v929
  %v946 = vadd.f32 %v767, %v934
  %v947 = vadd.f32 %v768, %v937
  %s948 = scalar_lea.vmem %s1, 40
  %v949 = vld [vmem:[%s948] sm:$0xf]
  %v950 = vld [vmem:[%s948 + $0x4] sm:$0xf]
  %v951 = vunpack.c.l.b16 %v837
  %v952 = vpack.c.b16 %v847, %v846
  %v953 = vpack.c.b16 %v849, %v848
  %v954 = vpack.c.b16 %v851, %v850
  %v955 = vpack.c.b16 %v951, %v852
  %v958 = vunpack.c.l.b16 %v949
  %v959 = vunpack.c.l.b16 %v950
  %v960 = vpack.c.b16 %v959, %v958
  %v963 = vsel %vm59, %v952, 0
  %v966 = vsel %vm59, %v953, 0
  %v969 = vsel %vm59, %v954, 0
  %v972 = vsel %vm59, %v955, 0
  %974 = vmatprep.subr.bf16.mxu0 0
  %975 = vmatpush1.bf16.msra.mxu0 %v960
  %976 = vmatprep.subr.bf16.mxu0 0
  %977 = vmatpush1.bf16.msra.mxu0 0
  %978 = vmatprep.subr.bf16.mxu0 0
  %979 = vmatpush1.bf16.msra.mxu0 0
  %980 = vmatprep.subr.bf16.mxu0 0
  %981 = vmatpush1.bf16.msra.mxu0 0
  %982 = vmatprep.subr.bf16.mxu0 0
  %983 = vmatpush1.bf16.msra.mxu0 0
  %984 = vmatprep.subr.bf16.mxu0 0
  %985 = vmatpush1.bf16.msra.mxu0 0
  %986 = vmatprep.subr.bf16.mxu0 0
  %987 = vmatpush1.bf16.msra.mxu0 0
  %988 = vmatprep.subr.bf16.mxu0 0
  %989 = vmatpush1.bf16.msra.mxu0 0
  %990 = vmatprep.subr.bf16.mxu0 0
  %991 = vmatpush1.bf16.msra.mxu0 0
  %992 = vmatprep.subr.bf16.mxu0 0
  %993 = vmatpush1.bf16.msra.mxu0 0
  %994 = vmatprep.subr.bf16.mxu0 0
  %995 = vmatpush1.bf16.msra.mxu0 0
  %996 = vmatprep.subr.bf16.mxu0 0
  %997 = vmatpush1.bf16.msra.mxu0 0
  %998 = vmatprep.subr.bf16.mxu0 0
  %999 = vmatpush1.bf16.msra.mxu0 0
  %1000 = vmatprep.subr.bf16.mxu0 0
  %1001 = vmatpush1.bf16.msra.mxu0 0
  %1002 = vmatprep.subr.bf16.mxu0 0
  %1003 = vmatpush1.bf16.msra.mxu0 0
  %1004 = vmatprep.subr.bf16.mxu0 0
  %1005 = vmatpush1.bf16.msra.mxu0 0
  %1006 = vmatprep.mubr.bf16.mxu0 0
  %1007 = vmatmul.mubr.bf16.gmra.mrb[0].mxu0 %v963
  %v1008 = vpop.f32.mrb[0].mxu0
  %v1009 = vadd.f32 0.0, %v1008
  %v1010 = vpop.f32.mrb[0].mxu0
  %v1011 = vpop.f32.mrb[0].mxu0
  %v1012 = vadd.f32 0.0, %v1011
  %v1013 = vpop.f32.mrb[0].mxu0
  %1014 = vmatprep.mubr.bf16.mxu0 0
  %1015 = vmatmul.mubr.bf16.gmra.mrb[0].mxu0 %v966
  %v1016 = vpop.f32.mrb[0].mxu0
  %v1017 = vadd.f32 0.0, %v1016
  %v1018 = vpop.f32.mrb[0].mxu0
  %v1019 = vpop.f32.mrb[0].mxu0
  %v1020 = vadd.f32 0.0, %v1019
  %v1021 = vpop.f32.mrb[0].mxu0
  %1022 = vmatprep.mubr.bf16.mxu0 0
  %1023 = vmatmul.mubr.bf16.gmra.mrb[0].mxu0 %v969
  %v1024 = vpop.f32.mrb[0].mxu0
  %v1025 = vadd.f32 0.0, %v1024
  %v1026 = vpop.f32.mrb[0].mxu0
  %v1027 = vpop.f32.mrb[0].mxu0
  %v1028 = vadd.f32 0.0, %v1027
  %v1029 = vpop.f32.mrb[0].mxu0
  %1030 = vmatprep.mubr.bf16.mxu0 0
  %1031 = vmatmul.mubr.bf16.gmra.mrb[0].mxu0 %v972
  %v1032 = vpop.f32.mrb[0].mxu0
  %v1033 = vadd.f32 0.0, %v1032
  %v1034 = vpop.f32.mrb[0].mxu0
  %v1035 = vpop.f32.mrb[0].mxu0
  %v1036 = vadd.f32 0.0, %v1035
  %v1037 = vpop.f32.mrb[0].mxu0
  %1038 = vdwg.mxu0
  %v1039 = vadd.f32 %v940, %v1009
  %v1040 = vadd.f32 %v941, %v1012
  %v1041 = vadd.f32 %v942, %v1017
  %v1042 = vadd.f32 %v943, %v1020
  %v1043 = vadd.f32 %v944, %v1025
  %v1044 = vadd.f32 %v945, %v1028
  %v1045 = vadd.f32 %v946, %v1033
  %v1046 = vadd.f32 %v947, %v1036
  %s1047 = scalar_lea.vmem %s1, 64
  %v1048 = vld [vmem:[%s1047] sm:$0xf]
  %v1049 = vld [vmem:[%s1047 + $0x4] sm:$0xf]
  %v1050 = vunpack.c.l.b16 %v841
  %v1051 = vpack.c.b16 %v1050, %v951
  %v1054 = vunpack.c.l.b16 %v1048
  %v1055 = vunpack.c.l.b16 %v1049
  %v1056 = vpack.c.b16 %v1055, %v1054
  %v1059 = vsel %vm59, %v1051, 0
  %1061 = vmatprep.subr.bf16.mxu0 0
  %1062 = vmatpush1.bf16.msra.mxu0 %v1056
  %1063 = vmatprep.subr.bf16.mxu0 0
  %1064 = vmatpush1.bf16.msra.mxu0 0
  %1065 = vmatprep.subr.bf16.mxu0 0
  %1066 = vmatpush1.bf16.msra.mxu0 0
  %1067 = vmatprep.subr.bf16.mxu0 0
  %1068 = vmatpush1.bf16.msra.mxu0 0
  %1069 = vmatprep.subr.bf16.mxu0 0
  %1070 = vmatpush1.bf16.msra.mxu0 0
  %1071 = vmatprep.subr.bf16.mxu0 0
  %1072 = vmatpush1.bf16.msra.mxu0 0
  %1073 = vmatprep.subr.bf16.mxu0 0
  %1074 = vmatpush1.bf16.msra.mxu0 0
  %1075 = vmatprep.subr.bf16.mxu0 0
  %1076 = vmatpush1.bf16.msra.mxu0 0
  %1077 = vmatprep.subr.bf16.mxu0 0
  %1078 = vmatpush1.bf16.msra.mxu0 0
  %1079 = vmatprep.subr.bf16.mxu0 0
  %1080 = vmatpush1.bf16.msra.mxu0 0
  %1081 = vmatprep.subr.bf16.mxu0 0
  %1082 = vmatpush1.bf16.msra.mxu0 0
  %1083 = vmatprep.subr.bf16.mxu0 0
  %1084 = vmatpush1.bf16.msra.mxu0 0
  %1085 = vmatprep.subr.bf16.mxu0 0
  %1086 = vmatpush1.bf16.msra.mxu0 0
  %1087 = vmatprep.subr.bf16.mxu0 0
  %1088 = vmatpush1.bf16.msra.mxu0 0
  %1089 = vmatprep.subr.bf16.mxu0 0
  %1090 = vmatpush1.bf16.msra.mxu0 0
  %1091 = vmatprep.subr.bf16.mxu0 0
  %1092 = vmatpush1.bf16.msra.mxu0 0
  %1093 = vmatprep.mubr.bf16.mxu0 0
  %1094 = vmatmul.mubr.bf16.gmra.mrb[0].mxu0 %v867
  %v1095 = vpop.f32.mrb[0].mxu0
  %v1096 = vadd.f32 0.0, %v1095
  %v1097 = vpop.f32.mrb[0].mxu0
  %v1098 = vpop.f32.mrb[0].mxu0
  %v1099 = vadd.f32 0.0, %v1098
  %v1100 = vpop.f32.mrb[0].mxu0
  %1101 = vmatprep.mubr.bf16.mxu0 0
  %1102 = vmatmul.mubr.bf16.gmra.mrb[0].mxu0 %v870
  %v1103 = vpop.f32.mrb[0].mxu0
  %v1104 = vadd.f32 0.0, %v1103
  %v1105 = vpop.f32.mrb[0].mxu0
  %v1106 = vpop.f32.mrb[0].mxu0
  %v1107 = vadd.f32 0.0, %v1106
  %v1108 = vpop.f32.mrb[0].mxu0
  %1109 = vmatprep.mubr.bf16.mxu0 0
  %1110 = vmatmul.mubr.bf16.gmra.mrb[0].mxu0 %v873
  %v1111 = vpop.f32.mrb[0].mxu0
  %v1112 = vadd.f32 0.0, %v1111
  %v1113 = vpop.f32.mrb[0].mxu0
  %v1114 = vpop.f32.mrb[0].mxu0
  %v1115 = vadd.f32 0.0, %v1114
  %v1116 = vpop.f32.mrb[0].mxu0
  %1117 = vmatprep.mubr.bf16.mxu0 0
  %1118 = vmatmul.mubr.bf16.gmra.mrb[0].mxu0 %v1059
  %v1119 = vpop.f32.mrb[0].mxu0
  %v1120 = vadd.f32 0.0, %v1119
  %v1121 = vpop.f32.mrb[0].mxu0
  %v1122 = vpop.f32.mrb[0].mxu0
  %v1123 = vadd.f32 0.0, %v1122
  %v1124 = vpop.f32.mrb[0].mxu0
  %1125 = vdwg.mxu0
  %v1126 = vadd.f32 %v1039, %v1096
  %v1127 = vadd.f32 %v1040, %v1099
  %v1128 = vadd.f32 %v1041, %v1104
  %v1129 = vadd.f32 %v1042, %v1107
  %v1130 = vadd.f32 %v1043, %v1112
  %v1131 = vadd.f32 %v1044, %v1115
  %v1132 = vadd.f32 %v1045, %v1120
  %v1133 = vadd.f32 %v1046, %v1123
  %vm1134 = vcmask 195584
  %1135 = vst.msk [vmem:[#allocation2] sm:$0xff] %vm1134, %v1126
  %1136 = vst.msk [vmem:[#allocation2 + $0x8] sm:$0xff] %vm1134, %v1127
  %1137 = vst.msk [vmem:[#allocation2 + $0x10] sm:$0xff] %vm1134, %v1128
  %1138 = vst.msk [vmem:[#allocation2 + $0x18] sm:$0xff] %vm1134, %v1129
  %1139 = vst.msk [vmem:[#allocation2 + $0x20] sm:$0xff] %vm1134, %v1130
  %1140 = vst.msk [vmem:[#allocation2 + $0x28] sm:$0xff] %vm1134, %v1131
  %1141 = vst.msk [vmem:[#allocation2 + $0x30] sm:$0xff] %vm1134, %v1132
  %1142 = vst.msk [vmem:[#allocation2 + $0x38] sm:$0xff] %vm1134, %v1133
  %v1143 = vsel %vm1134, %v1126, 0.0
  %v1144 = vsel %vm1134, %v1127, 0.0
  %v1145 = vadd.f32 %v1143, %v1144
  %v1146 = vsel %vm1134, %v1128, 0.0
  %v1147 = vadd.f32 %v1145, %v1146
  %v1148 = vsel %vm1134, %v1129, 0.0
  %v1149 = vadd.f32 %v1147, %v1148
  %v1150 = vsel %vm1134, %v1130, 0.0
  %v1151 = vadd.f32 %v1149, %v1150
  %v1152 = vsel %vm1134, %v1131, 0.0
  %v1153 = vadd.f32 %v1151, %v1152
  %v1154 = vsel %vm1134, %v1132, 0.0
  %v1155 = vadd.f32 %v1153, %v1154
  %v1156 = vsel %vm1134, %v1133, 0.0
  %v1157 = vadd.f32 %v1155, %v1156
  %v1158 = vrot.slane %v1157, 4
  %v1159 = vadd.f32 %v1157, %v1158
  %v1160 = vrot.slane %v1159, 2
  %v1161 = vadd.f32 %v1159, %v1160
  %v1162 = vrot.slane %v1161, 1
  %v1163 = vadd.f32 %v1161, %v1162
  %v1164 = vadd.f32 %v1163, 0.0
  %v1165 = vmul.f32 %v1126, %v1126
  %v1166 = vmul.f32 %v1127, %v1127
  %v1167 = vmul.f32 %v1128, %v1128
  %v1168 = vmul.f32 %v1129, %v1129
  %v1169 = vmul.f32 %v1130, %v1130
  %v1170 = vmul.f32 %v1131, %v1131
  %v1171 = vmul.f32 %v1132, %v1132
  %v1172 = vmul.f32 %v1133, %v1133
  %v1173 = vsel %vm1134, %v1165, 0.0
  %v1174 = vsel %vm1134, %v1166, 0.0
  %v1175 = vadd.f32 %v1173, %v1174
  %v1176 = vsel %vm1134, %v1167, 0.0
  %v1177 = vadd.f32 %v1175, %v1176
  %v1178 = vsel %vm1134, %v1168, 0.0
  %v1179 = vadd.f32 %v1177, %v1178
  %v1180 = vsel %vm1134, %v1169, 0.0
  %v1181 = vadd.f32 %v1179, %v1180
  %v1182 = vsel %vm1134, %v1170, 0.0
  %v1183 = vadd.f32 %v1181, %v1182
  %v1184 = vsel %vm1134, %v1171, 0.0
  %v1185 = vadd.f32 %v1183, %v1184
  %v1186 = vsel %vm1134, %v1172, 0.0
  %v1187 = vadd.f32 %v1185, %v1186
  %v1188 = vrot.slane %v1187, 4
  %v1189 = vadd.f32 %v1187, %v1188
  %v1190 = vrot.slane %v1189, 2
  %v1191 = vadd.f32 %v1189, %v1190
  %v1192 = vrot.slane %v1191, 1
  %v1193 = vadd.f32 %v1191, %v1192
  %v1194 = vadd.f32 %v1193, 0.0
  %v1195 = vrcp.pop 64.0
  %v1196 = vmul.f32 %v1164, %v1195
  %v1197 = vmul.f32 %v1194, %v1195
  %v1198 = vmul.f32 %v1196, %v1196
  %v1199 = vsub.f32 %v1197, %v1198
  %v1200 = vld [vmem:[%s2] sm:$0x1]
  %v1201 = vadd.f32 %v1199, 1e-05
  %v1202 = vrsqrt.pop %v1201
  %v1203 = vmul.f32 %v1200, %v1202
  %v1204 = vld [vmem:[%s3] sm:$0x1]
  %v1205 = vmul.f32 %v1196, %v1203
  %v1206 = vsub.f32 %v1204, %v1205
  %v1207 = vld [vmem:[#allocation2] sm:$0xff]
  %v1208 = vld [vmem:[#allocation2 + $0x8] sm:$0xff]
  %v1209 = vld [vmem:[#allocation2 + $0x10] sm:$0xff]
  %v1210 = vld [vmem:[#allocation2 + $0x18] sm:$0xff]
  %v1211 = vld [vmem:[#allocation2 + $0x20] sm:$0xff]
  %v1212 = vld [vmem:[#allocation2 + $0x28] sm:$0xff]
  %v1213 = vld [vmem:[#allocation2 + $0x30] sm:$0xff]
  %v1214 = vld [vmem:[#allocation2 + $0x38] sm:$0xff]
  %v1216 = vlaneseq
  %v1217 = vshrl.u32 %v1216, 7
  %v1218 = vsub.s32 0, %v1217
  %v1219 = vrot.slane %v1203, %v1218
  %v1221 = vmul.f32 %v1207, %v1219
  %v1222 = vmul.f32 %v1208, %v1219
  %v1223 = vmul.f32 %v1209, %v1219
  %v1224 = vmul.f32 %v1210, %v1219
  %v1225 = vmul.f32 %v1211, %v1219
  %v1226 = vmul.f32 %v1212, %v1219
  %v1227 = vmul.f32 %v1213, %v1219
  %v1228 = vmul.f32 %v1214, %v1219
  %v1230 = vlaneseq
  %v1231 = vshrl.u32 %v1230, 7
  %v1232 = vsub.s32 0, %v1231
  %v1233 = vrot.slane %v1206, %v1232
  %v1235 = vadd.f32 %v1221, %v1233
  %v1236 = vadd.f32 %v1222, %v1233
  %v1237 = vadd.f32 %v1223, %v1233
  %v1238 = vadd.f32 %v1224, %v1233
  %v1239 = vadd.f32 %v1225, %v1233
  %v1240 = vadd.f32 %v1226, %v1233
  %v1241 = vadd.f32 %v1227, %v1233
  %v1242 = vadd.f32 %v1228, %v1233
  %v1243 = vmax.f32 %v1235, 0.0
  %v1244 = vmax.f32 %v1236, 0.0
  %v1245 = vmax.f32 %v1237, 0.0
  %v1246 = vmax.f32 %v1238, 0.0
  %v1247 = vmax.f32 %v1239, 0.0
  %v1248 = vmax.f32 %v1240, 0.0
  %v1249 = vmax.f32 %v1241, 0.0
  %v1250 = vmax.f32 %v1242, 0.0
  %v1259 = vcombine.high %v1243, %v1243
  %v1261 = vunpack.c.l.s4 1983009808
  %v1262 = vunpack.c.0.s8 %v1261
  %v1263 = vlaneseq
  %v1264 = vshrl.u32 %v1263, 7
  %v1265 = vsub.s32 %v1262, %v1264
  %v1266 = vrot.slane %v1243, %v1265
  %v1268 = vunpack.c.l.s4 1983009808
  %v1269 = vunpack.c.0.s8 %v1268
  %v1270 = vlaneseq
  %v1271 = vshrl.u32 %v1270, 7
  %v1272 = vsub.s32 %v1269, %v1271
  %v1273 = vrot.slane %v1259, %v1272
  %v1274 = vcombine.high %v1266, %v1266
  %v1275 = vcombine.high %v1273, %v1273
  %v1276 = vcombine.high %v1244, %v1244
  %v1278 = vunpack.c.l.s4 1983009808
  %v1279 = vunpack.c.0.s8 %v1278
  %v1280 = vlaneseq
  %v1281 = vshrl.u32 %v1280, 7
  %v1282 = vsub.s32 %v1279, %v1281
  %v1283 = vrot.slane %v1244, %v1282
  %v1285 = vunpack.c.l.s4 1983009808
  %v1286 = vunpack.c.0.s8 %v1285
  %v1287 = vlaneseq
  %v1288 = vshrl.u32 %v1287, 7
  %v1289 = vsub.s32 %v1286, %v1288
  %v1290 = vrot.slane %v1276, %v1289
  %v1291 = vcombine.high %v1283, %v1283
  %v1292 = vcombine.high %v1290, %v1290
  %v1293 = vcombine.high %v1245, %v1245
  %v1295 = vunpack.c.l.s4 1983009808
  %v1296 = vunpack.c.0.s8 %v1295
  %v1297 = vlaneseq
  %v1298 = vshrl.u32 %v1297, 7
  %v1299 = vsub.s32 %v1296, %v1298
  %v1300 = vrot.slane %v1245, %v1299
  %v1302 = vunpack.c.l.s4 1983009808
  %v1303 = vunpack.c.0.s8 %v1302
  %v1304 = vlaneseq
  %v1305 = vshrl.u32 %v1304, 7
  %v1306 = vsub.s32 %v1303, %v1305
  %v1307 = vrot.slane %v1293, %v1306
  %v1308 = vcombine.high %v1300, %v1300
  %v1309 = vcombine.high %v1307, %v1307
  %v1310 = vcombine.high %v1246, %v1246
  %v1312 = vunpack.c.l.s4 1983009808
  %v1313 = vunpack.c.0.s8 %v1312
  %v1314 = vlaneseq
  %v1315 = vshrl.u32 %v1314, 7
  %v1316 = vsub.s32 %v1313, %v1315
  %v1317 = vrot.slane %v1246, %v1316
  %v1319 = vunpack.c.l.s4 1983009808
  %v1320 = vunpack.c.0.s8 %v1319
  %v1321 = vlaneseq
  %v1322 = vshrl.u32 %v1321, 7
  %v1323 = vsub.s32 %v1320, %v1322
  %v1324 = vrot.slane %v1310, %v1323
  %v1325 = vcombine.high %v1317, %v1317
  %v1326 = vcombine.high %v1324, %v1324
  %v1327 = vcombine.high %v1247, %v1247
  %v1329 = vunpack.c.l.s4 1983009808
  %v1330 = vunpack.c.0.s8 %v1329
  %v1331 = vlaneseq
  %v1332 = vshrl.u32 %v1331, 7
  %v1333 = vsub.s32 %v1330, %v1332
  %v1334 = vrot.slane %v1247, %v1333
  %v1336 = vunpack.c.l.s4 1983009808
  %v1337 = vunpack.c.0.s8 %v1336
  %v1338 = vlaneseq
  %v1339 = vshrl.u32 %v1338, 7
  %v1340 = vsub.s32 %v1337, %v1339
  %v1341 = vrot.slane %v1327, %v1340
  %v1342 = vcombine.high %v1334, %v1334
  %v1343 = vcombine.high %v1341, %v1341
  %v1344 = vcombine.high %v1248, %v1248
  %v1346 = vunpack.c.l.s4 1983009808
  %v1347 = vunpack.c.0.s8 %v1346
  %v1348 = vlaneseq
  %v1349 = vshrl.u32 %v1348, 7
  %v1350 = vsub.s32 %v1347, %v1349
  %v1351 = vrot.slane %v1248, %v1350
  %v1353 = vunpack.c.l.s4 1983009808
  %v1354 = vunpack.c.0.s8 %v1353
  %v1355 = vlaneseq
  %v1356 = vshrl.u32 %v1355, 7
  %v1357 = vsub.s32 %v1354, %v1356
  %v1358 = vrot.slane %v1344, %v1357
  %v1359 = vcombine.high %v1351, %v1351
  %v1360 = vcombine.high %v1358, %v1358
  %v1361 = vcombine.high %v1249, %v1249
  %v1363 = vunpack.c.l.s4 1983009808
  %v1364 = vunpack.c.0.s8 %v1363
  %v1365 = vlaneseq
  %v1366 = vshrl.u32 %v1365, 7
  %v1367 = vsub.s32 %v1364, %v1366
  %v1368 = vrot.slane %v1249, %v1367
  %v1370 = vunpack.c.l.s4 1983009808
  %v1371 = vunpack.c.0.s8 %v1370
  %v1372 = vlaneseq
  %v1373 = vshrl.u32 %v1372, 7
  %v1374 = vsub.s32 %v1371, %v1373
  %v1375 = vrot.slane %v1361, %v1374
  %v1376 = vcombine.high %v1368, %v1368
  %v1377 = vcombine.high %v1375, %v1375
  %v1378 = vcombine.high %v1250, %v1250
  %v1380 = vunpack.c.l.s4 1983009808
  %v1381 = vunpack.c.0.s8 %v1380
  %v1382 = vlaneseq
  %v1383 = vshrl.u32 %v1382, 7
  %v1384 = vsub.s32 %v1381, %v1383
  %v1385 = vrot.slane %v1250, %v1384
  %v1387 = vunpack.c.l.s4 1983009808
  %v1388 = vunpack.c.0.s8 %v1387
  %v1389 = vlaneseq
  %v1390 = vshrl.u32 %v1389, 7
  %v1391 = vsub.s32 %v1388, %v1390
  %v1392 = vrot.slane %v1378, %v1391
  %v1393 = vcombine.high %v1385, %v1385
  %v1394 = vcombine.high %v1392, %v1392
  %vm1427 = vcmask 189440
  %v1428 = vsel %vm1427, %v1266, -inf
  %v1429 = vrot.slane %v1428, 4
  %v1430 = vmax.f32 %v1428, %v1429
  %v1431 = vrot.slane %v1430, 2
  %v1432 = vmax.f32 %v1430, %v1431
  %v1433 = vrot.slane %v1432, 1
  %v1434 = vmax.f32 %v1432, %v1433
  %v1435 = vsel %vm1427, %v1274, -inf
  %v1436 = vrot.slane %v1435, 4
  %v1437 = vmax.f32 %v1435, %v1436
  %v1438 = vrot.slane %v1437, 2
  %v1439 = vmax.f32 %v1437, %v1438
  %v1440 = vrot.slane %v1439, 1
  %v1441 = vmax.f32 %v1439, %v1440
  %v1442 = vsel %vm1427, %v1273, -inf
  %v1443 = vrot.slane %v1442, 4
  %v1444 = vmax.f32 %v1442, %v1443
  %v1445 = vrot.slane %v1444, 2
  %v1446 = vmax.f32 %v1444, %v1445
  %v1447 = vrot.slane %v1446, 1
  %v1448 = vmax.f32 %v1446, %v1447
  %v1449 = vsel %vm1427, %v1275, -inf
  %v1450 = vrot.slane %v1449, 4
  %v1451 = vmax.f32 %v1449, %v1450
  %v1452 = vrot.slane %v1451, 2
  %v1453 = vmax.f32 %v1451, %v1452
  %v1454 = vrot.slane %v1453, 1
  %v1455 = vmax.f32 %v1453, %v1454
  %v1456 = vsel %vm1427, %v1283, -inf
  %v1457 = vrot.slane %v1456, 4
  %v1458 = vmax.f32 %v1456, %v1457
  %v1459 = vrot.slane %v1458, 2
  %v1460 = vmax.f32 %v1458, %v1459
  %v1461 = vrot.slane %v1460, 1
  %v1462 = vmax.f32 %v1460, %v1461
  %v1463 = vsel %vm1427, %v1291, -inf
  %v1464 = vrot.slane %v1463, 4
  %v1465 = vmax.f32 %v1463, %v1464
  %v1466 = vrot.slane %v1465, 2
  %v1467 = vmax.f32 %v1465, %v1466
  %v1468 = vrot.slane %v1467, 1
  %v1469 = vmax.f32 %v1467, %v1468
  %v1470 = vsel %vm1427, %v1290, -inf
  %v1471 = vrot.slane %v1470, 4
  %v1472 = vmax.f32 %v1470, %v1471
  %v1473 = vrot.slane %v1472, 2
  %v1474 = vmax.f32 %v1472, %v1473
  %v1475 = vrot.slane %v1474, 1
  %v1476 = vmax.f32 %v1474, %v1475
  %v1477 = vsel %vm1427, %v1292, -inf
  %v1478 = vrot.slane %v1477, 4
  %v1479 = vmax.f32 %v1477, %v1478
  %v1480 = vrot.slane %v1479, 2
  %v1481 = vmax.f32 %v1479, %v1480
  %v1482 = vrot.slane %v1481, 1
  %v1483 = vmax.f32 %v1481, %v1482
  %v1484 = vsel %vm1427, %v1300, -inf
  %v1485 = vrot.slane %v1484, 4
  %v1486 = vmax.f32 %v1484, %v1485
  %v1487 = vrot.slane %v1486, 2
  %v1488 = vmax.f32 %v1486, %v1487
  %v1489 = vrot.slane %v1488, 1
  %v1490 = vmax.f32 %v1488, %v1489
  %v1491 = vsel %vm1427, %v1308, -inf
  %v1492 = vrot.slane %v1491, 4
  %v1493 = vmax.f32 %v1491, %v1492
  %v1494 = vrot.slane %v1493, 2
  %v1495 = vmax.f32 %v1493, %v1494
  %v1496 = vrot.slane %v1495, 1
  %v1497 = vmax.f32 %v1495, %v1496
  %v1498 = vsel %vm1427, %v1307, -inf
  %v1499 = vrot.slane %v1498, 4
  %v1500 = vmax.f32 %v1498, %v1499
  %v1501 = vrot.slane %v1500, 2
  %v1502 = vmax.f32 %v1500, %v1501
  %v1503 = vrot.slane %v1502, 1
  %v1504 = vmax.f32 %v1502, %v1503
  %v1505 = vsel %vm1427, %v1309, -inf
  %v1506 = vrot.slane %v1505, 4
  %v1507 = vmax.f32 %v1505, %v1506
  %v1508 = vrot.slane %v1507, 2
  %v1509 = vmax.f32 %v1507, %v1508
  %v1510 = vrot.slane %v1509, 1
  %v1511 = vmax.f32 %v1509, %v1510
  %v1512 = vsel %vm1427, %v1317, -inf
  %v1513 = vrot.slane %v1512, 4
  %v1514 = vmax.f32 %v1512, %v1513
  %v1515 = vrot.slane %v1514, 2
  %v1516 = vmax.f32 %v1514, %v1515
  %v1517 = vrot.slane %v1516, 1
  %v1518 = vmax.f32 %v1516, %v1517
  %v1519 = vsel %vm1427, %v1325, -inf
  %v1520 = vrot.slane %v1519, 4
  %v1521 = vmax.f32 %v1519, %v1520
  %v1522 = vrot.slane %v1521, 2
  %v1523 = vmax.f32 %v1521, %v1522
  %v1524 = vrot.slane %v1523, 1
  %v1525 = vmax.f32 %v1523, %v1524
  %v1526 = vsel %vm1427, %v1324, -inf
  %v1527 = vrot.slane %v1526, 4
  %v1528 = vmax.f32 %v1526, %v1527
  %v1529 = vrot.slane %v1528, 2
  %v1530 = vmax.f32 %v1528, %v1529
  %v1531 = vrot.slane %v1530, 1
  %v1532 = vmax.f32 %v1530, %v1531
  %v1533 = vsel %vm1427, %v1326, -inf
  %v1534 = vrot.slane %v1533, 4
  %v1535 = vmax.f32 %v1533, %v1534
  %v1536 = vrot.slane %v1535, 2
  %v1537 = vmax.f32 %v1535, %v1536
  %v1538 = vrot.slane %v1537, 1
  %v1539 = vmax.f32 %v1537, %v1538
  %v1540 = vsel %vm1427, %v1334, -inf
  %v1541 = vrot.slane %v1540, 4
  %v1542 = vmax.f32 %v1540, %v1541
  %v1543 = vrot.slane %v1542, 2
  %v1544 = vmax.f32 %v1542, %v1543
  %v1545 = vrot.slane %v1544, 1
  %v1546 = vmax.f32 %v1544, %v1545
  %v1547 = vsel %vm1427, %v1342, -inf
  %v1548 = vrot.slane %v1547, 4
  %v1549 = vmax.f32 %v1547, %v1548
  %v1550 = vrot.slane %v1549, 2
  %v1551 = vmax.f32 %v1549, %v1550
  %v1552 = vrot.slane %v1551, 1
  %v1553 = vmax.f32 %v1551, %v1552
  %v1554 = vsel %vm1427, %v1341, -inf
  %v1555 = vrot.slane %v1554, 4
  %v1556 = vmax.f32 %v1554, %v1555
  %v1557 = vrot.slane %v1556, 2
  %v1558 = vmax.f32 %v1556, %v1557
  %v1559 = vrot.slane %v1558, 1
  %v1560 = vmax.f32 %v1558, %v1559
  %v1561 = vsel %vm1427, %v1343, -inf
  %v1562 = vrot.slane %v1561, 4
  %v1563 = vmax.f32 %v1561, %v1562
  %v1564 = vrot.slane %v1563, 2
  %v1565 = vmax.f32 %v1563, %v1564
  %v1566 = vrot.slane %v1565, 1
  %v1567 = vmax.f32 %v1565, %v1566
  %v1568 = vsel %vm1427, %v1351, -inf
  %v1569 = vrot.slane %v1568, 4
  %v1570 = vmax.f32 %v1568, %v1569
  %v1571 = vrot.slane %v1570, 2
  %v1572 = vmax.f32 %v1570, %v1571
  %v1573 = vrot.slane %v1572, 1
  %v1574 = vmax.f32 %v1572, %v1573
  %v1575 = vsel %vm1427, %v1359, -inf
  %v1576 = vrot.slane %v1575, 4
  %v1577 = vmax.f32 %v1575, %v1576
  %v1578 = vrot.slane %v1577, 2
  %v1579 = vmax.f32 %v1577, %v1578
  %v1580 = vrot.slane %v1579, 1
  %v1581 = vmax.f32 %v1579, %v1580
  %v1582 = vsel %vm1427, %v1358, -inf
  %v1583 = vrot.slane %v1582, 4
  %v1584 = vmax.f32 %v1582, %v1583
  %v1585 = vrot.slane %v1584, 2
  %v1586 = vmax.f32 %v1584, %v1585
  %v1587 = vrot.slane %v1586, 1
  %v1588 = vmax.f32 %v1586, %v1587
  %v1589 = vsel %vm1427, %v1360, -inf
  %v1590 = vrot.slane %v1589, 4
  %v1591 = vmax.f32 %v1589, %v1590
  %v1592 = vrot.slane %v1591, 2
  %v1593 = vmax.f32 %v1591, %v1592
  %v1594 = vrot.slane %v1593, 1
  %v1595 = vmax.f32 %v1593, %v1594
  %v1596 = vsel %vm1427, %v1368, -inf
  %v1597 = vrot.slane %v1596, 4
  %v1598 = vmax.f32 %v1596, %v1597
  %v1599 = vrot.slane %v1598, 2
  %v1600 = vmax.f32 %v1598, %v1599
  %v1601 = vrot.slane %v1600, 1
  %v1602 = vmax.f32 %v1600, %v1601
  %v1603 = vsel %vm1427, %v1376, -inf
  %v1604 = vrot.slane %v1603, 4
  %v1605 = vmax.f32 %v1603, %v1604
  %v1606 = vrot.slane %v1605, 2
  %v1607 = vmax.f32 %v1605, %v1606
  %v1608 = vrot.slane %v1607, 1
  %v1609 = vmax.f32 %v1607, %v1608
  %v1610 = vsel %vm1427, %v1375, -inf
  %v1611 = vrot.slane %v1610, 4
  %v1612 = vmax.f32 %v1610, %v1611
  %v1613 = vrot.slane %v1612, 2
  %v1614 = vmax.f32 %v1612, %v1613
  %v1615 = vrot.slane %v1614, 1
  %v1616 = vmax.f32 %v1614, %v1615
  %v1617 = vsel %vm1427, %v1377, -inf
  %v1618 = vrot.slane %v1617, 4
  %v1619 = vmax.f32 %v1617, %v1618
  %v1620 = vrot.slane %v1619, 2
  %v1621 = vmax.f32 %v1619, %v1620
  %v1622 = vrot.slane %v1621, 1
  %v1623 = vmax.f32 %v1621, %v1622
  %v1624 = vsel %vm1427, %v1385, -inf
  %v1625 = vrot.slane %v1624, 4
  %v1626 = vmax.f32 %v1624, %v1625
  %v1627 = vrot.slane %v1626, 2
  %v1628 = vmax.f32 %v1626, %v1627
  %v1629 = vrot.slane %v1628, 1
  %v1630 = vmax.f32 %v1628, %v1629
  %v1631 = vsel %vm1427, %v1393, -inf
  %v1632 = vrot.slane %v1631, 4
  %v1633 = vmax.f32 %v1631, %v1632
  %v1634 = vrot.slane %v1633, 2
  %v1635 = vmax.f32 %v1633, %v1634
  %v1636 = vrot.slane %v1635, 1
  %v1637 = vmax.f32 %v1635, %v1636
  %v1638 = vsel %vm1427, %v1392, -inf
  %v1639 = vrot.slane %v1638, 4
  %v1640 = vmax.f32 %v1638, %v1639
  %v1641 = vrot.slane %v1640, 2
  %v1642 = vmax.f32 %v1640, %v1641
  %v1643 = vrot.slane %v1642, 1
  %v1644 = vmax.f32 %v1642, %v1643
  %v1645 = vsel %vm1427, %v1394, -inf
  %v1646 = vrot.slane %v1645, 4
  %v1647 = vmax.f32 %v1645, %v1646
  %v1648 = vrot.slane %v1647, 2
  %v1649 = vmax.f32 %v1647, %v1648
  %v1650 = vrot.slane %v1649, 1
  %v1651 = vmax.f32 %v1649, %v1650
  %v1652 = vsel %vm1134, %v1434, -inf
  %v1653 = vsel %vm1134, %v1462, -inf
  %v1654 = vmax.f32 %v1652, %v1653
  %v1655 = vsel %vm1134, %v1441, -inf
  %v1656 = vsel %vm1134, %v1469, -inf
  %v1657 = vmax.f32 %v1655, %v1656
  %v1658 = vsel %vm1134, %v1448, -inf
  %v1659 = vsel %vm1134, %v1476, -inf
  %v1660 = vmax.f32 %v1658, %v1659
  %v1661 = vsel %vm1134, %v1455, -inf
  %v1662 = vsel %vm1134, %v1483, -inf
  %v1663 = vmax.f32 %v1661, %v1662
  %v1664 = vsel %vm1134, %v1490, -inf
  %v1665 = vsel %vm1134, %v1518, -inf
  %v1666 = vmax.f32 %v1664, %v1665
  %v1667 = vsel %vm1134, %v1497, -inf
  %v1668 = vsel %vm1134, %v1525, -inf
  %v1669 = vmax.f32 %v1667, %v1668
  %v1670 = vsel %vm1134, %v1504, -inf
  %v1671 = vsel %vm1134, %v1532, -inf
  %v1672 = vmax.f32 %v1670, %v1671
  %v1673 = vsel %vm1134, %v1511, -inf
  %v1674 = vsel %vm1134, %v1539, -inf
  %v1675 = vmax.f32 %v1673, %v1674
  %v1676 = vsel %vm1134, %v1546, -inf
  %v1677 = vsel %vm1134, %v1574, -inf
  %v1678 = vmax.f32 %v1676, %v1677
  %v1679 = vsel %vm1134, %v1553, -inf
  %v1680 = vsel %vm1134, %v1581, -inf
  %v1681 = vmax.f32 %v1679, %v1680
  %v1682 = vsel %vm1134, %v1560, -inf
  %v1683 = vsel %vm1134, %v1588, -inf
  %v1684 = vmax.f32 %v1682, %v1683
  %v1685 = vsel %vm1134, %v1567, -inf
  %v1686 = vsel %vm1134, %v1595, -inf
  %v1687 = vmax.f32 %v1685, %v1686
  %v1688 = vsel %vm1134, %v1602, -inf
  %v1689 = vsel %vm1134, %v1630, -inf
  %v1690 = vmax.f32 %v1688, %v1689
  %v1691 = vsel %vm1134, %v1609, -inf
  %v1692 = vsel %vm1134, %v1637, -inf
  %v1693 = vmax.f32 %v1691, %v1692
  %v1694 = vsel %vm1134, %v1616, -inf
  %v1695 = vsel %vm1134, %v1644, -inf
  %v1696 = vmax.f32 %v1694, %v1695
  %v1697 = vsel %vm1134, %v1623, -inf
  %v1698 = vsel %vm1134, %v1651, -inf
  %v1699 = vmax.f32 %v1697, %v1698
  %v1700 = vpack.c.bf16 %v1654, %v1654
  %v1701 = vpack.c.bf16 %v1657, %v1657
  %v1702 = vpack.c.bf16 %v1660, %v1660
  %v1703 = vpack.c.bf16 %v1663, %v1663
  %v1704 = vpack.c.bf16 %v1666, %v1666
  %v1705 = vpack.c.bf16 %v1669, %v1669
  %v1706 = vpack.c.bf16 %v1672, %v1672
  %v1707 = vpack.c.bf16 %v1675, %v1675
  %v1708 = vpack.c.bf16 %v1678, %v1678
  %v1709 = vpack.c.bf16 %v1681, %v1681
  %v1710 = vpack.c.bf16 %v1684, %v1684
  %v1711 = vpack.c.bf16 %v1687, %v1687
  %v1712 = vpack.c.bf16 %v1690, %v1690
  %v1713 = vpack.c.bf16 %v1693, %v1693
  %v1714 = vpack.c.bf16 %v1696, %v1696
  %v1715 = vpack.c.bf16 %v1699, %v1699
  %v1733 = vunpack.c.l.s4 1983009808
  %v1734 = vunpack.c.0.s8 %v1733
  %v1735 = vlaneseq
  %v1736 = vshrl.u32 %v1735, 7
  %v1737 = vsub.s32 %v1734, %v1736
  %v1738 = vrot.slane %v1700, %v1737
  %v1740 = vunpack.c.l.s4 1983009808
  %v1741 = vunpack.c.0.s8 %v1740
  %v1742 = vlaneseq
  %v1743 = vshrl.u32 %v1742, 7
  %v1744 = vsub.s32 %v1741, %v1743
  %v1745 = vrot.slane %v1701, %v1744
  %v1747 = vunpack.c.l.s4 1983009808
  %v1748 = vunpack.c.0.s8 %v1747
  %v1749 = vlaneseq
  %v1750 = vshrl.u32 %v1749, 7
  %v1751 = vsub.s32 %v1748, %v1750
  %v1752 = vrot.slane %v1702, %v1751
  %v1754 = vunpack.c.l.s4 1983009808
  %v1755 = vunpack.c.0.s8 %v1754
  %v1756 = vlaneseq
  %v1757 = vshrl.u32 %v1756, 7
  %v1758 = vsub.s32 %v1755, %v1757
  %v1759 = vrot.slane %v1703, %v1758
  %v1761 = vunpack.c.l.s4 1983009808
  %v1762 = vunpack.c.0.s8 %v1761
  %v1763 = vlaneseq
  %v1764 = vshrl.u32 %v1763, 7
  %v1765 = vsub.s32 %v1762, %v1764
  %v1766 = vrot.slane %v1704, %v1765
  %v1768 = vunpack.c.l.s4 1983009808
  %v1769 = vunpack.c.0.s8 %v1768
  %v1770 = vlaneseq
  %v1771 = vshrl.u32 %v1770, 7
  %v1772 = vsub.s32 %v1769, %v1771
  %v1773 = vrot.slane %v1705, %v1772
  %v1775 = vunpack.c.l.s4 1983009808
  %v1776 = vunpack.c.0.s8 %v1775
  %v1777 = vlaneseq
  %v1778 = vshrl.u32 %v1777, 7
  %v1779 = vsub.s32 %v1776, %v1778
  %v1780 = vrot.slane %v1706, %v1779
  %v1782 = vunpack.c.l.s4 1983009808
  %v1783 = vunpack.c.0.s8 %v1782
  %v1784 = vlaneseq
  %v1785 = vshrl.u32 %v1784, 7
  %v1786 = vsub.s32 %v1783, %v1785
  %v1787 = vrot.slane %v1707, %v1786
  %v1789 = vunpack.c.l.s4 1983009808
  %v1790 = vunpack.c.0.s8 %v1789
  %v1791 = vlaneseq
  %v1792 = vshrl.u32 %v1791, 7
  %v1793 = vsub.s32 %v1790, %v1792
  %v1794 = vrot.slane %v1708, %v1793
  %v1796 = vunpack.c.l.s4 1983009808
  %v1797 = vunpack.c.0.s8 %v1796
  %v1798 = vlaneseq
  %v1799 = vshrl.u32 %v1798, 7
  %v1800 = vsub.s32 %v1797, %v1799
  %v1801 = vrot.slane %v1709, %v1800
  %v1803 = vunpack.c.l.s4 1983009808
  %v1804 = vunpack.c.0.s8 %v1803
  %v1805 = vlaneseq
  %v1806 = vshrl.u32 %v1805, 7
  %v1807 = vsub.s32 %v1804, %v1806
  %v1808 = vrot.slane %v1710, %v1807
  %v1810 = vunpack.c.l.s4 1983009808
  %v1811 = vunpack.c.0.s8 %v1810
  %v1812 = vlaneseq
  %v1813 = vshrl.u32 %v1812, 7
  %v1814 = vsub.s32 %v1811, %v1813
  %v1815 = vrot.slane %v1711, %v1814
  %v1817 = vunpack.c.l.s4 1983009808
  %v1818 = vunpack.c.0.s8 %v1817
  %v1819 = vlaneseq
  %v1820 = vshrl.u32 %v1819, 7
  %v1821 = vsub.s32 %v1818, %v1820
  %v1822 = vrot.slane %v1712, %v1821
  %v1824 = vunpack.c.l.s4 1983009808
  %v1825 = vunpack.c.0.s8 %v1824
  %v1826 = vlaneseq
  %v1827 = vshrl.u32 %v1826, 7
  %v1828 = vsub.s32 %v1825, %v1827
  %v1829 = vrot.slane %v1713, %v1828
  %v1831 = vunpack.c.l.s4 1983009808
  %v1832 = vunpack.c.0.s8 %v1831
  %v1833 = vlaneseq
  %v1834 = vshrl.u32 %v1833, 7
  %v1835 = vsub.s32 %v1832, %v1834
  %v1836 = vrot.slane %v1714, %v1835
  %v1838 = vunpack.c.l.s4 1983009808
  %v1839 = vunpack.c.0.s8 %v1838
  %v1840 = vlaneseq
  %v1841 = vshrl.u32 %v1840, 7
  %v1842 = vsub.s32 %v1839, %v1841
  %v1843 = vrot.slane %v1715, %v1842
  %v1845 = vunpack.c.l.s4 1983009808
  %v1846 = vunpack.c.0.s8 %v1845
  %v1847 = vlaneseq
  %v1848 = vshrl.u32 %v1847, 7
  %v1849 = vsub.s32 %v1846, %v1848
  %v1850 = vrot.slane %v1738, %v1849
  %v1852 = vunpack.c.l.s4 1983009808
  %v1853 = vunpack.c.0.s8 %v1852
  %v1854 = vlaneseq
  %v1855 = vshrl.u32 %v1854, 7
  %v1856 = vsub.s32 %v1853, %v1855
  %v1857 = vrot.slane %v1745, %v1856
  %v1859 = vunpack.c.l.s4 1983009808
  %v1860 = vunpack.c.0.s8 %v1859
  %v1861 = vlaneseq
  %v1862 = vshrl.u32 %v1861, 7
  %v1863 = vsub.s32 %v1860, %v1862
  %v1864 = vrot.slane %v1752, %v1863
  %v1866 = vunpack.c.l.s4 1983009808
  %v1867 = vunpack.c.0.s8 %v1866
  %v1868 = vlaneseq
  %v1869 = vshrl.u32 %v1868, 7
  %v1870 = vsub.s32 %v1867, %v1869
  %v1871 = vrot.slane %v1759, %v1870
  %v1873 = vunpack.c.l.s4 1983009808
  %v1874 = vunpack.c.0.s8 %v1873
  %v1875 = vlaneseq
  %v1876 = vshrl.u32 %v1875, 7
  %v1877 = vsub.s32 %v1874, %v1876
  %v1878 = vrot.slane %v1766, %v1877
  %v1880 = vunpack.c.l.s4 1983009808
  %v1881 = vunpack.c.0.s8 %v1880
  %v1882 = vlaneseq
  %v1883 = vshrl.u32 %v1882, 7
  %v1884 = vsub.s32 %v1881, %v1883
  %v1885 = vrot.slane %v1773, %v1884
  %v1887 = vunpack.c.l.s4 1983009808
  %v1888 = vunpack.c.0.s8 %v1887
  %v1889 = vlaneseq
  %v1890 = vshrl.u32 %v1889, 7
  %v1891 = vsub.s32 %v1888, %v1890
  %v1892 = vrot.slane %v1780, %v1891
  %v1894 = vunpack.c.l.s4 1983009808
  %v1895 = vunpack.c.0.s8 %v1894
  %v1896 = vlaneseq
  %v1897 = vshrl.u32 %v1896, 7
  %v1898 = vsub.s32 %v1895, %v1897
  %v1899 = vrot.slane %v1787, %v1898
  %v1901 = vunpack.c.l.s4 1983009808
  %v1902 = vunpack.c.0.s8 %v1901
  %v1903 = vlaneseq
  %v1904 = vshrl.u32 %v1903, 7
  %v1905 = vsub.s32 %v1902, %v1904
  %v1906 = vrot.slane %v1794, %v1905
  %v1908 = vunpack.c.l.s4 1983009808
  %v1909 = vunpack.c.0.s8 %v1908
  %v1910 = vlaneseq
  %v1911 = vshrl.u32 %v1910, 7
  %v1912 = vsub.s32 %v1909, %v1911
  %v1913 = vrot.slane %v1801, %v1912
  %v1915 = vunpack.c.l.s4 1983009808
  %v1916 = vunpack.c.0.s8 %v1915
  %v1917 = vlaneseq
  %v1918 = vshrl.u32 %v1917, 7
  %v1919 = vsub.s32 %v1916, %v1918
  %v1920 = vrot.slane %v1808, %v1919
  %v1922 = vunpack.c.l.s4 1983009808
  %v1923 = vunpack.c.0.s8 %v1922
  %v1924 = vlaneseq
  %v1925 = vshrl.u32 %v1924, 7
  %v1926 = vsub.s32 %v1923, %v1925
  %v1927 = vrot.slane %v1815, %v1926
  %v1929 = vunpack.c.l.s4 1983009808
  %v1930 = vunpack.c.0.s8 %v1929
  %v1931 = vlaneseq
  %v1932 = vshrl.u32 %v1931, 7
  %v1933 = vsub.s32 %v1930, %v1932
  %v1934 = vrot.slane %v1822, %v1933
  %v1936 = vunpack.c.l.s4 1983009808
  %v1937 = vunpack.c.0.s8 %v1936
  %v1938 = vlaneseq
  %v1939 = vshrl.u32 %v1938, 7
  %v1940 = vsub.s32 %v1937, %v1939
  %v1941 = vrot.slane %v1829, %v1940
  %v1943 = vunpack.c.l.s4 1983009808
  %v1944 = vunpack.c.0.s8 %v1943
  %v1945 = vlaneseq
  %v1946 = vshrl.u32 %v1945, 7
  %v1947 = vsub.s32 %v1944, %v1946
  %v1948 = vrot.slane %v1836, %v1947
  %v1950 = vunpack.c.l.s4 1983009808
  %v1951 = vunpack.c.0.s8 %v1950
  %v1952 = vlaneseq
  %v1953 = vshrl.u32 %v1952, 7
  %v1954 = vsub.s32 %v1951, %v1953
  %v1955 = vrot.slane %v1843, %v1954
  %v1956 = vunpack.c.l.b16 %v1850
  %v1957 = vunpack.c.l.b16 %v1857
  %v1958 = vunpack.c.l.b16 %v1864
  %v1959 = vunpack.c.l.b16 %v1871
  %v1960 = vunpack.c.l.b16 %v1878
  %v1961 = vunpack.c.l.b16 %v1885
  %v1962 = vunpack.c.l.b16 %v1892
  %v1963 = vunpack.c.l.b16 %v1899
  %v1964 = vunpack.c.l.b16 %v1906
  %v1965 = vunpack.c.l.b16 %v1913
  %v1966 = vunpack.c.l.b16 %v1920
  %v1967 = vunpack.c.l.b16 %v1927
  %v1968 = vunpack.c.l.b16 %v1934
  %v1969 = vunpack.c.l.b16 %v1941
  %v1970 = vunpack.c.l.b16 %v1948
  %v1971 = vunpack.c.l.b16 %v1955
  %v1972 = vrot.slane %v1957, 7
  %vm1973 = vcmask 1041409
  %v1974 = vsel %vm1973, %v1972, %v1956
  %v1975 = vrot.slane %v1958, 6
  %vm1976 = vcmask 1042434
  %v1977 = vsel %vm1976, %v1975, %v1974
  %v1978 = vrot.slane %v1959, 5
  %vm1979 = vcmask 1043459
  %v1980 = vsel %vm1979, %v1978, %v1977
  %v1981 = vrot.slane %v1961, 7
  %v1982 = vsel %vm1973, %v1981, %v1960
  %v1983 = vrot.slane %v1962, 6
  %v1984 = vsel %vm1976, %v1983, %v1982
  %v1985 = vrot.slane %v1963, 5
  %v1986 = vsel %vm1979, %v1985, %v1984
  %v1987 = vrot.slane %v1965, 7
  %v1988 = vsel %vm1973, %v1987, %v1964
  %v1989 = vrot.slane %v1966, 6
  %v1990 = vsel %vm1976, %v1989, %v1988
  %v1991 = vrot.slane %v1967, 5
  %v1992 = vsel %vm1979, %v1991, %v1990
  %v1993 = vrot.slane %v1969, 7
  %v1994 = vsel %vm1973, %v1993, %v1968
  %v1995 = vrot.slane %v1970, 6
  %v1996 = vsel %vm1976, %v1995, %v1994
  %v1997 = vrot.slane %v1971, 5
  %v1998 = vsel %vm1979, %v1997, %v1996
  %v1999 = vpack.c.b16 %v1980, %v1980
  %v2000 = vpack.c.b16 %v1986, %v1986
  %v2001 = vpack.c.b16 %v1992, %v1992
  %v2002 = vpack.c.b16 %v1998, %v1998
  %v2004 = vunpack.c.l.s4 1983009808
  %v2005 = vunpack.c.0.s8 %v2004
  %v2006 = vlaneseq
  %v2007 = vshrl.u32 %v2006, 7
  %v2008 = vsub.s32 %v2005, %v2007
  %v2009 = vrot.slane %v1999, %v2008
  %v2011 = vunpack.c.l.s4 1983009808
  %v2012 = vunpack.c.0.s8 %v2011
  %v2013 = vlaneseq
  %v2014 = vshrl.u32 %v2013, 7
  %v2015 = vsub.s32 %v2012, %v2014
  %v2016 = vrot.slane %v2000, %v2015
  %v2018 = vunpack.c.l.s4 1983009808
  %v2019 = vunpack.c.0.s8 %v2018
  %v2020 = vlaneseq
  %v2021 = vshrl.u32 %v2020, 7
  %v2022 = vsub.s32 %v2019, %v2021
  %v2023 = vrot.slane %v2001, %v2022
  %v2025 = vunpack.c.l.s4 1983009808
  %v2026 = vunpack.c.0.s8 %v2025
  %v2027 = vlaneseq
  %v2028 = vshrl.u32 %v2027, 7
  %v2029 = vsub.s32 %v2026, %v2028
  %v2030 = vrot.slane %v2002, %v2029
  %2035 = vst.msk [vmem:[%s4] sm:$0x3] %vm1427, %v2009
  %2036 = vst.msk [vmem:[%s4 + $0x2] sm:$0x3] %vm1427, %v2016
  %2037 = vst.msk [vmem:[%s4 + $0x4] sm:$0x3] %vm1427, %v2023
  %2038 = vst.msk [vmem:[%s4 + $0x6] sm:$0x3] %vm1427, %v2030
  // Predicated region
  $region18: #{_lambda_.4} parent=0 // pred_check
    _
  $region19: #{_lambda_.4} parent=0 // pred_check_branch
    %2040 = sbr.rel (0) target = $region21
  $region20: #{_lambda_.4} parent=0 // pred_region
    _
  $region21: #{_lambda_.4} parent=0 // pred_fallthru
    _
  // Predicated region
  $region22: #{_lambda_.4} parent=0 // pred_check
    _
  $region23: #{_lambda_.4} parent=0 // pred_check_branch
    %2042 = sbr.rel (0) target = $region25
  $region24: #{_lambda_.4} parent=0 // pred_region
    _
  $region25: #{_lambda_.4} parent=0 // pred_fallthru
    _

// kernel: _lambda_.3
$region0: #{_lambda_.3}
  #allocation0 [shape = 'u32[]', space=smem, size = 0x4, offset = 0x4, fixed_abs, tag = 'smem constant byte address 0x4 - core index']
  #allocation1 [shape = 'u32[144,128]{1,0:T(1,128)}', space=vmem, size = 0x12000, scoped, tag = 'internal scratch']
  #allocation2 [shape = 'f32[256,16]{1,0:T(8,128)}', space=vmem, size = 0x20000, scoped, tag = 'scratch operand']
  %s0 = inlined_call_operand.vmem [shape: bf16[18,18,8], index: 0, kind: input, shape index: {}]
  %s1 = inlined_call_operand.vmem [shape: bf16[9,8,16], index: 1, kind: input, shape index: {}]
  %s2 = inlined_call_operand.vmem [shape: f32[1,16], index: 2, kind: input, shape index: {}]
  %s3 = inlined_call_operand.vmem [shape: f32[1,16], index: 3, kind: input, shape index: {}]
  %s4 = inlined_call_operand.vmem [shape: bf16[8,8,16], index: 4, kind: output, shape index: {}]
  %s5 = sld [smem:[#allocation0]]
  $region26: #{_lambda_.3} parent=0
    _
  %s7 = ssub.s32 1, %s5
  %s8 = scalar_select 0, %s7, %s5
  // Predicated region
  $region2: #{_lambda_.3} parent=0 // pred_check
    _
  $region3: #{_lambda_.3} parent=0 // pred_check_branch
    %10 = sbr.rel (0) target = $region5
  $region4: #{_lambda_.3} parent=0 // pred_region
    _
  $region5: #{_lambda_.3} parent=0 // pred_fallthru
    _
  // Predicated region
  $region6: #{_lambda_.3} parent=0 // pred_check
    _
  $region7: #{_lambda_.3} parent=0 // pred_check_branch
    %12 = sbr.rel (0) target = $region9
  $region8: #{_lambda_.3} parent=0 // pred_region
    _
  $region9: #{_lambda_.3} parent=0 // pred_fallthru
    _
  // Predicated region
  $region10: #{_lambda_.3} parent=0 // pred_check
    _
  $region11: #{_lambda_.3} parent=0 // pred_check_branch
    %14 = sbr.rel (0) target = $region13
  $region12: #{_lambda_.3} parent=0 // pred_region
    _
  $region13: #{_lambda_.3} parent=0 // pred_fallthru
    _
  // Predicated region
  $region14: #{_lambda_.3} parent=0 // pred_check
    _
  $region15: #{_lambda_.3} parent=0 // pred_check_branch
    %16 = sbr.rel (0) target = $region17
  $region16: #{_lambda_.3} parent=0 // pred_region
    _
  $region17: #{_lambda_.3} parent=0 // pred_fallthru
    _
  %v18 = vld [vmem:[%s0] sm:$0xf]
  %v19 = vld [vmem:[%s0 + $0x4] sm:$0xf]
  %v20 = vld [vmem:[%s0 + $0xc] sm:$0xf]
  %v21 = vld [vmem:[%s0 + $0x10] sm:$0xf]
  %v22 = vld [vmem:[%s0 + $0x18] sm:$0xf]
  %v23 = vld [vmem:[%s0 + $0x1c] sm:$0xf]
  %v24 = vld [vmem:[%s0 + $0x24] sm:$0xf]
  %v25 = vld [vmem:[%s0 + $0x28] sm:$0xf]
  %v26 = vld [vmem:[%s0 + $0x30] sm:$0xf]
  %v27 = vld [vmem:[%s0 + $0x34] sm:$0xf]
  %v28 = vld [vmem:[%s0 + $0x3c] sm:$0xf]
  %v29 = vld [vmem:[%s0 + $0x40] sm:$0xf]
  %v30 = vld [vmem:[%s0 + $0x48] sm:$0xf]
  %v31 = vld [vmem:[%s0 + $0x4c] sm:$0xf]
  %v32 = vld [vmem:[%s0 + $0x54] sm:$0xf]
  %v33 = vld [vmem:[%s0 + $0x58] sm:$0xf]
  %v34 = vld [vmem:[%s0 + $0x60] sm:$0xf]
  %v35 = vld [vmem:[%s0 + $0x64] sm:$0xf]
  %v36 = vld [vmem:[%s0 + $0x6c] sm:$0xf]
  %v37 = vld [vmem:[%s0 + $0x70] sm:$0xf]
  %v38 = vld [vmem:[%s1] sm:$0xf]
  %s39 = scalar_lea.vmem %s1, 12
  %v40 = vld [vmem:[%s39] sm:$0xf]
  %v57 = vunpack.c.l.b16 %v20
  %v58 = vunpack.c.l.b16 %v21
  %v59 = vunpack.c.l.b16 %v22
  %v60 = vunpack.c.l.b16 %v23
  %v61 = vunpack.c.l.b16 %v24
  %v62 = vunpack.c.l.b16 %v25
  %v63 = vunpack.c.l.b16 %v26
  %v64 = vunpack.c.l.b16 %v27
  %v65 = vunpack.c.l.b16 %v28
  %v66 = vunpack.c.l.b16 %v29
  %v67 = vunpack.c.l.b16 %v30
  %v68 = vunpack.c.l.b16 %v31
  %v69 = vunpack.c.l.b16 %v32
  %v70 = vunpack.c.l.b16 %v33
  %v71 = vunpack.c.l.b16 %v34
  %v72 = vunpack.c.l.b16 %v35
  %v73 = vpack.c.b16 %v58, %v57
  %v74 = vpack.c.b16 %v60, %v59
  %v75 = vpack.c.b16 %v62, %v61
  %v76 = vpack.c.b16 %v64, %v63
  %v77 = vpack.c.b16 %v66, %v65
  %v78 = vpack.c.b16 %v68, %v67
  %v79 = vpack.c.b16 %v70, %v69
  %v80 = vpack.c.b16 %v72, %v71
  %vm81 = vcmask 64512
  %v83 = vsel %vm81, %v73, 0
  %v86 = vsel %vm81, %v74, 0
  %v89 = vsel %vm81, %v75, 0
  %v92 = vsel %vm81, %v76, 0
  %v95 = vsel %vm81, %v77, 0
  %v98 = vsel %vm81, %v78, 0
  %v101 = vsel %vm81, %v79, 0
  %v104 = vsel %vm81, %v80, 0
  %vm106 = vcmask 1043456
  %v108 = vsel %vm106, %v40, 0
  %110 = vmatprep.subr.bf16.mxu0 0
  %111 = vmatpush1.bf16.msra.mxu0 %v108
  %112 = vmatprep.subr.bf16.mxu0 0
  %113 = vmatpush1.bf16.msra.mxu0 0
  %114 = vmatprep.subr.bf16.mxu0 0
  %115 = vmatpush1.bf16.msra.mxu0 0
  %116 = vmatprep.subr.bf16.mxu0 0
  %117 = vmatpush1.bf16.msra.mxu0 0
  %118 = vmatprep.subr.bf16.mxu0 0
  %119 = vmatpush1.bf16.msra.mxu0 0
  %120 = vmatprep.subr.bf16.mxu0 0
  %121 = vmatpush1.bf16.msra.mxu0 0
  %122 = vmatprep.subr.bf16.mxu0 0
  %123 = vmatpush1.bf16.msra.mxu0 0
  %124 = vmatprep.subr.bf16.mxu0 0
  %125 = vmatpush1.bf16.msra.mxu0 0
  %126 = vmatprep.subr.bf16.mxu0 0
  %127 = vmatpush1.bf16.msra.mxu0 0
  %128 = vmatprep.subr.bf16.mxu0 0
  %129 = vmatpush1.bf16.msra.mxu0 0
  %130 = vmatprep.subr.bf16.mxu0 0
  %131 = vmatpush1.bf16.msra.mxu0 0
  %132 = vmatprep.subr.bf16.mxu0 0
  %133 = vmatpush1.bf16.msra.mxu0 0
  %134 = vmatprep.subr.bf16.mxu0 0
  %135 = vmatpush1.bf16.msra.mxu0 0
  %136 = vmatprep.subr.bf16.mxu0 0
  %137 = vmatpush1.bf16.msra.mxu0 0
  %138 = vmatprep.subr.bf16.mxu0 0
  %139 = vmatpush1.bf16.msra.mxu0 0
  %140 = vmatprep.subr.bf16.mxu0 0
  %141 = vmatpush1.bf16.msra.mxu0 0
  %142 = vmatprep.mubr.bf16.mxu0 0
  %143 = vmatmul.mubr.bf16.gmra.mrb[0].mxu0 %v83
  %v144 = vpop.f32.mrb[0].mxu0
  %v145 = vadd.f32 0.0, %v144
  %v146 = vpop.f32.mrb[0].mxu0
  %v147 = vpop.f32.mrb[0].mxu0
  %v148 = vadd.f32 0.0, %v147
  %v149 = vpop.f32.mrb[0].mxu0
  %150 = vmatprep.mubr.bf16.mxu0 0
  %151 = vmatmul.mubr.bf16.gmra.mrb[0].mxu0 %v86
  %v152 = vpop.f32.mrb[0].mxu0
  %v153 = vadd.f32 0.0, %v152
  %v154 = vpop.f32.mrb[0].mxu0
  %v155 = vpop.f32.mrb[0].mxu0
  %v156 = vadd.f32 0.0, %v155
  %v157 = vpop.f32.mrb[0].mxu0
  %158 = vmatprep.mubr.bf16.mxu0 0
  %159 = vmatmul.mubr.bf16.gmra.mrb[0].mxu0 %v89
  %v160 = vpop.f32.mrb[0].mxu0
  %v161 = vadd.f32 0.0, %v160
  %v162 = vpop.f32.mrb[0].mxu0
  %v163 = vpop.f32.mrb[0].mxu0
  %v164 = vadd.f32 0.0, %v163
  %v165 = vpop.f32.mrb[0].mxu0
  %166 = vmatprep.mubr.bf16.mxu0 0
  %167 = vmatmul.mubr.bf16.gmra.mrb[0].mxu0 %v92
  %v168 = vpop.f32.mrb[0].mxu0
  %v169 = vadd.f32 0.0, %v168
  %v170 = vpop.f32.mrb[0].mxu0
  %v171 = vpop.f32.mrb[0].mxu0
  %v172 = vadd.f32 0.0, %v171
  %v173 = vpop.f32.mrb[0].mxu0
  %174 = vmatprep.mubr.bf16.mxu0 0
  %175 = vmatmul.mubr.bf16.gmra.mrb[0].mxu0 %v95
  %v176 = vpop.f32.mrb[0].mxu0
  %v177 = vadd.f32 0.0, %v176
  %v178 = vpop.f32.mrb[0].mxu0
  %v179 = vpop.f32.mrb[0].mxu0
  %v180 = vadd.f32 0.0, %v179
  %v181 = vpop.f32.mrb[0].mxu0
  %182 = vmatprep.mubr.bf16.mxu0 0
  %183 = vmatmul.mubr.bf16.gmra.mrb[0].mxu0 %v98
  %v184 = vpop.f32.mrb[0].mxu0
  %v185 = vadd.f32 0.0, %v184
  %v186 = vpop.f32.mrb[0].mxu0
  %v187 = vpop.f32.mrb[0].mxu0
  %v188 = vadd.f32 0.0, %v187
  %v189 = vpop.f32.mrb[0].mxu0
  %190 = vmatprep.mubr.bf16.mxu0 0
  %191 = vmatmul.mubr.bf16.gmra.mrb[0].mxu0 %v101
  %v192 = vpop.f32.mrb[0].mxu0
  %v193 = vadd.f32 0.0, %v192
  %v194 = vpop.f32.mrb[0].mxu0
  %v195 = vpop.f32.mrb[0].mxu0
  %v196 = vadd.f32 0.0, %v195
  %v197 = vpop.f32.mrb[0].mxu0
  %198 = vmatprep.mubr.bf16.mxu0 0
  %199 = vmatmul.mubr.bf16.gmra.mrb[0].mxu0 %v104
  %v200 = vpop.f32.mrb[0].mxu0
  %v201 = vadd.f32 0.0, %v200
  %v202 = vpop.f32.mrb[0].mxu0
  %v203 = vpop.f32.mrb[0].mxu0
  %v204 = vadd.f32 0.0, %v203
  %v205 = vpop.f32.mrb[0].mxu0
  %206 = vdwg.mxu0
  %v209 = vunpack.c.l.b16 %v18
  %v210 = vunpack.c.l.b16 %v19
  %v211 = vpack.c.b16 %v210, %v209
  %v213 = vsel %vm81, %v211, 0
  %v216 = vsel %vm106, %v38, 0
  %218 = vmatprep.subr.bf16.mxu0 0
  %219 = vmatpush1.bf16.msra.mxu0 %v216
  %220 = vmatprep.subr.bf16.mxu0 0
  %221 = vmatpush1.bf16.msra.mxu0 0
  %222 = vmatprep.subr.bf16.mxu0 0
  %223 = vmatpush1.bf16.msra.mxu0 0
  %224 = vmatprep.subr.bf16.mxu0 0
  %225 = vmatpush1.bf16.msra.mxu0 0
  %226 = vmatprep.subr.bf16.mxu0 0
  %227 = vmatpush1.bf16.msra.mxu0 0
  %228 = vmatprep.subr.bf16.mxu0 0
  %229 = vmatpush1.bf16.msra.mxu0 0
  %230 = vmatprep.subr.bf16.mxu0 0
  %231 = vmatpush1.bf16.msra.mxu0 0
  %232 = vmatprep.subr.bf16.mxu0 0
  %233 = vmatpush1.bf16.msra.mxu0 0
  %234 = vmatprep.subr.bf16.mxu0 0
  %235 = vmatpush1.bf16.msra.mxu0 0
  %236 = vmatprep.subr.bf16.mxu0 0
  %237 = vmatpush1.bf16.msra.mxu0 0
  %238 = vmatprep.subr.bf16.mxu0 0
  %239 = vmatpush1.bf16.msra.mxu0 0
  %240 = vmatprep.subr.bf16.mxu0 0
  %241 = vmatpush1.bf16.msra.mxu0 0
  %242 = vmatprep.subr.bf16.mxu0 0
  %243 = vmatpush1.bf16.msra.mxu0 0
  %244 = vmatprep.subr.bf16.mxu0 0
  %245 = vmatpush1.bf16.msra.mxu0 0
  %246 = vmatprep.subr.bf16.mxu0 0
  %247 = vmatpush1.bf16.msra.mxu0 0
  %248 = vmatprep.subr.bf16.mxu0 0
  %249 = vmatpush1.bf16.msra.mxu0 0
  %250 = vmatprep.mubr.bf16.mxu0 0
  %251 = vmatmul.mubr.bf16.gmra.mrb[0].mxu0 %v213
  %v252 = vpop.f32.mrb[0].mxu0
  %v253 = vadd.f32 %v145, %v252
  %v254 = vpop.f32.mrb[0].mxu0
  %v255 = vpop.f32.mrb[0].mxu0
  %v256 = vadd.f32 %v148, %v255
  %v257 = vpop.f32.mrb[0].mxu0
  %258 = vmatprep.mubr.bf16.mxu0 0
  %259 = vmatmul.mubr.bf16.gmra.mrb[0].mxu0 %v83
  %v260 = vpop.f32.mrb[0].mxu0
  %v261 = vadd.f32 %v153, %v260
  %v262 = vpop.f32.mrb[0].mxu0
  %v263 = vpop.f32.mrb[0].mxu0
  %v264 = vadd.f32 %v156, %v263
  %v265 = vpop.f32.mrb[0].mxu0
  %266 = vmatprep.mubr.bf16.mxu0 0
  %267 = vmatmul.mubr.bf16.gmra.mrb[0].mxu0 %v86
  %v268 = vpop.f32.mrb[0].mxu0
  %v269 = vadd.f32 %v161, %v268
  %v270 = vpop.f32.mrb[0].mxu0
  %v271 = vpop.f32.mrb[0].mxu0
  %v272 = vadd.f32 %v164, %v271
  %v273 = vpop.f32.mrb[0].mxu0
  %274 = vmatprep.mubr.bf16.mxu0 0
  %275 = vmatmul.mubr.bf16.gmra.mrb[0].mxu0 %v89
  %v276 = vpop.f32.mrb[0].mxu0
  %v277 = vadd.f32 %v169, %v276
  %v278 = vpop.f32.mrb[0].mxu0
  %v279 = vpop.f32.mrb[0].mxu0
  %v280 = vadd.f32 %v172, %v279
  %v281 = vpop.f32.mrb[0].mxu0
  %282 = vmatprep.mubr.bf16.mxu0 0
  %283 = vmatmul.mubr.bf16.gmra.mrb[0].mxu0 %v92
  %v284 = vpop.f32.mrb[0].mxu0
  %v285 = vadd.f32 %v177, %v284
  %v286 = vpop.f32.mrb[0].mxu0
  %v287 = vpop.f32.mrb[0].mxu0
  %v288 = vadd.f32 %v180, %v287
  %v289 = vpop.f32.mrb[0].mxu0
  %290 = vmatprep.mubr.bf16.mxu0 0
  %291 = vmatmul.mubr.bf16.gmra.mrb[0].mxu0 %v95
  %v292 = vpop.f32.mrb[0].mxu0
  %v293 = vadd.f32 %v185, %v292
  %v294 = vpop.f32.mrb[0].mxu0
  %v295 = vpop.f32.mrb[0].mxu0
  %v296 = vadd.f32 %v188, %v295
  %v297 = vpop.f32.mrb[0].mxu0
  %298 = vmatprep.mubr.bf16.mxu0 0
  %299 = vmatmul.mubr.bf16.gmra.mrb[0].mxu0 %v98
  %v300 = vpop.f32.mrb[0].mxu0
  %v301 = vadd.f32 %v193, %v300
  %v302 = vpop.f32.mrb[0].mxu0
  %v303 = vpop.f32.mrb[0].mxu0
  %v304 = vadd.f32 %v196, %v303
  %v305 = vpop.f32.mrb[0].mxu0
  %306 = vmatprep.mubr.bf16.mxu0 0
  %307 = vmatmul.mubr.bf16.gmra.mrb[0].mxu0 %v101
  %v308 = vpop.f32.mrb[0].mxu0
  %v309 = vadd.f32 %v201, %v308
  %v310 = vpop.f32.mrb[0].mxu0
  %v311 = vpop.f32.mrb[0].mxu0
  %v312 = vadd.f32 %v204, %v311
  %v313 = vpop.f32.mrb[0].mxu0
  %314 = vdwg.mxu0
  %s315 = scalar_lea.vmem %s1, 24
  %v316 = vld [vmem:[%s315] sm:$0xf]
  %v319 = vunpack.c.l.b16 %v36
  %v320 = vunpack.c.l.b16 %v37
  %v321 = vpack.c.b16 %v320, %v319
  %v323 = vsel %vm81, %v321, 0
  %v326 = vsel %vm106, %v316, 0
  %328 = vmatprep.subr.bf16.mxu0 0
  %329 = vmatpush1.bf16.msra.mxu0 %v326
  %330 = vmatprep.subr.bf16.mxu0 0
  %331 = vmatpush1.bf16.msra.mxu0 0
  %332 = vmatprep.subr.bf16.mxu0 0
  %333 = vmatpush1.bf16.msra.mxu0 0
  %334 = vmatprep.subr.bf16.mxu0 0
  %335 = vmatpush1.bf16.msra.mxu0 0
  %336 = vmatprep.subr.bf16.mxu0 0
  %337 = vmatpush1.bf16.msra.mxu0 0
  %338 = vmatprep.subr.bf16.mxu0 0
  %339 = vmatpush1.bf16.msra.mxu0 0
  %340 = vmatprep.subr.bf16.mxu0 0
  %341 = vmatpush1.bf16.msra.mxu0 0
  %342 = vmatprep.subr.bf16.mxu0 0
  %343 = vmatpush1.bf16.msra.mxu0 0
  %344 = vmatprep.subr.bf16.mxu0 0
  %345 = vmatpush1.bf16.msra.mxu0 0
  %346 = vmatprep.subr.bf16.mxu0 0
  %347 = vmatpush1.bf16.msra.mxu0 0
  %348 = vmatprep.subr.bf16.mxu0 0
  %349 = vmatpush1.bf16.msra.mxu0 0
  %350 = vmatprep.subr.bf16.mxu0 0
  %351 = vmatpush1.bf16.msra.mxu0 0
  %352 = vmatprep.subr.bf16.mxu0 0
  %353 = vmatpush1.bf16.msra.mxu0 0
  %354 = vmatprep.subr.bf16.mxu0 0
  %355 = vmatpush1.bf16.msra.mxu0 0
  %356 = vmatprep.subr.bf16.mxu0 0
  %357 = vmatpush1.bf16.msra.mxu0 0
  %358 = vmatprep.subr.bf16.mxu0 0
  %359 = vmatpush1.bf16.msra.mxu0 0
  %360 = vmatprep.mubr.bf16.mxu0 0
  %361 = vmatmul.mubr.bf16.gmra.mrb[0].mxu0 %v86
  %v362 = vpop.f32.mrb[0].mxu0
  %v363 = vadd.f32 0.0, %v362
  %v364 = vpop.f32.mrb[0].mxu0
  %v365 = vpop.f32.mrb[0].mxu0
  %v366 = vadd.f32 0.0, %v365
  %v367 = vpop.f32.mrb[0].mxu0
  %368 = vmatprep.mubr.bf16.mxu0 0
  %369 = vmatmul.mubr.bf16.gmra.mrb[0].mxu0 %v89
  %v370 = vpop.f32.mrb[0].mxu0
  %v371 = vadd.f32 0.0, %v370
  %v372 = vpop.f32.mrb[0].mxu0
  %v373 = vpop.f32.mrb[0].mxu0
  %v374 = vadd.f32 0.0, %v373
  %v375 = vpop.f32.mrb[0].mxu0
  %376 = vmatprep.mubr.bf16.mxu0 0
  %377 = vmatmul.mubr.bf16.gmra.mrb[0].mxu0 %v92
  %v378 = vpop.f32.mrb[0].mxu0
  %v379 = vadd.f32 0.0, %v378
  %v380 = vpop.f32.mrb[0].mxu0
  %v381 = vpop.f32.mrb[0].mxu0
  %v382 = vadd.f32 0.0, %v381
  %v383 = vpop.f32.mrb[0].mxu0
  %384 = vmatprep.mubr.bf16.mxu0 0
  %385 = vmatmul.mubr.bf16.gmra.mrb[0].mxu0 %v95
  %v386 = vpop.f32.mrb[0].mxu0
  %v387 = vadd.f32 0.0, %v386
  %v388 = vpop.f32.mrb[0].mxu0
  %v389 = vpop.f32.mrb[0].mxu0
  %v390 = vadd.f32 0.0, %v389
  %v391 = vpop.f32.mrb[0].mxu0
  %392 = vmatprep.mubr.bf16.mxu0 0
  %393 = vmatmul.mubr.bf16.gmra.mrb[0].mxu0 %v98
  %v394 = vpop.f32.mrb[0].mxu0
  %v395 = vadd.f32 0.0, %v394
  %v396 = vpop.f32.mrb[0].mxu0
  %v397 = vpop.f32.mrb[0].mxu0
  %v398 = vadd.f32 0.0, %v397
  %v399 = vpop.f32.mrb[0].mxu0
  %400 = vmatprep.mubr.bf16.mxu0 0
  %401 = vmatmul.mubr.bf16.gmra.mrb[0].mxu0 %v101
  %v402 = vpop.f32.mrb[0].mxu0
  %v403 = vadd.f32 0.0, %v402
  %v404 = vpop.f32.mrb[0].mxu0
  %v405 = vpop.f32.mrb[0].mxu0
  %v406 = vadd.f32 0.0, %v405
  %v407 = vpop.f32.mrb[0].mxu0
  %408 = vmatprep.mubr.bf16.mxu0 0
  %409 = vmatmul.mubr.bf16.gmra.mrb[0].mxu0 %v104
  %v410 = vpop.f32.mrb[0].mxu0
  %v411 = vadd.f32 0.0, %v410
  %v412 = vpop.f32.mrb[0].mxu0
  %v413 = vpop.f32.mrb[0].mxu0
  %v414 = vadd.f32 0.0, %v413
  %v415 = vpop.f32.mrb[0].mxu0
  %416 = vmatprep.mubr.bf16.mxu0 0
  %417 = vmatmul.mubr.bf16.gmra.mrb[0].mxu0 %v323
  %v418 = vpop.f32.mrb[0].mxu0
  %v419 = vadd.f32 0.0, %v418
  %v420 = vpop.f32.mrb[0].mxu0
  %v421 = vpop.f32.mrb[0].mxu0
  %v422 = vadd.f32 0.0, %v421
  %v423 = vpop.f32.mrb[0].mxu0
  %424 = vdwg.mxu0
  %v425 = vadd.f32 %v253, %v363
  %v426 = vadd.f32 %v256, %v366
  %v427 = vadd.f32 %v261, %v371
  %v428 = vadd.f32 %v264, %v374
  %v429 = vadd.f32 %v269, %v379
  %v430 = vadd.f32 %v272, %v382
  %v431 = vadd.f32 %v277, %v387
  %v432 = vadd.f32 %v280, %v390
  %v433 = vadd.f32 %v285, %v395
  %v434 = vadd.f32 %v288, %v398
  %v435 = vadd.f32 %v293, %v403
  %v436 = vadd.f32 %v296, %v406
  %v437 = vadd.f32 %v301, %v411
  %v438 = vadd.f32 %v304, %v414
  %v439 = vadd.f32 %v309, %v419
  %v440 = vadd.f32 %v312, %v422
  %v441 = vld [vmem:[%s0] sm:$0xf]
  %v442 = vld [vmem:[%s0 + $0x4] sm:$0xf]
  %v443 = vld [vmem:[%s0 + $0x8] sm:$0x1]
  %v444 = vld [vmem:[%s0 + $0xc] sm:$0xf]
  %v445 = vld [vmem:[%s0 + $0x10] sm:$0xf]
  %v446 = vld [vmem:[%s0 + $0x14] sm:$0x1]
  %v447 = vld [vmem:[%s0 + $0x18] sm:$0xf]
  %v448 = vld [vmem:[%s0 + $0x1c] sm:$0xf]
  %v449 = vld [vmem:[%s0 + $0x20] sm:$0x1]
  %v450 = vld [vmem:[%s0 + $0x24] sm:$0xf]
  %v451 = vld [vmem:[%s0 + $0x28] sm:$0xf]
  %v452 = vld [vmem:[%s0 + $0x2c] sm:$0x1]
  %v453 = vld [vmem:[%s0 + $0x30] sm:$0xf]
  %v454 = vld [vmem:[%s0 + $0x34] sm:$0xf]
  %v455 = vld [vmem:[%s0 + $0x38] sm:$0x1]
  %v456 = vld [vmem:[%s0 + $0x3c] sm:$0xf]
  %v457 = vld [vmem:[%s0 + $0x40] sm:$0xf]
  %v458 = vld [vmem:[%s0 + $0x44] sm:$0x1]
  %v459 = vld [vmem:[%s0 + $0x48] sm:$0xf]
  %v460 = vld [vmem:[%s0 + $0x4c] sm:$0xf]
  %v461 = vld [vmem:[%s0 + $0x50] sm:$0x1]
  %v462 = vld [vmem:[%s0 + $0x54] sm:$0xf]
  %v463 = vld [vmem:[%s0 + $0x58] sm:$0xf]
  %v464 = vld [vmem:[%s0 + $0x5c] sm:$0x1]
  %v465 = vld [vmem:[%s0 + $0x60] sm:$0xf]
  %v466 = vld [vmem:[%s0 + $0x64] sm:$0xf]
  %v467 = vld [vmem:[%s0 + $0x68] sm:$0x1]
  %v468 = vld [vmem:[%s0 + $0x6c] sm:$0xf]
  %v469 = vld [vmem:[%s0 + $0x70] sm:$0xf]
  %v470 = vld [vmem:[%s0 + $0x74] sm:$0x1]
  %vm471 = vsmask.f32 3328
  %vm472 = vsmask.f32 7440
  %vm473 = vmor %vm471, %vm472
  %v475 = vshrl.u32 %v441, 16
  %v477 = vrot.slane %v475, 4
  %v478 = vshll.u32 %v441, 16
  %v480 = vrot.slane %v478, 5
  %v481 = vor.u32 %v477, %v480
  %v482 = vrot.slane %v481, 4
  %v484 = vshll.u32 %v442, 16
  %v486 = vrot.slane %v484, 5
  %v487 = vsel %vm473, %v482, %v486
  %v488 = vshrl.u32 %v442, 16
  %v490 = vrot.slane %v488, 4
  %v491 = vor.u32 %v490, %v486
  %v492 = vrot.slane %v491, 4
  %v494 = vshll.u32 %v443, 16
  %v496 = vrot.slane %v494, 5
  %v497 = vsel %vm473, %v492, %v496
  %v499 = vshrl.u32 %v444, 16
  %v501 = vrot.slane %v499, 4
  %v502 = vshll.u32 %v444, 16
  %v504 = vrot.slane %v502, 5
  %v505 = vor.u32 %v501, %v504
  %v506 = vrot.slane %v505, 4
  %v508 = vshll.u32 %v445, 16
  %v510 = vrot.slane %v508, 5
  %v511 = vsel %vm473, %v506, %v510
  %v512 = vshrl.u32 %v445, 16
  %v514 = vrot.slane %v512, 4
  %v515 = vor.u32 %v514, %v510
  %v516 = vrot.slane %v515, 4
  %v518 = vshll.u32 %v446, 16
  %v520 = vrot.slane %v518, 5
  %v521 = vsel %vm473, %v516, %v520
  %v523 = vshrl.u32 %v447, 16
  %v525 = vrot.slane %v523, 4
  %v526 = vshll.u32 %v447, 16
  %v528 = vrot.slane %v526, 5
  %v529 = vor.u32 %v525, %v528
  %v530 = vrot.slane %v529, 4
  %v532 = vshll.u32 %v448, 16
  %v534 = vrot.slane %v532, 5
  %v535 = vsel %vm473, %v530, %v534
  %v536 = vshrl.u32 %v448, 16
  %v538 = vrot.slane %v536, 4
  %v539 = vor.u32 %v538, %v534
  %v540 = vrot.slane %v539, 4
  %v542 = vshll.u32 %v449, 16
  %v544 = vrot.slane %v542, 5
  %v545 = vsel %vm473, %v540, %v544
  %v547 = vshrl.u32 %v450, 16
  %v549 = vrot.slane %v547, 4
  %v550 = vshll.u32 %v450, 16
  %v552 = vrot.slane %v550, 5
  %v553 = vor.u32 %v549, %v552
  %v554 = vrot.slane %v553, 4
  %v556 = vshll.u32 %v451, 16
  %v558 = vrot.slane %v556, 5
  %v559 = vsel %vm473, %v554, %v558
  %v560 = vshrl.u32 %v451, 16
  %v562 = vrot.slane %v560, 4
  %v563 = vor.u32 %v562, %v558
  %v564 = vrot.slane %v563, 4
  %v566 = vshll.u32 %v452, 16
  %v568 = vrot.slane %v566, 5
  %v569 = vsel %vm473, %v564, %v568
  %v571 = vshrl.u32 %v453, 16
  %v573 = vrot.slane %v571, 4
  %v574 = vshll.u32 %v453, 16
  %v576 = vrot.slane %v574, 5
  %v577 = vor.u32 %v573, %v576
  %v578 = vrot.slane %v577, 4
  %v580 = vshll.u32 %v454, 16
  %v582 = vrot.slane %v580, 5
  %v583 = vsel %vm473, %v578, %v582
  %v584 = vshrl.u32 %v454, 16
  %v586 = vrot.slane %v584, 4
  %v587 = vor.u32 %v586, %v582
  %v588 = vrot.slane %v587, 4
  %v590 = vshll.u32 %v455, 16
  %v592 = vrot.slane %v590, 5
  %v593 = vsel %vm473, %v588, %v592
  %v595 = vshrl.u32 %v456, 16
  %v597 = vrot.slane %v595, 4
  %v598 = vshll.u32 %v456, 16
  %v600 = vrot.slane %v598, 5
  %v601 = vor.u32 %v597, %v600
  %v602 = vrot.slane %v601, 4
  %v604 = vshll.u32 %v457, 16
  %v606 = vrot.slane %v604, 5
  %v607 = vsel %vm473, %v602, %v606
  %v608 = vshrl.u32 %v457, 16
  %v610 = vrot.slane %v608, 4
  %v611 = vor.u32 %v610, %v606
  %v612 = vrot.slane %v611, 4
  %v614 = vshll.u32 %v458, 16
  %v616 = vrot.slane %v614, 5
  %v617 = vsel %vm473, %v612, %v616
  %v619 = vshrl.u32 %v459, 16
  %v621 = vrot.slane %v619, 4
  %v622 = vshll.u32 %v459, 16
  %v624 = vrot.slane %v622, 5
  %v625 = vor.u32 %v621, %v624
  %v626 = vrot.slane %v625, 4
  %v628 = vshll.u32 %v460, 16
  %v630 = vrot.slane %v628, 5
  %v631 = vsel %vm473, %v626, %v630
  %v632 = vshrl.u32 %v460, 16
  %v634 = vrot.slane %v632, 4
  %v635 = vor.u32 %v634, %v630
  %v636 = vrot.slane %v635, 4
  %v638 = vshll.u32 %v461, 16
  %v640 = vrot.slane %v638, 5
  %v641 = vsel %vm473, %v636, %v640
  %v643 = vshrl.u32 %v462, 16
  %v645 = vrot.slane %v643, 4
  %v646 = vshll.u32 %v462, 16
  %v648 = vrot.slane %v646, 5
  %v649 = vor.u32 %v645, %v648
  %v650 = vrot.slane %v649, 4
  %v652 = vshll.u32 %v463, 16
  %v654 = vrot.slane %v652, 5
  %v655 = vsel %vm473, %v650, %v654
  %v656 = vshrl.u32 %v463, 16
  %v658 = vrot.slane %v656, 4
  %v659 = vor.u32 %v658, %v654
  %v660 = vrot.slane %v659, 4
  %v662 = vshll.u32 %v464, 16
  %v664 = vrot.slane %v662, 5
  %v665 = vsel %vm473, %v660, %v664
  %v667 = vshrl.u32 %v465, 16
  %v669 = vrot.slane %v667, 4
  %v670 = vshll.u32 %v465, 16
  %v672 = vrot.slane %v670, 5
  %v673 = vor.u32 %v669, %v672
  %v674 = vrot.slane %v673, 4
  %v676 = vshll.u32 %v466, 16
  %v678 = vrot.slane %v676, 5
  %v679 = vsel %vm473, %v674, %v678
  %v680 = vshrl.u32 %v466, 16
  %v682 = vrot.slane %v680, 4
  %v683 = vor.u32 %v682, %v678
  %v684 = vrot.slane %v683, 4
  %v686 = vshll.u32 %v467, 16
  %v688 = vrot.slane %v686, 5
  %v689 = vsel %vm473, %v684, %v688
  %v691 = vshrl.u32 %v468, 16
  %v693 = vrot.slane %v691, 4
  %v694 = vshll.u32 %v468, 16
  %v696 = vrot.slane %v694, 5
  %v697 = vor.u32 %v693, %v696
  %v698 = vrot.slane %v697, 4
  %v700 = vshll.u32 %v469, 16
  %v702 = vrot.slane %v700, 5
  %v703 = vsel %vm473, %v698, %v702
  %v704 = vshrl.u32 %v469, 16
  %v706 = vrot.slane %v704, 4
  %v707 = vor.u32 %v706, %v702
  %v708 = vrot.slane %v707, 4
  %v710 = vshll.u32 %v470, 16
  %v712 = vrot.slane %v710, 5
  %v713 = vsel %vm473, %v708, %v712
  %s714 = scalar_lea.vmem %s1, 4
  %v715 = vld [vmem:[%s714] sm:$0xf]
  %v716 = vunpack.c.l.b16 %v487
  %v717 = vunpack.c.l.b16 %v497
  %v718 = vunpack.c.l.b16 %v511
  %v719 = vunpack.c.l.b16 %v521
  %v720 = vunpack.c.l.b16 %v535
  %v721 = vunpack.c.l.b16 %v545
  %v722 = vunpack.c.l.b16 %v559
  %v723 = vunpack.c.l.b16 %v569
  %v724 = vunpack.c.l.b16 %v583
  %v725 = vunpack.c.l.b16 %v593
  %v726 = vunpack.c.l.b16 %v607
  %v727 = vunpack.c.l.b16 %v617
  %v728 = vunpack.c.l.b16 %v631
  %v729 = vunpack.c.l.b16 %v641
  %v730 = vunpack.c.l.b16 %v655
  %v731 = vunpack.c.l.b16 %v665
  %v732 = vpack.c.b16 %v717, %v716
  %v733 = vpack.c.b16 %v719, %v718
  %v734 = vpack.c.b16 %v721, %v720
  %v735 = vpack.c.b16 %v723, %v722
  %v736 = vpack.c.b16 %v725, %v724
  %v737 = vpack.c.b16 %v727, %v726
  %v738 = vpack.c.b16 %v729, %v728
  %v739 = vpack.c.b16 %v731, %v730
  %v741 = vsel %vm81, %v732, 0
  %v744 = vsel %vm81, %v733, 0
  %v747 = vsel %vm81, %v734, 0
  %v750 = vsel %vm81, %v735, 0
  %v753 = vsel %vm81, %v736, 0
  %v756 = vsel %vm81, %v737, 0
  %v759 = vsel %vm81, %v738, 0
  %v762 = vsel %vm81, %v739, 0
  %v765 = vsel %vm106, %v715, 0
  %767 = vmatprep.subr.bf16.mxu0 0
  %768 = vmatpush1.bf16.msra.mxu0 %v765
  %769 = vmatprep.subr.bf16.mxu0 0
  %770 = vmatpush1.bf16.msra.mxu0 0
  %771 = vmatprep.subr.bf16.mxu0 0
  %772 = vmatpush1.bf16.msra.mxu0 0
  %773 = vmatprep.subr.bf16.mxu0 0
  %774 = vmatpush1.bf16.msra.mxu0 0
  %775 = vmatprep.subr.bf16.mxu0 0
  %776 = vmatpush1.bf16.msra.mxu0 0
  %777 = vmatprep.subr.bf16.mxu0 0
  %778 = vmatpush1.bf16.msra.mxu0 0
  %779 = vmatprep.subr.bf16.mxu0 0
  %780 = vmatpush1.bf16.msra.mxu0 0
  %781 = vmatprep.subr.bf16.mxu0 0
  %782 = vmatpush1.bf16.msra.mxu0 0
  %783 = vmatprep.subr.bf16.mxu0 0
  %784 = vmatpush1.bf16.msra.mxu0 0
  %785 = vmatprep.subr.bf16.mxu0 0
  %786 = vmatpush1.bf16.msra.mxu0 0
  %787 = vmatprep.subr.bf16.mxu0 0
  %788 = vmatpush1.bf16.msra.mxu0 0
  %789 = vmatprep.subr.bf16.mxu0 0
  %790 = vmatpush1.bf16.msra.mxu0 0
  %791 = vmatprep.subr.bf16.mxu0 0
  %792 = vmatpush1.bf16.msra.mxu0 0
  %793 = vmatprep.subr.bf16.mxu0 0
  %794 = vmatpush1.bf16.msra.mxu0 0
  %795 = vmatprep.subr.bf16.mxu0 0
  %796 = vmatpush1.bf16.msra.mxu0 0
  %797 = vmatprep.subr.bf16.mxu0 0
  %798 = vmatpush1.bf16.msra.mxu0 0
  %799 = vmatprep.mubr.bf16.mxu0 0
  %800 = vmatmul.mubr.bf16.gmra.mrb[0].mxu0 %v741
  %v801 = vpop.f32.mrb[0].mxu0
  %v802 = vadd.f32 0.0, %v801
  %v803 = vpop.f32.mrb[0].mxu0
  %v804 = vpop.f32.mrb[0].mxu0
  %v805 = vadd.f32 0.0, %v804
  %v806 = vpop.f32.mrb[0].mxu0
  %807 = vmatprep.mubr.bf16.mxu0 0
  %808 = vmatmul.mubr.bf16.gmra.mrb[0].mxu0 %v744
  %v809 = vpop.f32.mrb[0].mxu0
  %v810 = vadd.f32 0.0, %v809
  %v811 = vpop.f32.mrb[0].mxu0
  %v812 = vpop.f32.mrb[0].mxu0
  %v813 = vadd.f32 0.0, %v812
  %v814 = vpop.f32.mrb[0].mxu0
  %815 = vmatprep.mubr.bf16.mxu0 0
  %816 = vmatmul.mubr.bf16.gmra.mrb[0].mxu0 %v747
  %v817 = vpop.f32.mrb[0].mxu0
  %v818 = vadd.f32 0.0, %v817
  %v819 = vpop.f32.mrb[0].mxu0
  %v820 = vpop.f32.mrb[0].mxu0
  %v821 = vadd.f32 0.0, %v820
  %v822 = vpop.f32.mrb[0].mxu0
  %823 = vmatprep.mubr.bf16.mxu0 0
  %824 = vmatmul.mubr.bf16.gmra.mrb[0].mxu0 %v750
  %v825 = vpop.f32.mrb[0].mxu0
  %v826 = vadd.f32 0.0, %v825
  %v827 = vpop.f32.mrb[0].mxu0
  %v828 = vpop.f32.mrb[0].mxu0
  %v829 = vadd.f32 0.0, %v828
  %v830 = vpop.f32.mrb[0].mxu0
  %831 = vmatprep.mubr.bf16.mxu0 0
  %832 = vmatmul.mubr.bf16.gmra.mrb[0].mxu0 %v753
  %v833 = vpop.f32.mrb[0].mxu0
  %v834 = vadd.f32 0.0, %v833
  %v835 = vpop.f32.mrb[0].mxu0
  %v836 = vpop.f32.mrb[0].mxu0
  %v837 = vadd.f32 0.0, %v836
  %v838 = vpop.f32.mrb[0].mxu0
  %839 = vmatprep.mubr.bf16.mxu0 0
  %840 = vmatmul.mubr.bf16.gmra.mrb[0].mxu0 %v756
  %v841 = vpop.f32.mrb[0].mxu0
  %v842 = vadd.f32 0.0, %v841
  %v843 = vpop.f32.mrb[0].mxu0
  %v844 = vpop.f32.mrb[0].mxu0
  %v845 = vadd.f32 0.0, %v844
  %v846 = vpop.f32.mrb[0].mxu0
  %847 = vmatprep.mubr.bf16.mxu0 0
  %848 = vmatmul.mubr.bf16.gmra.mrb[0].mxu0 %v759
  %v849 = vpop.f32.mrb[0].mxu0
  %v850 = vadd.f32 0.0, %v849
  %v851 = vpop.f32.mrb[0].mxu0
  %v852 = vpop.f32.mrb[0].mxu0
  %v853 = vadd.f32 0.0, %v852
  %v854 = vpop.f32.mrb[0].mxu0
  %855 = vmatprep.mubr.bf16.mxu0 0
  %856 = vmatmul.mubr.bf16.gmra.mrb[0].mxu0 %v762
  %v857 = vpop.f32.mrb[0].mxu0
  %v858 = vadd.f32 0.0, %v857
  %v859 = vpop.f32.mrb[0].mxu0
  %v860 = vpop.f32.mrb[0].mxu0
  %v861 = vadd.f32 0.0, %v860
  %v862 = vpop.f32.mrb[0].mxu0
  %863 = vdwg.mxu0
  %v864 = vadd.f32 %v425, %v802
  %v865 = vadd.f32 %v426, %v805
  %v866 = vadd.f32 %v427, %v810
  %v867 = vadd.f32 %v428, %v813
  %v868 = vadd.f32 %v429, %v818
  %v869 = vadd.f32 %v430, %v821
  %v870 = vadd.f32 %v431, %v826
  %v871 = vadd.f32 %v432, %v829
  %v872 = vadd.f32 %v433, %v834
  %v873 = vadd.f32 %v434, %v837
  %v874 = vadd.f32 %v435, %v842
  %v875 = vadd.f32 %v436, %v845
  %v876 = vadd.f32 %v437, %v850
  %v877 = vadd.f32 %v438, %v853
  %v878 = vadd.f32 %v439, %v858
  %v879 = vadd.f32 %v440, %v861
  %s880 = scalar_lea.vmem %s1, 16
  %v881 = vld [vmem:[%s880] sm:$0xf]
  %v882 = vunpack.c.l.b16 %v679
  %v883 = vunpack.c.l.b16 %v689
  %v884 = vpack.c.b16 %v883, %v882
  %v886 = vsel %vm81, %v884, 0
  %v889 = vsel %vm106, %v881, 0
  %891 = vmatprep.subr.bf16.mxu0 0
  %892 = vmatpush1.bf16.msra.mxu0 %v889
  %893 = vmatprep.subr.bf16.mxu0 0
  %894 = vmatpush1.bf16.msra.mxu0 0
  %895 = vmatprep.subr.bf16.mxu0 0
  %896 = vmatpush1.bf16.msra.mxu0 0
  %897 = vmatprep.subr.bf16.mxu0 0
  %898 = vmatpush1.bf16.msra.mxu0 0
  %899 = vmatprep.subr.bf16.mxu0 0
  %900 = vmatpush1.bf16.msra.mxu0 0
  %901 = vmatprep.subr.bf16.mxu0 0
  %902 = vmatpush1.bf16.msra.mxu0 0
  %903 = vmatprep.subr.bf16.mxu0 0
  %904 = vmatpush1.bf16.msra.mxu0 0
  %905 = vmatprep.subr.bf16.mxu0 0
  %906 = vmatpush1.bf16.msra.mxu0 0
  %907 = vmatprep.subr.bf16.mxu0 0
  %908 = vmatpush1.bf16.msra.mxu0 0
  %909 = vmatprep.subr.bf16.mxu0 0
  %910 = vmatpush1.bf16.msra.mxu0 0
  %911 = vmatprep.subr.bf16.mxu0 0
  %912 = vmatpush1.bf16.msra.mxu0 0
  %913 = vmatprep.subr.bf16.mxu0 0
  %914 = vmatpush1.bf16.msra.mxu0 0
  %915 = vmatprep.subr.bf16.mxu0 0
  %916 = vmatpush1.bf16.msra.mxu0 0
  %917 = vmatprep.subr.bf16.mxu0 0
  %918 = vmatpush1.bf16.msra.mxu0 0
  %919 = vmatprep.subr.bf16.mxu0 0
  %920 = vmatpush1.bf16.msra.mxu0 0
  %921 = vmatprep.subr.bf16.mxu0 0
  %922 = vmatpush1.bf16.msra.mxu0 0
  %923 = vmatprep.mubr.bf16.mxu0 0
  %924 = vmatmul.mubr.bf16.gmra.mrb[0].mxu0 %v744
  %v925 = vpop.f32.mrb[0].mxu0
  %v926 = vadd.f32 0.0, %v925
  %v927 = vpop.f32.mrb[0].mxu0
  %v928 = vpop.f32.mrb[0].mxu0
  %v929 = vadd.f32 0.0, %v928
  %v930 = vpop.f32.mrb[0].mxu0
  %931 = vmatprep.mubr.bf16.mxu0 0
  %932 = vmatmul.mubr.bf16.gmra.mrb[0].mxu0 %v747
  %v933 = vpop.f32.mrb[0].mxu0
  %v934 = vadd.f32 0.0, %v933
  %v935 = vpop.f32.mrb[0].mxu0
  %v936 = vpop.f32.mrb[0].mxu0
  %v937 = vadd.f32 0.0, %v936
  %v938 = vpop.f32.mrb[0].mxu0
  %939 = vmatprep.mubr.bf16.mxu0 0
  %940 = vmatmul.mubr.bf16.gmra.mrb[0].mxu0 %v750
  %v941 = vpop.f32.mrb[0].mxu0
  %v942 = vadd.f32 0.0, %v941
  %v943 = vpop.f32.mrb[0].mxu0
  %v944 = vpop.f32.mrb[0].mxu0
  %v945 = vadd.f32 0.0, %v944
  %v946 = vpop.f32.mrb[0].mxu0
  %947 = vmatprep.mubr.bf16.mxu0 0
  %948 = vmatmul.mubr.bf16.gmra.mrb[0].mxu0 %v753
  %v949 = vpop.f32.mrb[0].mxu0
  %v950 = vadd.f32 0.0, %v949
  %v951 = vpop.f32.mrb[0].mxu0
  %v952 = vpop.f32.mrb[0].mxu0
  %v953 = vadd.f32 0.0, %v952
  %v954 = vpop.f32.mrb[0].mxu0
  %955 = vmatprep.mubr.bf16.mxu0 0
  %956 = vmatmul.mubr.bf16.gmra.mrb[0].mxu0 %v756
  %v957 = vpop.f32.mrb[0].mxu0
  %v958 = vadd.f32 0.0, %v957
  %v959 = vpop.f32.mrb[0].mxu0
  %v960 = vpop.f32.mrb[0].mxu0
  %v961 = vadd.f32 0.0, %v960
  %v962 = vpop.f32.mrb[0].mxu0
  %963 = vmatprep.mubr.bf16.mxu0 0
  %964 = vmatmul.mubr.bf16.gmra.mrb[0].mxu0 %v759
  %v965 = vpop.f32.mrb[0].mxu0
  %v966 = vadd.f32 0.0, %v965
  %v967 = vpop.f32.mrb[0].mxu0
  %v968 = vpop.f32.mrb[0].mxu0
  %v969 = vadd.f32 0.0, %v968
  %v970 = vpop.f32.mrb[0].mxu0
  %971 = vmatprep.mubr.bf16.mxu0 0
  %972 = vmatmul.mubr.bf16.gmra.mrb[0].mxu0 %v762
  %v973 = vpop.f32.mrb[0].mxu0
  %v974 = vadd.f32 0.0, %v973
  %v975 = vpop.f32.mrb[0].mxu0
  %v976 = vpop.f32.mrb[0].mxu0
  %v977 = vadd.f32 0.0, %v976
  %v978 = vpop.f32.mrb[0].mxu0
  %979 = vmatprep.mubr.bf16.mxu0 0
  %980 = vmatmul.mubr.bf16.gmra.mrb[0].mxu0 %v886
  %v981 = vpop.f32.mrb[0].mxu0
  %v982 = vadd.f32 0.0, %v981
  %v983 = vpop.f32.mrb[0].mxu0
  %v984 = vpop.f32.mrb[0].mxu0
  %v985 = vadd.f32 0.0, %v984
  %v986 = vpop.f32.mrb[0].mxu0
  %987 = vdwg.mxu0
  %v988 = vadd.f32 %v864, %v926
  %v989 = vadd.f32 %v865, %v929
  %v990 = vadd.f32 %v866, %v934
  %v991 = vadd.f32 %v867, %v937
  %v992 = vadd.f32 %v868, %v942
  %v993 = vadd.f32 %v869, %v945
  %v994 = vadd.f32 %v870, %v950
  %v995 = vadd.f32 %v871, %v953
  %v996 = vadd.f32 %v872, %v958
  %v997 = vadd.f32 %v873, %v961
  %v998 = vadd.f32 %v874, %v966
  %v999 = vadd.f32 %v875, %v969
  %v1000 = vadd.f32 %v876, %v974
  %v1001 = vadd.f32 %v877, %v977
  %v1002 = vadd.f32 %v878, %v982
  %v1003 = vadd.f32 %v879, %v985
  %s1004 = scalar_lea.vmem %s1, 28
  %v1005 = vld [vmem:[%s1004] sm:$0xf]
  %v1006 = vunpack.c.l.b16 %v703
  %v1007 = vunpack.c.l.b16 %v713
  %v1008 = vpack.c.b16 %v1007, %v1006
  %v1010 = vsel %vm81, %v1008, 0
  %v1013 = vsel %vm106, %v1005, 0
  %1015 = vmatprep.subr.bf16.mxu0 0
  %1016 = vmatpush1.bf16.msra.mxu0 %v1013
  %1017 = vmatprep.subr.bf16.mxu0 0
  %1018 = vmatpush1.bf16.msra.mxu0 0
  %1019 = vmatprep.subr.bf16.mxu0 0
  %1020 = vmatpush1.bf16.msra.mxu0 0
  %1021 = vmatprep.subr.bf16.mxu0 0
  %1022 = vmatpush1.bf16.msra.mxu0 0
  %1023 = vmatprep.subr.bf16.mxu0 0
  %1024 = vmatpush1.bf16.msra.mxu0 0
  %1025 = vmatprep.subr.bf16.mxu0 0
  %1026 = vmatpush1.bf16.msra.mxu0 0
  %1027 = vmatprep.subr.bf16.mxu0 0
  %1028 = vmatpush1.bf16.msra.mxu0 0
  %1029 = vmatprep.subr.bf16.mxu0 0
  %1030 = vmatpush1.bf16.msra.mxu0 0
  %1031 = vmatprep.subr.bf16.mxu0 0
  %1032 = vmatpush1.bf16.msra.mxu0 0
  %1033 = vmatprep.subr.bf16.mxu0 0
  %1034 = vmatpush1.bf16.msra.mxu0 0
  %1035 = vmatprep.subr.bf16.mxu0 0
  %1036 = vmatpush1.bf16.msra.mxu0 0
  %1037 = vmatprep.subr.bf16.mxu0 0
  %1038 = vmatpush1.bf16.msra.mxu0 0
  %1039 = vmatprep.subr.bf16.mxu0 0
  %1040 = vmatpush1.bf16.msra.mxu0 0
  %1041 = vmatprep.subr.bf16.mxu0 0
  %1042 = vmatpush1.bf16.msra.mxu0 0
  %1043 = vmatprep.subr.bf16.mxu0 0
  %1044 = vmatpush1.bf16.msra.mxu0 0
  %1045 = vmatprep.subr.bf16.mxu0 0
  %1046 = vmatpush1.bf16.msra.mxu0 0
  %1047 = vmatprep.mubr.bf16.mxu0 0
  %1048 = vmatmul.mubr.bf16.gmra.mrb[0].mxu0 %v747
  %v1049 = vpop.f32.mrb[0].mxu0
  %v1050 = vadd.f32 0.0, %v1049
  %v1051 = vpop.f32.mrb[0].mxu0
  %v1052 = vpop.f32.mrb[0].mxu0
  %v1053 = vadd.f32 0.0, %v1052
  %v1054 = vpop.f32.mrb[0].mxu0
  %1055 = vmatprep.mubr.bf16.mxu0 0
  %1056 = vmatmul.mubr.bf16.gmra.mrb[0].mxu0 %v750
  %v1057 = vpop.f32.mrb[0].mxu0
  %v1058 = vadd.f32 0.0, %v1057
  %v1059 = vpop.f32.mrb[0].mxu0
  %v1060 = vpop.f32.mrb[0].mxu0
  %v1061 = vadd.f32 0.0, %v1060
  %v1062 = vpop.f32.mrb[0].mxu0
  %1063 = vmatprep.mubr.bf16.mxu0 0
  %1064 = vmatmul.mubr.bf16.gmra.mrb[0].mxu0 %v753
  %v1065 = vpop.f32.mrb[0].mxu0
  %v1066 = vadd.f32 0.0, %v1065
  %v1067 = vpop.f32.mrb[0].mxu0
  %v1068 = vpop.f32.mrb[0].mxu0
  %v1069 = vadd.f32 0.0, %v1068
  %v1070 = vpop.f32.mrb[0].mxu0
  %1071 = vmatprep.mubr.bf16.mxu0 0
  %1072 = vmatmul.mubr.bf16.gmra.mrb[0].mxu0 %v756
  %v1073 = vpop.f32.mrb[0].mxu0
  %v1074 = vadd.f32 0.0, %v1073
  %v1075 = vpop.f32.mrb[0].mxu0
  %v1076 = vpop.f32.mrb[0].mxu0
  %v1077 = vadd.f32 0.0, %v1076
  %v1078 = vpop.f32.mrb[0].mxu0
  %1079 = vmatprep.mubr.bf16.mxu0 0
  %1080 = vmatmul.mubr.bf16.gmra.mrb[0].mxu0 %v759
  %v1081 = vpop.f32.mrb[0].mxu0
  %v1082 = vadd.f32 0.0, %v1081
  %v1083 = vpop.f32.mrb[0].mxu0
  %v1084 = vpop.f32.mrb[0].mxu0
  %v1085 = vadd.f32 0.0, %v1084
  %v1086 = vpop.f32.mrb[0].mxu0
  %1087 = vmatprep.mubr.bf16.mxu0 0
  %1088 = vmatmul.mubr.bf16.gmra.mrb[0].mxu0 %v762
  %v1089 = vpop.f32.mrb[0].mxu0
  %v1090 = vadd.f32 0.0, %v1089
  %v1091 = vpop.f32.mrb[0].mxu0
  %v1092 = vpop.f32.mrb[0].mxu0
  %v1093 = vadd.f32 0.0, %v1092
  %v1094 = vpop.f32.mrb[0].mxu0
  %1095 = vmatprep.mubr.bf16.mxu0 0
  %1096 = vmatmul.mubr.bf16.gmra.mrb[0].mxu0 %v886
  %v1097 = vpop.f32.mrb[0].mxu0
  %v1098 = vadd.f32 0.0, %v1097
  %v1099 = vpop.f32.mrb[0].mxu0
  %v1100 = vpop.f32.mrb[0].mxu0
  %v1101 = vadd.f32 0.0, %v1100
  %v1102 = vpop.f32.mrb[0].mxu0
  %1103 = vmatprep.mubr.bf16.mxu0 0
  %1104 = vmatmul.mubr.bf16.gmra.mrb[0].mxu0 %v1010
  %v1105 = vpop.f32.mrb[0].mxu0
  %v1106 = vadd.f32 0.0, %v1105
  %v1107 = vpop.f32.mrb[0].mxu0
  %v1108 = vpop.f32.mrb[0].mxu0
  %v1109 = vadd.f32 0.0, %v1108
  %v1110 = vpop.f32.mrb[0].mxu0
  %1111 = vdwg.mxu0
  %v1112 = vadd.f32 %v988, %v1050
  %v1113 = vadd.f32 %v989, %v1053
  %v1114 = vadd.f32 %v990, %v1058
  %v1115 = vadd.f32 %v991, %v1061
  %v1116 = vadd.f32 %v992, %v1066
  %v1117 = vadd.f32 %v993, %v1069
  %v1118 = vadd.f32 %v994, %v1074
  %v1119 = vadd.f32 %v995, %v1077
  %v1120 = vadd.f32 %v996, %v1082
  %v1121 = vadd.f32 %v997, %v1085
  %v1122 = vadd.f32 %v998, %v1090
  %v1123 = vadd.f32 %v999, %v1093
  %v1124 = vadd.f32 %v1000, %v1098
  %v1125 = vadd.f32 %v1001, %v1101
  %v1126 = vadd.f32 %v1002, %v1106
  %v1127 = vadd.f32 %v1003, %v1109
  %v1128 = vld [vmem:[%s0] sm:$0xe]
  %v1129 = vld [vmem:[%s0 + $0xc] sm:$0xe]
  %v1130 = vld [vmem:[%s0 + $0x18] sm:$0xe]
  %v1131 = vld [vmem:[%s0 + $0x24] sm:$0xe]
  %v1132 = vld [vmem:[%s0 + $0x30] sm:$0xe]
  %v1133 = vld [vmem:[%s0 + $0x3c] sm:$0xe]
  %v1134 = vld [vmem:[%s0 + $0x48] sm:$0xe]
  %v1135 = vld [vmem:[%s0 + $0x54] sm:$0xe]
  %v1136 = vld [vmem:[%s0 + $0x60] sm:$0xe]
  %v1137 = vld [vmem:[%s0 + $0x6c] sm:$0xe]
  %vm1168 = vcmask 1042432
  %vm1169 = vcmask 1046532
  %vm1170 = vmor %vm1168, %vm1169
  %v1171 = vrot.slane %v1128, 5
  %v1172 = vrot.slane %v1171, 4
  %v1173 = vrot.slane %v442, 5
  %v1174 = vsel %vm1170, %v1172, %v1173
  %v1175 = vrot.slane %v1173, 4
  %v1176 = vrot.slane %v443, 5
  %v1177 = vsel %vm1170, %v1175, %v1176
  %v1178 = vrot.slane %v1129, 5
  %v1179 = vrot.slane %v1178, 4
  %v1180 = vrot.slane %v445, 5
  %v1181 = vsel %vm1170, %v1179, %v1180
  %v1182 = vrot.slane %v1180, 4
  %v1183 = vrot.slane %v446, 5
  %v1184 = vsel %vm1170, %v1182, %v1183
  %v1185 = vrot.slane %v1130, 5
  %v1186 = vrot.slane %v1185, 4
  %v1187 = vrot.slane %v448, 5
  %v1188 = vsel %vm1170, %v1186, %v1187
  %v1189 = vrot.slane %v1187, 4
  %v1190 = vrot.slane %v449, 5
  %v1191 = vsel %vm1170, %v1189, %v1190
  %v1192 = vrot.slane %v1131, 5
  %v1193 = vrot.slane %v1192, 4
  %v1194 = vrot.slane %v451, 5
  %v1195 = vsel %vm1170, %v1193, %v1194
  %v1196 = vrot.slane %v1194, 4
  %v1197 = vrot.slane %v452, 5
  %v1198 = vsel %vm1170, %v1196, %v1197
  %v1199 = vrot.slane %v1132, 5
  %v1200 = vrot.slane %v1199, 4
  %v1201 = vrot.slane %v454, 5
  %v1202 = vsel %vm1170, %v1200, %v1201
  %v1203 = vrot.slane %v1201, 4
  %v1204 = vrot.slane %v455, 5
  %v1205 = vsel %vm1170, %v1203, %v1204
  %v1206 = vrot.slane %v1133, 5
  %v1207 = vrot.slane %v1206, 4
  %v1208 = vrot.slane %v457, 5
  %v1209 = vsel %vm1170, %v1207, %v1208
  %v1210 = vrot.slane %v1208, 4
  %v1211 = vrot.slane %v458, 5
  %v1212 = vsel %vm1170, %v1210, %v1211
  %v1213 = vrot.slane %v1134, 5
  %v1214 = vrot.slane %v1213, 4
  %v1215 = vrot.slane %v460, 5
  %v1216 = vsel %vm1170, %v1214, %v1215
  %v1217 = vrot.slane %v1215, 4
  %v1218 = vrot.slane %v461, 5
  %v1219 = vsel %vm1170, %v1217, %v1218
  %v1220 = vrot.slane %v1135, 5
  %v1221 = vrot.slane %v1220, 4
  %v1222 = vrot.slane %v463, 5
  %v1223 = vsel %vm1170, %v1221, %v1222
  %v1224 = vrot.slane %v1222, 4
  %v1225 = vrot.slane %v464, 5
  %v1226 = vsel %vm1170, %v1224, %v1225
  %v1227 = vrot.slane %v1136, 5
  %v1228 = vrot.slane %v1227, 4
  %v1229 = vrot.slane %v466, 5
  %v1230 = vsel %vm1170, %v1228, %v1229
  %v1231 = vrot.slane %v1229, 4
  %v1232 = vrot.slane %v467, 5
  %v1233 = vsel %vm1170, %v1231, %v1232
  %v1234 = vrot.slane %v1137, 5
  %v1235 = vrot.slane %v1234, 4
  %v1236 = vrot.slane %v469, 5
  %v1237 = vsel %vm1170, %v1235, %v1236
  %v1238 = vrot.slane %v1236, 4
  %v1239 = vrot.slane %v470, 5
  %v1240 = vsel %vm1170, %v1238, %v1239
  %s1241 = scalar_lea.vmem %s1, 8
  %v1242 = vld [vmem:[%s1241] sm:$0xf]
  %v1243 = vunpack.c.l.b16 %v1174
  %v1244 = vunpack.c.l.b16 %v1177
  %v1245 = vunpack.c.l.b16 %v1181
  %v1246 = vunpack.c.l.b16 %v1184
  %v1247 = vunpack.c.l.b16 %v1188
  %v1248 = vunpack.c.l.b16 %v1191
  %v1249 = vunpack.c.l.b16 %v1195
  %v1250 = vunpack.c.l.b16 %v1198
  %v1251 = vunpack.c.l.b16 %v1202
  %v1252 = vunpack.c.l.b16 %v1205
  %v1253 = vunpack.c.l.b16 %v1209
  %v1254 = vunpack.c.l.b16 %v1212
  %v1255 = vunpack.c.l.b16 %v1216
  %v1256 = vunpack.c.l.b16 %v1219
  %v1257 = vunpack.c.l.b16 %v1223
  %v1258 = vunpack.c.l.b16 %v1226
  %v1259 = vpack.c.b16 %v1244, %v1243
  %v1260 = vpack.c.b16 %v1246, %v1245
  %v1261 = vpack.c.b16 %v1248, %v1247
  %v1262 = vpack.c.b16 %v1250, %v1249
  %v1263 = vpack.c.b16 %v1252, %v1251
  %v1264 = vpack.c.b16 %v1254, %v1253
  %v1265 = vpack.c.b16 %v1256, %v1255
  %v1266 = vpack.c.b16 %v1258, %v1257
  %v1268 = vsel %vm81, %v1259, 0
  %v1271 = vsel %vm81, %v1260, 0
  %v1274 = vsel %vm81, %v1261, 0
  %v1277 = vsel %vm81, %v1262, 0
  %v1280 = vsel %vm81, %v1263, 0
  %v1283 = vsel %vm81, %v1264, 0
  %v1286 = vsel %vm81, %v1265, 0
  %v1289 = vsel %vm81, %v1266, 0
  %v1292 = vsel %vm106, %v1242, 0
  %1294 = vmatprep.subr.bf16.mxu0 0
  %1295 = vmatpush1.bf16.msra.mxu0 %v1292
  %1296 = vmatprep.subr.bf16.mxu0 0
  %1297 = vmatpush1.bf16.msra.mxu0 0
  %1298 = vmatprep.subr.bf16.mxu0 0
  %1299 = vmatpush1.bf16.msra.mxu0 0
  %1300 = vmatprep.subr.bf16.mxu0 0
  %1301 = vmatpush1.bf16.msra.mxu0 0
  %1302 = vmatprep.subr.bf16.mxu0 0
  %1303 = vmatpush1.bf16.msra.mxu0 0
  %1304 = vmatprep.subr.bf16.mxu0 0
  %1305 = vmatpush1.bf16.msra.mxu0 0
  %1306 = vmatprep.subr.bf16.mxu0 0
  %1307 = vmatpush1.bf16.msra.mxu0 0
  %1308 = vmatprep.subr.bf16.mxu0 0
  %1309 = vmatpush1.bf16.msra.mxu0 0
  %1310 = vmatprep.subr.bf16.mxu0 0
  %1311 = vmatpush1.bf16.msra.mxu0 0
  %1312 = vmatprep.subr.bf16.mxu0 0
  %1313 = vmatpush1.bf16.msra.mxu0 0
  %1314 = vmatprep.subr.bf16.mxu0 0
  %1315 = vmatpush1.bf16.msra.mxu0 0
  %1316 = vmatprep.subr.bf16.mxu0 0
  %1317 = vmatpush1.bf16.msra.mxu0 0
  %1318 = vmatprep.subr.bf16.mxu0 0
  %1319 = vmatpush1.bf16.msra.mxu0 0
  %1320 = vmatprep.subr.bf16.mxu0 0
  %1321 = vmatpush1.bf16.msra.mxu0 0
  %1322 = vmatprep.subr.bf16.mxu0 0
  %1323 = vmatpush1.bf16.msra.mxu0 0
  %1324 = vmatprep.subr.bf16.mxu0 0
  %1325 = vmatpush1.bf16.msra.mxu0 0
  %1326 = vmatprep.mubr.bf16.mxu0 0
  %1327 = vmatmul.mubr.bf16.gmra.mrb[0].mxu0 %v1268
  %v1328 = vpop.f32.mrb[0].mxu0
  %v1329 = vadd.f32 0.0, %v1328
  %v1330 = vpop.f32.mrb[0].mxu0
  %v1331 = vpop.f32.mrb[0].mxu0
  %v1332 = vadd.f32 0.0, %v1331
  %v1333 = vpop.f32.mrb[0].mxu0
  %1334 = vmatprep.mubr.bf16.mxu0 0
  %1335 = vmatmul.mubr.bf16.gmra.mrb[0].mxu0 %v1271
  %v1336 = vpop.f32.mrb[0].mxu0
  %v1337 = vadd.f32 0.0, %v1336
  %v1338 = vpop.f32.mrb[0].mxu0
  %v1339 = vpop.f32.mrb[0].mxu0
  %v1340 = vadd.f32 0.0, %v1339
  %v1341 = vpop.f32.mrb[0].mxu0
  %1342 = vmatprep.mubr.bf16.mxu0 0
  %1343 = vmatmul.mubr.bf16.gmra.mrb[0].mxu0 %v1274
  %v1344 = vpop.f32.mrb[0].mxu0
  %v1345 = vadd.f32 0.0, %v1344
  %v1346 = vpop.f32.mrb[0].mxu0
  %v1347 = vpop.f32.mrb[0].mxu0
  %v1348 = vadd.f32 0.0, %v1347
  %v1349 = vpop.f32.mrb[0].mxu0
  %1350 = vmatprep.mubr.bf16.mxu0 0
  %1351 = vmatmul.mubr.bf16.gmra.mrb[0].mxu0 %v1277
  %v1352 = vpop.f32.mrb[0].mxu0
  %v1353 = vadd.f32 0.0, %v1352
  %v1354 = vpop.f32.mrb[0].mxu0
  %v1355 = vpop.f32.mrb[0].mxu0
  %v1356 = vadd.f32 0.0, %v1355
  %v1357 = vpop.f32.mrb[0].mxu0
  %1358 = vmatprep.mubr.bf16.mxu0 0
  %1359 = vmatmul.mubr.bf16.gmra.mrb[0].mxu0 %v1280
  %v1360 = vpop.f32.mrb[0].mxu0
  %v1361 = vadd.f32 0.0, %v1360
  %v1362 = vpop.f32.mrb[0].mxu0
  %v1363 = vpop.f32.mrb[0].mxu0
  %v1364 = vadd.f32 0.0, %v1363
  %v1365 = vpop.f32.mrb[0].mxu0
  %1366 = vmatprep.mubr.bf16.mxu0 0
  %1367 = vmatmul.mubr.bf16.gmra.mrb[0].mxu0 %v1283
  %v1368 = vpop.f32.mrb[0].mxu0
  %v1369 = vadd.f32 0.0, %v1368
  %v1370 = vpop.f32.mrb[0].mxu0
  %v1371 = vpop.f32.mrb[0].mxu0
  %v1372 = vadd.f32 0.0, %v1371
  %v1373 = vpop.f32.mrb[0].mxu0
  %1374 = vmatprep.mubr.bf16.mxu0 0
  %1375 = vmatmul.mubr.bf16.gmra.mrb[0].mxu0 %v1286
  %v1376 = vpop.f32.mrb[0].mxu0
  %v1377 = vadd.f32 0.0, %v1376
  %v1378 = vpop.f32.mrb[0].mxu0
  %v1379 = vpop.f32.mrb[0].mxu0
  %v1380 = vadd.f32 0.0, %v1379
  %v1381 = vpop.f32.mrb[0].mxu0
  %1382 = vmatprep.mubr.bf16.mxu0 0
  %1383 = vmatmul.mubr.bf16.gmra.mrb[0].mxu0 %v1289
  %v1384 = vpop.f32.mrb[0].mxu0
  %v1385 = vadd.f32 0.0, %v1384
  %v1386 = vpop.f32.mrb[0].mxu0
  %v1387 = vpop.f32.mrb[0].mxu0
  %v1388 = vadd.f32 0.0, %v1387
  %v1389 = vpop.f32.mrb[0].mxu0
  %1390 = vdwg.mxu0
  %v1391 = vadd.f32 %v1112, %v1329
  %v1392 = vadd.f32 %v1113, %v1332
  %v1393 = vadd.f32 %v1114, %v1337
  %v1394 = vadd.f32 %v1115, %v1340
  %v1395 = vadd.f32 %v1116, %v1345
  %v1396 = vadd.f32 %v1117, %v1348
  %v1397 = vadd.f32 %v1118, %v1353
  %v1398 = vadd.f32 %v1119, %v1356
  %v1399 = vadd.f32 %v1120, %v1361
  %v1400 = vadd.f32 %v1121, %v1364
  %v1401 = vadd.f32 %v1122, %v1369
  %v1402 = vadd.f32 %v1123, %v1372
  %v1403 = vadd.f32 %v1124, %v1377
  %v1404 = vadd.f32 %v1125, %v1380
  %v1405 = vadd.f32 %v1126, %v1385
  %v1406 = vadd.f32 %v1127, %v1388
  %s1407 = scalar_lea.vmem %s1, 20
  %v1408 = vld [vmem:[%s1407] sm:$0xf]
  %v1409 = vunpack.c.l.b16 %v1230
  %v1410 = vunpack.c.l.b16 %v1233
  %v1411 = vpack.c.b16 %v1410, %v1409
  %v1413 = vsel %vm81, %v1411, 0
  %v1416 = vsel %vm106, %v1408, 0
  %1418 = vmatprep.subr.bf16.mxu0 0
  %1419 = vmatpush1.bf16.msra.mxu0 %v1416
  %1420 = vmatprep.subr.bf16.mxu0 0
  %1421 = vmatpush1.bf16.msra.mxu0 0
  %1422 = vmatprep.subr.bf16.mxu0 0
  %1423 = vmatpush1.bf16.msra.mxu0 0
  %1424 = vmatprep.subr.bf16.mxu0 0
  %1425 = vmatpush1.bf16.msra.mxu0 0
  %1426 = vmatprep.subr.bf16.mxu0 0
  %1427 = vmatpush1.bf16.msra.mxu0 0
  %1428 = vmatprep.subr.bf16.mxu0 0
  %1429 = vmatpush1.bf16.msra.mxu0 0
  %1430 = vmatprep.subr.bf16.mxu0 0
  %1431 = vmatpush1.bf16.msra.mxu0 0
  %1432 = vmatprep.subr.bf16.mxu0 0
  %1433 = vmatpush1.bf16.msra.mxu0 0
  %1434 = vmatprep.subr.bf16.mxu0 0
  %1435 = vmatpush1.bf16.msra.mxu0 0
  %1436 = vmatprep.subr.bf16.mxu0 0
  %1437 = vmatpush1.bf16.msra.mxu0 0
  %1438 = vmatprep.subr.bf16.mxu0 0
  %1439 = vmatpush1.bf16.msra.mxu0 0
  %1440 = vmatprep.subr.bf16.mxu0 0
  %1441 = vmatpush1.bf16.msra.mxu0 0
  %1442 = vmatprep.subr.bf16.mxu0 0
  %1443 = vmatpush1.bf16.msra.mxu0 0
  %1444 = vmatprep.subr.bf16.mxu0 0
  %1445 = vmatpush1.bf16.msra.mxu0 0
  %1446 = vmatprep.subr.bf16.mxu0 0
  %1447 = vmatpush1.bf16.msra.mxu0 0
  %1448 = vmatprep.subr.bf16.mxu0 0
  %1449 = vmatpush1.bf16.msra.mxu0 0
  %1450 = vmatprep.mubr.bf16.mxu0 0
  %1451 = vmatmul.mubr.bf16.gmra.mrb[0].mxu0 %v1271
  %v1452 = vpop.f32.mrb[0].mxu0
  %v1453 = vadd.f32 0.0, %v1452
  %v1454 = vpop.f32.mrb[0].mxu0
  %v1455 = vpop.f32.mrb[0].mxu0
  %v1456 = vadd.f32 0.0, %v1455
  %v1457 = vpop.f32.mrb[0].mxu0
  %1458 = vmatprep.mubr.bf16.mxu0 0
  %1459 = vmatmul.mubr.bf16.gmra.mrb[0].mxu0 %v1274
  %v1460 = vpop.f32.mrb[0].mxu0
  %v1461 = vadd.f32 0.0, %v1460
  %v1462 = vpop.f32.mrb[0].mxu0
  %v1463 = vpop.f32.mrb[0].mxu0
  %v1464 = vadd.f32 0.0, %v1463
  %v1465 = vpop.f32.mrb[0].mxu0
  %1466 = vmatprep.mubr.bf16.mxu0 0
  %1467 = vmatmul.mubr.bf16.gmra.mrb[0].mxu0 %v1277
  %v1468 = vpop.f32.mrb[0].mxu0
  %v1469 = vadd.f32 0.0, %v1468
  %v1470 = vpop.f32.mrb[0].mxu0
  %v1471 = vpop.f32.mrb[0].mxu0
  %v1472 = vadd.f32 0.0, %v1471
  %v1473 = vpop.f32.mrb[0].mxu0
  %1474 = vmatprep.mubr.bf16.mxu0 0
  %1475 = vmatmul.mubr.bf16.gmra.mrb[0].mxu0 %v1280
  %v1476 = vpop.f32.mrb[0].mxu0
  %v1477 = vadd.f32 0.0, %v1476
  %v1478 = vpop.f32.mrb[0].mxu0
  %v1479 = vpop.f32.mrb[0].mxu0
  %v1480 = vadd.f32 0.0, %v1479
  %v1481 = vpop.f32.mrb[0].mxu0
  %1482 = vmatprep.mubr.bf16.mxu0 0
  %1483 = vmatmul.mubr.bf16.gmra.mrb[0].mxu0 %v1283
  %v1484 = vpop.f32.mrb[0].mxu0
  %v1485 = vadd.f32 0.0, %v1484
  %v1486 = vpop.f32.mrb[0].mxu0
  %v1487 = vpop.f32.mrb[0].mxu0
  %v1488 = vadd.f32 0.0, %v1487
  %v1489 = vpop.f32.mrb[0].mxu0
  %1490 = vmatprep.mubr.bf16.mxu0 0
  %1491 = vmatmul.mubr.bf16.gmra.mrb[0].mxu0 %v1286
  %v1492 = vpop.f32.mrb[0].mxu0
  %v1493 = vadd.f32 0.0, %v1492
  %v1494 = vpop.f32.mrb[0].mxu0
  %v1495 = vpop.f32.mrb[0].mxu0
  %v1496 = vadd.f32 0.0, %v1495
  %v1497 = vpop.f32.mrb[0].mxu0
  %1498 = vmatprep.mubr.bf16.mxu0 0
  %1499 = vmatmul.mubr.bf16.gmra.mrb[0].mxu0 %v1289
  %v1500 = vpop.f32.mrb[0].mxu0
  %v1501 = vadd.f32 0.0, %v1500
  %v1502 = vpop.f32.mrb[0].mxu0
  %v1503 = vpop.f32.mrb[0].mxu0
  %v1504 = vadd.f32 0.0, %v1503
  %v1505 = vpop.f32.mrb[0].mxu0
  %1506 = vmatprep.mubr.bf16.mxu0 0
  %1507 = vmatmul.mubr.bf16.gmra.mrb[0].mxu0 %v1413
  %v1508 = vpop.f32.mrb[0].mxu0
  %v1509 = vadd.f32 0.0, %v1508
  %v1510 = vpop.f32.mrb[0].mxu0
  %v1511 = vpop.f32.mrb[0].mxu0
  %v1512 = vadd.f32 0.0, %v1511
  %v1513 = vpop.f32.mrb[0].mxu0
  %1514 = vdwg.mxu0
  %v1515 = vadd.f32 %v1391, %v1453
  %v1516 = vadd.f32 %v1392, %v1456
  %v1517 = vadd.f32 %v1393, %v1461
  %v1518 = vadd.f32 %v1394, %v1464
  %v1519 = vadd.f32 %v1395, %v1469
  %v1520 = vadd.f32 %v1396, %v1472
  %v1521 = vadd.f32 %v1397, %v1477
  %v1522 = vadd.f32 %v1398, %v1480
  %v1523 = vadd.f32 %v1399, %v1485
  %v1524 = vadd.f32 %v1400, %v1488
  %v1525 = vadd.f32 %v1401, %v1493
  %v1526 = vadd.f32 %v1402, %v1496
  %v1527 = vadd.f32 %v1403, %v1501
  %v1528 = vadd.f32 %v1404, %v1504
  %v1529 = vadd.f32 %v1405, %v1509
  %v1530 = vadd.f32 %v1406, %v1512
  %s1531 = scalar_lea.vmem %s1, 32
  %v1532 = vld [vmem:[%s1531] sm:$0xf]
  %v1533 = vunpack.c.l.b16 %v1237
  %v1534 = vunpack.c.l.b16 %v1240
  %v1535 = vpack.c.b16 %v1534, %v1533
  %v1537 = vsel %vm81, %v1535, 0
  %v1540 = vsel %vm106, %v1532, 0
  %1542 = vmatprep.subr.bf16.mxu0 0
  %1543 = vmatpush1.bf16.msra.mxu0 %v1540
  %1544 = vmatprep.subr.bf16.mxu0 0
  %1545 = vmatpush1.bf16.msra.mxu0 0
  %1546 = vmatprep.subr.bf16.mxu0 0
  %1547 = vmatpush1.bf16.msra.mxu0 0
  %1548 = vmatprep.subr.bf16.mxu0 0
  %1549 = vmatpush1.bf16.msra.mxu0 0
  %1550 = vmatprep.subr.bf16.mxu0 0
  %1551 = vmatpush1.bf16.msra.mxu0 0
  %1552 = vmatprep.subr.bf16.mxu0 0
  %1553 = vmatpush1.bf16.msra.mxu0 0
  %1554 = vmatprep.subr.bf16.mxu0 0
  %1555 = vmatpush1.bf16.msra.mxu0 0
  %1556 = vmatprep.subr.bf16.mxu0 0
  %1557 = vmatpush1.bf16.msra.mxu0 0
  %1558 = vmatprep.subr.bf16.mxu0 0
  %1559 = vmatpush1.bf16.msra.mxu0 0
  %1560 = vmatprep.subr.bf16.mxu0 0
  %1561 = vmatpush1.bf16.msra.mxu0 0
  %1562 = vmatprep.subr.bf16.mxu0 0
  %1563 = vmatpush1.bf16.msra.mxu0 0
  %1564 = vmatprep.subr.bf16.mxu0 0
  %1565 = vmatpush1.bf16.msra.mxu0 0
  %1566 = vmatprep.subr.bf16.mxu0 0
  %1567 = vmatpush1.bf16.msra.mxu0 0
  %1568 = vmatprep.subr.bf16.mxu0 0
  %1569 = vmatpush1.bf16.msra.mxu0 0
  %1570 = vmatprep.subr.bf16.mxu0 0
  %1571 = vmatpush1.bf16.msra.mxu0 0
  %1572 = vmatprep.subr.bf16.mxu0 0
  %1573 = vmatpush1.bf16.msra.mxu0 0
  %1574 = vmatprep.mubr.bf16.mxu0 0
  %1575 = vmatmul.mubr.bf16.gmra.mrb[0].mxu0 %v1274
  %v1576 = vpop.f32.mrb[0].mxu0
  %v1577 = vadd.f32 0.0, %v1576
  %v1578 = vpop.f32.mrb[0].mxu0
  %v1579 = vpop.f32.mrb[0].mxu0
  %v1580 = vadd.f32 0.0, %v1579
  %v1581 = vpop.f32.mrb[0].mxu0
  %1582 = vmatprep.mubr.bf16.mxu0 0
  %1583 = vmatmul.mubr.bf16.gmra.mrb[0].mxu0 %v1277
  %v1584 = vpop.f32.mrb[0].mxu0
  %v1585 = vadd.f32 0.0, %v1584
  %v1586 = vpop.f32.mrb[0].mxu0
  %v1587 = vpop.f32.mrb[0].mxu0
  %v1588 = vadd.f32 0.0, %v1587
  %v1589 = vpop.f32.mrb[0].mxu0
  %1590 = vmatprep.mubr.bf16.mxu0 0
  %1591 = vmatmul.mubr.bf16.gmra.mrb[0].mxu0 %v1280
  %v1592 = vpop.f32.mrb[0].mxu0
  %v1593 = vadd.f32 0.0, %v1592
  %v1594 = vpop.f32.mrb[0].mxu0
  %v1595 = vpop.f32.mrb[0].mxu0
  %v1596 = vadd.f32 0.0, %v1595
  %v1597 = vpop.f32.mrb[0].mxu0
  %1598 = vmatprep.mubr.bf16.mxu0 0
  %1599 = vmatmul.mubr.bf16.gmra.mrb[0].mxu0 %v1283
  %v1600 = vpop.f32.mrb[0].mxu0
  %v1601 = vadd.f32 0.0, %v1600
  %v1602 = vpop.f32.mrb[0].mxu0
  %v1603 = vpop.f32.mrb[0].mxu0
  %v1604 = vadd.f32 0.0, %v1603
  %v1605 = vpop.f32.mrb[0].mxu0
  %1606 = vmatprep.mubr.bf16.mxu0 0
  %1607 = vmatmul.mubr.bf16.gmra.mrb[0].mxu0 %v1286
  %v1608 = vpop.f32.mrb[0].mxu0
  %v1609 = vadd.f32 0.0, %v1608
  %v1610 = vpop.f32.mrb[0].mxu0
  %v1611 = vpop.f32.mrb[0].mxu0
  %v1612 = vadd.f32 0.0, %v1611
  %v1613 = vpop.f32.mrb[0].mxu0
  %1614 = vmatprep.mubr.bf16.mxu0 0
  %1615 = vmatmul.mubr.bf16.gmra.mrb[0].mxu0 %v1289
  %v1616 = vpop.f32.mrb[0].mxu0
  %v1617 = vadd.f32 0.0, %v1616
  %v1618 = vpop.f32.mrb[0].mxu0
  %v1619 = vpop.f32.mrb[0].mxu0
  %v1620 = vadd.f32 0.0, %v1619
  %v1621 = vpop.f32.mrb[0].mxu0
  %1622 = vmatprep.mubr.bf16.mxu0 0
  %1623 = vmatmul.mubr.bf16.gmra.mrb[0].mxu0 %v1413
  %v1624 = vpop.f32.mrb[0].mxu0
  %v1625 = vadd.f32 0.0, %v1624
  %v1626 = vpop.f32.mrb[0].mxu0
  %v1627 = vpop.f32.mrb[0].mxu0
  %v1628 = vadd.f32 0.0, %v1627
  %v1629 = vpop.f32.mrb[0].mxu0
  %1630 = vmatprep.mubr.bf16.mxu0 0
  %1631 = vmatmul.mubr.bf16.gmra.mrb[0].mxu0 %v1537
  %v1632 = vpop.f32.mrb[0].mxu0
  %v1633 = vadd.f32 0.0, %v1632
  %v1634 = vpop.f32.mrb[0].mxu0
  %v1635 = vpop.f32.mrb[0].mxu0
  %v1636 = vadd.f32 0.0, %v1635
  %v1637 = vpop.f32.mrb[0].mxu0
  %1638 = vdwg.mxu0
  %v1639 = vadd.f32 %v1515, %v1577
  %v1640 = vadd.f32 %v1516, %v1580
  %v1641 = vadd.f32 %v1517, %v1585
  %v1642 = vadd.f32 %v1518, %v1588
  %v1643 = vadd.f32 %v1519, %v1593
  %v1644 = vadd.f32 %v1520, %v1596
  %v1645 = vadd.f32 %v1521, %v1601
  %v1646 = vadd.f32 %v1522, %v1604
  %v1647 = vadd.f32 %v1523, %v1609
  %v1648 = vadd.f32 %v1524, %v1612
  %v1649 = vadd.f32 %v1525, %v1617
  %v1650 = vadd.f32 %v1526, %v1620
  %v1651 = vadd.f32 %v1527, %v1625
  %v1652 = vadd.f32 %v1528, %v1628
  %v1653 = vadd.f32 %v1529, %v1633
  %v1654 = vadd.f32 %v1530, %v1636
  %vm1655 = vcmask 130048
  %1656 = vst.msk [vmem:[#allocation2] sm:$0xff] %vm1655, %v1639
  %1657 = vst.msk [vmem:[#allocation2 + $0x8] sm:$0xff] %vm1655, %v1640
  %1658 = vst.msk [vmem:[#allocation2 + $0x10] sm:$0xff] %vm1655, %v1641
  %1659 = vst.msk [vmem:[#allocation2 + $0x18] sm:$0xff] %vm1655, %v1642
  %1660 = vst.msk [vmem:[#allocation2 + $0x20] sm:$0xff] %vm1655, %v1643
  %1661 = vst.msk [vmem:[#allocation2 + $0x28] sm:$0xff] %vm1655, %v1644
  %1662 = vst.msk [vmem:[#allocation2 + $0x30] sm:$0xff] %vm1655, %v1645
  %1663 = vst.msk [vmem:[#allocation2 + $0x38] sm:$0xff] %vm1655, %v1646
  %1664 = vst.msk [vmem:[#allocation2 + $0x40] sm:$0xff] %vm1655, %v1647
  %1665 = vst.msk [vmem:[#allocation2 + $0x48] sm:$0xff] %vm1655, %v1648
  %1666 = vst.msk [vmem:[#allocation2 + $0x50] sm:$0xff] %vm1655, %v1649
  %1667 = vst.msk [vmem:[#allocation2 + $0x58] sm:$0xff] %vm1655, %v1650
  %1668 = vst.msk [vmem:[#allocation2 + $0x60] sm:$0xff] %vm1655, %v1651
  %1669 = vst.msk [vmem:[#allocation2 + $0x68] sm:$0xff] %vm1655, %v1652
  %1670 = vst.msk [vmem:[#allocation2 + $0x70] sm:$0xff] %vm1655, %v1653
  %1671 = vst.msk [vmem:[#allocation2 + $0x78] sm:$0xff] %vm1655, %v1654
  %v1672 = vsel %vm1655, %v1639, 0.0
  %v1673 = vsel %vm1655, %v1640, 0.0
  %v1674 = vadd.f32 %v1672, %v1673
  %v1675 = vsel %vm1655, %v1641, 0.0
  %v1676 = vadd.f32 %v1674, %v1675
  %v1677 = vsel %vm1655, %v1642, 0.0
  %v1678 = vadd.f32 %v1676, %v1677
  %v1679 = vsel %vm1655, %v1643, 0.0
  %v1680 = vadd.f32 %v1678, %v1679
  %v1681 = vsel %vm1655, %v1644, 0.0
  %v1682 = vadd.f32 %v1680, %v1681
  %v1683 = vsel %vm1655, %v1645, 0.0
  %v1684 = vadd.f32 %v1682, %v1683
  %v1685 = vsel %vm1655, %v1646, 0.0
  %v1686 = vadd.f32 %v1684, %v1685
  %v1687 = vsel %vm1655, %v1647, 0.0
  %v1688 = vadd.f32 %v1686, %v1687
  %v1689 = vsel %vm1655, %v1648, 0.0
  %v1690 = vadd.f32 %v1688, %v1689
  %v1691 = vsel %vm1655, %v1649, 0.0
  %v1692 = vadd.f32 %v1690, %v1691
  %v1693 = vsel %vm1655, %v1650, 0.0
  %v1694 = vadd.f32 %v1692, %v1693
  %v1695 = vsel %vm1655, %v1651, 0.0
  %v1696 = vadd.f32 %v1694, %v1695
  %v1697 = vsel %vm1655, %v1652, 0.0
  %v1698 = vadd.f32 %v1696, %v1697
  %v1699 = vsel %vm1655, %v1653, 0.0
  %v1700 = vadd.f32 %v1698, %v1699
  %v1701 = vsel %vm1655, %v1654, 0.0
  %v1702 = vadd.f32 %v1700, %v1701
  %v1703 = vrot.slane %v1702, 4
  %v1704 = vadd.f32 %v1702, %v1703
  %v1705 = vrot.slane %v1704, 2
  %v1706 = vadd.f32 %v1704, %v1705
  %v1707 = vrot.slane %v1706, 1
  %v1708 = vadd.f32 %v1706, %v1707
  %v1709 = vadd.f32 %v1708, 0.0
  %v1710 = vmul.f32 %v1639, %v1639
  %v1711 = vmul.f32 %v1640, %v1640
  %v1712 = vmul.f32 %v1641, %v1641
  %v1713 = vmul.f32 %v1642, %v1642
  %v1714 = vmul.f32 %v1643, %v1643
  %v1715 = vmul.f32 %v1644, %v1644
  %v1716 = vmul.f32 %v1645, %v1645
  %v1717 = vmul.f32 %v1646, %v1646
  %v1718 = vmul.f32 %v1647, %v1647
  %v1719 = vmul.f32 %v1648, %v1648
  %v1720 = vmul.f32 %v1649, %v1649
  %v1721 = vmul.f32 %v1650, %v1650
  %v1722 = vmul.f32 %v1651, %v1651
  %v1723 = vmul.f32 %v1652, %v1652
  %v1724 = vmul.f32 %v1653, %v1653
  %v1725 = vmul.f32 %v1654, %v1654
  %v1726 = vsel %vm1655, %v1710, 0.0
  %v1727 = vsel %vm1655, %v1711, 0.0
  %v1728 = vadd.f32 %v1726, %v1727
  %v1729 = vsel %vm1655, %v1712, 0.0
  %v1730 = vadd.f32 %v1728, %v1729
  %v1731 = vsel %vm1655, %v1713, 0.0
  %v1732 = vadd.f32 %v1730, %v1731
  %v1733 = vsel %vm1655, %v1714, 0.0
  %v1734 = vadd.f32 %v1732, %v1733
  %v1735 = vsel %vm1655, %v1715, 0.0
  %v1736 = vadd.f32 %v1734, %v1735
  %v1737 = vsel %vm1655, %v1716, 0.0
  %v1738 = vadd.f32 %v1736, %v1737
  %v1739 = vsel %vm1655, %v1717, 0.0
  %v1740 = vadd.f32 %v1738, %v1739
  %v1741 = vsel %vm1655, %v1718, 0.0
  %v1742 = vadd.f32 %v1740, %v1741
  %v1743 = vsel %vm1655, %v1719, 0.0
  %v1744 = vadd.f32 %v1742, %v1743
  %v1745 = vsel %vm1655, %v1720, 0.0
  %v1746 = vadd.f32 %v1744, %v1745
  %v1747 = vsel %vm1655, %v1721, 0.0
  %v1748 = vadd.f32 %v1746, %v1747
  %v1749 = vsel %vm1655, %v1722, 0.0
  %v1750 = vadd.f32 %v1748, %v1749
  %v1751 = vsel %vm1655, %v1723, 0.0
  %v1752 = vadd.f32 %v1750, %v1751
  %v1753 = vsel %vm1655, %v1724, 0.0
  %v1754 = vadd.f32 %v1752, %v1753
  %v1755 = vsel %vm1655, %v1725, 0.0
  %v1756 = vadd.f32 %v1754, %v1755
  %v1757 = vrot.slane %v1756, 4
  %v1758 = vadd.f32 %v1756, %v1757
  %v1759 = vrot.slane %v1758, 2
  %v1760 = vadd.f32 %v1758, %v1759
  %v1761 = vrot.slane %v1760, 1
  %v1762 = vadd.f32 %v1760, %v1761
  %v1763 = vadd.f32 %v1762, 0.0
  %s1764 = scalar_lea.vmem %s0, 96
  %v1765 = vld [vmem:[%s1764] sm:$0xf]
  %v1766 = vld [vmem:[%s1764 + $0x4] sm:$0xf]
  %v1767 = vld [vmem:[%s1764 + $0xc] sm:$0xf]
  %v1768 = vld [vmem:[%s1764 + $0x10] sm:$0xf]
  %v1769 = vld [vmem:[%s1764 + $0x18] sm:$0xf]
  %v1770 = vld [vmem:[%s1764 + $0x1c] sm:$0xf]
  %v1771 = vld [vmem:[%s1764 + $0x24] sm:$0xf]
  %v1772 = vld [vmem:[%s1764 + $0x28] sm:$0xf]
  %v1773 = vld [vmem:[%s1764 + $0x30] sm:$0xf]
  %v1774 = vld [vmem:[%s1764 + $0x34] sm:$0xf]
  %v1775 = vld [vmem:[%s1764 + $0x3c] sm:$0xf]
  %v1776 = vld [vmem:[%s1764 + $0x40] sm:$0xf]
  %v1777 = vld [vmem:[%s1764 + $0x48] sm:$0xf]
  %v1778 = vld [vmem:[%s1764 + $0x4c] sm:$0xf]
  %v1779 = vld [vmem:[%s1764 + $0x54] sm:$0xf]
  %v1780 = vld [vmem:[%s1764 + $0x58] sm:$0xf]
  %v1781 = vld [vmem:[%s1764 + $0x60] sm:$0xf]
  %v1782 = vld [vmem:[%s1764 + $0x64] sm:$0xf]
  %v1783 = vld [vmem:[%s1764 + $0x6c] sm:$0xf]
  %v1784 = vld [vmem:[%s1764 + $0x70] sm:$0xf]
  %v1785 = vld [vmem:[%s1] sm:$0xf]
  %v1786 = vld [vmem:[%s39] sm:$0xf]
  %v1803 = vunpack.c.l.b16 %v1767
  %v1804 = vunpack.c.l.b16 %v1768
  %v1805 = vunpack.c.l.b16 %v1769
  %v1806 = vunpack.c.l.b16 %v1770
  %v1807 = vunpack.c.l.b16 %v1771
  %v1808 = vunpack.c.l.b16 %v1772
  %v1809 = vunpack.c.l.b16 %v1773
  %v1810 = vunpack.c.l.b16 %v1774
  %v1811 = vunpack.c.l.b16 %v1775
  %v1812 = vunpack.c.l.b16 %v1776
  %v1813 = vunpack.c.l.b16 %v1777
  %v1814 = vunpack.c.l.b16 %v1778
  %v1815 = vunpack.c.l.b16 %v1779
  %v1816 = vunpack.c.l.b16 %v1780
  %v1817 = vunpack.c.l.b16 %v1781
  %v1818 = vunpack.c.l.b16 %v1782
  %v1819 = vpack.c.b16 %v1804, %v1803
  %v1820 = vpack.c.b16 %v1806, %v1805
  %v1821 = vpack.c.b16 %v1808, %v1807
  %v1822 = vpack.c.b16 %v1810, %v1809
  %v1823 = vpack.c.b16 %v1812, %v1811
  %v1824 = vpack.c.b16 %v1814, %v1813
  %v1825 = vpack.c.b16 %v1816, %v1815
  %v1826 = vpack.c.b16 %v1818, %v1817
  %v1828 = vsel %vm81, %v1819, 0
  %v1831 = vsel %vm81, %v1820, 0
  %v1834 = vsel %vm81, %v1821, 0
  %v1837 = vsel %vm81, %v1822, 0
  %v1840 = vsel %vm81, %v1823, 0
  %v1843 = vsel %vm81, %v1824, 0
  %v1846 = vsel %vm81, %v1825, 0
  %v1849 = vsel %vm81, %v1826, 0
  %v1852 = vsel %vm106, %v1786, 0
  %1854 = vmatprep.subr.bf16.mxu0 0
  %1855 = vmatpush1.bf16.msra.mxu0 %v1852
  %1856 = vmatprep.subr.bf16.mxu0 0
  %1857 = vmatpush1.bf16.msra.mxu0 0
  %1858 = vmatprep.subr.bf16.mxu0 0
  %1859 = vmatpush1.bf16.msra.mxu0 0
  %1860 = vmatprep.subr.bf16.mxu0 0
  %1861 = vmatpush1.bf16.msra.mxu0 0
  %1862 = vmatprep.subr.bf16.mxu0 0
  %1863 = vmatpush1.bf16.msra.mxu0 0
  %1864 = vmatprep.subr.bf16.mxu0 0
  %1865 = vmatpush1.bf16.msra.mxu0 0
  %1866 = vmatprep.subr.bf16.mxu0 0
  %1867 = vmatpush1.bf16.msra.mxu0 0
  %1868 = vmatprep.subr.bf16.mxu0 0
  %1869 = vmatpush1.bf16.msra.mxu0 0
  %1870 = vmatprep.subr.bf16.mxu0 0
  %1871 = vmatpush1.bf16.msra.mxu0 0
  %1872 = vmatprep.subr.bf16.mxu0 0
  %1873 = vmatpush1.bf16.msra.mxu0 0
  %1874 = vmatprep.subr.bf16.mxu0 0
  %1875 = vmatpush1.bf16.msra.mxu0 0
  %1876 = vmatprep.subr.bf16.mxu0 0
  %1877 = vmatpush1.bf16.msra.mxu0 0
  %1878 = vmatprep.subr.bf16.mxu0 0
  %1879 = vmatpush1.bf16.msra.mxu0 0
  %1880 = vmatprep.subr.bf16.mxu0 0
  %1881 = vmatpush1.bf16.msra.mxu0 0
  %1882 = vmatprep.subr.bf16.mxu0 0
  %1883 = vmatpush1.bf16.msra.mxu0 0
  %1884 = vmatprep.subr.bf16.mxu0 0
  %1885 = vmatpush1.bf16.msra.mxu0 0
  %1886 = vmatprep.mubr.bf16.mxu0 0
  %1887 = vmatmul.mubr.bf16.gmra.mrb[0].mxu0 %v1828
  %v1888 = vpop.f32.mrb[0].mxu0
  %v1889 = vadd.f32 0.0, %v1888
  %v1890 = vpop.f32.mrb[0].mxu0
  %v1891 = vpop.f32.mrb[0].mxu0
  %v1892 = vadd.f32 0.0, %v1891
  %v1893 = vpop.f32.mrb[0].mxu0
  %1894 = vmatprep.mubr.bf16.mxu0 0
  %1895 = vmatmul.mubr.bf16.gmra.mrb[0].mxu0 %v1831
  %v1896 = vpop.f32.mrb[0].mxu0
  %v1897 = vadd.f32 0.0, %v1896
  %v1898 = vpop.f32.mrb[0].mxu0
  %v1899 = vpop.f32.mrb[0].mxu0
  %v1900 = vadd.f32 0.0, %v1899
  %v1901 = vpop.f32.mrb[0].mxu0
  %1902 = vmatprep.mubr.bf16.mxu0 0
  %1903 = vmatmul.mubr.bf16.gmra.mrb[0].mxu0 %v1834
  %v1904 = vpop.f32.mrb[0].mxu0
  %v1905 = vadd.f32 0.0, %v1904
  %v1906 = vpop.f32.mrb[0].mxu0
  %v1907 = vpop.f32.mrb[0].mxu0
  %v1908 = vadd.f32 0.0, %v1907
  %v1909 = vpop.f32.mrb[0].mxu0
  %1910 = vmatprep.mubr.bf16.mxu0 0
  %1911 = vmatmul.mubr.bf16.gmra.mrb[0].mxu0 %v1837
  %v1912 = vpop.f32.mrb[0].mxu0
  %v1913 = vadd.f32 0.0, %v1912
  %v1914 = vpop.f32.mrb[0].mxu0
  %v1915 = vpop.f32.mrb[0].mxu0
  %v1916 = vadd.f32 0.0, %v1915
  %v1917 = vpop.f32.mrb[0].mxu0
  %1918 = vmatprep.mubr.bf16.mxu0 0
  %1919 = vmatmul.mubr.bf16.gmra.mrb[0].mxu0 %v1840
  %v1920 = vpop.f32.mrb[0].mxu0
  %v1921 = vadd.f32 0.0, %v1920
  %v1922 = vpop.f32.mrb[0].mxu0
  %v1923 = vpop.f32.mrb[0].mxu0
  %v1924 = vadd.f32 0.0, %v1923
  %v1925 = vpop.f32.mrb[0].mxu0
  %1926 = vmatprep.mubr.bf16.mxu0 0
  %1927 = vmatmul.mubr.bf16.gmra.mrb[0].mxu0 %v1843
  %v1928 = vpop.f32.mrb[0].mxu0
  %v1929 = vadd.f32 0.0, %v1928
  %v1930 = vpop.f32.mrb[0].mxu0
  %v1931 = vpop.f32.mrb[0].mxu0
  %v1932 = vadd.f32 0.0, %v1931
  %v1933 = vpop.f32.mrb[0].mxu0
  %1934 = vmatprep.mubr.bf16.mxu0 0
  %1935 = vmatmul.mubr.bf16.gmra.mrb[0].mxu0 %v1846
  %v1936 = vpop.f32.mrb[0].mxu0
  %v1937 = vadd.f32 0.0, %v1936
  %v1938 = vpop.f32.mrb[0].mxu0
  %v1939 = vpop.f32.mrb[0].mxu0
  %v1940 = vadd.f32 0.0, %v1939
  %v1941 = vpop.f32.mrb[0].mxu0
  %1942 = vmatprep.mubr.bf16.mxu0 0
  %1943 = vmatmul.mubr.bf16.gmra.mrb[0].mxu0 %v1849
  %v1944 = vpop.f32.mrb[0].mxu0
  %v1945 = vadd.f32 0.0, %v1944
  %v1946 = vpop.f32.mrb[0].mxu0
  %v1947 = vpop.f32.mrb[0].mxu0
  %v1948 = vadd.f32 0.0, %v1947
  %v1949 = vpop.f32.mrb[0].mxu0
  %1950 = vdwg.mxu0
  %v1953 = vunpack.c.l.b16 %v1765
  %v1954 = vunpack.c.l.b16 %v1766
  %v1955 = vpack.c.b16 %v1954, %v1953
  %v1957 = vsel %vm81, %v1955, 0
  %v1960 = vsel %vm106, %v1785, 0
  %1962 = vmatprep.subr.bf16.mxu0 0
  %1963 = vmatpush1.bf16.msra.mxu0 %v1960
  %1964 = vmatprep.subr.bf16.mxu0 0
  %1965 = vmatpush1.bf16.msra.mxu0 0
  %1966 = vmatprep.subr.bf16.mxu0 0
  %1967 = vmatpush1.bf16.msra.mxu0 0
  %1968 = vmatprep.subr.bf16.mxu0 0
  %1969 = vmatpush1.bf16.msra.mxu0 0
  %1970 = vmatprep.subr.bf16.mxu0 0
  %1971 = vmatpush1.bf16.msra.mxu0 0
  %1972 = vmatprep.subr.bf16.mxu0 0
  %1973 = vmatpush1.bf16.msra.mxu0 0
  %1974 = vmatprep.subr.bf16.mxu0 0
  %1975 = vmatpush1.bf16.msra.mxu0 0
  %1976 = vmatprep.subr.bf16.mxu0 0
  %1977 = vmatpush1.bf16.msra.mxu0 0
  %1978 = vmatprep.subr.bf16.mxu0 0
  %1979 = vmatpush1.bf16.msra.mxu0 0
  %1980 = vmatprep.subr.bf16.mxu0 0
  %1981 = vmatpush1.bf16.msra.mxu0 0
  %1982 = vmatprep.subr.bf16.mxu0 0
  %1983 = vmatpush1.bf16.msra.mxu0 0
  %1984 = vmatprep.subr.bf16.mxu0 0
  %1985 = vmatpush1.bf16.msra.mxu0 0
  %1986 = vmatprep.subr.bf16.mxu0 0
  %1987 = vmatpush1.bf16.msra.mxu0 0
  %1988 = vmatprep.subr.bf16.mxu0 0
  %1989 = vmatpush1.bf16.msra.mxu0 0
  %1990 = vmatprep.subr.bf16.mxu0 0
  %1991 = vmatpush1.bf16.msra.mxu0 0
  %1992 = vmatprep.subr.bf16.mxu0 0
  %1993 = vmatpush1.bf16.msra.mxu0 0
  %1994 = vmatprep.mubr.bf16.mxu0 0
  %1995 = vmatmul.mubr.bf16.gmra.mrb[0].mxu0 %v1957
  %v1996 = vpop.f32.mrb[0].mxu0
  %v1997 = vadd.f32 %v1889, %v1996
  %v1998 = vpop.f32.mrb[0].mxu0
  %v1999 = vpop.f32.mrb[0].mxu0
  %v2000 = vadd.f32 %v1892, %v1999
  %v2001 = vpop.f32.mrb[0].mxu0
  %2002 = vmatprep.mubr.bf16.mxu0 0
  %2003 = vmatmul.mubr.bf16.gmra.mrb[0].mxu0 %v1828
  %v2004 = vpop.f32.mrb[0].mxu0
  %v2005 = vadd.f32 %v1897, %v2004
  %v2006 = vpop.f32.mrb[0].mxu0
  %v2007 = vpop.f32.mrb[0].mxu0
  %v2008 = vadd.f32 %v1900, %v2007
  %v2009 = vpop.f32.mrb[0].mxu0
  %2010 = vmatprep.mubr.bf16.mxu0 0
  %2011 = vmatmul.mubr.bf16.gmra.mrb[0].mxu0 %v1831
  %v2012 = vpop.f32.mrb[0].mxu0
  %v2013 = vadd.f32 %v1905, %v2012
  %v2014 = vpop.f32.mrb[0].mxu0
  %v2015 = vpop.f32.mrb[0].mxu0
  %v2016 = vadd.f32 %v1908, %v2015
  %v2017 = vpop.f32.mrb[0].mxu0
  %2018 = vmatprep.mubr.bf16.mxu0 0
  %2019 = vmatmul.mubr.bf16.gmra.mrb[0].mxu0 %v1834
  %v2020 = vpop.f32.mrb[0].mxu0
  %v2021 = vadd.f32 %v1913, %v2020
  %v2022 = vpop.f32.mrb[0].mxu0
  %v2023 = vpop.f32.mrb[0].mxu0
  %v2024 = vadd.f32 %v1916, %v2023
  %v2025 = vpop.f32.mrb[0].mxu0
  %2026 = vmatprep.mubr.bf16.mxu0 0
  %2027 = vmatmul.mubr.bf16.gmra.mrb[0].mxu0 %v1837
  %v2028 = vpop.f32.mrb[0].mxu0
  %v2029 = vadd.f32 %v1921, %v2028
  %v2030 = vpop.f32.mrb[0].mxu0
  %v2031 = vpop.f32.mrb[0].mxu0
  %v2032 = vadd.f32 %v1924, %v2031
  %v2033 = vpop.f32.mrb[0].mxu0
  %2034 = vmatprep.mubr.bf16.mxu0 0
  %2035 = vmatmul.mubr.bf16.gmra.mrb[0].mxu0 %v1840
  %v2036 = vpop.f32.mrb[0].mxu0
  %v2037 = vadd.f32 %v1929, %v2036
  %v2038 = vpop.f32.mrb[0].mxu0
  %v2039 = vpop.f32.mrb[0].mxu0
  %v2040 = vadd.f32 %v1932, %v2039
  %v2041 = vpop.f32.mrb[0].mxu0
  %2042 = vmatprep.mubr.bf16.mxu0 0
  %2043 = vmatmul.mubr.bf16.gmra.mrb[0].mxu0 %v1843
  %v2044 = vpop.f32.mrb[0].mxu0
  %v2045 = vadd.f32 %v1937, %v2044
  %v2046 = vpop.f32.mrb[0].mxu0
  %v2047 = vpop.f32.mrb[0].mxu0
  %v2048 = vadd.f32 %v1940, %v2047
  %v2049 = vpop.f32.mrb[0].mxu0
  %2050 = vmatprep.mubr.bf16.mxu0 0
  %2051 = vmatmul.mubr.bf16.gmra.mrb[0].mxu0 %v1846
  %v2052 = vpop.f32.mrb[0].mxu0
  %v2053 = vadd.f32 %v1945, %v2052
  %v2054 = vpop.f32.mrb[0].mxu0
  %v2055 = vpop.f32.mrb[0].mxu0
  %v2056 = vadd.f32 %v1948, %v2055
  %v2057 = vpop.f32.mrb[0].mxu0
  %2058 = vdwg.mxu0
  %v2059 = vld [vmem:[%s315] sm:$0xf]
  %v2062 = vunpack.c.l.b16 %v1783
  %v2063 = vunpack.c.l.b16 %v1784
  %v2064 = vpack.c.b16 %v2063, %v2062
  %v2066 = vsel %vm81, %v2064, 0
  %v2069 = vsel %vm106, %v2059, 0
  %2071 = vmatprep.subr.bf16.mxu0 0
  %2072 = vmatpush1.bf16.msra.mxu0 %v2069
  %2073 = vmatprep.subr.bf16.mxu0 0
  %2074 = vmatpush1.bf16.msra.mxu0 0
  %2075 = vmatprep.subr.bf16.mxu0 0
  %2076 = vmatpush1.bf16.msra.mxu0 0
  %2077 = vmatprep.subr.bf16.mxu0 0
  %2078 = vmatpush1.bf16.msra.mxu0 0
  %2079 = vmatprep.subr.bf16.mxu0 0
  %2080 = vmatpush1.bf16.msra.mxu0 0
  %2081 = vmatprep.subr.bf16.mxu0 0
  %2082 = vmatpush1.bf16.msra.mxu0 0
  %2083 = vmatprep.subr.bf16.mxu0 0
  %2084 = vmatpush1.bf16.msra.mxu0 0
  %2085 = vmatprep.subr.bf16.mxu0 0
  %2086 = vmatpush1.bf16.msra.mxu0 0
  %2087 = vmatprep.subr.bf16.mxu0 0
  %2088 = vmatpush1.bf16.msra.mxu0 0
  %2089 = vmatprep.subr.bf16.mxu0 0
  %2090 = vmatpush1.bf16.msra.mxu0 0
  %2091 = vmatprep.subr.bf16.mxu0 0
  %2092 = vmatpush1.bf16.msra.mxu0 0
  %2093 = vmatprep.subr.bf16.mxu0 0
  %2094 = vmatpush1.bf16.msra.mxu0 0
  %2095 = vmatprep.subr.bf16.mxu0 0
  %2096 = vmatpush1.bf16.msra.mxu0 0
  %2097 = vmatprep.subr.bf16.mxu0 0
  %2098 = vmatpush1.bf16.msra.mxu0 0
  %2099 = vmatprep.subr.bf16.mxu0 0
  %2100 = vmatpush1.bf16.msra.mxu0 0
  %2101 = vmatprep.subr.bf16.mxu0 0
  %2102 = vmatpush1.bf16.msra.mxu0 0
  %2103 = vmatprep.mubr.bf16.mxu0 0
  %2104 = vmatmul.mubr.bf16.gmra.mrb[0].mxu0 %v1831
  %v2105 = vpop.f32.mrb[0].mxu0
  %v2106 = vadd.f32 0.0, %v2105
  %v2107 = vpop.f32.mrb[0].mxu0
  %v2108 = vpop.f32.mrb[0].mxu0
  %v2109 = vadd.f32 0.0, %v2108
  %v2110 = vpop.f32.mrb[0].mxu0
  %2111 = vmatprep.mubr.bf16.mxu0 0
  %2112 = vmatmul.mubr.bf16.gmra.mrb[0].mxu0 %v1834
  %v2113 = vpop.f32.mrb[0].mxu0
  %v2114 = vadd.f32 0.0, %v2113
  %v2115 = vpop.f32.mrb[0].mxu0
  %v2116 = vpop.f32.mrb[0].mxu0
  %v2117 = vadd.f32 0.0, %v2116
  %v2118 = vpop.f32.mrb[0].mxu0
  %2119 = vmatprep.mubr.bf16.mxu0 0
  %2120 = vmatmul.mubr.bf16.gmra.mrb[0].mxu0 %v1837
  %v2121 = vpop.f32.mrb[0].mxu0
  %v2122 = vadd.f32 0.0, %v2121
  %v2123 = vpop.f32.mrb[0].mxu0
  %v2124 = vpop.f32.mrb[0].mxu0
  %v2125 = vadd.f32 0.0, %v2124
  %v2126 = vpop.f32.mrb[0].mxu0
  %2127 = vmatprep.mubr.bf16.mxu0 0
  %2128 = vmatmul.mubr.bf16.gmra.mrb[0].mxu0 %v1840
  %v2129 = vpop.f32.mrb[0].mxu0
  %v2130 = vadd.f32 0.0, %v2129
  %v2131 = vpop.f32.mrb[0].mxu0
  %v2132 = vpop.f32.mrb[0].mxu0
  %v2133 = vadd.f32 0.0, %v2132
  %v2134 = vpop.f32.mrb[0].mxu0
  %2135 = vmatprep.mubr.bf16.mxu0 0
  %2136 = vmatmul.mubr.bf16.gmra.mrb[0].mxu0 %v1843
  %v2137 = vpop.f32.mrb[0].mxu0
  %v2138 = vadd.f32 0.0, %v2137
  %v2139 = vpop.f32.mrb[0].mxu0
  %v2140 = vpop.f32.mrb[0].mxu0
  %v2141 = vadd.f32 0.0, %v2140
  %v2142 = vpop.f32.mrb[0].mxu0
  %2143 = vmatprep.mubr.bf16.mxu0 0
  %2144 = vmatmul.mubr.bf16.gmra.mrb[0].mxu0 %v1846
  %v2145 = vpop.f32.mrb[0].mxu0
  %v2146 = vadd.f32 0.0, %v2145
  %v2147 = vpop.f32.mrb[0].mxu0
  %v2148 = vpop.f32.mrb[0].mxu0
  %v2149 = vadd.f32 0.0, %v2148
  %v2150 = vpop.f32.mrb[0].mxu0
  %2151 = vmatprep.mubr.bf16.mxu0 0
  %2152 = vmatmul.mubr.bf16.gmra.mrb[0].mxu0 %v1849
  %v2153 = vpop.f32.mrb[0].mxu0
  %v2154 = vadd.f32 0.0, %v2153
  %v2155 = vpop.f32.mrb[0].mxu0
  %v2156 = vpop.f32.mrb[0].mxu0
  %v2157 = vadd.f32 0.0, %v2156
  %v2158 = vpop.f32.mrb[0].mxu0
  %2159 = vmatprep.mubr.bf16.mxu0 0
  %2160 = vmatmul.mubr.bf16.gmra.mrb[0].mxu0 %v2066
  %v2161 = vpop.f32.mrb[0].mxu0
  %v2162 = vadd.f32 0.0, %v2161
  %v2163 = vpop.f32.mrb[0].mxu0
  %v2164 = vpop.f32.mrb[0].mxu0
  %v2165 = vadd.f32 0.0, %v2164
  %v2166 = vpop.f32.mrb[0].mxu0
  %2167 = vdwg.mxu0
  %v2168 = vadd.f32 %v1997, %v2106
  %v2169 = vadd.f32 %v2000, %v2109
  %v2170 = vadd.f32 %v2005, %v2114
  %v2171 = vadd.f32 %v2008, %v2117
  %v2172 = vadd.f32 %v2013, %v2122
  %v2173 = vadd.f32 %v2016, %v2125
  %v2174 = vadd.f32 %v2021, %v2130
  %v2175 = vadd.f32 %v2024, %v2133
  %v2176 = vadd.f32 %v2029, %v2138
  %v2177 = vadd.f32 %v2032, %v2141
  %v2178 = vadd.f32 %v2037, %v2146
  %v2179 = vadd.f32 %v2040, %v2149
  %v2180 = vadd.f32 %v2045, %v2154
  %v2181 = vadd.f32 %v2048, %v2157
  %v2182 = vadd.f32 %v2053, %v2162
  %v2183 = vadd.f32 %v2056, %v2165
  %v2184 = vld [vmem:[%s1764] sm:$0xf]
  %v2185 = vld [vmem:[%s1764 + $0x4] sm:$0xf]
  %v2186 = vld [vmem:[%s1764 + $0x8] sm:$0x1]
  %v2187 = vld [vmem:[%s1764 + $0xc] sm:$0xf]
  %v2188 = vld [vmem:[%s1764 + $0x10] sm:$0xf]
  %v2189 = vld [vmem:[%s1764 + $0x14] sm:$0x1]
  %v2190 = vld [vmem:[%s1764 + $0x18] sm:$0xf]
  %v2191 = vld [vmem:[%s1764 + $0x1c] sm:$0xf]
  %v2192 = vld [vmem:[%s1764 + $0x20] sm:$0x1]
  %v2193 = vld [vmem:[%s1764 + $0x24] sm:$0xf]
  %v2194 = vld [vmem:[%s1764 + $0x28] sm:$0xf]
  %v2195 = vld [vmem:[%s1764 + $0x2c] sm:$0x1]
  %v2196 = vld [vmem:[%s1764 + $0x30] sm:$0xf]
  %v2197 = vld [vmem:[%s1764 + $0x34] sm:$0xf]
  %v2198 = vld [vmem:[%s1764 + $0x38] sm:$0x1]
  %v2199 = vld [vmem:[%s1764 + $0x3c] sm:$0xf]
  %v2200 = vld [vmem:[%s1764 + $0x40] sm:$0xf]
  %v2201 = vld [vmem:[%s1764 + $0x44] sm:$0x1]
  %v2202 = vld [vmem:[%s1764 + $0x48] sm:$0xf]
  %v2203 = vld [vmem:[%s1764 + $0x4c] sm:$0xf]
  %v2204 = vld [vmem:[%s1764 + $0x50] sm:$0x1]
  %v2205 = vld [vmem:[%s1764 + $0x54] sm:$0xf]
  %v2206 = vld [vmem:[%s1764 + $0x58] sm:$0xf]
  %v2207 = vld [vmem:[%s1764 + $0x5c] sm:$0x1]
  %v2208 = vld [vmem:[%s1764 + $0x60] sm:$0xf]
  %v2209 = vld [vmem:[%s1764 + $0x64] sm:$0xf]
  %v2210 = vld [vmem:[%s1764 + $0x68] sm:$0x1]
  %v2211 = vld [vmem:[%s1764 + $0x6c] sm:$0xf]
  %v2212 = vld [vmem:[%s1764 + $0x70] sm:$0xf]
  %v2213 = vld [vmem:[%s1764 + $0x74] sm:$0x1]
  %v2215 = vshrl.u32 %v2184, 16
  %v2217 = vrot.slane %v2215, 4
  %v2218 = vshll.u32 %v2184, 16
  %v2220 = vrot.slane %v2218, 5
  %v2221 = vor.u32 %v2217, %v2220
  %v2222 = vrot.slane %v2221, 4
  %v2224 = vshll.u32 %v2185, 16
  %v2226 = vrot.slane %v2224, 5
  %v2227 = vsel %vm473, %v2222, %v2226
  %v2228 = vshrl.u32 %v2185, 16
  %v2230 = vrot.slane %v2228, 4
  %v2231 = vor.u32 %v2230, %v2226
  %v2232 = vrot.slane %v2231, 4
  %v2234 = vshll.u32 %v2186, 16
  %v2236 = vrot.slane %v2234, 5
  %v2237 = vsel %vm473, %v2232, %v2236
  %v2239 = vshrl.u32 %v2187, 16
  %v2241 = vrot.slane %v2239, 4
  %v2242 = vshll.u32 %v2187, 16
  %v2244 = vrot.slane %v2242, 5
  %v2245 = vor.u32 %v2241, %v2244
  %v2246 = vrot.slane %v2245, 4
  %v2248 = vshll.u32 %v2188, 16
  %v2250 = vrot.slane %v2248, 5
  %v2251 = vsel %vm473, %v2246, %v2250
  %v2252 = vshrl.u32 %v2188, 16
  %v2254 = vrot.slane %v2252, 4
  %v2255 = vor.u32 %v2254, %v2250
  %v2256 = vrot.slane %v2255, 4
  %v2258 = vshll.u32 %v2189, 16
  %v2260 = vrot.slane %v2258, 5
  %v2261 = vsel %vm473, %v2256, %v2260
  %v2263 = vshrl.u32 %v2190, 16
  %v2265 = vrot.slane %v2263, 4
  %v2266 = vshll.u32 %v2190, 16
  %v2268 = vrot.slane %v2266, 5
  %v2269 = vor.u32 %v2265, %v2268
  %v2270 = vrot.slane %v2269, 4
  %v2272 = vshll.u32 %v2191, 16
  %v2274 = vrot.slane %v2272, 5
  %v2275 = vsel %vm473, %v2270, %v2274
  %v2276 = vshrl.u32 %v2191, 16
  %v2278 = vrot.slane %v2276, 4
  %v2279 = vor.u32 %v2278, %v2274
  %v2280 = vrot.slane %v2279, 4
  %v2282 = vshll.u32 %v2192, 16
  %v2284 = vrot.slane %v2282, 5
  %v2285 = vsel %vm473, %v2280, %v2284
  %v2287 = vshrl.u32 %v2193, 16
  %v2289 = vrot.slane %v2287, 4
  %v2290 = vshll.u32 %v2193, 16
  %v2292 = vrot.slane %v2290, 5
  %v2293 = vor.u32 %v2289, %v2292
  %v2294 = vrot.slane %v2293, 4
  %v2296 = vshll.u32 %v2194, 16
  %v2298 = vrot.slane %v2296, 5
  %v2299 = vsel %vm473, %v2294, %v2298
  %v2300 = vshrl.u32 %v2194, 16
  %v2302 = vrot.slane %v2300, 4
  %v2303 = vor.u32 %v2302, %v2298
  %v2304 = vrot.slane %v2303, 4
  %v2306 = vshll.u32 %v2195, 16
  %v2308 = vrot.slane %v2306, 5
  %v2309 = vsel %vm473, %v2304, %v2308
  %v2311 = vshrl.u32 %v2196, 16
  %v2313 = vrot.slane %v2311, 4
  %v2314 = vshll.u32 %v2196, 16
  %v2316 = vrot.slane %v2314, 5
  %v2317 = vor.u32 %v2313, %v2316
  %v2318 = vrot.slane %v2317, 4
  %v2320 = vshll.u32 %v2197, 16
  %v2322 = vrot.slane %v2320, 5
  %v2323 = vsel %vm473, %v2318, %v2322
  %v2324 = vshrl.u32 %v2197, 16
  %v2326 = vrot.slane %v2324, 4
  %v2327 = vor.u32 %v2326, %v2322
  %v2328 = vrot.slane %v2327, 4
  %v2330 = vshll.u32 %v2198, 16
  %v2332 = vrot.slane %v2330, 5
  %v2333 = vsel %vm473, %v2328, %v2332
  %v2335 = vshrl.u32 %v2199, 16
  %v2337 = vrot.slane %v2335, 4
  %v2338 = vshll.u32 %v2199, 16
  %v2340 = vrot.slane %v2338, 5
  %v2341 = vor.u32 %v2337, %v2340
  %v2342 = vrot.slane %v2341, 4
  %v2344 = vshll.u32 %v2200, 16
  %v2346 = vrot.slane %v2344, 5
  %v2347 = vsel %vm473, %v2342, %v2346
  %v2348 = vshrl.u32 %v2200, 16
  %v2350 = vrot.slane %v2348, 4
  %v2351 = vor.u32 %v2350, %v2346
  %v2352 = vrot.slane %v2351, 4
  %v2354 = vshll.u32 %v2201, 16
  %v2356 = vrot.slane %v2354, 5
  %v2357 = vsel %vm473, %v2352, %v2356
  %v2359 = vshrl.u32 %v2202, 16
  %v2361 = vrot.slane %v2359, 4
  %v2362 = vshll.u32 %v2202, 16
  %v2364 = vrot.slane %v2362, 5
  %v2365 = vor.u32 %v2361, %v2364
  %v2366 = vrot.slane %v2365, 4
  %v2368 = vshll.u32 %v2203, 16
  %v2370 = vrot.slane %v2368, 5
  %v2371 = vsel %vm473, %v2366, %v2370
  %v2372 = vshrl.u32 %v2203, 16
  %v2374 = vrot.slane %v2372, 4
  %v2375 = vor.u32 %v2374, %v2370
  %v2376 = vrot.slane %v2375, 4
  %v2378 = vshll.u32 %v2204, 16
  %v2380 = vrot.slane %v2378, 5
  %v2381 = vsel %vm473, %v2376, %v2380
  %v2383 = vshrl.u32 %v2205, 16
  %v2385 = vrot.slane %v2383, 4
  %v2386 = vshll.u32 %v2205, 16
  %v2388 = vrot.slane %v2386, 5
  %v2389 = vor.u32 %v2385, %v2388
  %v2390 = vrot.slane %v2389, 4
  %v2392 = vshll.u32 %v2206, 16
  %v2394 = vrot.slane %v2392, 5
  %v2395 = vsel %vm473, %v2390, %v2394
  %v2396 = vshrl.u32 %v2206, 16
  %v2398 = vrot.slane %v2396, 4
  %v2399 = vor.u32 %v2398, %v2394
  %v2400 = vrot.slane %v2399, 4
  %v2402 = vshll.u32 %v2207, 16
  %v2404 = vrot.slane %v2402, 5
  %v2405 = vsel %vm473, %v2400, %v2404
  %v2407 = vshrl.u32 %v2208, 16
  %v2409 = vrot.slane %v2407, 4
  %v2410 = vshll.u32 %v2208, 16
  %v2412 = vrot.slane %v2410, 5
  %v2413 = vor.u32 %v2409, %v2412
  %v2414 = vrot.slane %v2413, 4
  %v2416 = vshll.u32 %v2209, 16
  %v2418 = vrot.slane %v2416, 5
  %v2419 = vsel %vm473, %v2414, %v2418
  %v2420 = vshrl.u32 %v2209, 16
  %v2422 = vrot.slane %v2420, 4
  %v2423 = vor.u32 %v2422, %v2418
  %v2424 = vrot.slane %v2423, 4
  %v2426 = vshll.u32 %v2210, 16
  %v2428 = vrot.slane %v2426, 5
  %v2429 = vsel %vm473, %v2424, %v2428
  %v2431 = vshrl.u32 %v2211, 16
  %v2433 = vrot.slane %v2431, 4
  %v2434 = vshll.u32 %v2211, 16
  %v2436 = vrot.slane %v2434, 5
  %v2437 = vor.u32 %v2433, %v2436
  %v2438 = vrot.slane %v2437, 4
  %v2440 = vshll.u32 %v2212, 16
  %v2442 = vrot.slane %v2440, 5
  %v2443 = vsel %vm473, %v2438, %v2442
  %v2444 = vshrl.u32 %v2212, 16
  %v2446 = vrot.slane %v2444, 4
  %v2447 = vor.u32 %v2446, %v2442
  %v2448 = vrot.slane %v2447, 4
  %v2450 = vshll.u32 %v2213, 16
  %v2452 = vrot.slane %v2450, 5
  %v2453 = vsel %vm473, %v2448, %v2452
  %v2454 = vld [vmem:[%s714] sm:$0xf]
  %v2455 = vunpack.c.l.b16 %v2227
  %v2456 = vunpack.c.l.b16 %v2237
  %v2457 = vunpack.c.l.b16 %v2251
  %v2458 = vunpack.c.l.b16 %v2261
  %v2459 = vunpack.c.l.b16 %v2275
  %v2460 = vunpack.c.l.b16 %v2285
  %v2461 = vunpack.c.l.b16 %v2299
  %v2462 = vunpack.c.l.b16 %v2309
  %v2463 = vunpack.c.l.b16 %v2323
  %v2464 = vunpack.c.l.b16 %v2333
  %v2465 = vunpack.c.l.b16 %v2347
  %v2466 = vunpack.c.l.b16 %v2357
  %v2467 = vunpack.c.l.b16 %v2371
  %v2468 = vunpack.c.l.b16 %v2381
  %v2469 = vunpack.c.l.b16 %v2395
  %v2470 = vunpack.c.l.b16 %v2405
  %v2471 = vpack.c.b16 %v2456, %v2455
  %v2472 = vpack.c.b16 %v2458, %v2457
  %v2473 = vpack.c.b16 %v2460, %v2459
  %v2474 = vpack.c.b16 %v2462, %v2461
  %v2475 = vpack.c.b16 %v2464, %v2463
  %v2476 = vpack.c.b16 %v2466, %v2465
  %v2477 = vpack.c.b16 %v2468, %v2467
  %v2478 = vpack.c.b16 %v2470, %v2469
  %v2480 = vsel %vm81, %v2471, 0
  %v2483 = vsel %vm81, %v2472, 0
  %v2486 = vsel %vm81, %v2473, 0
  %v2489 = vsel %vm81, %v2474, 0
  %v2492 = vsel %vm81, %v2475, 0
  %v2495 = vsel %vm81, %v2476, 0
  %v2498 = vsel %vm81, %v2477, 0
  %v2501 = vsel %vm81, %v2478, 0
  %v2504 = vsel %vm106, %v2454, 0
  %2506 = vmatprep.subr.bf16.mxu0 0
  %2507 = vmatpush1.bf16.msra.mxu0 %v2504
  %2508 = vmatprep.subr.bf16.mxu0 0
  %2509 = vmatpush1.bf16.msra.mxu0 0
  %2510 = vmatprep.subr.bf16.mxu0 0
  %2511 = vmatpush1.bf16.msra.mxu0 0
  %2512 = vmatprep.subr.bf16.mxu0 0
  %2513 = vmatpush1.bf16.msra.mxu0 0
  %2514 = vmatprep.subr.bf16.mxu0 0
  %2515 = vmatpush1.bf16.msra.mxu0 0
  %2516 = vmatprep.subr.bf16.mxu0 0
  %2517 = vmatpush1.bf16.msra.mxu0 0
  %2518 = vmatprep.subr.bf16.mxu0 0
  %2519 = vmatpush1.bf16.msra.mxu0 0
  %2520 = vmatprep.subr.bf16.mxu0 0
  %2521 = vmatpush1.bf16.msra.mxu0 0
  %2522 = vmatprep.subr.bf16.mxu0 0
  %2523 = vmatpush1.bf16.msra.mxu0 0
  %2524 = vmatprep.subr.bf16.mxu0 0
  %2525 = vmatpush1.bf16.msra.mxu0 0
  %2526 = vmatprep.subr.bf16.mxu0 0
  %2527 = vmatpush1.bf16.msra.mxu0 0
  %2528 = vmatprep.subr.bf16.mxu0 0
  %2529 = vmatpush1.bf16.msra.mxu0 0
  %2530 = vmatprep.subr.bf16.mxu0 0
  %2531 = vmatpush1.bf16.msra.mxu0 0
  %2532 = vmatprep.subr.bf16.mxu0 0
  %2533 = vmatpush1.bf16.msra.mxu0 0
  %2534 = vmatprep.subr.bf16.mxu0 0
  %2535 = vmatpush1.bf16.msra.mxu0 0
  %2536 = vmatprep.subr.bf16.mxu0 0
  %2537 = vmatpush1.bf16.msra.mxu0 0
  %2538 = vmatprep.mubr.bf16.mxu0 0
  %2539 = vmatmul.mubr.bf16.gmra.mrb[0].mxu0 %v2480
  %v2540 = vpop.f32.mrb[0].mxu0
  %v2541 = vadd.f32 0.0, %v2540
  %v2542 = vpop.f32.mrb[0].mxu0
  %v2543 = vpop.f32.mrb[0].mxu0
  %v2544 = vadd.f32 0.0, %v2543
  %v2545 = vpop.f32.mrb[0].mxu0
  %2546 = vmatprep.mubr.bf16.mxu0 0
  %2547 = vmatmul.mubr.bf16.gmra.mrb[0].mxu0 %v2483
  %v2548 = vpop.f32.mrb[0].mxu0
  %v2549 = vadd.f32 0.0, %v2548
  %v2550 = vpop.f32.mrb[0].mxu0
  %v2551 = vpop.f32.mrb[0].mxu0
  %v2552 = vadd.f32 0.0, %v2551
  %v2553 = vpop.f32.mrb[0].mxu0
  %2554 = vmatprep.mubr.bf16.mxu0 0
  %2555 = vmatmul.mubr.bf16.gmra.mrb[0].mxu0 %v2486
  %v2556 = vpop.f32.mrb[0].mxu0
  %v2557 = vadd.f32 0.0, %v2556
  %v2558 = vpop.f32.mrb[0].mxu0
  %v2559 = vpop.f32.mrb[0].mxu0
  %v2560 = vadd.f32 0.0, %v2559
  %v2561 = vpop.f32.mrb[0].mxu0
  %2562 = vmatprep.mubr.bf16.mxu0 0
  %2563 = vmatmul.mubr.bf16.gmra.mrb[0].mxu0 %v2489
  %v2564 = vpop.f32.mrb[0].mxu0
  %v2565 = vadd.f32 0.0, %v2564
  %v2566 = vpop.f32.mrb[0].mxu0
  %v2567 = vpop.f32.mrb[0].mxu0
  %v2568 = vadd.f32 0.0, %v2567
  %v2569 = vpop.f32.mrb[0].mxu0
  %2570 = vmatprep.mubr.bf16.mxu0 0
  %2571 = vmatmul.mubr.bf16.gmra.mrb[0].mxu0 %v2492
  %v2572 = vpop.f32.mrb[0].mxu0
  %v2573 = vadd.f32 0.0, %v2572
  %v2574 = vpop.f32.mrb[0].mxu0
  %v2575 = vpop.f32.mrb[0].mxu0
  %v2576 = vadd.f32 0.0, %v2575
  %v2577 = vpop.f32.mrb[0].mxu0
  %2578 = vmatprep.mubr.bf16.mxu0 0
  %2579 = vmatmul.mubr.bf16.gmra.mrb[0].mxu0 %v2495
  %v2580 = vpop.f32.mrb[0].mxu0
  %v2581 = vadd.f32 0.0, %v2580
  %v2582 = vpop.f32.mrb[0].mxu0
  %v2583 = vpop.f32.mrb[0].mxu0
  %v2584 = vadd.f32 0.0, %v2583
  %v2585 = vpop.f32.mrb[0].mxu0
  %2586 = vmatprep.mubr.bf16.mxu0 0
  %2587 = vmatmul.mubr.bf16.gmra.mrb[0].mxu0 %v2498
  %v2588 = vpop.f32.mrb[0].mxu0
  %v2589 = vadd.f32 0.0, %v2588
  %v2590 = vpop.f32.mrb[0].mxu0
  %v2591 = vpop.f32.mrb[0].mxu0
  %v2592 = vadd.f32 0.0, %v2591
  %v2593 = vpop.f32.mrb[0].mxu0
  %2594 = vmatprep.mubr.bf16.mxu0 0
  %2595 = vmatmul.mubr.bf16.gmra.mrb[0].mxu0 %v2501
  %v2596 = vpop.f32.mrb[0].mxu0
  %v2597 = vadd.f32 0.0, %v2596
  %v2598 = vpop.f32.mrb[0].mxu0
  %v2599 = vpop.f32.mrb[0].mxu0
  %v2600 = vadd.f32 0.0, %v2599
  %v2601 = vpop.f32.mrb[0].mxu0
  %2602 = vdwg.mxu0
  %v2603 = vadd.f32 %v2168, %v2541
  %v2604 = vadd.f32 %v2169, %v2544
  %v2605 = vadd.f32 %v2170, %v2549
  %v2606 = vadd.f32 %v2171, %v2552
  %v2607 = vadd.f32 %v2172, %v2557
  %v2608 = vadd.f32 %v2173, %v2560
  %v2609 = vadd.f32 %v2174, %v2565
  %v2610 = vadd.f32 %v2175, %v2568
  %v2611 = vadd.f32 %v2176, %v2573
  %v2612 = vadd.f32 %v2177, %v2576
  %v2613 = vadd.f32 %v2178, %v2581
  %v2614 = vadd.f32 %v2179, %v2584
  %v2615 = vadd.f32 %v2180, %v2589
  %v2616 = vadd.f32 %v2181, %v2592
  %v2617 = vadd.f32 %v2182, %v2597
  %v2618 = vadd.f32 %v2183, %v2600
  %v2619 = vld [vmem:[%s880] sm:$0xf]
  %v2620 = vunpack.c.l.b16 %v2419
  %v2621 = vunpack.c.l.b16 %v2429
  %v2622 = vpack.c.b16 %v2621, %v2620
  %v2624 = vsel %vm81, %v2622, 0
  %v2627 = vsel %vm106, %v2619, 0
  %2629 = vmatprep.subr.bf16.mxu0 0
  %2630 = vmatpush1.bf16.msra.mxu0 %v2627
  %2631 = vmatprep.subr.bf16.mxu0 0
  %2632 = vmatpush1.bf16.msra.mxu0 0
  %2633 = vmatprep.subr.bf16.mxu0 0
  %2634 = vmatpush1.bf16.msra.mxu0 0
  %2635 = vmatprep.subr.bf16.mxu0 0
  %2636 = vmatpush1.bf16.msra.mxu0 0
  %2637 = vmatprep.subr.bf16.mxu0 0
  %2638 = vmatpush1.bf16.msra.mxu0 0
  %2639 = vmatprep.subr.bf16.mxu0 0
  %2640 = vmatpush1.bf16.msra.mxu0 0
  %2641 = vmatprep.subr.bf16.mxu0 0
  %2642 = vmatpush1.bf16.msra.mxu0 0
  %2643 = vmatprep.subr.bf16.mxu0 0
  %2644 = vmatpush1.bf16.msra.mxu0 0
  %2645 = vmatprep.subr.bf16.mxu0 0
  %2646 = vmatpush1.bf16.msra.mxu0 0
  %2647 = vmatprep.subr.bf16.mxu0 0
  %2648 = vmatpush1.bf16.msra.mxu0 0
  %2649 = vmatprep.subr.bf16.mxu0 0
  %2650 = vmatpush1.bf16.msra.mxu0 0
  %2651 = vmatprep.subr.bf16.mxu0 0
  %2652 = vmatpush1.bf16.msra.mxu0 0
  %2653 = vmatprep.subr.bf16.mxu0 0
  %2654 = vmatpush1.bf16.msra.mxu0 0
  %2655 = vmatprep.subr.bf16.mxu0 0
  %2656 = vmatpush1.bf16.msra.mxu0 0
  %2657 = vmatprep.subr.bf16.mxu0 0
  %2658 = vmatpush1.bf16.msra.mxu0 0
  %2659 = vmatprep.subr.bf16.mxu0 0
  %2660 = vmatpush1.bf16.msra.mxu0 0
  %2661 = vmatprep.mubr.bf16.mxu0 0
  %2662 = vmatmul.mubr.bf16.gmra.mrb[0].mxu0 %v2483
  %v2663 = vpop.f32.mrb[0].mxu0
  %v2664 = vadd.f32 0.0, %v2663
  %v2665 = vpop.f32.mrb[0].mxu0
  %v2666 = vpop.f32.mrb[0].mxu0
  %v2667 = vadd.f32 0.0, %v2666
  %v2668 = vpop.f32.mrb[0].mxu0
  %2669 = vmatprep.mubr.bf16.mxu0 0
  %2670 = vmatmul.mubr.bf16.gmra.mrb[0].mxu0 %v2486
  %v2671 = vpop.f32.mrb[0].mxu0
  %v2672 = vadd.f32 0.0, %v2671
  %v2673 = vpop.f32.mrb[0].mxu0
  %v2674 = vpop.f32.mrb[0].mxu0
  %v2675 = vadd.f32 0.0, %v2674
  %v2676 = vpop.f32.mrb[0].mxu0
  %2677 = vmatprep.mubr.bf16.mxu0 0
  %2678 = vmatmul.mubr.bf16.gmra.mrb[0].mxu0 %v2489
  %v2679 = vpop.f32.mrb[0].mxu0
  %v2680 = vadd.f32 0.0, %v2679
  %v2681 = vpop.f32.mrb[0].mxu0
  %v2682 = vpop.f32.mrb[0].mxu0
  %v2683 = vadd.f32 0.0, %v2682
  %v2684 = vpop.f32.mrb[0].mxu0
  %2685 = vmatprep.mubr.bf16.mxu0 0
  %2686 = vmatmul.mubr.bf16.gmra.mrb[0].mxu0 %v2492
  %v2687 = vpop.f32.mrb[0].mxu0
  %v2688 = vadd.f32 0.0, %v2687
  %v2689 = vpop.f32.mrb[0].mxu0
  %v2690 = vpop.f32.mrb[0].mxu0
  %v2691 = vadd.f32 0.0, %v2690
  %v2692 = vpop.f32.mrb[0].mxu0
  %2693 = vmatprep.mubr.bf16.mxu0 0
  %2694 = vmatmul.mubr.bf16.gmra.mrb[0].mxu0 %v2495
  %v2695 = vpop.f32.mrb[0].mxu0
  %v2696 = vadd.f32 0.0, %v2695
  %v2697 = vpop.f32.mrb[0].mxu0
  %v2698 = vpop.f32.mrb[0].mxu0
  %v2699 = vadd.f32 0.0, %v2698
  %v2700 = vpop.f32.mrb[0].mxu0
  %2701 = vmatprep.mubr.bf16.mxu0 0
  %2702 = vmatmul.mubr.bf16.gmra.mrb[0].mxu0 %v2498
  %v2703 = vpop.f32.mrb[0].mxu0
  %v2704 = vadd.f32 0.0, %v2703
  %v2705 = vpop.f32.mrb[0].mxu0
  %v2706 = vpop.f32.mrb[0].mxu0
  %v2707 = vadd.f32 0.0, %v2706
  %v2708 = vpop.f32.mrb[0].mxu0
  %2709 = vmatprep.mubr.bf16.mxu0 0
  %2710 = vmatmul.mubr.bf16.gmra.mrb[0].mxu0 %v2501
  %v2711 = vpop.f32.mrb[0].mxu0
  %v2712 = vadd.f32 0.0, %v2711
  %v2713 = vpop.f32.mrb[0].mxu0
  %v2714 = vpop.f32.mrb[0].mxu0
  %v2715 = vadd.f32 0.0, %v2714
  %v2716 = vpop.f32.mrb[0].mxu0
  %2717 = vmatprep.mubr.bf16.mxu0 0
  %2718 = vmatmul.mubr.bf16.gmra.mrb[0].mxu0 %v2624
  %v2719 = vpop.f32.mrb[0].mxu0
  %v2720 = vadd.f32 0.0, %v2719
  %v2721 = vpop.f32.mrb[0].mxu0
  %v2722 = vpop.f32.mrb[0].mxu0
  %v2723 = vadd.f32 0.0, %v2722
  %v2724 = vpop.f32.mrb[0].mxu0
  %2725 = vdwg.mxu0
  %v2726 = vadd.f32 %v2603, %v2664
  %v2727 = vadd.f32 %v2604, %v2667
  %v2728 = vadd.f32 %v2605, %v2672
  %v2729 = vadd.f32 %v2606, %v2675
  %v2730 = vadd.f32 %v2607, %v2680
  %v2731 = vadd.f32 %v2608, %v2683
  %v2732 = vadd.f32 %v2609, %v2688
  %v2733 = vadd.f32 %v2610, %v2691
  %v2734 = vadd.f32 %v2611, %v2696
  %v2735 = vadd.f32 %v2612, %v2699
  %v2736 = vadd.f32 %v2613, %v2704
  %v2737 = vadd.f32 %v2614, %v2707
  %v2738 = vadd.f32 %v2615, %v2712
  %v2739 = vadd.f32 %v2616, %v2715
  %v2740 = vadd.f32 %v2617, %v2720
  %v2741 = vadd.f32 %v2618, %v2723
  %v2742 = vld [vmem:[%s1004] sm:$0xf]
  %v2743 = vunpack.c.l.b16 %v2443
  %v2744 = vunpack.c.l.b16 %v2453
  %v2745 = vpack.c.b16 %v2744, %v2743
  %v2747 = vsel %vm81, %v2745, 0
  %v2750 = vsel %vm106, %v2742, 0
  %2752 = vmatprep.subr.bf16.mxu0 0
  %2753 = vmatpush1.bf16.msra.mxu0 %v2750
  %2754 = vmatprep.subr.bf16.mxu0 0
  %2755 = vmatpush1.bf16.msra.mxu0 0
  %2756 = vmatprep.subr.bf16.mxu0 0
  %2757 = vmatpush1.bf16.msra.mxu0 0
  %2758 = vmatprep.subr.bf16.mxu0 0
  %2759 = vmatpush1.bf16.msra.mxu0 0
  %2760 = vmatprep.subr.bf16.mxu0 0
  %2761 = vmatpush1.bf16.msra.mxu0 0
  %2762 = vmatprep.subr.bf16.mxu0 0
  %2763 = vmatpush1.bf16.msra.mxu0 0
  %2764 = vmatprep.subr.bf16.mxu0 0
  %2765 = vmatpush1.bf16.msra.mxu0 0
  %2766 = vmatprep.subr.bf16.mxu0 0
  %2767 = vmatpush1.bf16.msra.mxu0 0
  %2768 = vmatprep.subr.bf16.mxu0 0
  %2769 = vmatpush1.bf16.msra.mxu0 0
  %2770 = vmatprep.subr.bf16.mxu0 0
  %2771 = vmatpush1.bf16.msra.mxu0 0
  %2772 = vmatprep.subr.bf16.mxu0 0
  %2773 = vmatpush1.bf16.msra.mxu0 0
  %2774 = vmatprep.subr.bf16.mxu0 0
  %2775 = vmatpush1.bf16.msra.mxu0 0
  %2776 = vmatprep.subr.bf16.mxu0 0
  %2777 = vmatpush1.bf16.msra.mxu0 0
  %2778 = vmatprep.subr.bf16.mxu0 0
  %2779 = vmatpush1.bf16.msra.mxu0 0
  %2780 = vmatprep.subr.bf16.mxu0 0
  %2781 = vmatpush1.bf16.msra.mxu0 0
  %2782 = vmatprep.subr.bf16.mxu0 0
  %2783 = vmatpush1.bf16.msra.mxu0 0
  %2784 = vmatprep.mubr.bf16.mxu0 0
  %2785 = vmatmul.mubr.bf16.gmra.mrb[0].mxu0 %v2486
  %v2786 = vpop.f32.mrb[0].mxu0
  %v2787 = vadd.f32 0.0, %v2786
  %v2788 = vpop.f32.mrb[0].mxu0
  %v2789 = vpop.f32.mrb[0].mxu0
  %v2790 = vadd.f32 0.0, %v2789
  %v2791 = vpop.f32.mrb[0].mxu0
  %2792 = vmatprep.mubr.bf16.mxu0 0
  %2793 = vmatmul.mubr.bf16.gmra.mrb[0].mxu0 %v2489
  %v2794 = vpop.f32.mrb[0].mxu0
  %v2795 = vadd.f32 0.0, %v2794
  %v2796 = vpop.f32.mrb[0].mxu0
  %v2797 = vpop.f32.mrb[0].mxu0
  %v2798 = vadd.f32 0.0, %v2797
  %v2799 = vpop.f32.mrb[0].mxu0
  %2800 = vmatprep.mubr.bf16.mxu0 0
  %2801 = vmatmul.mubr.bf16.gmra.mrb[0].mxu0 %v2492
  %v2802 = vpop.f32.mrb[0].mxu0
  %v2803 = vadd.f32 0.0, %v2802
  %v2804 = vpop.f32.mrb[0].mxu0
  %v2805 = vpop.f32.mrb[0].mxu0
  %v2806 = vadd.f32 0.0, %v2805
  %v2807 = vpop.f32.mrb[0].mxu0
  %2808 = vmatprep.mubr.bf16.mxu0 0
  %2809 = vmatmul.mubr.bf16.gmra.mrb[0].mxu0 %v2495
  %v2810 = vpop.f32.mrb[0].mxu0
  %v2811 = vadd.f32 0.0, %v2810
  %v2812 = vpop.f32.mrb[0].mxu0
  %v2813 = vpop.f32.mrb[0].mxu0
  %v2814 = vadd.f32 0.0, %v2813
  %v2815 = vpop.f32.mrb[0].mxu0
  %2816 = vmatprep.mubr.bf16.mxu0 0
  %2817 = vmatmul.mubr.bf16.gmra.mrb[0].mxu0 %v2498
  %v2818 = vpop.f32.mrb[0].mxu0
  %v2819 = vadd.f32 0.0, %v2818
  %v2820 = vpop.f32.mrb[0].mxu0
  %v2821 = vpop.f32.mrb[0].mxu0
  %v2822 = vadd.f32 0.0, %v2821
  %v2823 = vpop.f32.mrb[0].mxu0
  %2824 = vmatprep.mubr.bf16.mxu0 0
  %2825 = vmatmul.mubr.bf16.gmra.mrb[0].mxu0 %v2501
  %v2826 = vpop.f32.mrb[0].mxu0
  %v2827 = vadd.f32 0.0, %v2826
  %v2828 = vpop.f32.mrb[0].mxu0
  %v2829 = vpop.f32.mrb[0].mxu0
  %v2830 = vadd.f32 0.0, %v2829
  %v2831 = vpop.f32.mrb[0].mxu0
  %2832 = vmatprep.mubr.bf16.mxu0 0
  %2833 = vmatmul.mubr.bf16.gmra.mrb[0].mxu0 %v2624
  %v2834 = vpop.f32.mrb[0].mxu0
  %v2835 = vadd.f32 0.0, %v2834
  %v2836 = vpop.f32.mrb[0].mxu0
  %v2837 = vpop.f32.mrb[0].mxu0
  %v2838 = vadd.f32 0.0, %v2837
  %v2839 = vpop.f32.mrb[0].mxu0
  %2840 = vmatprep.mubr.bf16.mxu0 0
  %2841 = vmatmul.mubr.bf16.gmra.mrb[0].mxu0 %v2747
  %v2842 = vpop.f32.mrb[0].mxu0
  %v2843 = vadd.f32 0.0, %v2842
  %v2844 = vpop.f32.mrb[0].mxu0
  %v2845 = vpop.f32.mrb[0].mxu0
  %v2846 = vadd.f32 0.0, %v2845
  %v2847 = vpop.f32.mrb[0].mxu0
  %2848 = vdwg.mxu0
  %v2849 = vadd.f32 %v2726, %v2787
  %v2850 = vadd.f32 %v2727, %v2790
  %v2851 = vadd.f32 %v2728, %v2795
  %v2852 = vadd.f32 %v2729, %v2798
  %v2853 = vadd.f32 %v2730, %v2803
  %v2854 = vadd.f32 %v2731, %v2806
  %v2855 = vadd.f32 %v2732, %v2811
  %v2856 = vadd.f32 %v2733, %v2814
  %v2857 = vadd.f32 %v2734, %v2819
  %v2858 = vadd.f32 %v2735, %v2822
  %v2859 = vadd.f32 %v2736, %v2827
  %v2860 = vadd.f32 %v2737, %v2830
  %v2861 = vadd.f32 %v2738, %v2835
  %v2862 = vadd.f32 %v2739, %v2838
  %v2863 = vadd.f32 %v2740, %v2843
  %v2864 = vadd.f32 %v2741, %v2846
  %v2865 = vld [vmem:[%s1764] sm:$0xe]
  %v2866 = vld [vmem:[%s1764 + $0xc] sm:$0xe]
  %v2867 = vld [vmem:[%s1764 + $0x18] sm:$0xe]
  %v2868 = vld [vmem:[%s1764 + $0x24] sm:$0xe]
  %v2869 = vld [vmem:[%s1764 + $0x30] sm:$0xe]
  %v2870 = vld [vmem:[%s1764 + $0x3c] sm:$0xe]
  %v2871 = vld [vmem:[%s1764 + $0x48] sm:$0xe]
  %v2872 = vld [vmem:[%s1764 + $0x54] sm:$0xe]
  %v2873 = vld [vmem:[%s1764 + $0x60] sm:$0xe]
  %v2874 = vld [vmem:[%s1764 + $0x6c] sm:$0xe]
  %v2905 = vrot.slane %v2865, 5
  %v2906 = vrot.slane %v2905, 4
  %v2907 = vrot.slane %v2185, 5
  %v2908 = vsel %vm1170, %v2906, %v2907
  %v2909 = vrot.slane %v2907, 4
  %v2910 = vrot.slane %v2186, 5
  %v2911 = vsel %vm1170, %v2909, %v2910
  %v2912 = vrot.slane %v2866, 5
  %v2913 = vrot.slane %v2912, 4
  %v2914 = vrot.slane %v2188, 5
  %v2915 = vsel %vm1170, %v2913, %v2914
  %v2916 = vrot.slane %v2914, 4
  %v2917 = vrot.slane %v2189, 5
  %v2918 = vsel %vm1170, %v2916, %v2917
  %v2919 = vrot.slane %v2867, 5
  %v2920 = vrot.slane %v2919, 4
  %v2921 = vrot.slane %v2191, 5
  %v2922 = vsel %vm1170, %v2920, %v2921
  %v2923 = vrot.slane %v2921, 4
  %v2924 = vrot.slane %v2192, 5
  %v2925 = vsel %vm1170, %v2923, %v2924
  %v2926 = vrot.slane %v2868, 5
  %v2927 = vrot.slane %v2926, 4
  %v2928 = vrot.slane %v2194, 5
  %v2929 = vsel %vm1170, %v2927, %v2928
  %v2930 = vrot.slane %v2928, 4
  %v2931 = vrot.slane %v2195, 5
  %v2932 = vsel %vm1170, %v2930, %v2931
  %v2933 = vrot.slane %v2869, 5
  %v2934 = vrot.slane %v2933, 4
  %v2935 = vrot.slane %v2197, 5
  %v2936 = vsel %vm1170, %v2934, %v2935
  %v2937 = vrot.slane %v2935, 4
  %v2938 = vrot.slane %v2198, 5
  %v2939 = vsel %vm1170, %v2937, %v2938
  %v2940 = vrot.slane %v2870, 5
  %v2941 = vrot.slane %v2940, 4
  %v2942 = vrot.slane %v2200, 5
  %v2943 = vsel %vm1170, %v2941, %v2942
  %v2944 = vrot.slane %v2942, 4
  %v2945 = vrot.slane %v2201, 5
  %v2946 = vsel %vm1170, %v2944, %v2945
  %v2947 = vrot.slane %v2871, 5
  %v2948 = vrot.slane %v2947, 4
  %v2949 = vrot.slane %v2203, 5
  %v2950 = vsel %vm1170, %v2948, %v2949
  %v2951 = vrot.slane %v2949, 4
  %v2952 = vrot.slane %v2204, 5
  %v2953 = vsel %vm1170, %v2951, %v2952
  %v2954 = vrot.slane %v2872, 5
  %v2955 = vrot.slane %v2954, 4
  %v2956 = vrot.slane %v2206, 5
  %v2957 = vsel %vm1170, %v2955, %v2956
  %v2958 = vrot.slane %v2956, 4
  %v2959 = vrot.slane %v2207, 5
  %v2960 = vsel %vm1170, %v2958, %v2959
  %v2961 = vrot.slane %v2873, 5
  %v2962 = vrot.slane %v2961, 4
  %v2963 = vrot.slane %v2209, 5
  %v2964 = vsel %vm1170, %v2962, %v2963
  %v2965 = vrot.slane %v2963, 4
  %v2966 = vrot.slane %v2210, 5
  %v2967 = vsel %vm1170, %v2965, %v2966
  %v2968 = vrot.slane %v2874, 5
  %v2969 = vrot.slane %v2968, 4
  %v2970 = vrot.slane %v2212, 5
  %v2971 = vsel %vm1170, %v2969, %v2970
  %v2972 = vrot.slane %v2970, 4
  %v2973 = vrot.slane %v2213, 5
  %v2974 = vsel %vm1170, %v2972, %v2973
  %v2975 = vld [vmem:[%s1241] sm:$0xf]
  %v2976 = vunpack.c.l.b16 %v2908
  %v2977 = vunpack.c.l.b16 %v2911
  %v2978 = vunpack.c.l.b16 %v2915
  %v2979 = vunpack.c.l.b16 %v2918
  %v2980 = vunpack.c.l.b16 %v2922
  %v2981 = vunpack.c.l.b16 %v2925
  %v2982 = vunpack.c.l.b16 %v2929
  %v2983 = vunpack.c.l.b16 %v2932
  %v2984 = vunpack.c.l.b16 %v2936
  %v2985 = vunpack.c.l.b16 %v2939
  %v2986 = vunpack.c.l.b16 %v2943
  %v2987 = vunpack.c.l.b16 %v2946
  %v2988 = vunpack.c.l.b16 %v2950
  %v2989 = vunpack.c.l.b16 %v2953
  %v2990 = vunpack.c.l.b16 %v2957
  %v2991 = vunpack.c.l.b16 %v2960
  %v2992 = vpack.c.b16 %v2977, %v2976
  %v2993 = vpack.c.b16 %v2979, %v2978
  %v2994 = vpack.c.b16 %v2981, %v2980
  %v2995 = vpack.c.b16 %v2983, %v2982
  %v2996 = vpack.c.b16 %v2985, %v2984
  %v2997 = vpack.c.b16 %v2987, %v2986
  %v2998 = vpack.c.b16 %v2989, %v2988
  %v2999 = vpack.c.b16 %v2991, %v2990
  %v3001 = vsel %vm81, %v2992, 0
  %v3004 = vsel %vm81, %v2993, 0
  %v3007 = vsel %vm81, %v2994, 0
  %v3010 = vsel %vm81, %v2995, 0
  %v3013 = vsel %vm81, %v2996, 0
  %v3016 = vsel %vm81, %v2997, 0
  %v3019 = vsel %vm81, %v2998, 0
  %v3022 = vsel %vm81, %v2999, 0
  %v3025 = vsel %vm106, %v2975, 0
  %3027 = vmatprep.subr.bf16.mxu0 0
  %3028 = vmatpush1.bf16.msra.mxu0 %v3025
  %3029 = vmatprep.subr.bf16.mxu0 0
  %3030 = vmatpush1.bf16.msra.mxu0 0
  %3031 = vmatprep.subr.bf16.mxu0 0
  %3032 = vmatpush1.bf16.msra.mxu0 0
  %3033 = vmatprep.subr.bf16.mxu0 0
  %3034 = vmatpush1.bf16.msra.mxu0 0
  %3035 = vmatprep.subr.bf16.mxu0 0
  %3036 = vmatpush1.bf16.msra.mxu0 0
  %3037 = vmatprep.subr.bf16.mxu0 0
  %3038 = vmatpush1.bf16.msra.mxu0 0
  %3039 = vmatprep.subr.bf16.mxu0 0
  %3040 = vmatpush1.bf16.msra.mxu0 0
  %3041 = vmatprep.subr.bf16.mxu0 0
  %3042 = vmatpush1.bf16.msra.mxu0 0
  %3043 = vmatprep.subr.bf16.mxu0 0
  %3044 = vmatpush1.bf16.msra.mxu0 0
  %3045 = vmatprep.subr.bf16.mxu0 0
  %3046 = vmatpush1.bf16.msra.mxu0 0
  %3047 = vmatprep.subr.bf16.mxu0 0
  %3048 = vmatpush1.bf16.msra.mxu0 0
  %3049 = vmatprep.subr.bf16.mxu0 0
  %3050 = vmatpush1.bf16.msra.mxu0 0
  %3051 = vmatprep.subr.bf16.mxu0 0
  %3052 = vmatpush1.bf16.msra.mxu0 0
  %3053 = vmatprep.subr.bf16.mxu0 0
  %3054 = vmatpush1.bf16.msra.mxu0 0
  %3055 = vmatprep.subr.bf16.mxu0 0
  %3056 = vmatpush1.bf16.msra.mxu0 0
  %3057 = vmatprep.subr.bf16.mxu0 0
  %3058 = vmatpush1.bf16.msra.mxu0 0
  %3059 = vmatprep.mubr.bf16.mxu0 0
  %3060 = vmatmul.mubr.bf16.gmra.mrb[0].mxu0 %v3001
  %v3061 = vpop.f32.mrb[0].mxu0
  %v3062 = vadd.f32 0.0, %v3061
  %v3063 = vpop.f32.mrb[0].mxu0
  %v3064 = vpop.f32.mrb[0].mxu0
  %v3065 = vadd.f32 0.0, %v3064
  %v3066 = vpop.f32.mrb[0].mxu0
  %3067 = vmatprep.mubr.bf16.mxu0 0
  %3068 = vmatmul.mubr.bf16.gmra.mrb[0].mxu0 %v3004
  %v3069 = vpop.f32.mrb[0].mxu0
  %v3070 = vadd.f32 0.0, %v3069
  %v3071 = vpop.f32.mrb[0].mxu0
  %v3072 = vpop.f32.mrb[0].mxu0
  %v3073 = vadd.f32 0.0, %v3072
  %v3074 = vpop.f32.mrb[0].mxu0
  %3075 = vmatprep.mubr.bf16.mxu0 0
  %3076 = vmatmul.mubr.bf16.gmra.mrb[0].mxu0 %v3007
  %v3077 = vpop.f32.mrb[0].mxu0
  %v3078 = vadd.f32 0.0, %v3077
  %v3079 = vpop.f32.mrb[0].mxu0
  %v3080 = vpop.f32.mrb[0].mxu0
  %v3081 = vadd.f32 0.0, %v3080
  %v3082 = vpop.f32.mrb[0].mxu0
  %3083 = vmatprep.mubr.bf16.mxu0 0
  %3084 = vmatmul.mubr.bf16.gmra.mrb[0].mxu0 %v3010
  %v3085 = vpop.f32.mrb[0].mxu0
  %v3086 = vadd.f32 0.0, %v3085
  %v3087 = vpop.f32.mrb[0].mxu0
  %v3088 = vpop.f32.mrb[0].mxu0
  %v3089 = vadd.f32 0.0, %v3088
  %v3090 = vpop.f32.mrb[0].mxu0
  %3091 = vmatprep.mubr.bf16.mxu0 0
  %3092 = vmatmul.mubr.bf16.gmra.mrb[0].mxu0 %v3013
  %v3093 = vpop.f32.mrb[0].mxu0
  %v3094 = vadd.f32 0.0, %v3093
  %v3095 = vpop.f32.mrb[0].mxu0
  %v3096 = vpop.f32.mrb[0].mxu0
  %v3097 = vadd.f32 0.0, %v3096
  %v3098 = vpop.f32.mrb[0].mxu0
  %3099 = vmatprep.mubr.bf16.mxu0 0
  %3100 = vmatmul.mubr.bf16.gmra.mrb[0].mxu0 %v3016
  %v3101 = vpop.f32.mrb[0].mxu0
  %v3102 = vadd.f32 0.0, %v3101
  %v3103 = vpop.f32.mrb[0].mxu0
  %v3104 = vpop.f32.mrb[0].mxu0
  %v3105 = vadd.f32 0.0, %v3104
  %v3106 = vpop.f32.mrb[0].mxu0
  %3107 = vmatprep.mubr.bf16.mxu0 0
  %3108 = vmatmul.mubr.bf16.gmra.mrb[0].mxu0 %v3019
  %v3109 = vpop.f32.mrb[0].mxu0
  %v3110 = vadd.f32 0.0, %v3109
  %v3111 = vpop.f32.mrb[0].mxu0
  %v3112 = vpop.f32.mrb[0].mxu0
  %v3113 = vadd.f32 0.0, %v3112
  %v3114 = vpop.f32.mrb[0].mxu0
  %3115 = vmatprep.mubr.bf16.mxu0 0
  %3116 = vmatmul.mubr.bf16.gmra.mrb[0].mxu0 %v3022
  %v3117 = vpop.f32.mrb[0].mxu0
  %v3118 = vadd.f32 0.0, %v3117
  %v3119 = vpop.f32.mrb[0].mxu0
  %v3120 = vpop.f32.mrb[0].mxu0
  %v3121 = vadd.f32 0.0, %v3120
  %v3122 = vpop.f32.mrb[0].mxu0
  %3123 = vdwg.mxu0
  %v3124 = vadd.f32 %v2849, %v3062
  %v3125 = vadd.f32 %v2850, %v3065
  %v3126 = vadd.f32 %v2851, %v3070
  %v3127 = vadd.f32 %v2852, %v3073
  %v3128 = vadd.f32 %v2853, %v3078
  %v3129 = vadd.f32 %v2854, %v3081
  %v3130 = vadd.f32 %v2855, %v3086
  %v3131 = vadd.f32 %v2856, %v3089
  %v3132 = vadd.f32 %v2857, %v3094
  %v3133 = vadd.f32 %v2858, %v3097
  %v3134 = vadd.f32 %v2859, %v3102
  %v3135 = vadd.f32 %v2860, %v3105
  %v3136 = vadd.f32 %v2861, %v3110
  %v3137 = vadd.f32 %v2862, %v3113
  %v3138 = vadd.f32 %v2863, %v3118
  %v3139 = vadd.f32 %v2864, %v3121
  %v3140 = vld [vmem:[%s1407] sm:$0xf]
  %v3141 = vunpack.c.l.b16 %v2964
  %v3142 = vunpack.c.l.b16 %v2967
  %v3143 = vpack.c.b16 %v3142, %v3141
  %v3145 = vsel %vm81, %v3143, 0
  %v3148 = vsel %vm106, %v3140, 0
  %3150 = vmatprep.subr.bf16.mxu0 0
  %3151 = vmatpush1.bf16.msra.mxu0 %v3148
  %3152 = vmatprep.subr.bf16.mxu0 0
  %3153 = vmatpush1.bf16.msra.mxu0 0
  %3154 = vmatprep.subr.bf16.mxu0 0
  %3155 = vmatpush1.bf16.msra.mxu0 0
  %3156 = vmatprep.subr.bf16.mxu0 0
  %3157 = vmatpush1.bf16.msra.mxu0 0
  %3158 = vmatprep.subr.bf16.mxu0 0
  %3159 = vmatpush1.bf16.msra.mxu0 0
  %3160 = vmatprep.subr.bf16.mxu0 0
  %3161 = vmatpush1.bf16.msra.mxu0 0
  %3162 = vmatprep.subr.bf16.mxu0 0
  %3163 = vmatpush1.bf16.msra.mxu0 0
  %3164 = vmatprep.subr.bf16.mxu0 0
  %3165 = vmatpush1.bf16.msra.mxu0 0
  %3166 = vmatprep.subr.bf16.mxu0 0
  %3167 = vmatpush1.bf16.msra.mxu0 0
  %3168 = vmatprep.subr.bf16.mxu0 0
  %3169 = vmatpush1.bf16.msra.mxu0 0
  %3170 = vmatprep.subr.bf16.mxu0 0
  %3171 = vmatpush1.bf16.msra.mxu0 0
  %3172 = vmatprep.subr.bf16.mxu0 0
  %3173 = vmatpush1.bf16.msra.mxu0 0
  %3174 = vmatprep.subr.bf16.mxu0 0
  %3175 = vmatpush1.bf16.msra.mxu0 0
  %3176 = vmatprep.subr.bf16.mxu0 0
  %3177 = vmatpush1.bf16.msra.mxu0 0
  %3178 = vmatprep.subr.bf16.mxu0 0
  %3179 = vmatpush1.bf16.msra.mxu0 0
  %3180 = vmatprep.subr.bf16.mxu0 0
  %3181 = vmatpush1.bf16.msra.mxu0 0
  %3182 = vmatprep.mubr.bf16.mxu0 0
  %3183 = vmatmul.mubr.bf16.gmra.mrb[0].mxu0 %v3004
  %v3184 = vpop.f32.mrb[0].mxu0
  %v3185 = vadd.f32 0.0, %v3184
  %v3186 = vpop.f32.mrb[0].mxu0
  %v3187 = vpop.f32.mrb[0].mxu0
  %v3188 = vadd.f32 0.0, %v3187
  %v3189 = vpop.f32.mrb[0].mxu0
  %3190 = vmatprep.mubr.bf16.mxu0 0
  %3191 = vmatmul.mubr.bf16.gmra.mrb[0].mxu0 %v3007
  %v3192 = vpop.f32.mrb[0].mxu0
  %v3193 = vadd.f32 0.0, %v3192
  %v3194 = vpop.f32.mrb[0].mxu0
  %v3195 = vpop.f32.mrb[0].mxu0
  %v3196 = vadd.f32 0.0, %v3195
  %v3197 = vpop.f32.mrb[0].mxu0
  %3198 = vmatprep.mubr.bf16.mxu0 0
  %3199 = vmatmul.mubr.bf16.gmra.mrb[0].mxu0 %v3010
  %v3200 = vpop.f32.mrb[0].mxu0
  %v3201 = vadd.f32 0.0, %v3200
  %v3202 = vpop.f32.mrb[0].mxu0
  %v3203 = vpop.f32.mrb[0].mxu0
  %v3204 = vadd.f32 0.0, %v3203
  %v3205 = vpop.f32.mrb[0].mxu0
  %3206 = vmatprep.mubr.bf16.mxu0 0
  %3207 = vmatmul.mubr.bf16.gmra.mrb[0].mxu0 %v3013
  %v3208 = vpop.f32.mrb[0].mxu0
  %v3209 = vadd.f32 0.0, %v3208
  %v3210 = vpop.f32.mrb[0].mxu0
  %v3211 = vpop.f32.mrb[0].mxu0
  %v3212 = vadd.f32 0.0, %v3211
  %v3213 = vpop.f32.mrb[0].mxu0
  %3214 = vmatprep.mubr.bf16.mxu0 0
  %3215 = vmatmul.mubr.bf16.gmra.mrb[0].mxu0 %v3016
  %v3216 = vpop.f32.mrb[0].mxu0
  %v3217 = vadd.f32 0.0, %v3216
  %v3218 = vpop.f32.mrb[0].mxu0
  %v3219 = vpop.f32.mrb[0].mxu0
  %v3220 = vadd.f32 0.0, %v3219
  %v3221 = vpop.f32.mrb[0].mxu0
  %3222 = vmatprep.mubr.bf16.mxu0 0
  %3223 = vmatmul.mubr.bf16.gmra.mrb[0].mxu0 %v3019
  %v3224 = vpop.f32.mrb[0].mxu0
  %v3225 = vadd.f32 0.0, %v3224
  %v3226 = vpop.f32.mrb[0].mxu0
  %v3227 = vpop.f32.mrb[0].mxu0
  %v3228 = vadd.f32 0.0, %v3227
  %v3229 = vpop.f32.mrb[0].mxu0
  %3230 = vmatprep.mubr.bf16.mxu0 0
  %3231 = vmatmul.mubr.bf16.gmra.mrb[0].mxu0 %v3022
  %v3232 = vpop.f32.mrb[0].mxu0
  %v3233 = vadd.f32 0.0, %v3232
  %v3234 = vpop.f32.mrb[0].mxu0
  %v3235 = vpop.f32.mrb[0].mxu0
  %v3236 = vadd.f32 0.0, %v3235
  %v3237 = vpop.f32.mrb[0].mxu0
  %3238 = vmatprep.mubr.bf16.mxu0 0
  %3239 = vmatmul.mubr.bf16.gmra.mrb[0].mxu0 %v3145
  %v3240 = vpop.f32.mrb[0].mxu0
  %v3241 = vadd.f32 0.0, %v3240
  %v3242 = vpop.f32.mrb[0].mxu0
  %v3243 = vpop.f32.mrb[0].mxu0
  %v3244 = vadd.f32 0.0, %v3243
  %v3245 = vpop.f32.mrb[0].mxu0
  %3246 = vdwg.mxu0
  %v3247 = vadd.f32 %v3124, %v3185
  %v3248 = vadd.f32 %v3125, %v3188
  %v3249 = vadd.f32 %v3126, %v3193
  %v3250 = vadd.f32 %v3127, %v3196
  %v3251 = vadd.f32 %v3128, %v3201
  %v3252 = vadd.f32 %v3129, %v3204
  %v3253 = vadd.f32 %v3130, %v3209
  %v3254 = vadd.f32 %v3131, %v3212
  %v3255 = vadd.f32 %v3132, %v3217
  %v3256 = vadd.f32 %v3133, %v3220
  %v3257 = vadd.f32 %v3134, %v3225
  %v3258 = vadd.f32 %v3135, %v3228
  %v3259 = vadd.f32 %v3136, %v3233
  %v3260 = vadd.f32 %v3137, %v3236
  %v3261 = vadd.f32 %v3138, %v3241
  %v3262 = vadd.f32 %v3139, %v3244
  %v3263 = vld [vmem:[%s1531] sm:$0xf]
  %v3264 = vunpack.c.l.b16 %v2971
  %v3265 = vunpack.c.l.b16 %v2974
  %v3266 = vpack.c.b16 %v3265, %v3264
  %v3268 = vsel %vm81, %v3266, 0
  %v3271 = vsel %vm106, %v3263, 0
  %3273 = vmatprep.subr.bf16.mxu0 0
  %3274 = vmatpush1.bf16.msra.mxu0 %v3271
  %3275 = vmatprep.subr.bf16.mxu0 0
  %3276 = vmatpush1.bf16.msra.mxu0 0
  %3277 = vmatprep.subr.bf16.mxu0 0
  %3278 = vmatpush1.bf16.msra.mxu0 0
  %3279 = vmatprep.subr.bf16.mxu0 0
  %3280 = vmatpush1.bf16.msra.mxu0 0
  %3281 = vmatprep.subr.bf16.mxu0 0
  %3282 = vmatpush1.bf16.msra.mxu0 0
  %3283 = vmatprep.subr.bf16.mxu0 0
  %3284 = vmatpush1.bf16.msra.mxu0 0
  %3285 = vmatprep.subr.bf16.mxu0 0
  %3286 = vmatpush1.bf16.msra.mxu0 0
  %3287 = vmatprep.subr.bf16.mxu0 0
  %3288 = vmatpush1.bf16.msra.mxu0 0
  %3289 = vmatprep.subr.bf16.mxu0 0
  %3290 = vmatpush1.bf16.msra.mxu0 0
  %3291 = vmatprep.subr.bf16.mxu0 0
  %3292 = vmatpush1.bf16.msra.mxu0 0
  %3293 = vmatprep.subr.bf16.mxu0 0
  %3294 = vmatpush1.bf16.msra.mxu0 0
  %3295 = vmatprep.subr.bf16.mxu0 0
  %3296 = vmatpush1.bf16.msra.mxu0 0
  %3297 = vmatprep.subr.bf16.mxu0 0
  %3298 = vmatpush1.bf16.msra.mxu0 0
  %3299 = vmatprep.subr.bf16.mxu0 0
  %3300 = vmatpush1.bf16.msra.mxu0 0
  %3301 = vmatprep.subr.bf16.mxu0 0
  %3302 = vmatpush1.bf16.msra.mxu0 0
  %3303 = vmatprep.subr.bf16.mxu0 0
  %3304 = vmatpush1.bf16.msra.mxu0 0
  %3305 = vmatprep.mubr.bf16.mxu0 0
  %3306 = vmatmul.mubr.bf16.gmra.mrb[0].mxu0 %v3007
  %v3307 = vpop.f32.mrb[0].mxu0
  %v3308 = vadd.f32 0.0, %v3307
  %v3309 = vpop.f32.mrb[0].mxu0
  %v3310 = vpop.f32.mrb[0].mxu0
  %v3311 = vadd.f32 0.0, %v3310
  %v3312 = vpop.f32.mrb[0].mxu0
  %3313 = vmatprep.mubr.bf16.mxu0 0
  %3314 = vmatmul.mubr.bf16.gmra.mrb[0].mxu0 %v3010
  %v3315 = vpop.f32.mrb[0].mxu0
  %v3316 = vadd.f32 0.0, %v3315
  %v3317 = vpop.f32.mrb[0].mxu0
  %v3318 = vpop.f32.mrb[0].mxu0
  %v3319 = vadd.f32 0.0, %v3318
  %v3320 = vpop.f32.mrb[0].mxu0
  %3321 = vmatprep.mubr.bf16.mxu0 0
  %3322 = vmatmul.mubr.bf16.gmra.mrb[0].mxu0 %v3013
  %v3323 = vpop.f32.mrb[0].mxu0
  %v3324 = vadd.f32 0.0, %v3323
  %v3325 = vpop.f32.mrb[0].mxu0
  %v3326 = vpop.f32.mrb[0].mxu0
  %v3327 = vadd.f32 0.0, %v3326
  %v3328 = vpop.f32.mrb[0].mxu0
  %3329 = vmatprep.mubr.bf16.mxu0 0
  %3330 = vmatmul.mubr.bf16.gmra.mrb[0].mxu0 %v3016
  %v3331 = vpop.f32.mrb[0].mxu0
  %v3332 = vadd.f32 0.0, %v3331
  %v3333 = vpop.f32.mrb[0].mxu0
  %v3334 = vpop.f32.mrb[0].mxu0
  %v3335 = vadd.f32 0.0, %v3334
  %v3336 = vpop.f32.mrb[0].mxu0
  %3337 = vmatprep.mubr.bf16.mxu0 0
  %3338 = vmatmul.mubr.bf16.gmra.mrb[0].mxu0 %v3019
  %v3339 = vpop.f32.mrb[0].mxu0
  %v3340 = vadd.f32 0.0, %v3339
  %v3341 = vpop.f32.mrb[0].mxu0
  %v3342 = vpop.f32.mrb[0].mxu0
  %v3343 = vadd.f32 0.0, %v3342
  %v3344 = vpop.f32.mrb[0].mxu0
  %3345 = vmatprep.mubr.bf16.mxu0 0
  %3346 = vmatmul.mubr.bf16.gmra.mrb[0].mxu0 %v3022
  %v3347 = vpop.f32.mrb[0].mxu0
  %v3348 = vadd.f32 0.0, %v3347
  %v3349 = vpop.f32.mrb[0].mxu0
  %v3350 = vpop.f32.mrb[0].mxu0
  %v3351 = vadd.f32 0.0, %v3350
  %v3352 = vpop.f32.mrb[0].mxu0
  %3353 = vmatprep.mubr.bf16.mxu0 0
  %3354 = vmatmul.mubr.bf16.gmra.mrb[0].mxu0 %v3145
  %v3355 = vpop.f32.mrb[0].mxu0
  %v3356 = vadd.f32 0.0, %v3355
  %v3357 = vpop.f32.mrb[0].mxu0
  %v3358 = vpop.f32.mrb[0].mxu0
  %v3359 = vadd.f32 0.0, %v3358
  %v3360 = vpop.f32.mrb[0].mxu0
  %3361 = vmatprep.mubr.bf16.mxu0 0
  %3362 = vmatmul.mubr.bf16.gmra.mrb[0].mxu0 %v3268
  %v3363 = vpop.f32.mrb[0].mxu0
  %v3364 = vadd.f32 0.0, %v3363
  %v3365 = vpop.f32.mrb[0].mxu0
  %v3366 = vpop.f32.mrb[0].mxu0
  %v3367 = vadd.f32 0.0, %v3366
  %v3368 = vpop.f32.mrb[0].mxu0
  %3369 = vdwg.mxu0
  %v3370 = vadd.f32 %v3247, %v3308
  %v3371 = vadd.f32 %v3248, %v3311
  %v3372 = vadd.f32 %v3249, %v3316
  %v3373 = vadd.f32 %v3250, %v3319
  %v3374 = vadd.f32 %v3251, %v3324
  %v3375 = vadd.f32 %v3252, %v3327
  %v3376 = vadd.f32 %v3253, %v3332
  %v3377 = vadd.f32 %v3254, %v3335
  %v3378 = vadd.f32 %v3255, %v3340
  %v3379 = vadd.f32 %v3256, %v3343
  %v3380 = vadd.f32 %v3257, %v3348
  %v3381 = vadd.f32 %v3258, %v3351
  %v3382 = vadd.f32 %v3259, %v3356
  %v3383 = vadd.f32 %v3260, %v3359
  %v3384 = vadd.f32 %v3261, %v3364
  %v3385 = vadd.f32 %v3262, %v3367
  %3386 = vst.msk [vmem:[#allocation2 + $0x80] sm:$0xff] %vm1655, %v3370
  %3387 = vst.msk [vmem:[#allocation2 + $0x88] sm:$0xff] %vm1655, %v3371
  %3388 = vst.msk [vmem:[#allocation2 + $0x90] sm:$0xff] %vm1655, %v3372
  %3389 = vst.msk [vmem:[#allocation2 + $0x98] sm:$0xff] %vm1655, %v3373
  %3390 = vst.msk [vmem:[#allocation2 + $0xa0] sm:$0xff] %vm1655, %v3374
  %3391 = vst.msk [vmem:[#allocation2 + $0xa8] sm:$0xff] %vm1655, %v3375
  %3392 = vst.msk [vmem:[#allocation2 + $0xb0] sm:$0xff] %vm1655, %v3376
  %3393 = vst.msk [vmem:[#allocation2 + $0xb8] sm:$0xff] %vm1655, %v3377
  %3394 = vst.msk [vmem:[#allocation2 + $0xc0] sm:$0xff] %vm1655, %v3378
  %3395 = vst.msk [vmem:[#allocation2 + $0xc8] sm:$0xff] %vm1655, %v3379
  %3396 = vst.msk [vmem:[#allocation2 + $0xd0] sm:$0xff] %vm1655, %v3380
  %3397 = vst.msk [vmem:[#allocation2 + $0xd8] sm:$0xff] %vm1655, %v3381
  %3398 = vst.msk [vmem:[#allocation2 + $0xe0] sm:$0xff] %vm1655, %v3382
  %3399 = vst.msk [vmem:[#allocation2 + $0xe8] sm:$0xff] %vm1655, %v3383
  %3400 = vst.msk [vmem:[#allocation2 + $0xf0] sm:$0xff] %vm1655, %v3384
  %3401 = vst.msk [vmem:[#allocation2 + $0xf8] sm:$0xff] %vm1655, %v3385
  %v3402 = vsel %vm1655, %v3370, 0.0
  %v3403 = vsel %vm1655, %v3371, 0.0
  %v3404 = vadd.f32 %v3402, %v3403
  %v3405 = vsel %vm1655, %v3372, 0.0
  %v3406 = vadd.f32 %v3404, %v3405
  %v3407 = vsel %vm1655, %v3373, 0.0
  %v3408 = vadd.f32 %v3406, %v3407
  %v3409 = vsel %vm1655, %v3374, 0.0
  %v3410 = vadd.f32 %v3408, %v3409
  %v3411 = vsel %vm1655, %v3375, 0.0
  %v3412 = vadd.f32 %v3410, %v3411
  %v3413 = vsel %vm1655, %v3376, 0.0
  %v3414 = vadd.f32 %v3412, %v3413
  %v3415 = vsel %vm1655, %v3377, 0.0
  %v3416 = vadd.f32 %v3414, %v3415
  %v3417 = vsel %vm1655, %v3378, 0.0
  %v3418 = vadd.f32 %v3416, %v3417
  %v3419 = vsel %vm1655, %v3379, 0.0
  %v3420 = vadd.f32 %v3418, %v3419
  %v3421 = vsel %vm1655, %v3380, 0.0
  %v3422 = vadd.f32 %v3420, %v3421
  %v3423 = vsel %vm1655, %v3381, 0.0
  %v3424 = vadd.f32 %v3422, %v3423
  %v3425 = vsel %vm1655, %v3382, 0.0
  %v3426 = vadd.f32 %v3424, %v3425
  %v3427 = vsel %vm1655, %v3383, 0.0
  %v3428 = vadd.f32 %v3426, %v3427
  %v3429 = vsel %vm1655, %v3384, 0.0
  %v3430 = vadd.f32 %v3428, %v3429
  %v3431 = vsel %vm1655, %v3385, 0.0
  %v3432 = vadd.f32 %v3430, %v3431
  %v3433 = vrot.slane %v3432, 4
  %v3434 = vadd.f32 %v3432, %v3433
  %v3435 = vrot.slane %v3434, 2
  %v3436 = vadd.f32 %v3434, %v3435
  %v3437 = vrot.slane %v3436, 1
  %v3438 = vadd.f32 %v3436, %v3437
  %v3439 = vadd.f32 %v1709, %v3438
  %v3440 = vmul.f32 %v3370, %v3370
  %v3441 = vmul.f32 %v3371, %v3371
  %v3442 = vmul.f32 %v3372, %v3372
  %v3443 = vmul.f32 %v3373, %v3373
  %v3444 = vmul.f32 %v3374, %v3374
  %v3445 = vmul.f32 %v3375, %v3375
  %v3446 = vmul.f32 %v3376, %v3376
  %v3447 = vmul.f32 %v3377, %v3377
  %v3448 = vmul.f32 %v3378, %v3378
  %v3449 = vmul.f32 %v3379, %v3379
  %v3450 = vmul.f32 %v3380, %v3380
  %v3451 = vmul.f32 %v3381, %v3381
  %v3452 = vmul.f32 %v3382, %v3382
  %v3453 = vmul.f32 %v3383, %v3383
  %v3454 = vmul.f32 %v3384, %v3384
  %v3455 = vmul.f32 %v3385, %v3385
  %v3456 = vsel %vm1655, %v3440, 0.0
  %v3457 = vsel %vm1655, %v3441, 0.0
  %v3458 = vadd.f32 %v3456, %v3457
  %v3459 = vsel %vm1655, %v3442, 0.0
  %v3460 = vadd.f32 %v3458, %v3459
  %v3461 = vsel %vm1655, %v3443, 0.0
  %v3462 = vadd.f32 %v3460, %v3461
  %v3463 = vsel %vm1655, %v3444, 0.0
  %v3464 = vadd.f32 %v3462, %v3463
  %v3465 = vsel %vm1655, %v3445, 0.0
  %v3466 = vadd.f32 %v3464, %v3465
  %v3467 = vsel %vm1655, %v3446, 0.0
  %v3468 = vadd.f32 %v3466, %v3467
  %v3469 = vsel %vm1655, %v3447, 0.0
  %v3470 = vadd.f32 %v3468, %v3469
  %v3471 = vsel %vm1655, %v3448, 0.0
  %v3472 = vadd.f32 %v3470, %v3471
  %v3473 = vsel %vm1655, %v3449, 0.0
  %v3474 = vadd.f32 %v3472, %v3473
  %v3475 = vsel %vm1655, %v3450, 0.0
  %v3476 = vadd.f32 %v3474, %v3475
  %v3477 = vsel %vm1655, %v3451, 0.0
  %v3478 = vadd.f32 %v3476, %v3477
  %v3479 = vsel %vm1655, %v3452, 0.0
  %v3480 = vadd.f32 %v3478, %v3479
  %v3481 = vsel %vm1655, %v3453, 0.0
  %v3482 = vadd.f32 %v3480, %v3481
  %v3483 = vsel %vm1655, %v3454, 0.0
  %v3484 = vadd.f32 %v3482, %v3483
  %v3485 = vsel %vm1655, %v3455, 0.0
  %v3486 = vadd.f32 %v3484, %v3485
  %v3487 = vrot.slane %v3486, 4
  %v3488 = vadd.f32 %v3486, %v3487
  %v3489 = vrot.slane %v3488, 2
  %v3490 = vadd.f32 %v3488, %v3489
  %v3491 = vrot.slane %v3490, 1
  %v3492 = vadd.f32 %v3490, %v3491
  %v3493 = vadd.f32 %v1763, %v3492
  %v3494 = vrcp.pop 256.0
  %v3495 = vmul.f32 %v3439, %v3494
  %v3496 = vmul.f32 %v3493, %v3494
  %v3497 = vmul.f32 %v3495, %v3495
  %v3498 = vsub.f32 %v3496, %v3497
  %v3499 = vld [vmem:[%s2] sm:$0x1]
  %v3500 = vadd.f32 %v3498, 1e-05
  %v3501 = vrsqrt.pop %v3500
  %v3502 = vmul.f32 %v3499, %v3501
  %v3503 = vld [vmem:[%s3] sm:$0x1]
  %v3504 = vmul.f32 %v3495, %v3502
  %v3505 = vsub.f32 %v3503, %v3504
  %v3506 = vld [vmem:[#allocation2] sm:$0xff]
  %v3507 = vld [vmem:[#allocation2 + $0x8] sm:$0xff]
  %v3508 = vld [vmem:[#allocation2 + $0x10] sm:$0xff]
  %v3509 = vld [vmem:[#allocation2 + $0x18] sm:$0xff]
  %v3510 = vld [vmem:[#allocation2 + $0x20] sm:$0xff]
  %v3511 = vld [vmem:[#allocation2 + $0x28] sm:$0xff]
  %v3512 = vld [vmem:[#allocation2 + $0x30] sm:$0xff]
  %v3513 = vld [vmem:[#allocation2 + $0x38] sm:$0xff]
  %v3514 = vld [vmem:[#allocation2 + $0x40] sm:$0xff]
  %v3515 = vld [vmem:[#allocation2 + $0x48] sm:$0xff]
  %v3516 = vld [vmem:[#allocation2 + $0x50] sm:$0xff]
  %v3517 = vld [vmem:[#allocation2 + $0x58] sm:$0xff]
  %v3518 = vld [vmem:[#allocation2 + $0x60] sm:$0xff]
  %v3519 = vld [vmem:[#allocation2 + $0x68] sm:$0xff]
  %v3520 = vld [vmem:[#allocation2 + $0x70] sm:$0xff]
  %v3521 = vld [vmem:[#allocation2 + $0x78] sm:$0xff]
  %v3523 = vlaneseq
  %v3524 = vshrl.u32 %v3523, 7
  %v3525 = vsub.s32 0, %v3524
  %v3526 = vrot.slane %v3502, %v3525
  %v3528 = vmul.f32 %v3506, %v3526
  %v3529 = vmul.f32 %v3507, %v3526
  %v3530 = vmul.f32 %v3508, %v3526
  %v3531 = vmul.f32 %v3509, %v3526
  %v3532 = vmul.f32 %v3510, %v3526
  %v3533 = vmul.f32 %v3511, %v3526
  %v3534 = vmul.f32 %v3512, %v3526
  %v3535 = vmul.f32 %v3513, %v3526
  %v3536 = vmul.f32 %v3514, %v3526
  %v3537 = vmul.f32 %v3515, %v3526
  %v3538 = vmul.f32 %v3516, %v3526
  %v3539 = vmul.f32 %v3517, %v3526
  %v3540 = vmul.f32 %v3518, %v3526
  %v3541 = vmul.f32 %v3519, %v3526
  %v3542 = vmul.f32 %v3520, %v3526
  %v3543 = vmul.f32 %v3521, %v3526
  %v3545 = vlaneseq
  %v3546 = vshrl.u32 %v3545, 7
  %v3547 = vsub.s32 0, %v3546
  %v3548 = vrot.slane %v3505, %v3547
  %v3550 = vadd.f32 %v3528, %v3548
  %v3551 = vadd.f32 %v3529, %v3548
  %v3552 = vadd.f32 %v3530, %v3548
  %v3553 = vadd.f32 %v3531, %v3548
  %v3554 = vadd.f32 %v3532, %v3548
  %v3555 = vadd.f32 %v3533, %v3548
  %v3556 = vadd.f32 %v3534, %v3548
  %v3557 = vadd.f32 %v3535, %v3548
  %v3558 = vadd.f32 %v3536, %v3548
  %v3559 = vadd.f32 %v3537, %v3548
  %v3560 = vadd.f32 %v3538, %v3548
  %v3561 = vadd.f32 %v3539, %v3548
  %v3562 = vadd.f32 %v3540, %v3548
  %v3563 = vadd.f32 %v3541, %v3548
  %v3564 = vadd.f32 %v3542, %v3548
  %v3565 = vadd.f32 %v3543, %v3548
  %v3566 = vmax.f32 %v3550, 0.0
  %v3567 = vmax.f32 %v3551, 0.0
  %v3568 = vmax.f32 %v3552, 0.0
  %v3569 = vmax.f32 %v3553, 0.0
  %v3570 = vmax.f32 %v3554, 0.0
  %v3571 = vmax.f32 %v3555, 0.0
  %v3572 = vmax.f32 %v3556, 0.0
  %v3573 = vmax.f32 %v3557, 0.0
  %v3574 = vmax.f32 %v3558, 0.0
  %v3575 = vmax.f32 %v3559, 0.0
  %v3576 = vmax.f32 %v3560, 0.0
  %v3577 = vmax.f32 %v3561, 0.0
  %v3578 = vmax.f32 %v3562, 0.0
  %v3579 = vmax.f32 %v3563, 0.0
  %v3580 = vmax.f32 %v3564, 0.0
  %v3581 = vmax.f32 %v3565, 0.0
  %v3598 = vcombine.high %v3566, %v3566
  %v3600 = vunpack.c.l.s4 1983009808
  %v3601 = vunpack.c.0.s8 %v3600
  %v3602 = vlaneseq
  %v3603 = vshrl.u32 %v3602, 7
  %v3604 = vsub.s32 %v3601, %v3603
  %v3605 = vrot.slane %v3566, %v3604
  %v3607 = vunpack.c.l.s4 1983009808
  %v3608 = vunpack.c.0.s8 %v3607
  %v3609 = vlaneseq
  %v3610 = vshrl.u32 %v3609, 7
  %v3611 = vsub.s32 %v3608, %v3610
  %v3612 = vrot.slane %v3598, %v3611
  %v3613 = vcombine.high %v3605, %v3605
  %v3614 = vcombine.high %v3612, %v3612
  %v3615 = vcombine.high %v3567, %v3567
  %v3617 = vunpack.c.l.s4 1983009808
  %v3618 = vunpack.c.0.s8 %v3617
  %v3619 = vlaneseq
  %v3620 = vshrl.u32 %v3619, 7
  %v3621 = vsub.s32 %v3618, %v3620
  %v3622 = vrot.slane %v3567, %v3621
  %v3624 = vunpack.c.l.s4 1983009808
  %v3625 = vunpack.c.0.s8 %v3624
  %v3626 = vlaneseq
  %v3627 = vshrl.u32 %v3626, 7
  %v3628 = vsub.s32 %v3625, %v3627
  %v3629 = vrot.slane %v3615, %v3628
  %v3630 = vcombine.high %v3622, %v3622
  %v3631 = vcombine.high %v3629, %v3629
  %v3632 = vcombine.high %v3568, %v3568
  %v3634 = vunpack.c.l.s4 1983009808
  %v3635 = vunpack.c.0.s8 %v3634
  %v3636 = vlaneseq
  %v3637 = vshrl.u32 %v3636, 7
  %v3638 = vsub.s32 %v3635, %v3637
  %v3639 = vrot.slane %v3568, %v3638
  %v3641 = vunpack.c.l.s4 1983009808
  %v3642 = vunpack.c.0.s8 %v3641
  %v3643 = vlaneseq
  %v3644 = vshrl.u32 %v3643, 7
  %v3645 = vsub.s32 %v3642, %v3644
  %v3646 = vrot.slane %v3632, %v3645
  %v3647 = vcombine.high %v3639, %v3639
  %v3648 = vcombine.high %v3646, %v3646
  %v3649 = vcombine.high %v3569, %v3569
  %v3651 = vunpack.c.l.s4 1983009808
  %v3652 = vunpack.c.0.s8 %v3651
  %v3653 = vlaneseq
  %v3654 = vshrl.u32 %v3653, 7
  %v3655 = vsub.s32 %v3652, %v3654
  %v3656 = vrot.slane %v3569, %v3655
  %v3658 = vunpack.c.l.s4 1983009808
  %v3659 = vunpack.c.0.s8 %v3658
  %v3660 = vlaneseq
  %v3661 = vshrl.u32 %v3660, 7
  %v3662 = vsub.s32 %v3659, %v3661
  %v3663 = vrot.slane %v3649, %v3662
  %v3664 = vcombine.high %v3656, %v3656
  %v3665 = vcombine.high %v3663, %v3663
  %v3666 = vcombine.high %v3570, %v3570
  %v3668 = vunpack.c.l.s4 1983009808
  %v3669 = vunpack.c.0.s8 %v3668
  %v3670 = vlaneseq
  %v3671 = vshrl.u32 %v3670, 7
  %v3672 = vsub.s32 %v3669, %v3671
  %v3673 = vrot.slane %v3570, %v3672
  %v3675 = vunpack.c.l.s4 1983009808
  %v3676 = vunpack.c.0.s8 %v3675
  %v3677 = vlaneseq
  %v3678 = vshrl.u32 %v3677, 7
  %v3679 = vsub.s32 %v3676, %v3678
  %v3680 = vrot.slane %v3666, %v3679
  %v3681 = vcombine.high %v3673, %v3673
  %v3682 = vcombine.high %v3680, %v3680
  %v3683 = vcombine.high %v3571, %v3571
  %v3685 = vunpack.c.l.s4 1983009808
  %v3686 = vunpack.c.0.s8 %v3685
  %v3687 = vlaneseq
  %v3688 = vshrl.u32 %v3687, 7
  %v3689 = vsub.s32 %v3686, %v3688
  %v3690 = vrot.slane %v3571, %v3689
  %v3692 = vunpack.c.l.s4 1983009808
  %v3693 = vunpack.c.0.s8 %v3692
  %v3694 = vlaneseq
  %v3695 = vshrl.u32 %v3694, 7
  %v3696 = vsub.s32 %v3693, %v3695
  %v3697 = vrot.slane %v3683, %v3696
  %v3698 = vcombine.high %v3690, %v3690
  %v3699 = vcombine.high %v3697, %v3697
  %v3700 = vcombine.high %v3572, %v3572
  %v3702 = vunpack.c.l.s4 1983009808
  %v3703 = vunpack.c.0.s8 %v3702
  %v3704 = vlaneseq
  %v3705 = vshrl.u32 %v3704, 7
  %v3706 = vsub.s32 %v3703, %v3705
  %v3707 = vrot.slane %v3572, %v3706
  %v3709 = vunpack.c.l.s4 1983009808
  %v3710 = vunpack.c.0.s8 %v3709
  %v3711 = vlaneseq
  %v3712 = vshrl.u32 %v3711, 7
  %v3713 = vsub.s32 %v3710, %v3712
  %v3714 = vrot.slane %v3700, %v3713
  %v3715 = vcombine.high %v3707, %v3707
  %v3716 = vcombine.high %v3714, %v3714
  %v3717 = vcombine.high %v3573, %v3573
  %v3719 = vunpack.c.l.s4 1983009808
  %v3720 = vunpack.c.0.s8 %v3719
  %v3721 = vlaneseq
  %v3722 = vshrl.u32 %v3721, 7
  %v3723 = vsub.s32 %v3720, %v3722
  %v3724 = vrot.slane %v3573, %v3723
  %v3726 = vunpack.c.l.s4 1983009808
  %v3727 = vunpack.c.0.s8 %v3726
  %v3728 = vlaneseq
  %v3729 = vshrl.u32 %v3728, 7
  %v3730 = vsub.s32 %v3727, %v3729
  %v3731 = vrot.slane %v3717, %v3730
  %v3732 = vcombine.high %v3724, %v3724
  %v3733 = vcombine.high %v3731, %v3731
  %v3734 = vcombine.high %v3574, %v3574
  %v3736 = vunpack.c.l.s4 1983009808
  %v3737 = vunpack.c.0.s8 %v3736
  %v3738 = vlaneseq
  %v3739 = vshrl.u32 %v3738, 7
  %v3740 = vsub.s32 %v3737, %v3739
  %v3741 = vrot.slane %v3574, %v3740
  %v3743 = vunpack.c.l.s4 1983009808
  %v3744 = vunpack.c.0.s8 %v3743
  %v3745 = vlaneseq
  %v3746 = vshrl.u32 %v3745, 7
  %v3747 = vsub.s32 %v3744, %v3746
  %v3748 = vrot.slane %v3734, %v3747
  %v3749 = vcombine.high %v3741, %v3741
  %v3750 = vcombine.high %v3748, %v3748
  %v3751 = vcombine.high %v3575, %v3575
  %v3753 = vunpack.c.l.s4 1983009808
  %v3754 = vunpack.c.0.s8 %v3753
  %v3755 = vlaneseq
  %v3756 = vshrl.u32 %v3755, 7
  %v3757 = vsub.s32 %v3754, %v3756
  %v3758 = vrot.slane %v3575, %v3757
  %v3760 = vunpack.c.l.s4 1983009808
  %v3761 = vunpack.c.0.s8 %v3760
  %v3762 = vlaneseq
  %v3763 = vshrl.u32 %v3762, 7
  %v3764 = vsub.s32 %v3761, %v3763
  %v3765 = vrot.slane %v3751, %v3764
  %v3766 = vcombine.high %v3758, %v3758
  %v3767 = vcombine.high %v3765, %v3765
  %v3768 = vcombine.high %v3576, %v3576
  %v3770 = vunpack.c.l.s4 1983009808
  %v3771 = vunpack.c.0.s8 %v3770
  %v3772 = vlaneseq
  %v3773 = vshrl.u32 %v3772, 7
  %v3774 = vsub.s32 %v3771, %v3773
  %v3775 = vrot.slane %v3576, %v3774
  %v3777 = vunpack.c.l.s4 1983009808
  %v3778 = vunpack.c.0.s8 %v3777
  %v3779 = vlaneseq
  %v3780 = vshrl.u32 %v3779, 7
  %v3781 = vsub.s32 %v3778, %v3780
  %v3782 = vrot.slane %v3768, %v3781
  %v3783 = vcombine.high %v3775, %v3775
  %v3784 = vcombine.high %v3782, %v3782
  %v3785 = vcombine.high %v3577, %v3577
  %v3787 = vunpack.c.l.s4 1983009808
  %v3788 = vunpack.c.0.s8 %v3787
  %v3789 = vlaneseq
  %v3790 = vshrl.u32 %v3789, 7
  %v3791 = vsub.s32 %v3788, %v3790
  %v3792 = vrot.slane %v3577, %v3791
  %v3794 = vunpack.c.l.s4 1983009808
  %v3795 = vunpack.c.0.s8 %v3794
  %v3796 = vlaneseq
  %v3797 = vshrl.u32 %v3796, 7
  %v3798 = vsub.s32 %v3795, %v3797
  %v3799 = vrot.slane %v3785, %v3798
  %v3800 = vcombine.high %v3792, %v3792
  %v3801 = vcombine.high %v3799, %v3799
  %v3802 = vcombine.high %v3578, %v3578
  %v3804 = vunpack.c.l.s4 1983009808
  %v3805 = vunpack.c.0.s8 %v3804
  %v3806 = vlaneseq
  %v3807 = vshrl.u32 %v3806, 7
  %v3808 = vsub.s32 %v3805, %v3807
  %v3809 = vrot.slane %v3578, %v3808
  %v3811 = vunpack.c.l.s4 1983009808
  %v3812 = vunpack.c.0.s8 %v3811
  %v3813 = vlaneseq
  %v3814 = vshrl.u32 %v3813, 7
  %v3815 = vsub.s32 %v3812, %v3814
  %v3816 = vrot.slane %v3802, %v3815
  %v3817 = vcombine.high %v3809, %v3809
  %v3818 = vcombine.high %v3816, %v3816
  %v3819 = vcombine.high %v3579, %v3579
  %v3821 = vunpack.c.l.s4 1983009808
  %v3822 = vunpack.c.0.s8 %v3821
  %v3823 = vlaneseq
  %v3824 = vshrl.u32 %v3823, 7
  %v3825 = vsub.s32 %v3822, %v3824
  %v3826 = vrot.slane %v3579, %v3825
  %v3828 = vunpack.c.l.s4 1983009808
  %v3829 = vunpack.c.0.s8 %v3828
  %v3830 = vlaneseq
  %v3831 = vshrl.u32 %v3830, 7
  %v3832 = vsub.s32 %v3829, %v3831
  %v3833 = vrot.slane %v3819, %v3832
  %v3834 = vcombine.high %v3826, %v3826
  %v3835 = vcombine.high %v3833, %v3833
  %v3836 = vcombine.high %v3580, %v3580
  %v3838 = vunpack.c.l.s4 1983009808
  %v3839 = vunpack.c.0.s8 %v3838
  %v3840 = vlaneseq
  %v3841 = vshrl.u32 %v3840, 7
  %v3842 = vsub.s32 %v3839, %v3841
  %v3843 = vrot.slane %v3580, %v3842
  %v3845 = vunpack.c.l.s4 1983009808
  %v3846 = vunpack.c.0.s8 %v3845
  %v3847 = vlaneseq
  %v3848 = vshrl.u32 %v3847, 7
  %v3849 = vsub.s32 %v3846, %v3848
  %v3850 = vrot.slane %v3836, %v3849
  %v3851 = vcombine.high %v3843, %v3843
  %v3852 = vcombine.high %v3850, %v3850
  %v3853 = vcombine.high %v3581, %v3581
  %v3855 = vunpack.c.l.s4 1983009808
  %v3856 = vunpack.c.0.s8 %v3855
  %v3857 = vlaneseq
  %v3858 = vshrl.u32 %v3857, 7
  %v3859 = vsub.s32 %v3856, %v3858
  %v3860 = vrot.slane %v3581, %v3859
  %v3862 = vunpack.c.l.s4 1983009808
  %v3863 = vunpack.c.0.s8 %v3862
  %v3864 = vlaneseq
  %v3865 = vshrl.u32 %v3864, 7
  %v3866 = vsub.s32 %v3863, %v3865
  %v3867 = vrot.slane %v3853, %v3866
  %v3868 = vcombine.high %v3860, %v3860
  %v3869 = vcombine.high %v3867, %v3867
  %vm3934 = vcmask 123904
  %v3935 = vsel %vm3934, %v3605, -inf
  %v3936 = vrot.slane %v3935, 4
  %v3937 = vmax.f32 %v3935, %v3936
  %v3938 = vrot.slane %v3937, 2
  %v3939 = vmax.f32 %v3937, %v3938
  %v3940 = vrot.slane %v3939, 1
  %v3941 = vmax.f32 %v3939, %v3940
  %v3942 = vsel %vm3934, %v3613, -inf
  %v3943 = vrot.slane %v3942, 4
  %v3944 = vmax.f32 %v3942, %v3943
  %v3945 = vrot.slane %v3944, 2
  %v3946 = vmax.f32 %v3944, %v3945
  %v3947 = vrot.slane %v3946, 1
  %v3948 = vmax.f32 %v3946, %v3947
  %v3949 = vsel %vm3934, %v3612, -inf
  %v3950 = vrot.slane %v3949, 4
  %v3951 = vmax.f32 %v3949, %v3950
  %v3952 = vrot.slane %v3951, 2
  %v3953 = vmax.f32 %v3951, %v3952
  %v3954 = vrot.slane %v3953, 1
  %v3955 = vmax.f32 %v3953, %v3954
  %v3956 = vsel %vm3934, %v3614, -inf
  %v3957 = vrot.slane %v3956, 4
  %v3958 = vmax.f32 %v3956, %v3957
  %v3959 = vrot.slane %v3958, 2
  %v3960 = vmax.f32 %v3958, %v3959
  %v3961 = vrot.slane %v3960, 1
  %v3962 = vmax.f32 %v3960, %v3961
  %v3963 = vsel %vm3934, %v3622, -inf
  %v3964 = vrot.slane %v3963, 4
  %v3965 = vmax.f32 %v3963, %v3964
  %v3966 = vrot.slane %v3965, 2
  %v3967 = vmax.f32 %v3965, %v3966
  %v3968 = vrot.slane %v3967, 1
  %v3969 = vmax.f32 %v3967, %v3968
  %v3970 = vsel %vm3934, %v3630, -inf
  %v3971 = vrot.slane %v3970, 4
  %v3972 = vmax.f32 %v3970, %v3971
  %v3973 = vrot.slane %v3972, 2
  %v3974 = vmax.f32 %v3972, %v3973
  %v3975 = vrot.slane %v3974, 1
  %v3976 = vmax.f32 %v3974, %v3975
  %v3977 = vsel %vm3934, %v3629, -inf
  %v3978 = vrot.slane %v3977, 4
  %v3979 = vmax.f32 %v3977, %v3978
  %v3980 = vrot.slane %v3979, 2
  %v3981 = vmax.f32 %v3979, %v3980
  %v3982 = vrot.slane %v3981, 1
  %v3983 = vmax.f32 %v3981, %v3982
  %v3984 = vsel %vm3934, %v3631, -inf
  %v3985 = vrot.slane %v3984, 4
  %v3986 = vmax.f32 %v3984, %v3985
  %v3987 = vrot.slane %v3986, 2
  %v3988 = vmax.f32 %v3986, %v3987
  %v3989 = vrot.slane %v3988, 1
  %v3990 = vmax.f32 %v3988, %v3989
  %v3991 = vsel %vm3934, %v3639, -inf
  %v3992 = vrot.slane %v3991, 4
  %v3993 = vmax.f32 %v3991, %v3992
  %v3994 = vrot.slane %v3993, 2
  %v3995 = vmax.f32 %v3993, %v3994
  %v3996 = vrot.slane %v3995, 1
  %v3997 = vmax.f32 %v3995, %v3996
  %v3998 = vsel %vm3934, %v3647, -inf
  %v3999 = vrot.slane %v3998, 4
  %v4000 = vmax.f32 %v3998, %v3999
  %v4001 = vrot.slane %v4000, 2
  %v4002 = vmax.f32 %v4000, %v4001
  %v4003 = vrot.slane %v4002, 1
  %v4004 = vmax.f32 %v4002, %v4003
  %v4005 = vsel %vm3934, %v3646, -inf
  %v4006 = vrot.slane %v4005, 4
  %v4007 = vmax.f32 %v4005, %v4006
  %v4008 = vrot.slane %v4007, 2
  %v4009 = vmax.f32 %v4007, %v4008
  %v4010 = vrot.slane %v4009, 1
  %v4011 = vmax.f32 %v4009, %v4010
  %v4012 = vsel %vm3934, %v3648, -inf
  %v4013 = vrot.slane %v4012, 4
  %v4014 = vmax.f32 %v4012, %v4013
  %v4015 = vrot.slane %v4014, 2
  %v4016 = vmax.f32 %v4014, %v4015
  %v4017 = vrot.slane %v4016, 1
  %v4018 = vmax.f32 %v4016, %v4017
  %v4019 = vsel %vm3934, %v3656, -inf
  %v4020 = vrot.slane %v4019, 4
  %v4021 = vmax.f32 %v4019, %v4020
  %v4022 = vrot.slane %v4021, 2
  %v4023 = vmax.f32 %v4021, %v4022
  %v4024 = vrot.slane %v4023, 1
  %v4025 = vmax.f32 %v4023, %v4024
  %v4026 = vsel %vm3934, %v3664, -inf
  %v4027 = vrot.slane %v4026, 4
  %v4028 = vmax.f32 %v4026, %v4027
  %v4029 = vrot.slane %v4028, 2
  %v4030 = vmax.f32 %v4028, %v4029
  %v4031 = vrot.slane %v4030, 1
  %v4032 = vmax.f32 %v4030, %v4031
  %v4033 = vsel %vm3934, %v3663, -inf
  %v4034 = vrot.slane %v4033, 4
  %v4035 = vmax.f32 %v4033, %v4034
  %v4036 = vrot.slane %v4035, 2
  %v4037 = vmax.f32 %v4035, %v4036
  %v4038 = vrot.slane %v4037, 1
  %v4039 = vmax.f32 %v4037, %v4038
  %v4040 = vsel %vm3934, %v3665, -inf
  %v4041 = vrot.slane %v4040, 4
  %v4042 = vmax.f32 %v4040, %v4041
  %v4043 = vrot.slane %v4042, 2
  %v4044 = vmax.f32 %v4042, %v4043
  %v4045 = vrot.slane %v4044, 1
  %v4046 = vmax.f32 %v4044, %v4045
  %v4047 = vsel %vm3934, %v3673, -inf
  %v4048 = vrot.slane %v4047, 4
  %v4049 = vmax.f32 %v4047, %v4048
  %v4050 = vrot.slane %v4049, 2
  %v4051 = vmax.f32 %v4049, %v4050
  %v4052 = vrot.slane %v4051, 1
  %v4053 = vmax.f32 %v4051, %v4052
  %v4054 = vsel %vm3934, %v3681, -inf
  %v4055 = vrot.slane %v4054, 4
  %v4056 = vmax.f32 %v4054, %v4055
  %v4057 = vrot.slane %v4056, 2
  %v4058 = vmax.f32 %v4056, %v4057
  %v4059 = vrot.slane %v4058, 1
  %v4060 = vmax.f32 %v4058, %v4059
  %v4061 = vsel %vm3934, %v3680, -inf
  %v4062 = vrot.slane %v4061, 4
  %v4063 = vmax.f32 %v4061, %v4062
  %v4064 = vrot.slane %v4063, 2
  %v4065 = vmax.f32 %v4063, %v4064
  %v4066 = vrot.slane %v4065, 1
  %v4067 = vmax.f32 %v4065, %v4066
  %v4068 = vsel %vm3934, %v3682, -inf
  %v4069 = vrot.slane %v4068, 4
  %v4070 = vmax.f32 %v4068, %v4069
  %v4071 = vrot.slane %v4070, 2
  %v4072 = vmax.f32 %v4070, %v4071
  %v4073 = vrot.slane %v4072, 1
  %v4074 = vmax.f32 %v4072, %v4073
  %v4075 = vsel %vm3934, %v3690, -inf
  %v4076 = vrot.slane %v4075, 4
  %v4077 = vmax.f32 %v4075, %v4076
  %v4078 = vrot.slane %v4077, 2
  %v4079 = vmax.f32 %v4077, %v4078
  %v4080 = vrot.slane %v4079, 1
  %v4081 = vmax.f32 %v4079, %v4080
  %v4082 = vsel %vm3934, %v3698, -inf
  %v4083 = vrot.slane %v4082, 4
  %v4084 = vmax.f32 %v4082, %v4083
  %v4085 = vrot.slane %v4084, 2
  %v4086 = vmax.f32 %v4084, %v4085
  %v4087 = vrot.slane %v4086, 1
  %v4088 = vmax.f32 %v4086, %v4087
  %v4089 = vsel %vm3934, %v3697, -inf
  %v4090 = vrot.slane %v4089, 4
  %v4091 = vmax.f32 %v4089, %v4090
  %v4092 = vrot.slane %v4091, 2
  %v4093 = vmax.f32 %v4091, %v4092
  %v4094 = vrot.slane %v4093, 1
  %v4095 = vmax.f32 %v4093, %v4094
  %v4096 = vsel %vm3934, %v3699, -inf
  %v4097 = vrot.slane %v4096, 4
  %v4098 = vmax.f32 %v4096, %v4097
  %v4099 = vrot.slane %v4098, 2
  %v4100 = vmax.f32 %v4098, %v4099
  %v4101 = vrot.slane %v4100, 1
  %v4102 = vmax.f32 %v4100, %v4101
  %v4103 = vsel %vm3934, %v3707, -inf
  %v4104 = vrot.slane %v4103, 4
  %v4105 = vmax.f32 %v4103, %v4104
  %v4106 = vrot.slane %v4105, 2
  %v4107 = vmax.f32 %v4105, %v4106
  %v4108 = vrot.slane %v4107, 1
  %v4109 = vmax.f32 %v4107, %v4108
  %v4110 = vsel %vm3934, %v3715, -inf
  %v4111 = vrot.slane %v4110, 4
  %v4112 = vmax.f32 %v4110, %v4111
  %v4113 = vrot.slane %v4112, 2
  %v4114 = vmax.f32 %v4112, %v4113
  %v4115 = vrot.slane %v4114, 1
  %v4116 = vmax.f32 %v4114, %v4115
  %v4117 = vsel %vm3934, %v3714, -inf
  %v4118 = vrot.slane %v4117, 4
  %v4119 = vmax.f32 %v4117, %v4118
  %v4120 = vrot.slane %v4119, 2
  %v4121 = vmax.f32 %v4119, %v4120
  %v4122 = vrot.slane %v4121, 1
  %v4123 = vmax.f32 %v4121, %v4122
  %v4124 = vsel %vm3934, %v3716, -inf
  %v4125 = vrot.slane %v4124, 4
  %v4126 = vmax.f32 %v4124, %v4125
  %v4127 = vrot.slane %v4126, 2
  %v4128 = vmax.f32 %v4126, %v4127
  %v4129 = vrot.slane %v4128, 1
  %v4130 = vmax.f32 %v4128, %v4129
  %v4131 = vsel %vm3934, %v3724, -inf
  %v4132 = vrot.slane %v4131, 4
  %v4133 = vmax.f32 %v4131, %v4132
  %v4134 = vrot.slane %v4133, 2
  %v4135 = vmax.f32 %v4133, %v4134
  %v4136 = vrot.slane %v4135, 1
  %v4137 = vmax.f32 %v4135, %v4136
  %v4138 = vsel %vm3934, %v3732, -inf
  %v4139 = vrot.slane %v4138, 4
  %v4140 = vmax.f32 %v4138, %v4139
  %v4141 = vrot.slane %v4140, 2
  %v4142 = vmax.f32 %v4140, %v4141
  %v4143 = vrot.slane %v4142, 1
  %v4144 = vmax.f32 %v4142, %v4143
  %v4145 = vsel %vm3934, %v3731, -inf
  %v4146 = vrot.slane %v4145, 4
  %v4147 = vmax.f32 %v4145, %v4146
  %v4148 = vrot.slane %v4147, 2
  %v4149 = vmax.f32 %v4147, %v4148
  %v4150 = vrot.slane %v4149, 1
  %v4151 = vmax.f32 %v4149, %v4150
  %v4152 = vsel %vm3934, %v3733, -inf
  %v4153 = vrot.slane %v4152, 4
  %v4154 = vmax.f32 %v4152, %v4153
  %v4155 = vrot.slane %v4154, 2
  %v4156 = vmax.f32 %v4154, %v4155
  %v4157 = vrot.slane %v4156, 1
  %v4158 = vmax.f32 %v4156, %v4157
  %v4159 = vsel %vm3934, %v3741, -inf
  %v4160 = vrot.slane %v4159, 4
  %v4161 = vmax.f32 %v4159, %v4160
  %v4162 = vrot.slane %v4161, 2
  %v4163 = vmax.f32 %v4161, %v4162
  %v4164 = vrot.slane %v4163, 1
  %v4165 = vmax.f32 %v4163, %v4164
  %v4166 = vsel %vm3934, %v3749, -inf
  %v4167 = vrot.slane %v4166, 4
  %v4168 = vmax.f32 %v4166, %v4167
  %v4169 = vrot.slane %v4168, 2
  %v4170 = vmax.f32 %v4168, %v4169
  %v4171 = vrot.slane %v4170, 1
  %v4172 = vmax.f32 %v4170, %v4171
  %v4173 = vsel %vm3934, %v3748, -inf
  %v4174 = vrot.slane %v4173, 4
  %v4175 = vmax.f32 %v4173, %v4174
  %v4176 = vrot.slane %v4175, 2
  %v4177 = vmax.f32 %v4175, %v4176
  %v4178 = vrot.slane %v4177, 1
  %v4179 = vmax.f32 %v4177, %v4178
  %v4180 = vsel %vm3934, %v3750, -inf
  %v4181 = vrot.slane %v4180, 4
  %v4182 = vmax.f32 %v4180, %v4181
  %v4183 = vrot.slane %v4182, 2
  %v4184 = vmax.f32 %v4182, %v4183
  %v4185 = vrot.slane %v4184, 1
  %v4186 = vmax.f32 %v4184, %v4185
  %v4187 = vsel %vm3934, %v3758, -inf
  %v4188 = vrot.slane %v4187, 4
  %v4189 = vmax.f32 %v4187, %v4188
  %v4190 = vrot.slane %v4189, 2
  %v4191 = vmax.f32 %v4189, %v4190
  %v4192 = vrot.slane %v4191, 1
  %v4193 = vmax.f32 %v4191, %v4192
  %v4194 = vsel %vm3934, %v3766, -inf
  %v4195 = vrot.slane %v4194, 4
  %v4196 = vmax.f32 %v4194, %v4195
  %v4197 = vrot.slane %v4196, 2
  %v4198 = vmax.f32 %v4196, %v4197
  %v4199 = vrot.slane %v4198, 1
  %v4200 = vmax.f32 %v4198, %v4199
  %v4201 = vsel %vm3934, %v3765, -inf
  %v4202 = vrot.slane %v4201, 4
  %v4203 = vmax.f32 %v4201, %v4202
  %v4204 = vrot.slane %v4203, 2
  %v4205 = vmax.f32 %v4203, %v4204
  %v4206 = vrot.slane %v4205, 1
  %v4207 = vmax.f32 %v4205, %v4206
  %v4208 = vsel %vm3934, %v3767, -inf
  %v4209 = vrot.slane %v4208, 4
  %v4210 = vmax.f32 %v4208, %v4209
  %v4211 = vrot.slane %v4210, 2
  %v4212 = vmax.f32 %v4210, %v4211
  %v4213 = vrot.slane %v4212, 1
  %v4214 = vmax.f32 %v4212, %v4213
  %v4215 = vsel %vm3934, %v3775, -inf
  %v4216 = vrot.slane %v4215, 4
  %v4217 = vmax.f32 %v4215, %v4216
  %v4218 = vrot.slane %v4217, 2
  %v4219 = vmax.f32 %v4217, %v4218
  %v4220 = vrot.slane %v4219, 1
  %v4221 = vmax.f32 %v4219, %v4220
  %v4222 = vsel %vm3934, %v3783, -inf
  %v4223 = vrot.slane %v4222, 4
  %v4224 = vmax.f32 %v4222, %v4223
  %v4225 = vrot.slane %v4224, 2
  %v4226 = vmax.f32 %v4224, %v4225
  %v4227 = vrot.slane %v4226, 1
  %v4228 = vmax.f32 %v4226, %v4227
  %v4229 = vsel %vm3934, %v3782, -inf
  %v4230 = vrot.slane %v4229, 4
  %v4231 = vmax.f32 %v4229, %v4230
  %v4232 = vrot.slane %v4231, 2
  %v4233 = vmax.f32 %v4231, %v4232
  %v4234 = vrot.slane %v4233, 1
  %v4235 = vmax.f32 %v4233, %v4234
  %v4236 = vsel %vm3934, %v3784, -inf
  %v4237 = vrot.slane %v4236, 4
  %v4238 = vmax.f32 %v4236, %v4237
  %v4239 = vrot.slane %v4238, 2
  %v4240 = vmax.f32 %v4238, %v4239
  %v4241 = vrot.slane %v4240, 1
  %v4242 = vmax.f32 %v4240, %v4241
  %v4243 = vsel %vm3934, %v3792, -inf
  %v4244 = vrot.slane %v4243, 4
  %v4245 = vmax.f32 %v4243, %v4244
  %v4246 = vrot.slane %v4245, 2
  %v4247 = vmax.f32 %v4245, %v4246
  %v4248 = vrot.slane %v4247, 1
  %v4249 = vmax.f32 %v4247, %v4248
  %v4250 = vsel %vm3934, %v3800, -inf
  %v4251 = vrot.slane %v4250, 4
  %v4252 = vmax.f32 %v4250, %v4251
  %v4253 = vrot.slane %v4252, 2
  %v4254 = vmax.f32 %v4252, %v4253
  %v4255 = vrot.slane %v4254, 1
  %v4256 = vmax.f32 %v4254, %v4255
  %v4257 = vsel %vm3934, %v3799, -inf
  %v4258 = vrot.slane %v4257, 4
  %v4259 = vmax.f32 %v4257, %v4258
  %v4260 = vrot.slane %v4259, 2
  %v4261 = vmax.f32 %v4259, %v4260
  %v4262 = vrot.slane %v4261, 1
  %v4263 = vmax.f32 %v4261, %v4262
  %v4264 = vsel %vm3934, %v3801, -inf
  %v4265 = vrot.slane %v4264, 4
  %v4266 = vmax.f32 %v4264, %v4265
  %v4267 = vrot.slane %v4266, 2
  %v4268 = vmax.f32 %v4266, %v4267
  %v4269 = vrot.slane %v4268, 1
  %v4270 = vmax.f32 %v4268, %v4269
  %v4271 = vsel %vm3934, %v3809, -inf
  %v4272 = vrot.slane %v4271, 4
  %v4273 = vmax.f32 %v4271, %v4272
  %v4274 = vrot.slane %v4273, 2
  %v4275 = vmax.f32 %v4273, %v4274
  %v4276 = vrot.slane %v4275, 1
  %v4277 = vmax.f32 %v4275, %v4276
  %v4278 = vsel %vm3934, %v3817, -inf
  %v4279 = vrot.slane %v4278, 4
  %v4280 = vmax.f32 %v4278, %v4279
  %v4281 = vrot.slane %v4280, 2
  %v4282 = vmax.f32 %v4280, %v4281
  %v4283 = vrot.slane %v4282, 1
  %v4284 = vmax.f32 %v4282, %v4283
  %v4285 = vsel %vm3934, %v3816, -inf
  %v4286 = vrot.slane %v4285, 4
  %v4287 = vmax.f32 %v4285, %v4286
  %v4288 = vrot.slane %v4287, 2
  %v4289 = vmax.f32 %v4287, %v4288
  %v4290 = vrot.slane %v4289, 1
  %v4291 = vmax.f32 %v4289, %v4290
  %v4292 = vsel %vm3934, %v3818, -inf
  %v4293 = vrot.slane %v4292, 4
  %v4294 = vmax.f32 %v4292, %v4293
  %v4295 = vrot.slane %v4294, 2
  %v4296 = vmax.f32 %v4294, %v4295
  %v4297 = vrot.slane %v4296, 1
  %v4298 = vmax.f32 %v4296, %v4297
  %v4299 = vsel %vm3934, %v3826, -inf
  %v4300 = vrot.slane %v4299, 4
  %v4301 = vmax.f32 %v4299, %v4300
  %v4302 = vrot.slane %v4301, 2
  %v4303 = vmax.f32 %v4301, %v4302
  %v4304 = vrot.slane %v4303, 1
  %v4305 = vmax.f32 %v4303, %v4304
  %v4306 = vsel %vm3934, %v3834, -inf
  %v4307 = vrot.slane %v4306, 4
  %v4308 = vmax.f32 %v4306, %v4307
  %v4309 = vrot.slane %v4308, 2
  %v4310 = vmax.f32 %v4308, %v4309
  %v4311 = vrot.slane %v4310, 1
  %v4312 = vmax.f32 %v4310, %v4311
  %v4313 = vsel %vm3934, %v3833, -inf
  %v4314 = vrot.slane %v4313, 4
  %v4315 = vmax.f32 %v4313, %v4314
  %v4316 = vrot.slane %v4315, 2
  %v4317 = vmax.f32 %v4315, %v4316
  %v4318 = vrot.slane %v4317, 1
  %v4319 = vmax.f32 %v4317, %v4318
  %v4320 = vsel %vm3934, %v3835, -inf
  %v4321 = vrot.slane %v4320, 4
  %v4322 = vmax.f32 %v4320, %v4321
  %v4323 = vrot.slane %v4322, 2
  %v4324 = vmax.f32 %v4322, %v4323
  %v4325 = vrot.slane %v4324, 1
  %v4326 = vmax.f32 %v4324, %v4325
  %v4327 = vsel %vm3934, %v3843, -inf
  %v4328 = vrot.slane %v4327, 4
  %v4329 = vmax.f32 %v4327, %v4328
  %v4330 = vrot.slane %v4329, 2
  %v4331 = vmax.f32 %v4329, %v4330
  %v4332 = vrot.slane %v4331, 1
  %v4333 = vmax.f32 %v4331, %v4332
  %v4334 = vsel %vm3934, %v3851, -inf
  %v4335 = vrot.slane %v4334, 4
  %v4336 = vmax.f32 %v4334, %v4335
  %v4337 = vrot.slane %v4336, 2
  %v4338 = vmax.f32 %v4336, %v4337
  %v4339 = vrot.slane %v4338, 1
  %v4340 = vmax.f32 %v4338, %v4339
  %v4341 = vsel %vm3934, %v3850, -inf
  %v4342 = vrot.slane %v4341, 4
  %v4343 = vmax.f32 %v4341, %v4342
  %v4344 = vrot.slane %v4343, 2
  %v4345 = vmax.f32 %v4343, %v4344
  %v4346 = vrot.slane %v4345, 1
  %v4347 = vmax.f32 %v4345, %v4346
  %v4348 = vsel %vm3934, %v3852, -inf
  %v4349 = vrot.slane %v4348, 4
  %v4350 = vmax.f32 %v4348, %v4349
  %v4351 = vrot.slane %v4350, 2
  %v4352 = vmax.f32 %v4350, %v4351
  %v4353 = vrot.slane %v4352, 1
  %v4354 = vmax.f32 %v4352, %v4353
  %v4355 = vsel %vm3934, %v3860, -inf
  %v4356 = vrot.slane %v4355, 4
  %v4357 = vmax.f32 %v4355, %v4356
  %v4358 = vrot.slane %v4357, 2
  %v4359 = vmax.f32 %v4357, %v4358
  %v4360 = vrot.slane %v4359, 1
  %v4361 = vmax.f32 %v4359, %v4360
  %v4362 = vsel %vm3934, %v3868, -inf
  %v4363 = vrot.slane %v4362, 4
  %v4364 = vmax.f32 %v4362, %v4363
  %v4365 = vrot.slane %v4364, 2
  %v4366 = vmax.f32 %v4364, %v4365
  %v4367 = vrot.slane %v4366, 1
  %v4368 = vmax.f32 %v4366, %v4367
  %v4369 = vsel %vm3934, %v3867, -inf
  %v4370 = vrot.slane %v4369, 4
  %v4371 = vmax.f32 %v4369, %v4370
  %v4372 = vrot.slane %v4371, 2
  %v4373 = vmax.f32 %v4371, %v4372
  %v4374 = vrot.slane %v4373, 1
  %v4375 = vmax.f32 %v4373, %v4374
  %v4376 = vsel %vm3934, %v3869, -inf
  %v4377 = vrot.slane %v4376, 4
  %v4378 = vmax.f32 %v4376, %v4377
  %v4379 = vrot.slane %v4378, 2
  %v4380 = vmax.f32 %v4378, %v4379
  %v4381 = vrot.slane %v4380, 1
  %v4382 = vmax.f32 %v4380, %v4381
  %v4383 = vsel %vm1655, %v3941, -inf
  %v4384 = vsel %vm1655, %v3997, -inf
  %v4385 = vmax.f32 %v4383, %v4384
  %v4386 = vsel %vm1655, %v3948, -inf
  %v4387 = vsel %vm1655, %v4004, -inf
  %v4388 = vmax.f32 %v4386, %v4387
  %v4389 = vsel %vm1655, %v3955, -inf
  %v4390 = vsel %vm1655, %v4011, -inf
  %v4391 = vmax.f32 %v4389, %v4390
  %v4392 = vsel %vm1655, %v3962, -inf
  %v4393 = vsel %vm1655, %v4018, -inf
  %v4394 = vmax.f32 %v4392, %v4393
  %v4395 = vsel %vm1655, %v3969, -inf
  %v4396 = vsel %vm1655, %v4025, -inf
  %v4397 = vmax.f32 %v4395, %v4396
  %v4398 = vsel %vm1655, %v3976, -inf
  %v4399 = vsel %vm1655, %v4032, -inf
  %v4400 = vmax.f32 %v4398, %v4399
  %v4401 = vsel %vm1655, %v3983, -inf
  %v4402 = vsel %vm1655, %v4039, -inf
  %v4403 = vmax.f32 %v4401, %v4402
  %v4404 = vsel %vm1655, %v3990, -inf
  %v4405 = vsel %vm1655, %v4046, -inf
  %v4406 = vmax.f32 %v4404, %v4405
  %v4407 = vsel %vm1655, %v4053, -inf
  %v4408 = vsel %vm1655, %v4109, -inf
  %v4409 = vmax.f32 %v4407, %v4408
  %v4410 = vsel %vm1655, %v4060, -inf
  %v4411 = vsel %vm1655, %v4116, -inf
  %v4412 = vmax.f32 %v4410, %v4411
  %v4413 = vsel %vm1655, %v4067, -inf
  %v4414 = vsel %vm1655, %v4123, -inf
  %v4415 = vmax.f32 %v4413, %v4414
  %v4416 = vsel %vm1655, %v4074, -inf
  %v4417 = vsel %vm1655, %v4130, -inf
  %v4418 = vmax.f32 %v4416, %v4417
  %v4419 = vsel %vm1655, %v4081, -inf
  %v4420 = vsel %vm1655, %v4137, -inf
  %v4421 = vmax.f32 %v4419, %v4420
  %v4422 = vsel %vm1655, %v4088, -inf
  %v4423 = vsel %vm1655, %v4144, -inf
  %v4424 = vmax.f32 %v4422, %v4423
  %v4425 = vsel %vm1655, %v4095, -inf
  %v4426 = vsel %vm1655, %v4151, -inf
  %v4427 = vmax.f32 %v4425, %v4426
  %v4428 = vsel %vm1655, %v4102, -inf
  %v4429 = vsel %vm1655, %v4158, -inf
  %v4430 = vmax.f32 %v4428, %v4429
  %v4431 = vsel %vm1655, %v4165, -inf
  %v4432 = vsel %vm1655, %v4221, -inf
  %v4433 = vmax.f32 %v4431, %v4432
  %v4434 = vsel %vm1655, %v4172, -inf
  %v4435 = vsel %vm1655, %v4228, -inf
  %v4436 = vmax.f32 %v4434, %v4435
  %v4437 = vsel %vm1655, %v4179, -inf
  %v4438 = vsel %vm1655, %v4235, -inf
  %v4439 = vmax.f32 %v4437, %v4438
  %v4440 = vsel %vm1655, %v4186, -inf
  %v4441 = vsel %vm1655, %v4242, -inf
  %v4442 = vmax.f32 %v4440, %v4441
  %v4443 = vsel %vm1655, %v4193, -inf
  %v4444 = vsel %vm1655, %v4249, -inf
  %v4445 = vmax.f32 %v4443, %v4444
  %v4446 = vsel %vm1655, %v4200, -inf
  %v4447 = vsel %vm1655, %v4256, -inf
  %v4448 = vmax.f32 %v4446, %v4447
  %v4449 = vsel %vm1655, %v4207, -inf
  %v4450 = vsel %vm1655, %v4263, -inf
  %v4451 = vmax.f32 %v4449, %v4450
  %v4452 = vsel %vm1655, %v4214, -inf
  %v4453 = vsel %vm1655, %v4270, -inf
  %v4454 = vmax.f32 %v4452, %v4453
  %v4455 = vsel %vm1655, %v4277, -inf
  %v4456 = vsel %vm1655, %v4333, -inf
  %v4457 = vmax.f32 %v4455, %v4456
  %v4458 = vsel %vm1655, %v4284, -inf
  %v4459 = vsel %vm1655, %v4340, -inf
  %v4460 = vmax.f32 %v4458, %v4459
  %v4461 = vsel %vm1655, %v4291, -inf
  %v4462 = vsel %vm1655, %v4347, -inf
  %v4463 = vmax.f32 %v4461, %v4462
  %v4464 = vsel %vm1655, %v4298, -inf
  %v4465 = vsel %vm1655, %v4354, -inf
  %v4466 = vmax.f32 %v4464, %v4465
  %v4467 = vsel %vm1655, %v4305, -inf
  %v4468 = vsel %vm1655, %v4361, -inf
  %v4469 = vmax.f32 %v4467, %v4468
  %v4470 = vsel %vm1655, %v4312, -inf
  %v4471 = vsel %vm1655, %v4368, -inf
  %v4472 = vmax.f32 %v4470, %v4471
  %v4473 = vsel %vm1655, %v4319, -inf
  %v4474 = vsel %vm1655, %v4375, -inf
  %v4475 = vmax.f32 %v4473, %v4474
  %v4476 = vsel %vm1655, %v4326, -inf
  %v4477 = vsel %vm1655, %v4382, -inf
  %v4478 = vmax.f32 %v4476, %v4477
  %v4479 = vpack.c.bf16 %v4385, %v4385
  %v4480 = vpack.c.bf16 %v4388, %v4388
  %v4481 = vpack.c.bf16 %v4391, %v4391
  %v4482 = vpack.c.bf16 %v4394, %v4394
  %v4483 = vpack.c.bf16 %v4397, %v4397
  %v4484 = vpack.c.bf16 %v4400, %v4400
  %v4485 = vpack.c.bf16 %v4403, %v4403
  %v4486 = vpack.c.bf16 %v4406, %v4406
  %v4487 = vpack.c.bf16 %v4409, %v4409
  %v4488 = vpack.c.bf16 %v4412, %v4412
  %v4489 = vpack.c.bf16 %v4415, %v4415
  %v4490 = vpack.c.bf16 %v4418, %v4418
  %v4491 = vpack.c.bf16 %v4421, %v4421
  %v4492 = vpack.c.bf16 %v4424, %v4424
  %v4493 = vpack.c.bf16 %v4427, %v4427
  %v4494 = vpack.c.bf16 %v4430, %v4430
  %v4495 = vpack.c.bf16 %v4433, %v4433
  %v4496 = vpack.c.bf16 %v4436, %v4436
  %v4497 = vpack.c.bf16 %v4439, %v4439
  %v4498 = vpack.c.bf16 %v4442, %v4442
  %v4499 = vpack.c.bf16 %v4445, %v4445
  %v4500 = vpack.c.bf16 %v4448, %v4448
  %v4501 = vpack.c.bf16 %v4451, %v4451
  %v4502 = vpack.c.bf16 %v4454, %v4454
  %v4503 = vpack.c.bf16 %v4457, %v4457
  %v4504 = vpack.c.bf16 %v4460, %v4460
  %v4505 = vpack.c.bf16 %v4463, %v4463
  %v4506 = vpack.c.bf16 %v4466, %v4466
  %v4507 = vpack.c.bf16 %v4469, %v4469
  %v4508 = vpack.c.bf16 %v4472, %v4472
  %v4509 = vpack.c.bf16 %v4475, %v4475
  %v4510 = vpack.c.bf16 %v4478, %v4478
  %v4543 = vunpack.c.l.b16 %v4479
  %v4544 = vunpack.c.l.b16 %v4480
  %v4545 = vunpack.c.l.b16 %v4481
  %v4546 = vunpack.c.l.b16 %v4482
  %v4547 = vunpack.c.l.b16 %v4483
  %v4548 = vunpack.c.l.b16 %v4484
  %v4549 = vunpack.c.l.b16 %v4485
  %v4550 = vunpack.c.l.b16 %v4486
  %v4551 = vunpack.c.l.b16 %v4487
  %v4552 = vunpack.c.l.b16 %v4488
  %v4553 = vunpack.c.l.b16 %v4489
  %v4554 = vunpack.c.l.b16 %v4490
  %v4555 = vunpack.c.l.b16 %v4491
  %v4556 = vunpack.c.l.b16 %v4492
  %v4557 = vunpack.c.l.b16 %v4493
  %v4558 = vunpack.c.l.b16 %v4494
  %v4559 = vunpack.c.l.b16 %v4495
  %v4560 = vunpack.c.l.b16 %v4496
  %v4561 = vunpack.c.l.b16 %v4497
  %v4562 = vunpack.c.l.b16 %v4498
  %v4563 = vunpack.c.l.b16 %v4499
  %v4564 = vunpack.c.l.b16 %v4500
  %v4565 = vunpack.c.l.b16 %v4501
  %v4566 = vunpack.c.l.b16 %v4502
  %v4567 = vunpack.c.l.b16 %v4503
  %v4568 = vunpack.c.l.b16 %v4504
  %v4569 = vunpack.c.l.b16 %v4505
  %v4570 = vunpack.c.l.b16 %v4506
  %v4571 = vunpack.c.l.b16 %v4507
  %v4572 = vunpack.c.l.b16 %v4508
  %v4573 = vunpack.c.l.b16 %v4509
  %v4574 = vunpack.c.l.b16 %v4510
  %v4575 = vpack.c.b16 %v4543, %v4543
  %v4576 = vpack.c.b16 %v4544, %v4544
  %v4577 = vpack.c.b16 %v4545, %v4545
  %v4578 = vpack.c.b16 %v4546, %v4546
  %v4579 = vpack.c.b16 %v4547, %v4547
  %v4580 = vpack.c.b16 %v4548, %v4548
  %v4581 = vpack.c.b16 %v4549, %v4549
  %v4582 = vpack.c.b16 %v4550, %v4550
  %v4583 = vpack.c.b16 %v4551, %v4551
  %v4584 = vpack.c.b16 %v4552, %v4552
  %v4585 = vpack.c.b16 %v4553, %v4553
  %v4586 = vpack.c.b16 %v4554, %v4554
  %v4587 = vpack.c.b16 %v4555, %v4555
  %v4588 = vpack.c.b16 %v4556, %v4556
  %v4589 = vpack.c.b16 %v4557, %v4557
  %v4590 = vpack.c.b16 %v4558, %v4558
  %v4591 = vpack.c.b16 %v4559, %v4559
  %v4592 = vpack.c.b16 %v4560, %v4560
  %v4593 = vpack.c.b16 %v4561, %v4561
  %v4594 = vpack.c.b16 %v4562, %v4562
  %v4595 = vpack.c.b16 %v4563, %v4563
  %v4596 = vpack.c.b16 %v4564, %v4564
  %v4597 = vpack.c.b16 %v4565, %v4565
  %v4598 = vpack.c.b16 %v4566, %v4566
  %v4599 = vpack.c.b16 %v4567, %v4567
  %v4600 = vpack.c.b16 %v4568, %v4568
  %v4601 = vpack.c.b16 %v4569, %v4569
  %v4602 = vpack.c.b16 %v4570, %v4570
  %v4603 = vpack.c.b16 %v4571, %v4571
  %v4604 = vpack.c.b16 %v4572, %v4572
  %v4605 = vpack.c.b16 %v4573, %v4573
  %v4606 = vpack.c.b16 %v4574, %v4574
  %v4607 = vunpack.c.l.b16 %v4575
  %v4608 = vunpack.c.l.b16 %v4576
  %v4609 = vunpack.c.l.b16 %v4577
  %v4610 = vunpack.c.l.b16 %v4578
  %v4611 = vunpack.c.l.b16 %v4579
  %v4612 = vunpack.c.l.b16 %v4580
  %v4613 = vunpack.c.l.b16 %v4581
  %v4614 = vunpack.c.l.b16 %v4582
  %v4615 = vunpack.c.l.b16 %v4583
  %v4616 = vunpack.c.l.b16 %v4584
  %v4617 = vunpack.c.l.b16 %v4585
  %v4618 = vunpack.c.l.b16 %v4586
  %v4619 = vunpack.c.l.b16 %v4587
  %v4620 = vunpack.c.l.b16 %v4588
  %v4621 = vunpack.c.l.b16 %v4589
  %v4622 = vunpack.c.l.b16 %v4590
  %v4623 = vunpack.c.l.b16 %v4591
  %v4624 = vunpack.c.l.b16 %v4592
  %v4625 = vunpack.c.l.b16 %v4593
  %v4626 = vunpack.c.l.b16 %v4594
  %v4627 = vunpack.c.l.b16 %v4595
  %v4628 = vunpack.c.l.b16 %v4596
  %v4629 = vunpack.c.l.b16 %v4597
  %v4630 = vunpack.c.l.b16 %v4598
  %v4631 = vunpack.c.l.b16 %v4599
  %v4632 = vunpack.c.l.b16 %v4600
  %v4633 = vunpack.c.l.b16 %v4601
  %v4634 = vunpack.c.l.b16 %v4602
  %v4635 = vunpack.c.l.b16 %v4603
  %v4636 = vunpack.c.l.b16 %v4604
  %v4637 = vunpack.c.l.b16 %v4605
  %v4638 = vunpack.c.l.b16 %v4606
  %vm4639 = vcmask 1041409
  %v4640 = vsel %vm4639, %v4608, %v4607
  %vm4641 = vcmask 1042434
  %v4642 = vsel %vm4641, %v4609, %v4640
  %vm4643 = vcmask 1043459
  %v4644 = vsel %vm4643, %v4610, %v4642
  %vm4645 = vcmask 1044484
  %v4646 = vsel %vm4645, %v4611, %v4644
  %vm4647 = vcmask 1045509
  %v4648 = vsel %vm4647, %v4612, %v4646
  %vm4649 = vcmask 1046534
  %v4650 = vsel %vm4649, %v4613, %v4648
  %vm4651 = vcmask 1047559
  %v4652 = vsel %vm4651, %v4614, %v4650
  %v4653 = vsel %vm4639, %v4616, %v4615
  %v4654 = vsel %vm4641, %v4617, %v4653
  %v4655 = vsel %vm4643, %v4618, %v4654
  %v4656 = vsel %vm4645, %v4619, %v4655
  %v4657 = vsel %vm4647, %v4620, %v4656
  %v4658 = vsel %vm4649, %v4621, %v4657
  %v4659 = vsel %vm4651, %v4622, %v4658
  %v4660 = vsel %vm4639, %v4624, %v4623
  %v4661 = vsel %vm4641, %v4625, %v4660
  %v4662 = vsel %vm4643, %v4626, %v4661
  %v4663 = vsel %vm4645, %v4627, %v4662
  %v4664 = vsel %vm4647, %v4628, %v4663
  %v4665 = vsel %vm4649, %v4629, %v4664
  %v4666 = vsel %vm4651, %v4630, %v4665
  %v4667 = vsel %vm4639, %v4632, %v4631
  %v4668 = vsel %vm4641, %v4633, %v4667
  %v4669 = vsel %vm4643, %v4634, %v4668
  %v4670 = vsel %vm4645, %v4635, %v4669
  %v4671 = vsel %vm4647, %v4636, %v4670
  %v4672 = vsel %vm4649, %v4637, %v4671
  %v4673 = vsel %vm4651, %v4638, %v4672
  %v4674 = vpack.c.b16 %v4652, %v4652
  %v4675 = vpack.c.b16 %v4659, %v4659
  %v4676 = vpack.c.b16 %v4666, %v4666
  %v4677 = vpack.c.b16 %v4673, %v4673
  %vm4682 = vcmask 125952
  %4683 = vst.msk [vmem:[%s4] sm:$0xf] %vm4682, %v4674
  %4684 = vst.msk [vmem:[%s4 + $0x4] sm:$0xf] %vm4682, %v4675
  %4685 = vst.msk [vmem:[%s4 + $0x8] sm:$0xf] %vm4682, %v4676
  %4686 = vst.msk [vmem:[%s4 + $0xc] sm:$0xf] %vm4682, %v4677
  %v4687 = vld [vmem:[#allocation2 + $0x80] sm:$0xff]
  %v4688 = vld [vmem:[#allocation2 + $0x88] sm:$0xff]
  %v4689 = vld [vmem:[#allocation2 + $0x90] sm:$0xff]
  %v4690 = vld [vmem:[#allocation2 + $0x98] sm:$0xff]
  %v4691 = vld [vmem:[#allocation2 + $0xa0] sm:$0xff]
  %v4692 = vld [vmem:[#allocation2 + $0xa8] sm:$0xff]
  %v4693 = vld [vmem:[#allocation2 + $0xb0] sm:$0xff]
  %v4694 = vld [vmem:[#allocation2 + $0xb8] sm:$0xff]
  %v4695 = vld [vmem:[#allocation2 + $0xc0] sm:$0xff]
  %v4696 = vld [vmem:[#allocation2 + $0xc8] sm:$0xff]
  %v4697 = vld [vmem:[#allocation2 + $0xd0] sm:$0xff]
  %v4698 = vld [vmem:[#allocation2 + $0xd8] sm:$0xff]
  %v4699 = vld [vmem:[#allocation2 + $0xe0] sm:$0xff]
  %v4700 = vld [vmem:[#allocation2 + $0xe8] sm:$0xff]
  %v4701 = vld [vmem:[#allocation2 + $0xf0] sm:$0xff]
  %v4702 = vld [vmem:[#allocation2 + $0xf8] sm:$0xff]
  %v4703 = vmul.f32 %v4687, %v3526
  %v4704 = vmul.f32 %v4688, %v3526
  %v4705 = vmul.f32 %v4689, %v3526
  %v4706 = vmul.f32 %v4690, %v3526
  %v4707 = vmul.f32 %v4691, %v3526
  %v4708 = vmul.f32 %v4692, %v3526
  %v4709 = vmul.f32 %v4693, %v3526
  %v4710 = vmul.f32 %v4694, %v3526
  %v4711 = vmul.f32 %v4695, %v3526
  %v4712 = vmul.f32 %v4696, %v3526
  %v4713 = vmul.f32 %v4697, %v3526
  %v4714 = vmul.f32 %v4698, %v3526
  %v4715 = vmul.f32 %v4699, %v3526
  %v4716 = vmul.f32 %v4700, %v3526
  %v4717 = vmul.f32 %v4701, %v3526
  %v4718 = vmul.f32 %v4702, %v3526
  %v4719 = vadd.f32 %v4703, %v3548
  %v4720 = vadd.f32 %v4704, %v3548
  %v4721 = vadd.f32 %v4705, %v3548
  %v4722 = vadd.f32 %v4706, %v3548
  %v4723 = vadd.f32 %v4707, %v3548
  %v4724 = vadd.f32 %v4708, %v3548
  %v4725 = vadd.f32 %v4709, %v3548
  %v4726 = vadd.f32 %v4710, %v3548
  %v4727 = vadd.f32 %v4711, %v3548
  %v4728 = vadd.f32 %v4712, %v3548
  %v4729 = vadd.f32 %v4713, %v3548
  %v4730 = vadd.f32 %v4714, %v3548
  %v4731 = vadd.f32 %v4715, %v3548
  %v4732 = vadd.f32 %v4716, %v3548
  %v4733 = vadd.f32 %v4717, %v3548
  %v4734 = vadd.f32 %v4718, %v3548
  %v4735 = vmax.f32 %v4719, 0.0
  %v4736 = vmax.f32 %v4720, 0.0
  %v4737 = vmax.f32 %v4721, 0.0
  %v4738 = vmax.f32 %v4722, 0.0
  %v4739 = vmax.f32 %v4723, 0.0
  %v4740 = vmax.f32 %v4724, 0.0
  %v4741 = vmax.f32 %v4725, 0.0
  %v4742 = vmax.f32 %v4726, 0.0
  %v4743 = vmax.f32 %v4727, 0.0
  %v4744 = vmax.f32 %v4728, 0.0
  %v4745 = vmax.f32 %v4729, 0.0
  %v4746 = vmax.f32 %v4730, 0.0
  %v4747 = vmax.f32 %v4731, 0.0
  %v4748 = vmax.f32 %v4732, 0.0
  %v4749 = vmax.f32 %v4733, 0.0
  %v4750 = vmax.f32 %v4734, 0.0
  %v4767 = vcombine.high %v4735, %v4735
  %v4769 = vunpack.c.l.s4 1983009808
  %v4770 = vunpack.c.0.s8 %v4769
  %v4771 = vlaneseq
  %v4772 = vshrl.u32 %v4771, 7
  %v4773 = vsub.s32 %v4770, %v4772
  %v4774 = vrot.slane %v4735, %v4773
  %v4776 = vunpack.c.l.s4 1983009808
  %v4777 = vunpack.c.0.s8 %v4776
  %v4778 = vlaneseq
  %v4779 = vshrl.u32 %v4778, 7
  %v4780 = vsub.s32 %v4777, %v4779
  %v4781 = vrot.slane %v4767, %v4780
  %v4782 = vcombine.high %v4774, %v4774
  %v4783 = vcombine.high %v4781, %v4781
  %v4784 = vcombine.high %v4736, %v4736
  %v4786 = vunpack.c.l.s4 1983009808
  %v4787 = vunpack.c.0.s8 %v4786
  %v4788 = vlaneseq
  %v4789 = vshrl.u32 %v4788, 7
  %v4790 = vsub.s32 %v4787, %v4789
  %v4791 = vrot.slane %v4736, %v4790
  %v4793 = vunpack.c.l.s4 1983009808
  %v4794 = vunpack.c.0.s8 %v4793
  %v4795 = vlaneseq
  %v4796 = vshrl.u32 %v4795, 7
  %v4797 = vsub.s32 %v4794, %v4796
  %v4798 = vrot.slane %v4784, %v4797
  %v4799 = vcombine.high %v4791, %v4791
  %v4800 = vcombine.high %v4798, %v4798
  %v4801 = vcombine.high %v4737, %v4737
  %v4803 = vunpack.c.l.s4 1983009808
  %v4804 = vunpack.c.0.s8 %v4803
  %v4805 = vlaneseq
  %v4806 = vshrl.u32 %v4805, 7
  %v4807 = vsub.s32 %v4804, %v4806
  %v4808 = vrot.slane %v4737, %v4807
  %v4810 = vunpack.c.l.s4 1983009808
  %v4811 = vunpack.c.0.s8 %v4810
  %v4812 = vlaneseq
  %v4813 = vshrl.u32 %v4812, 7
  %v4814 = vsub.s32 %v4811, %v4813
  %v4815 = vrot.slane %v4801, %v4814
  %v4816 = vcombine.high %v4808, %v4808
  %v4817 = vcombine.high %v4815, %v4815
  %v4818 = vcombine.high %v4738, %v4738
  %v4820 = vunpack.c.l.s4 1983009808
  %v4821 = vunpack.c.0.s8 %v4820
  %v4822 = vlaneseq
  %v4823 = vshrl.u32 %v4822, 7
  %v4824 = vsub.s32 %v4821, %v4823
  %v4825 = vrot.slane %v4738, %v4824
  %v4827 = vunpack.c.l.s4 1983009808
  %v4828 = vunpack.c.0.s8 %v4827
  %v4829 = vlaneseq
  %v4830 = vshrl.u32 %v4829, 7
  %v4831 = vsub.s32 %v4828, %v4830
  %v4832 = vrot.slane %v4818, %v4831
  %v4833 = vcombine.high %v4825, %v4825
  %v4834 = vcombine.high %v4832, %v4832
  %v4835 = vcombine.high %v4739, %v4739
  %v4837 = vunpack.c.l.s4 1983009808
  %v4838 = vunpack.c.0.s8 %v4837
  %v4839 = vlaneseq
  %v4840 = vshrl.u32 %v4839, 7
  %v4841 = vsub.s32 %v4838, %v4840
  %v4842 = vrot.slane %v4739, %v4841
  %v4844 = vunpack.c.l.s4 1983009808
  %v4845 = vunpack.c.0.s8 %v4844
  %v4846 = vlaneseq
  %v4847 = vshrl.u32 %v4846, 7
  %v4848 = vsub.s32 %v4845, %v4847
  %v4849 = vrot.slane %v4835, %v4848
  %v4850 = vcombine.high %v4842, %v4842
  %v4851 = vcombine.high %v4849, %v4849
  %v4852 = vcombine.high %v4740, %v4740
  %v4854 = vunpack.c.l.s4 1983009808
  %v4855 = vunpack.c.0.s8 %v4854
  %v4856 = vlaneseq
  %v4857 = vshrl.u32 %v4856, 7
  %v4858 = vsub.s32 %v4855, %v4857
  %v4859 = vrot.slane %v4740, %v4858
  %v4861 = vunpack.c.l.s4 1983009808
  %v4862 = vunpack.c.0.s8 %v4861
  %v4863 = vlaneseq
  %v4864 = vshrl.u32 %v4863, 7
  %v4865 = vsub.s32 %v4862, %v4864
  %v4866 = vrot.slane %v4852, %v4865
  %v4867 = vcombine.high %v4859, %v4859
  %v4868 = vcombine.high %v4866, %v4866
  %v4869 = vcombine.high %v4741, %v4741
  %v4871 = vunpack.c.l.s4 1983009808
  %v4872 = vunpack.c.0.s8 %v4871
  %v4873 = vlaneseq
  %v4874 = vshrl.u32 %v4873, 7
  %v4875 = vsub.s32 %v4872, %v4874
  %v4876 = vrot.slane %v4741, %v4875
  %v4878 = vunpack.c.l.s4 1983009808
  %v4879 = vunpack.c.0.s8 %v4878
  %v4880 = vlaneseq
  %v4881 = vshrl.u32 %v4880, 7
  %v4882 = vsub.s32 %v4879, %v4881
  %v4883 = vrot.slane %v4869, %v4882
  %v4884 = vcombine.high %v4876, %v4876
  %v4885 = vcombine.high %v4883, %v4883
  %v4886 = vcombine.high %v4742, %v4742
  %v4888 = vunpack.c.l.s4 1983009808
  %v4889 = vunpack.c.0.s8 %v4888
  %v4890 = vlaneseq
  %v4891 = vshrl.u32 %v4890, 7
  %v4892 = vsub.s32 %v4889, %v4891
  %v4893 = vrot.slane %v4742, %v4892
  %v4895 = vunpack.c.l.s4 1983009808
  %v4896 = vunpack.c.0.s8 %v4895
  %v4897 = vlaneseq
  %v4898 = vshrl.u32 %v4897, 7
  %v4899 = vsub.s32 %v4896, %v4898
  %v4900 = vrot.slane %v4886, %v4899
  %v4901 = vcombine.high %v4893, %v4893
  %v4902 = vcombine.high %v4900, %v4900
  %v4903 = vcombine.high %v4743, %v4743
  %v4905 = vunpack.c.l.s4 1983009808
  %v4906 = vunpack.c.0.s8 %v4905
  %v4907 = vlaneseq
  %v4908 = vshrl.u32 %v4907, 7
  %v4909 = vsub.s32 %v4906, %v4908
  %v4910 = vrot.slane %v4743, %v4909
  %v4912 = vunpack.c.l.s4 1983009808
  %v4913 = vunpack.c.0.s8 %v4912
  %v4914 = vlaneseq
  %v4915 = vshrl.u32 %v4914, 7
  %v4916 = vsub.s32 %v4913, %v4915
  %v4917 = vrot.slane %v4903, %v4916
  %v4918 = vcombine.high %v4910, %v4910
  %v4919 = vcombine.high %v4917, %v4917
  %v4920 = vcombine.high %v4744, %v4744
  %v4922 = vunpack.c.l.s4 1983009808
  %v4923 = vunpack.c.0.s8 %v4922
  %v4924 = vlaneseq
  %v4925 = vshrl.u32 %v4924, 7
  %v4926 = vsub.s32 %v4923, %v4925
  %v4927 = vrot.slane %v4744, %v4926
  %v4929 = vunpack.c.l.s4 1983009808
  %v4930 = vunpack.c.0.s8 %v4929
  %v4931 = vlaneseq
  %v4932 = vshrl.u32 %v4931, 7
  %v4933 = vsub.s32 %v4930, %v4932
  %v4934 = vrot.slane %v4920, %v4933
  %v4935 = vcombine.high %v4927, %v4927
  %v4936 = vcombine.high %v4934, %v4934
  %v4937 = vcombine.high %v4745, %v4745
  %v4939 = vunpack.c.l.s4 1983009808
  %v4940 = vunpack.c.0.s8 %v4939
  %v4941 = vlaneseq
  %v4942 = vshrl.u32 %v4941, 7
  %v4943 = vsub.s32 %v4940, %v4942
  %v4944 = vrot.slane %v4745, %v4943
  %v4946 = vunpack.c.l.s4 1983009808
  %v4947 = vunpack.c.0.s8 %v4946
  %v4948 = vlaneseq
  %v4949 = vshrl.u32 %v4948, 7
  %v4950 = vsub.s32 %v4947, %v4949
  %v4951 = vrot.slane %v4937, %v4950
  %v4952 = vcombine.high %v4944, %v4944
  %v4953 = vcombine.high %v4951, %v4951
  %v4954 = vcombine.high %v4746, %v4746
  %v4956 = vunpack.c.l.s4 1983009808
  %v4957 = vunpack.c.0.s8 %v4956
  %v4958 = vlaneseq
  %v4959 = vshrl.u32 %v4958, 7
  %v4960 = vsub.s32 %v4957, %v4959
  %v4961 = vrot.slane %v4746, %v4960
  %v4963 = vunpack.c.l.s4 1983009808
  %v4964 = vunpack.c.0.s8 %v4963
  %v4965 = vlaneseq
  %v4966 = vshrl.u32 %v4965, 7
  %v4967 = vsub.s32 %v4964, %v4966
  %v4968 = vrot.slane %v4954, %v4967
  %v4969 = vcombine.high %v4961, %v4961
  %v4970 = vcombine.high %v4968, %v4968
  %v4971 = vcombine.high %v4747, %v4747
  %v4973 = vunpack.c.l.s4 1983009808
  %v4974 = vunpack.c.0.s8 %v4973
  %v4975 = vlaneseq
  %v4976 = vshrl.u32 %v4975, 7
  %v4977 = vsub.s32 %v4974, %v4976
  %v4978 = vrot.slane %v4747, %v4977
  %v4980 = vunpack.c.l.s4 1983009808
  %v4981 = vunpack.c.0.s8 %v4980
  %v4982 = vlaneseq
  %v4983 = vshrl.u32 %v4982, 7
  %v4984 = vsub.s32 %v4981, %v4983
  %v4985 = vrot.slane %v4971, %v4984
  %v4986 = vcombine.high %v4978, %v4978
  %v4987 = vcombine.high %v4985, %v4985
  %v4988 = vcombine.high %v4748, %v4748
  %v4990 = vunpack.c.l.s4 1983009808
  %v4991 = vunpack.c.0.s8 %v4990
  %v4992 = vlaneseq
  %v4993 = vshrl.u32 %v4992, 7
  %v4994 = vsub.s32 %v4991, %v4993
  %v4995 = vrot.slane %v4748, %v4994
  %v4997 = vunpack.c.l.s4 1983009808
  %v4998 = vunpack.c.0.s8 %v4997
  %v4999 = vlaneseq
  %v5000 = vshrl.u32 %v4999, 7
  %v5001 = vsub.s32 %v4998, %v5000
  %v5002 = vrot.slane %v4988, %v5001
  %v5003 = vcombine.high %v4995, %v4995
  %v5004 = vcombine.high %v5002, %v5002
  %v5005 = vcombine.high %v4749, %v4749
  %v5007 = vunpack.c.l.s4 1983009808
  %v5008 = vunpack.c.0.s8 %v5007
  %v5009 = vlaneseq
  %v5010 = vshrl.u32 %v5009, 7
  %v5011 = vsub.s32 %v5008, %v5010
  %v5012 = vrot.slane %v4749, %v5011
  %v5014 = vunpack.c.l.s4 1983009808
  %v5015 = vunpack.c.0.s8 %v5014
  %v5016 = vlaneseq
  %v5017 = vshrl.u32 %v5016, 7
  %v5018 = vsub.s32 %v5015, %v5017
  %v5019 = vrot.slane %v5005, %v5018
  %v5020 = vcombine.high %v5012, %v5012
  %v5021 = vcombine.high %v5019, %v5019
  %v5022 = vcombine.high %v4750, %v4750
  %v5024 = vunpack.c.l.s4 1983009808
  %v5025 = vunpack.c.0.s8 %v5024
  %v5026 = vlaneseq
  %v5027 = vshrl.u32 %v5026, 7
  %v5028 = vsub.s32 %v5025, %v5027
  %v5029 = vrot.slane %v4750, %v5028
  %v5031 = vunpack.c.l.s4 1983009808
  %v5032 = vunpack.c.0.s8 %v5031
  %v5033 = vlaneseq
  %v5034 = vshrl.u32 %v5033, 7
  %v5035 = vsub.s32 %v5032, %v5034
  %v5036 = vrot.slane %v5022, %v5035
  %v5037 = vcombine.high %v5029, %v5029
  %v5038 = vcombine.high %v5036, %v5036
  %v5103 = vsel %vm3934, %v4774, -inf
  %v5104 = vrot.slane %v5103, 4
  %v5105 = vmax.f32 %v5103, %v5104
  %v5106 = vrot.slane %v5105, 2
  %v5107 = vmax.f32 %v5105, %v5106
  %v5108 = vrot.slane %v5107, 1
  %v5109 = vmax.f32 %v5107, %v5108
  %v5110 = vsel %vm3934, %v4782, -inf
  %v5111 = vrot.slane %v5110, 4
  %v5112 = vmax.f32 %v5110, %v5111
  %v5113 = vrot.slane %v5112, 2
  %v5114 = vmax.f32 %v5112, %v5113
  %v5115 = vrot.slane %v5114, 1
  %v5116 = vmax.f32 %v5114, %v5115
  %v5117 = vsel %vm3934, %v4781, -inf
  %v5118 = vrot.slane %v5117, 4
  %v5119 = vmax.f32 %v5117, %v5118
  %v5120 = vrot.slane %v5119, 2
  %v5121 = vmax.f32 %v5119, %v5120
  %v5122 = vrot.slane %v5121, 1
  %v5123 = vmax.f32 %v5121, %v5122
  %v5124 = vsel %vm3934, %v4783, -inf
  %v5125 = vrot.slane %v5124, 4
  %v5126 = vmax.f32 %v5124, %v5125
  %v5127 = vrot.slane %v5126, 2
  %v5128 = vmax.f32 %v5126, %v5127
  %v5129 = vrot.slane %v5128, 1
  %v5130 = vmax.f32 %v5128, %v5129
  %v5131 = vsel %vm3934, %v4791, -inf
  %v5132 = vrot.slane %v5131, 4
  %v5133 = vmax.f32 %v5131, %v5132
  %v5134 = vrot.slane %v5133, 2
  %v5135 = vmax.f32 %v5133, %v5134
  %v5136 = vrot.slane %v5135, 1
  %v5137 = vmax.f32 %v5135, %v5136
  %v5138 = vsel %vm3934, %v4799, -inf
  %v5139 = vrot.slane %v5138, 4
  %v5140 = vmax.f32 %v5138, %v5139
  %v5141 = vrot.slane %v5140, 2
  %v5142 = vmax.f32 %v5140, %v5141
  %v5143 = vrot.slane %v5142, 1
  %v5144 = vmax.f32 %v5142, %v5143
  %v5145 = vsel %vm3934, %v4798, -inf
  %v5146 = vrot.slane %v5145, 4
  %v5147 = vmax.f32 %v5145, %v5146
  %v5148 = vrot.slane %v5147, 2
  %v5149 = vmax.f32 %v5147, %v5148
  %v5150 = vrot.slane %v5149, 1
  %v5151 = vmax.f32 %v5149, %v5150
  %v5152 = vsel %vm3934, %v4800, -inf
  %v5153 = vrot.slane %v5152, 4
  %v5154 = vmax.f32 %v5152, %v5153
  %v5155 = vrot.slane %v5154, 2
  %v5156 = vmax.f32 %v5154, %v5155
  %v5157 = vrot.slane %v5156, 1
  %v5158 = vmax.f32 %v5156, %v5157
  %v5159 = vsel %vm3934, %v4808, -inf
  %v5160 = vrot.slane %v5159, 4
  %v5161 = vmax.f32 %v5159, %v5160
  %v5162 = vrot.slane %v5161, 2
  %v5163 = vmax.f32 %v5161, %v5162
  %v5164 = vrot.slane %v5163, 1
  %v5165 = vmax.f32 %v5163, %v5164
  %v5166 = vsel %vm3934, %v4816, -inf
  %v5167 = vrot.slane %v5166, 4
  %v5168 = vmax.f32 %v5166, %v5167
  %v5169 = vrot.slane %v5168, 2
  %v5170 = vmax.f32 %v5168, %v5169
  %v5171 = vrot.slane %v5170, 1
  %v5172 = vmax.f32 %v5170, %v5171
  %v5173 = vsel %vm3934, %v4815, -inf
  %v5174 = vrot.slane %v5173, 4
  %v5175 = vmax.f32 %v5173, %v5174
  %v5176 = vrot.slane %v5175, 2
  %v5177 = vmax.f32 %v5175, %v5176
  %v5178 = vrot.slane %v5177, 1
  %v5179 = vmax.f32 %v5177, %v5178
  %v5180 = vsel %vm3934, %v4817, -inf
  %v5181 = vrot.slane %v5180, 4
  %v5182 = vmax.f32 %v5180, %v5181
  %v5183 = vrot.slane %v5182, 2
  %v5184 = vmax.f32 %v5182, %v5183
  %v5185 = vrot.slane %v5184, 1
  %v5186 = vmax.f32 %v5184, %v5185
  %v5187 = vsel %vm3934, %v4825, -inf
  %v5188 = vrot.slane %v5187, 4
  %v5189 = vmax.f32 %v5187, %v5188
  %v5190 = vrot.slane %v5189, 2
  %v5191 = vmax.f32 %v5189, %v5190
  %v5192 = vrot.slane %v5191, 1
  %v5193 = vmax.f32 %v5191, %v5192
  %v5194 = vsel %vm3934, %v4833, -inf
  %v5195 = vrot.slane %v5194, 4
  %v5196 = vmax.f32 %v5194, %v5195
  %v5197 = vrot.slane %v5196, 2
  %v5198 = vmax.f32 %v5196, %v5197
  %v5199 = vrot.slane %v5198, 1
  %v5200 = vmax.f32 %v5198, %v5199
  %v5201 = vsel %vm3934, %v4832, -inf
  %v5202 = vrot.slane %v5201, 4
  %v5203 = vmax.f32 %v5201, %v5202
  %v5204 = vrot.slane %v5203, 2
  %v5205 = vmax.f32 %v5203, %v5204
  %v5206 = vrot.slane %v5205, 1
  %v5207 = vmax.f32 %v5205, %v5206
  %v5208 = vsel %vm3934, %v4834, -inf
  %v5209 = vrot.slane %v5208, 4
  %v5210 = vmax.f32 %v5208, %v5209
  %v5211 = vrot.slane %v5210, 2
  %v5212 = vmax.f32 %v5210, %v5211
  %v5213 = vrot.slane %v5212, 1
  %v5214 = vmax.f32 %v5212, %v5213
  %v5215 = vsel %vm3934, %v4842, -inf
  %v5216 = vrot.slane %v5215, 4
  %v5217 = vmax.f32 %v5215, %v5216
  %v5218 = vrot.slane %v5217, 2
  %v5219 = vmax.f32 %v5217, %v5218
  %v5220 = vrot.slane %v5219, 1
  %v5221 = vmax.f32 %v5219, %v5220
  %v5222 = vsel %vm3934, %v4850, -inf
  %v5223 = vrot.slane %v5222, 4
  %v5224 = vmax.f32 %v5222, %v5223
  %v5225 = vrot.slane %v5224, 2
  %v5226 = vmax.f32 %v5224, %v5225
  %v5227 = vrot.slane %v5226, 1
  %v5228 = vmax.f32 %v5226, %v5227
  %v5229 = vsel %vm3934, %v4849, -inf
  %v5230 = vrot.slane %v5229, 4
  %v5231 = vmax.f32 %v5229, %v5230
  %v5232 = vrot.slane %v5231, 2
  %v5233 = vmax.f32 %v5231, %v5232
  %v5234 = vrot.slane %v5233, 1
  %v5235 = vmax.f32 %v5233, %v5234
  %v5236 = vsel %vm3934, %v4851, -inf
  %v5237 = vrot.slane %v5236, 4
  %v5238 = vmax.f32 %v5236, %v5237
  %v5239 = vrot.slane %v5238, 2
  %v5240 = vmax.f32 %v5238, %v5239
  %v5241 = vrot.slane %v5240, 1
  %v5242 = vmax.f32 %v5240, %v5241
  %v5243 = vsel %vm3934, %v4859, -inf
  %v5244 = vrot.slane %v5243, 4
  %v5245 = vmax.f32 %v5243, %v5244
  %v5246 = vrot.slane %v5245, 2
  %v5247 = vmax.f32 %v5245, %v5246
  %v5248 = vrot.slane %v5247, 1
  %v5249 = vmax.f32 %v5247, %v5248
  %v5250 = vsel %vm3934, %v4867, -inf
  %v5251 = vrot.slane %v5250, 4
  %v5252 = vmax.f32 %v5250, %v5251
  %v5253 = vrot.slane %v5252, 2
  %v5254 = vmax.f32 %v5252, %v5253
  %v5255 = vrot.slane %v5254, 1
  %v5256 = vmax.f32 %v5254, %v5255
  %v5257 = vsel %vm3934, %v4866, -inf
  %v5258 = vrot.slane %v5257, 4
  %v5259 = vmax.f32 %v5257, %v5258
  %v5260 = vrot.slane %v5259, 2
  %v5261 = vmax.f32 %v5259, %v5260
  %v5262 = vrot.slane %v5261, 1
  %v5263 = vmax.f32 %v5261, %v5262
  %v5264 = vsel %vm3934, %v4868, -inf
  %v5265 = vrot.slane %v5264, 4
  %v5266 = vmax.f32 %v5264, %v5265
  %v5267 = vrot.slane %v5266, 2
  %v5268 = vmax.f32 %v5266, %v5267
  %v5269 = vrot.slane %v5268, 1
  %v5270 = vmax.f32 %v5268, %v5269
  %v5271 = vsel %vm3934, %v4876, -inf
  %v5272 = vrot.slane %v5271, 4
  %v5273 = vmax.f32 %v5271, %v5272
  %v5274 = vrot.slane %v5273, 2
  %v5275 = vmax.f32 %v5273, %v5274
  %v5276 = vrot.slane %v5275, 1
  %v5277 = vmax.f32 %v5275, %v5276
  %v5278 = vsel %vm3934, %v4884, -inf
  %v5279 = vrot.slane %v5278, 4
  %v5280 = vmax.f32 %v5278, %v5279
  %v5281 = vrot.slane %v5280, 2
  %v5282 = vmax.f32 %v5280, %v5281
  %v5283 = vrot.slane %v5282, 1
  %v5284 = vmax.f32 %v5282, %v5283
  %v5285 = vsel %vm3934, %v4883, -inf
  %v5286 = vrot.slane %v5285, 4
  %v5287 = vmax.f32 %v5285, %v5286
  %v5288 = vrot.slane %v5287, 2
  %v5289 = vmax.f32 %v5287, %v5288
  %v5290 = vrot.slane %v5289, 1
  %v5291 = vmax.f32 %v5289, %v5290
  %v5292 = vsel %vm3934, %v4885, -inf
  %v5293 = vrot.slane %v5292, 4
  %v5294 = vmax.f32 %v5292, %v5293
  %v5295 = vrot.slane %v5294, 2
  %v5296 = vmax.f32 %v5294, %v5295
  %v5297 = vrot.slane %v5296, 1
  %v5298 = vmax.f32 %v5296, %v5297
  %v5299 = vsel %vm3934, %v4893, -inf
  %v5300 = vrot.slane %v5299, 4
  %v5301 = vmax.f32 %v5299, %v5300
  %v5302 = vrot.slane %v5301, 2
  %v5303 = vmax.f32 %v5301, %v5302
  %v5304 = vrot.slane %v5303, 1
  %v5305 = vmax.f32 %v5303, %v5304
  %v5306 = vsel %vm3934, %v4901, -inf
  %v5307 = vrot.slane %v5306, 4
  %v5308 = vmax.f32 %v5306, %v5307
  %v5309 = vrot.slane %v5308, 2
  %v5310 = vmax.f32 %v5308, %v5309
  %v5311 = vrot.slane %v5310, 1
  %v5312 = vmax.f32 %v5310, %v5311
  %v5313 = vsel %vm3934, %v4900, -inf
  %v5314 = vrot.slane %v5313, 4
  %v5315 = vmax.f32 %v5313, %v5314
  %v5316 = vrot.slane %v5315, 2
  %v5317 = vmax.f32 %v5315, %v5316
  %v5318 = vrot.slane %v5317, 1
  %v5319 = vmax.f32 %v5317, %v5318
  %v5320 = vsel %vm3934, %v4902, -inf
  %v5321 = vrot.slane %v5320, 4
  %v5322 = vmax.f32 %v5320, %v5321
  %v5323 = vrot.slane %v5322, 2
  %v5324 = vmax.f32 %v5322, %v5323
  %v5325 = vrot.slane %v5324, 1
  %v5326 = vmax.f32 %v5324, %v5325
  %v5327 = vsel %vm3934, %v4910, -inf
  %v5328 = vrot.slane %v5327, 4
  %v5329 = vmax.f32 %v5327, %v5328
  %v5330 = vrot.slane %v5329, 2
  %v5331 = vmax.f32 %v5329, %v5330
  %v5332 = vrot.slane %v5331, 1
  %v5333 = vmax.f32 %v5331, %v5332
  %v5334 = vsel %vm3934, %v4918, -inf
  %v5335 = vrot.slane %v5334, 4
  %v5336 = vmax.f32 %v5334, %v5335
  %v5337 = vrot.slane %v5336, 2
  %v5338 = vmax.f32 %v5336, %v5337
  %v5339 = vrot.slane %v5338, 1
  %v5340 = vmax.f32 %v5338, %v5339
  %v5341 = vsel %vm3934, %v4917, -inf
  %v5342 = vrot.slane %v5341, 4
  %v5343 = vmax.f32 %v5341, %v5342
  %v5344 = vrot.slane %v5343, 2
  %v5345 = vmax.f32 %v5343, %v5344
  %v5346 = vrot.slane %v5345, 1
  %v5347 = vmax.f32 %v5345, %v5346
  %v5348 = vsel %vm3934, %v4919, -inf
  %v5349 = vrot.slane %v5348, 4
  %v5350 = vmax.f32 %v5348, %v5349
  %v5351 = vrot.slane %v5350, 2
  %v5352 = vmax.f32 %v5350, %v5351
  %v5353 = vrot.slane %v5352, 1
  %v5354 = vmax.f32 %v5352, %v5353
  %v5355 = vsel %vm3934, %v4927, -inf
  %v5356 = vrot.slane %v5355, 4
  %v5357 = vmax.f32 %v5355, %v5356
  %v5358 = vrot.slane %v5357, 2
  %v5359 = vmax.f32 %v5357, %v5358
  %v5360 = vrot.slane %v5359, 1
  %v5361 = vmax.f32 %v5359, %v5360
  %v5362 = vsel %vm3934, %v4935, -inf
  %v5363 = vrot.slane %v5362, 4
  %v5364 = vmax.f32 %v5362, %v5363
  %v5365 = vrot.slane %v5364, 2
  %v5366 = vmax.f32 %v5364, %v5365
  %v5367 = vrot.slane %v5366, 1
  %v5368 = vmax.f32 %v5366, %v5367
  %v5369 = vsel %vm3934, %v4934, -inf
  %v5370 = vrot.slane %v5369, 4
  %v5371 = vmax.f32 %v5369, %v5370
  %v5372 = vrot.slane %v5371, 2
  %v5373 = vmax.f32 %v5371, %v5372
  %v5374 = vrot.slane %v5373, 1
  %v5375 = vmax.f32 %v5373, %v5374
  %v5376 = vsel %vm3934, %v4936, -inf
  %v5377 = vrot.slane %v5376, 4
  %v5378 = vmax.f32 %v5376, %v5377
  %v5379 = vrot.slane %v5378, 2
  %v5380 = vmax.f32 %v5378, %v5379
  %v5381 = vrot.slane %v5380, 1
  %v5382 = vmax.f32 %v5380, %v5381
  %v5383 = vsel %vm3934, %v4944, -inf
  %v5384 = vrot.slane %v5383, 4
  %v5385 = vmax.f32 %v5383, %v5384
  %v5386 = vrot.slane %v5385, 2
  %v5387 = vmax.f32 %v5385, %v5386
  %v5388 = vrot.slane %v5387, 1
  %v5389 = vmax.f32 %v5387, %v5388
  %v5390 = vsel %vm3934, %v4952, -inf
  %v5391 = vrot.slane %v5390, 4
  %v5392 = vmax.f32 %v5390, %v5391
  %v5393 = vrot.slane %v5392, 2
  %v5394 = vmax.f32 %v5392, %v5393
  %v5395 = vrot.slane %v5394, 1
  %v5396 = vmax.f32 %v5394, %v5395
  %v5397 = vsel %vm3934, %v4951, -inf
  %v5398 = vrot.slane %v5397, 4
  %v5399 = vmax.f32 %v5397, %v5398
  %v5400 = vrot.slane %v5399, 2
  %v5401 = vmax.f32 %v5399, %v5400
  %v5402 = vrot.slane %v5401, 1
  %v5403 = vmax.f32 %v5401, %v5402
  %v5404 = vsel %vm3934, %v4953, -inf
  %v5405 = vrot.slane %v5404, 4
  %v5406 = vmax.f32 %v5404, %v5405
  %v5407 = vrot.slane %v5406, 2
  %v5408 = vmax.f32 %v5406, %v5407
  %v5409 = vrot.slane %v5408, 1
  %v5410 = vmax.f32 %v5408, %v5409
  %v5411 = vsel %vm3934, %v4961, -inf
  %v5412 = vrot.slane %v5411, 4
  %v5413 = vmax.f32 %v5411, %v5412
  %v5414 = vrot.slane %v5413, 2
  %v5415 = vmax.f32 %v5413, %v5414
  %v5416 = vrot.slane %v5415, 1
  %v5417 = vmax.f32 %v5415, %v5416
  %v5418 = vsel %vm3934, %v4969, -inf
  %v5419 = vrot.slane %v5418, 4
  %v5420 = vmax.f32 %v5418, %v5419
  %v5421 = vrot.slane %v5420, 2
  %v5422 = vmax.f32 %v5420, %v5421
  %v5423 = vrot.slane %v5422, 1
  %v5424 = vmax.f32 %v5422, %v5423
  %v5425 = vsel %vm3934, %v4968, -inf
  %v5426 = vrot.slane %v5425, 4
  %v5427 = vmax.f32 %v5425, %v5426
  %v5428 = vrot.slane %v5427, 2
  %v5429 = vmax.f32 %v5427, %v5428
  %v5430 = vrot.slane %v5429, 1
  %v5431 = vmax.f32 %v5429, %v5430
  %v5432 = vsel %vm3934, %v4970, -inf
  %v5433 = vrot.slane %v5432, 4
  %v5434 = vmax.f32 %v5432, %v5433
  %v5435 = vrot.slane %v5434, 2
  %v5436 = vmax.f32 %v5434, %v5435
  %v5437 = vrot.slane %v5436, 1
  %v5438 = vmax.f32 %v5436, %v5437
  %v5439 = vsel %vm3934, %v4978, -inf
  %v5440 = vrot.slane %v5439, 4
  %v5441 = vmax.f32 %v5439, %v5440
  %v5442 = vrot.slane %v5441, 2
  %v5443 = vmax.f32 %v5441, %v5442
  %v5444 = vrot.slane %v5443, 1
  %v5445 = vmax.f32 %v5443, %v5444
  %v5446 = vsel %vm3934, %v4986, -inf
  %v5447 = vrot.slane %v5446, 4
  %v5448 = vmax.f32 %v5446, %v5447
  %v5449 = vrot.slane %v5448, 2
  %v5450 = vmax.f32 %v5448, %v5449
  %v5451 = vrot.slane %v5450, 1
  %v5452 = vmax.f32 %v5450, %v5451
  %v5453 = vsel %vm3934, %v4985, -inf
  %v5454 = vrot.slane %v5453, 4
  %v5455 = vmax.f32 %v5453, %v5454
  %v5456 = vrot.slane %v5455, 2
  %v5457 = vmax.f32 %v5455, %v5456
  %v5458 = vrot.slane %v5457, 1
  %v5459 = vmax.f32 %v5457, %v5458
  %v5460 = vsel %vm3934, %v4987, -inf
  %v5461 = vrot.slane %v5460, 4
  %v5462 = vmax.f32 %v5460, %v5461
  %v5463 = vrot.slane %v5462, 2
  %v5464 = vmax.f32 %v5462, %v5463
  %v5465 = vrot.slane %v5464, 1
  %v5466 = vmax.f32 %v5464, %v5465
  %v5467 = vsel %vm3934, %v4995, -inf
  %v5468 = vrot.slane %v5467, 4
  %v5469 = vmax.f32 %v5467, %v5468
  %v5470 = vrot.slane %v5469, 2
  %v5471 = vmax.f32 %v5469, %v5470
  %v5472 = vrot.slane %v5471, 1
  %v5473 = vmax.f32 %v5471, %v5472
  %v5474 = vsel %vm3934, %v5003, -inf
  %v5475 = vrot.slane %v5474, 4
  %v5476 = vmax.f32 %v5474, %v5475
  %v5477 = vrot.slane %v5476, 2
  %v5478 = vmax.f32 %v5476, %v5477
  %v5479 = vrot.slane %v5478, 1
  %v5480 = vmax.f32 %v5478, %v5479
  %v5481 = vsel %vm3934, %v5002, -inf
  %v5482 = vrot.slane %v5481, 4
  %v5483 = vmax.f32 %v5481, %v5482
  %v5484 = vrot.slane %v5483, 2
  %v5485 = vmax.f32 %v5483, %v5484
  %v5486 = vrot.slane %v5485, 1
  %v5487 = vmax.f32 %v5485, %v5486
  %v5488 = vsel %vm3934, %v5004, -inf
  %v5489 = vrot.slane %v5488, 4
  %v5490 = vmax.f32 %v5488, %v5489
  %v5491 = vrot.slane %v5490, 2
  %v5492 = vmax.f32 %v5490, %v5491
  %v5493 = vrot.slane %v5492, 1
  %v5494 = vmax.f32 %v5492, %v5493
  %v5495 = vsel %vm3934, %v5012, -inf
  %v5496 = vrot.slane %v5495, 4
  %v5497 = vmax.f32 %v5495, %v5496
  %v5498 = vrot.slane %v5497, 2
  %v5499 = vmax.f32 %v5497, %v5498
  %v5500 = vrot.slane %v5499, 1
  %v5501 = vmax.f32 %v5499, %v5500
  %v5502 = vsel %vm3934, %v5020, -inf
  %v5503 = vrot.slane %v5502, 4
  %v5504 = vmax.f32 %v5502, %v5503
  %v5505 = vrot.slane %v5504, 2
  %v5506 = vmax.f32 %v5504, %v5505
  %v5507 = vrot.slane %v5506, 1
  %v5508 = vmax.f32 %v5506, %v5507
  %v5509 = vsel %vm3934, %v5019, -inf
  %v5510 = vrot.slane %v5509, 4
  %v5511 = vmax.f32 %v5509, %v5510
  %v5512 = vrot.slane %v5511, 2
  %v5513 = vmax.f32 %v5511, %v5512
  %v5514 = vrot.slane %v5513, 1
  %v5515 = vmax.f32 %v5513, %v5514
  %v5516 = vsel %vm3934, %v5021, -inf
  %v5517 = vrot.slane %v5516, 4
  %v5518 = vmax.f32 %v5516, %v5517
  %v5519 = vrot.slane %v5518, 2
  %v5520 = vmax.f32 %v5518, %v5519
  %v5521 = vrot.slane %v5520, 1
  %v5522 = vmax.f32 %v5520, %v5521
  %v5523 = vsel %vm3934, %v5029, -inf
  %v5524 = vrot.slane %v5523, 4
  %v5525 = vmax.f32 %v5523, %v5524
  %v5526 = vrot.slane %v5525, 2
  %v5527 = vmax.f32 %v5525, %v5526
  %v5528 = vrot.slane %v5527, 1
  %v5529 = vmax.f32 %v5527, %v5528
  %v5530 = vsel %vm3934, %v5037, -inf
  %v5531 = vrot.slane %v5530, 4
  %v5532 = vmax.f32 %v5530, %v5531
  %v5533 = vrot.slane %v5532, 2
  %v5534 = vmax.f32 %v5532, %v5533
  %v5535 = vrot.slane %v5534, 1
  %v5536 = vmax.f32 %v5534, %v5535
  %v5537 = vsel %vm3934, %v5036, -inf
  %v5538 = vrot.slane %v5537, 4
  %v5539 = vmax.f32 %v5537, %v5538
  %v5540 = vrot.slane %v5539, 2
  %v5541 = vmax.f32 %v5539, %v5540
  %v5542 = vrot.slane %v5541, 1
  %v5543 = vmax.f32 %v5541, %v5542
  %v5544 = vsel %vm3934, %v5038, -inf
  %v5545 = vrot.slane %v5544, 4
  %v5546 = vmax.f32 %v5544, %v5545
  %v5547 = vrot.slane %v5546, 2
  %v5548 = vmax.f32 %v5546, %v5547
  %v5549 = vrot.slane %v5548, 1
  %v5550 = vmax.f32 %v5548, %v5549
  %v5551 = vsel %vm1655, %v5109, -inf
  %v5552 = vsel %vm1655, %v5165, -inf
  %v5553 = vmax.f32 %v5551, %v5552
  %v5554 = vsel %vm1655, %v5116, -inf
  %v5555 = vsel %vm1655, %v5172, -inf
  %v5556 = vmax.f32 %v5554, %v5555
  %v5557 = vsel %vm1655, %v5123, -inf
  %v5558 = vsel %vm1655, %v5179, -inf
  %v5559 = vmax.f32 %v5557, %v5558
  %v5560 = vsel %vm1655, %v5130, -inf
  %v5561 = vsel %vm1655, %v5186, -inf
  %v5562 = vmax.f32 %v5560, %v5561
  %v5563 = vsel %vm1655, %v5137, -inf
  %v5564 = vsel %vm1655, %v5193, -inf
  %v5565 = vmax.f32 %v5563, %v5564
  %v5566 = vsel %vm1655, %v5144, -inf
  %v5567 = vsel %vm1655, %v5200, -inf
  %v5568 = vmax.f32 %v5566, %v5567
  %v5569 = vsel %vm1655, %v5151, -inf
  %v5570 = vsel %vm1655, %v5207, -inf
  %v5571 = vmax.f32 %v5569, %v5570
  %v5572 = vsel %vm1655, %v5158, -inf
  %v5573 = vsel %vm1655, %v5214, -inf
  %v5574 = vmax.f32 %v5572, %v5573
  %v5575 = vsel %vm1655, %v5221, -inf
  %v5576 = vsel %vm1655, %v5277, -inf
  %v5577 = vmax.f32 %v5575, %v5576
  %v5578 = vsel %vm1655, %v5228, -inf
  %v5579 = vsel %vm1655, %v5284, -inf
  %v5580 = vmax.f32 %v5578, %v5579
  %v5581 = vsel %vm1655, %v5235, -inf
  %v5582 = vsel %vm1655, %v5291, -inf
  %v5583 = vmax.f32 %v5581, %v5582
  %v5584 = vsel %vm1655, %v5242, -inf
  %v5585 = vsel %vm1655, %v5298, -inf
  %v5586 = vmax.f32 %v5584, %v5585
  %v5587 = vsel %vm1655, %v5249, -inf
  %v5588 = vsel %vm1655, %v5305, -inf
  %v5589 = vmax.f32 %v5587, %v5588
  %v5590 = vsel %vm1655, %v5256, -inf
  %v5591 = vsel %vm1655, %v5312, -inf
  %v5592 = vmax.f32 %v5590, %v5591
  %v5593 = vsel %vm1655, %v5263, -inf
  %v5594 = vsel %vm1655, %v5319, -inf
  %v5595 = vmax.f32 %v5593, %v5594
  %v5596 = vsel %vm1655, %v5270, -inf
  %v5597 = vsel %vm1655, %v5326, -inf
  %v5598 = vmax.f32 %v5596, %v5597
  %v5599 = vsel %vm1655, %v5333, -inf
  %v5600 = vsel %vm1655, %v5389, -inf
  %v5601 = vmax.f32 %v5599, %v5600
  %v5602 = vsel %vm1655, %v5340, -inf
  %v5603 = vsel %vm1655, %v5396, -inf
  %v5604 = vmax.f32 %v5602, %v5603
  %v5605 = vsel %vm1655, %v5347, -inf
  %v5606 = vsel %vm1655, %v5403, -inf
  %v5607 = vmax.f32 %v5605, %v5606
  %v5608 = vsel %vm1655, %v5354, -inf
  %v5609 = vsel %vm1655, %v5410, -inf
  %v5610 = vmax.f32 %v5608, %v5609
  %v5611 = vsel %vm1655, %v5361, -inf
  %v5612 = vsel %vm1655, %v5417, -inf
  %v5613 = vmax.f32 %v5611, %v5612
  %v5614 = vsel %vm1655, %v5368, -inf
  %v5615 = vsel %vm1655, %v5424, -inf
  %v5616 = vmax.f32 %v5614, %v5615
  %v5617 = vsel %vm1655, %v5375, -inf
  %v5618 = vsel %vm1655, %v5431, -inf
  %v5619 = vmax.f32 %v5617, %v5618
  %v5620 = vsel %vm1655, %v5382, -inf
  %v5621 = vsel %vm1655, %v5438, -inf
  %v5622 = vmax.f32 %v5620, %v5621
  %v5623 = vsel %vm1655, %v5445, -inf
  %v5624 = vsel %vm1655, %v5501, -inf
  %v5625 = vmax.f32 %v5623, %v5624
  %v5626 = vsel %vm1655, %v5452, -inf
  %v5627 = vsel %vm1655, %v5508, -inf
  %v5628 = vmax.f32 %v5626, %v5627
  %v5629 = vsel %vm1655, %v5459, -inf
  %v5630 = vsel %vm1655, %v5515, -inf
  %v5631 = vmax.f32 %v5629, %v5630
  %v5632 = vsel %vm1655, %v5466, -inf
  %v5633 = vsel %vm1655, %v5522, -inf
  %v5634 = vmax.f32 %v5632, %v5633
  %v5635 = vsel %vm1655, %v5473, -inf
  %v5636 = vsel %vm1655, %v5529, -inf
  %v5637 = vmax.f32 %v5635, %v5636
  %v5638 = vsel %vm1655, %v5480, -inf
  %v5639 = vsel %vm1655, %v5536, -inf
  %v5640 = vmax.f32 %v5638, %v5639
  %v5641 = vsel %vm1655, %v5487, -inf
  %v5642 = vsel %vm1655, %v5543, -inf
  %v5643 = vmax.f32 %v5641, %v5642
  %v5644 = vsel %vm1655, %v5494, -inf
  %v5645 = vsel %vm1655, %v5550, -inf
  %v5646 = vmax.f32 %v5644, %v5645
  %v5647 = vpack.c.bf16 %v5553, %v5553
  %v5648 = vpack.c.bf16 %v5556, %v5556
  %v5649 = vpack.c.bf16 %v5559, %v5559
  %v5650 = vpack.c.bf16 %v5562, %v5562
  %v5651 = vpack.c.bf16 %v5565, %v5565
  %v5652 = vpack.c.bf16 %v5568, %v5568
  %v5653 = vpack.c.bf16 %v5571, %v5571
  %v5654 = vpack.c.bf16 %v5574, %v5574
  %v5655 = vpack.c.bf16 %v5577, %v5577
  %v5656 = vpack.c.bf16 %v5580, %v5580
  %v5657 = vpack.c.bf16 %v5583, %v5583
  %v5658 = vpack.c.bf16 %v5586, %v5586
  %v5659 = vpack.c.bf16 %v5589, %v5589
  %v5660 = vpack.c.bf16 %v5592, %v5592
  %v5661 = vpack.c.bf16 %v5595, %v5595
  %v5662 = vpack.c.bf16 %v5598, %v5598
  %v5663 = vpack.c.bf16 %v5601, %v5601
  %v5664 = vpack.c.bf16 %v5604, %v5604
  %v5665 = vpack.c.bf16 %v5607, %v5607
  %v5666 = vpack.c.bf16 %v5610, %v5610
  %v5667 = vpack.c.bf16 %v5613, %v5613
  %v5668 = vpack.c.bf16 %v5616, %v5616
  %v5669 = vpack.c.bf16 %v5619, %v5619
  %v5670 = vpack.c.bf16 %v5622, %v5622
  %v5671 = vpack.c.bf16 %v5625, %v5625
  %v5672 = vpack.c.bf16 %v5628, %v5628
  %v5673 = vpack.c.bf16 %v5631, %v5631
  %v5674 = vpack.c.bf16 %v5634, %v5634
  %v5675 = vpack.c.bf16 %v5637, %v5637
  %v5676 = vpack.c.bf16 %v5640, %v5640
  %v5677 = vpack.c.bf16 %v5643, %v5643
  %v5678 = vpack.c.bf16 %v5646, %v5646
  %v5711 = vunpack.c.l.b16 %v5647
  %v5712 = vunpack.c.l.b16 %v5648
  %v5713 = vunpack.c.l.b16 %v5649
  %v5714 = vunpack.c.l.b16 %v5650
  %v5715 = vunpack.c.l.b16 %v5651
  %v5716 = vunpack.c.l.b16 %v5652
  %v5717 = vunpack.c.l.b16 %v5653
  %v5718 = vunpack.c.l.b16 %v5654
  %v5719 = vunpack.c.l.b16 %v5655
  %v5720 = vunpack.c.l.b16 %v5656
  %v5721 = vunpack.c.l.b16 %v5657
  %v5722 = vunpack.c.l.b16 %v5658
  %v5723 = vunpack.c.l.b16 %v5659
  %v5724 = vunpack.c.l.b16 %v5660
  %v5725 = vunpack.c.l.b16 %v5661
  %v5726 = vunpack.c.l.b16 %v5662
  %v5727 = vunpack.c.l.b16 %v5663
  %v5728 = vunpack.c.l.b16 %v5664
  %v5729 = vunpack.c.l.b16 %v5665
  %v5730 = vunpack.c.l.b16 %v5666
  %v5731 = vunpack.c.l.b16 %v5667
  %v5732 = vunpack.c.l.b16 %v5668
  %v5733 = vunpack.c.l.b16 %v5669
  %v5734 = vunpack.c.l.b16 %v5670
  %v5735 = vunpack.c.l.b16 %v5671
  %v5736 = vunpack.c.l.b16 %v5672
  %v5737 = vunpack.c.l.b16 %v5673
  %v5738 = vunpack.c.l.b16 %v5674
  %v5739 = vunpack.c.l.b16 %v5675
  %v5740 = vunpack.c.l.b16 %v5676
  %v5741 = vunpack.c.l.b16 %v5677
  %v5742 = vunpack.c.l.b16 %v5678
  %v5743 = vpack.c.b16 %v5711, %v5711
  %v5744 = vpack.c.b16 %v5712, %v5712
  %v5745 = vpack.c.b16 %v5713, %v5713
  %v5746 = vpack.c.b16 %v5714, %v5714
  %v5747 = vpack.c.b16 %v5715, %v5715
  %v5748 = vpack.c.b16 %v5716, %v5716
  %v5749 = vpack.c.b16 %v5717, %v5717
  %v5750 = vpack.c.b16 %v5718, %v5718
  %v5751 = vpack.c.b16 %v5719, %v5719
  %v5752 = vpack.c.b16 %v5720, %v5720
  %v5753 = vpack.c.b16 %v5721, %v5721
  %v5754 = vpack.c.b16 %v5722, %v5722
  %v5755 = vpack.c.b16 %v5723, %v5723
  %v5756 = vpack.c.b16 %v5724, %v5724
  %v5757 = vpack.c.b16 %v5725, %v5725
  %v5758 = vpack.c.b16 %v5726, %v5726
  %v5759 = vpack.c.b16 %v5727, %v5727
  %v5760 = vpack.c.b16 %v5728, %v5728
  %v5761 = vpack.c.b16 %v5729, %v5729
  %v5762 = vpack.c.b16 %v5730, %v5730
  %v5763 = vpack.c.b16 %v5731, %v5731
  %v5764 = vpack.c.b16 %v5732, %v5732
  %v5765 = vpack.c.b16 %v5733, %v5733
  %v5766 = vpack.c.b16 %v5734, %v5734
  %v5767 = vpack.c.b16 %v5735, %v5735
  %v5768 = vpack.c.b16 %v5736, %v5736
  %v5769 = vpack.c.b16 %v5737, %v5737
  %v5770 = vpack.c.b16 %v5738, %v5738
  %v5771 = vpack.c.b16 %v5739, %v5739
  %v5772 = vpack.c.b16 %v5740, %v5740
  %v5773 = vpack.c.b16 %v5741, %v5741
  %v5774 = vpack.c.b16 %v5742, %v5742
  %v5775 = vunpack.c.l.b16 %v5743
  %v5776 = vunpack.c.l.b16 %v5744
  %v5777 = vunpack.c.l.b16 %v5745
  %v5778 = vunpack.c.l.b16 %v5746
  %v5779 = vunpack.c.l.b16 %v5747
  %v5780 = vunpack.c.l.b16 %v5748
  %v5781 = vunpack.c.l.b16 %v5749
  %v5782 = vunpack.c.l.b16 %v5750
  %v5783 = vunpack.c.l.b16 %v5751
  %v5784 = vunpack.c.l.b16 %v5752
  %v5785 = vunpack.c.l.b16 %v5753
  %v5786 = vunpack.c.l.b16 %v5754
  %v5787 = vunpack.c.l.b16 %v5755
  %v5788 = vunpack.c.l.b16 %v5756
  %v5789 = vunpack.c.l.b16 %v5757
  %v5790 = vunpack.c.l.b16 %v5758
  %v5791 = vunpack.c.l.b16 %v5759
  %v5792 = vunpack.c.l.b16 %v5760
  %v5793 = vunpack.c.l.b16 %v5761
  %v5794 = vunpack.c.l.b16 %v5762
  %v5795 = vunpack.c.l.b16 %v5763
  %v5796 = vunpack.c.l.b16 %v5764
  %v5797 = vunpack.c.l.b16 %v5765
  %v5798 = vunpack.c.l.b16 %v5766
  %v5799 = vunpack.c.l.b16 %v5767
  %v5800 = vunpack.c.l.b16 %v5768
  %v5801 = vunpack.c.l.b16 %v5769
  %v5802 = vunpack.c.l.b16 %v5770
  %v5803 = vunpack.c.l.b16 %v5771
  %v5804 = vunpack.c.l.b16 %v5772
  %v5805 = vunpack.c.l.b16 %v5773
  %v5806 = vunpack.c.l.b16 %v5774
  %v5807 = vsel %vm4639, %v5776, %v5775
  %v5808 = vsel %vm4641, %v5777, %v5807
  %v5809 = vsel %vm4643, %v5778, %v5808
  %v5810 = vsel %vm4645, %v5779, %v5809
  %v5811 = vsel %vm4647, %v5780, %v5810
  %v5812 = vsel %vm4649, %v5781, %v5811
  %v5813 = vsel %vm4651, %v5782, %v5812
  %v5814 = vsel %vm4639, %v5784, %v5783
  %v5815 = vsel %vm4641, %v5785, %v5814
  %v5816 = vsel %vm4643, %v5786, %v5815
  %v5817 = vsel %vm4645, %v5787, %v5816
  %v5818 = vsel %vm4647, %v5788, %v5817
  %v5819 = vsel %vm4649, %v5789, %v5818
  %v5820 = vsel %vm4651, %v5790, %v5819
  %v5821 = vsel %vm4639, %v5792, %v5791
  %v5822 = vsel %vm4641, %v5793, %v5821
  %v5823 = vsel %vm4643, %v5794, %v5822
  %v5824 = vsel %vm4645, %v5795, %v5823
  %v5825 = vsel %vm4647, %v5796, %v5824
  %v5826 = vsel %vm4649, %v5797, %v5825
  %v5827 = vsel %vm4651, %v5798, %v5826
  %v5828 = vsel %vm4639, %v5800, %v5799
  %v5829 = vsel %vm4641, %v5801, %v5828
  %v5830 = vsel %vm4643, %v5802, %v5829
  %v5831 = vsel %vm4645, %v5803, %v5830
  %v5832 = vsel %vm4647, %v5804, %v5831
  %v5833 = vsel %vm4649, %v5805, %v5832
  %v5834 = vsel %vm4651, %v5806, %v5833
  %v5835 = vpack.c.b16 %v5813, %v5813
  %v5836 = vpack.c.b16 %v5820, %v5820
  %v5837 = vpack.c.b16 %v5827, %v5827
  %v5838 = vpack.c.b16 %v5834, %v5834
  %s5843 = scalar_lea.vmem %s4, 16
  %5844 = vst.msk [vmem:[%s5843] sm:$0xf] %vm4682, %v5835
  %5845 = vst.msk [vmem:[%s5843 + $0x4] sm:$0xf] %vm4682, %v5836
  %5846 = vst.msk [vmem:[%s5843 + $0x8] sm:$0xf] %vm4682, %v5837
  %5847 = vst.msk [vmem:[%s5843 + $0xc] sm:$0xf] %vm4682, %v5838
  // Predicated region
  $region18: #{_lambda_.3} parent=0 // pred_check
    _
  $region19: #{_lambda_.3} parent=0 // pred_check_branch
    %5849 = sbr.rel (0) target = $region21
  $region20: #{_lambda_.3} parent=0 // pred_region
    _
  $region21: #{_lambda_.3} parent=0 // pred_fallthru
    _
  // Predicated region
  $region22: #{_lambda_.3} parent=0 // pred_check
    _
  $region23: #{_lambda_.3} parent=0 // pred_check_branch
    %5851 = sbr.rel (0) target = $region25
  $region24: #{_lambda_.3} parent=0 // pred_region
    _
  $region25: #{_lambda_.3} parent=0 // pred_fallthru
    _

</llo_original>
